<compile_context>
chip_gen: v7x
topology: tpu7x:2x2x1
jax: 0.10.0
libtpu: 0.0.40
codegen_flags: <defaults>
</compile_context>

<pallas_src>
import functools

import jax
import jax.numpy as jnp
from jax.experimental import pallas as pl
from jax.experimental.pallas import tpu as pltpu


def _round_up(x, m):
    return (x + m - 1) // m * m


# ------------------------------ Pallas kernels ------------------------------

def _block_kernel(a_ref, w0_ref, b0_ref, w1_ref, b1_ref, w2_ref, b2_ref, o_ref):
    """One fused NIN block:
       im2col-matmul conv (+folded BN bias) -> ReLU -> 1x1 conv (+BN) -> ReLU
       -> 1x1 conv (+BN) -> ReLU (next layer's input ReLU, hoisted before the
       max-pool with which it commutes).  bf16 operands, f32 accumulation."""
    h = jnp.dot(a_ref[...], w0_ref[...], preferred_element_type=jnp.float32)
    h = h + b0_ref[...]
    h = jnp.maximum(h, 0.0).astype(jnp.bfloat16)
    h = jnp.dot(h, w1_ref[...], preferred_element_type=jnp.float32) + b1_ref[...]
    h = jnp.maximum(h, 0.0).astype(jnp.bfloat16)
    h = jnp.dot(h, w2_ref[...], preferred_element_type=jnp.float32) + b2_ref[...]
    o_ref[...] = jnp.maximum(h, 0.0).astype(o_ref.dtype)


def _final_block_kernel(a_ref, w0_ref, b0_ref, w1_ref, b1_ref, w2_ref, b2_ref,
                        o_ref, *, n_images, spatial):
    """Last NIN block + last_relu + global 8x8 average pool in one kernel."""
    h = jnp.dot(a_ref[...], w0_ref[...], preferred_element_type=jnp.float32)
    h = h + b0_ref[...]
    h = jnp.maximum(h, 0.0).astype(jnp.bfloat16)
    h = jnp.dot(h, w1_ref[...], preferred_element_type=jnp.float32) + b1_ref[...]
    h = jnp.maximum(h, 0.0).astype(jnp.bfloat16)
    h = jnp.dot(h, w2_ref[...], preferred_element_type=jnp.float32) + b2_ref[...]
    h = jnp.maximum(h, 0.0)  # last_relu (applied before AvgPool2d, as in ref)
    for img in range(n_images):  # static unroll; tiny N
        seg = h[img * spatial:(img + 1) * spatial, :]
        o_ref[img:img + 1, :] = jnp.mean(seg, axis=0, keepdims=True)


# ----------------------------- host-side helpers -----------------------------

def _fold_bn(w, b, gamma, beta, mean, var, eps=1e-5):
    """Fold conv bias + eval-mode BatchNorm into the weight columns / a bias."""
    kh, kw, cin, cout = w.shape
    scale = gamma / jnp.sqrt(var + eps)
    wm = w.reshape(kh * kw * cin, cout) * scale[None, :]
    bias = beta + (b - mean) * scale
    return wm, bias


def _pad_weight(wm, kp, cp):
    k, c = wm.shape
    return jnp.pad(wm, ((0, kp - k), (0, cp - c))).astype(jnp.bfloat16)


def _pad_bias(bias, cp):
    c = bias.shape[0]
    return jnp.pad(bias, (0, cp - c)).reshape(1, cp).astype(jnp.float32)


def _im2col(x, k, pad):
    """x: NHWC bf16, stride 1 'same' conv -> A: (N*H*W, k*k*C)."""
    n, h, w, c = x.shape
    if k == 1:
        return x.reshape(n * h * w, c), h, w
    xp = jnp.pad(x, ((0, 0), (pad, pad), (pad, pad), (0, 0)))
    cols = [xp[:, kh:kh + h, kw:kw + w, :] for kh in range(k) for kw in range(k)]
    a = jnp.concatenate(cols, axis=-1)           # tap-major, channel-minor
    return a.reshape(n * h * w, k * k * c), h, w


def maxpool_3x3_s2_p1_nonneg(x):
    """MaxPool2d(kernel=3, stride=2, padding=1) for non-negative (post-ReLU)
    NHWC input.  Separable max over 3 row taps then 3 col taps; zero padding
    is exact because every real value is >= 0 (matches -inf padding + ReLU)."""
    n, h, w, c = x.shape
    ho = (h + 2 - 3) // 2 + 1
    wo = (w + 2 - 3) // 2 + 1
    xp = jnp.pad(x, ((0, 0), (1, 1), (1, 1), (0, 0)))
    r = jnp.maximum(jnp.maximum(xp[:, 0:2 * ho:2], xp[:, 1:2 * ho:2]),
                    xp[:, 2:2 * ho + 1:2])
    out = jnp.maximum(jnp.maximum(r[:, :, 0:2 * wo:2], r[:, :, 1:2 * wo:2]),
                      r[:, :, 2:2 * wo + 1:2])
    return out


# ------------------------------- block wrapper -------------------------------

def nin_block(x, block_params, k0, pad0, *, final=False, tm_max=1024):
    """x: (N, H, W, Cin) bf16, already pre-activated (or raw for first block).
    block_params: 3 tuples (w, b, gamma, beta, mean, var)."""
    n, h, w_, cin = x.shape
    a, ho, wo = _im2col(x, k0, pad0)
    m, k = a.shape

    folded = [_fold_bn(*p) for p in block_params]
    c_outs = [fw.shape[1] for fw, _ in folded]
    kp = _round_up(k, 128)
    cps = [_round_up(c, 128) for c in c_outs]

    w0 = _pad_weight(folded[0][0], kp, cps[0])
    w1 = _pad_weight(folded[1][0], cps[0], cps[1])
    w2 = _pad_weight(folded[2][0], cps[1], cps[2])
    b0 = _pad_bias(folded[0][1], cps[0])
    b1 = _pad_bias(folded[1][1], cps[1])
    b2 = _pad_bias(folded[2][1], cps[2])

    if final:
        mp = _round_up(m, 8)
        a = jnp.pad(a, ((0, mp - m), (0, kp - k))).astype(jnp.bfloat16)
        out = pl.pallas_call(
            functools.partial(_final_block_kernel, n_images=n, spatial=ho * wo),
            out_shape=jax.ShapeDtypeStruct((n, cps[2]), jnp.float32),
            grid=(1,),
            in_specs=[
                pl.BlockSpec((mp, kp), lambda i: (0, 0)),
                pl.BlockSpec((kp, cps[0]), lambda i: (0, 0)),
                pl.BlockSpec((1, cps[0]), lambda i: (0, 0)),
                pl.BlockSpec((cps[0], cps[1]), lambda i: (0, 0)),
                pl.BlockSpec((1, cps[1]), lambda i: (0, 0)),
                pl.BlockSpec((cps[1], cps[2]), lambda i: (0, 0)),
                pl.BlockSpec((1, cps[2]), lambda i: (0, 0)),
            ],
            out_specs=pl.BlockSpec((n, cps[2]), lambda i: (0, 0)),
            compiler_params=pltpu.CompilerParams(
                dimension_semantics=("arbitrary",)),
        )(a, w0, b0, w1, b1, w2, b2)
        return out[:, :c_outs[2]]                       # (N, 10)

    tm = tm_max if m >= tm_max else _round_up(m, 8)
    mp = _round_up(m, tm)
    a = jnp.pad(a, ((0, mp - m), (0, kp - k))).astype(jnp.bfloat16)
    out = pl.pallas_call(
        _block_kernel,
        out_shape=jax.ShapeDtypeStruct((mp, cps[2]), jnp.bfloat16),
        grid=(mp // tm,),
        in_specs=[
            pl.BlockSpec((tm, kp), lambda i: (i, 0)),
            pl.BlockSpec((kp, cps[0]), lambda i: (0, 0)),
            pl.BlockSpec((1, cps[0]), lambda i: (0, 0)),
            pl.BlockSpec((cps[0], cps[1]), lambda i: (0, 0)),
            pl.BlockSpec((1, cps[1]), lambda i: (0, 0)),
            pl.BlockSpec((cps[1], cps[2]), lambda i: (0, 0)),
            pl.BlockSpec((1, cps[2]), lambda i: (0, 0)),
        ],
        out_specs=pl.BlockSpec((tm, cps[2]), lambda i: (i, 0)),
        compiler_params=pltpu.CompilerParams(
            dimension_semantics=("parallel",)),
    )(a, w0, b0, w1, b1, w2, b2)
    return out[:m, :c_outs[2]].reshape(n, ho, wo, c_outs[2])


# -------------------------------- the network --------------------------------

def layer_dims(cfg):
    # (cin, cout, kernel) for the 9 QuanConv2d layers.
    return [
        (3, cfg[0], 5), (cfg[0], cfg[1], 1), (cfg[1], cfg[2], 1),
        (cfg[2], cfg[3], 5), (cfg[3], cfg[4], 1), (cfg[4], cfg[5], 1),
        (cfg[5], cfg[6], 3), (cfg[6], cfg[7], 1), (cfg[7], 10, 1),
    ]


def init_params(key, dims):
    params = []
    for cin, cout, k in dims:
        key, k1, k2, k3, k4, k5, k6 = jax.random.split(key, 7)
        fan_in = cin * k * k
        w = jax.random.normal(k1, (k, k, cin, cout), jnp.float32) / jnp.sqrt(fan_in)
        b = 0.01 * jax.random.normal(k2, (cout,), jnp.float32)
        gamma = 0.5 + jax.random.uniform(k3, (cout,), jnp.float32)
        beta = 0.1 * jax.random.normal(k4, (cout,), jnp.float32)
        mean = 0.1 * jax.random.normal(k5, (cout,), jnp.float32)
        var = 0.5 + jax.random.uniform(k6, (cout,), jnp.float32)
        params.append((w, b, gamma, beta, mean, var))
    return params


def net_forward(x_nchw, params):
    """Forward pass matching Net.forward (eval-mode BN, no fake-quant)."""
    x = jnp.transpose(x_nchw, (0, 2, 3, 1)).astype(jnp.bfloat16)  # NCHW -> NHWC
    x = nin_block(x, params[0:3], 5, 2)                 # block 1 (first_layer)
    x = maxpool_3x3_s2_p1_nonneg(x)
    x = nin_block(x, params[3:6], 5, 2)                 # block 2
    x = maxpool_3x3_s2_p1_nonneg(x)
    return nin_block(x, params[6:9], 3, 1, final=True)  # block 3 + relu + avgpool


if __name__ == "__main__":
    # Small configuration (cfg is a constructor argument of Net).
    cfg = [32, 16, 16, 32, 32, 32, 32, 32]
    dims = layer_dims(cfg)

    key = jax.random.PRNGKey(0)
    key, kx = jax.random.split(key)
    params = init_params(key, dims)

    # CIFAR-like input: the final AvgPool2d(8) requires a 32x32 spatial input.
    x = jax.random.normal(kx, (2, 3, 32, 32), jnp.float32)

    fwd = jax.jit(net_forward)
    out = jax.block_until_ready(fwd(x, params))
    assert out.shape == (2, 10), out.shape
    assert bool(jnp.all(jnp.isfinite(out)))
    print("KERNEL_OK")
</pallas_src>

<mosaic_0001>
module attributes {stable_mosaic.version = 11 : i64} {
  func.func @_block_kernel(%arg0: i32, %arg1: memref<1024x128xbf16, #tpu.memory_space<vmem>>, %arg2: memref<128x128xbf16, #tpu.memory_space<vmem>>, %arg3: memref<1x128xf32, #tpu.memory_space<vmem>>, %arg4: memref<128x128xbf16, #tpu.memory_space<vmem>>, %arg5: memref<1x128xf32, #tpu.memory_space<vmem>>, %arg6: memref<128x128xbf16, #tpu.memory_space<vmem>>, %arg7: memref<1x128xf32, #tpu.memory_space<vmem>>, %arg8: memref<1024x128xbf16, #tpu.memory_space<vmem>>) attributes {dimension_semantics = [#tpu.dimension_semantics<parallel>], iteration_bounds = array<i64: 2>, scalar_prefetch = 0 : i64, scratch_operands = 0 : i64, tpu.core_type = #tpu.core_type<tc>, window_params = [{transform_indices = @transform_0, window_bounds = array<i64: 1024, 128>}, {pipeline_mode = #tpu.pipeline_mode<synchronous>, transform_indices = @transform_1, window_bounds = array<i64: 128, 128>}, {pipeline_mode = #tpu.pipeline_mode<synchronous>, transform_indices = @transform_2, window_bounds = array<i64: 1, 128>}, {pipeline_mode = #tpu.pipeline_mode<synchronous>, transform_indices = @transform_3, window_bounds = array<i64: 128, 128>}, {pipeline_mode = #tpu.pipeline_mode<synchronous>, transform_indices = @transform_4, window_bounds = array<i64: 1, 128>}, {pipeline_mode = #tpu.pipeline_mode<synchronous>, transform_indices = @transform_5, window_bounds = array<i64: 128, 128>}, {pipeline_mode = #tpu.pipeline_mode<synchronous>, transform_indices = @transform_6, window_bounds = array<i64: 1, 128>}, {transform_indices = @transform_7, window_bounds = array<i64: 1024, 128>}]} {
    %c0 = arith.constant 0 : index
    %c0_0 = arith.constant 0 : index
    %0 = vector.load %arg1[%c0, %c0_0] : memref<1024x128xbf16, #tpu.memory_space<vmem>>, vector<1024x128xbf16>
    %c0_1 = arith.constant 0 : index
    %c0_2 = arith.constant 0 : index
    %1 = vector.load %arg2[%c0_1, %c0_2] : memref<128x128xbf16, #tpu.memory_space<vmem>>, vector<128x128xbf16>
    %cst = arith.constant dense<0.000000e+00> : vector<1024x128xf32>
    %2 = tpu.matmul %0, %1, %cst {dimension_numbers = #tpu.dot_dimension_numbers<[1], [0], [0], [1], [0, 0, 1, 1], [], []>} : vector<1024x128xbf16>, vector<128x128xbf16>, vector<1024x128xf32> -> vector<1024x128xf32>
    %c0_3 = arith.constant 0 : index
    %c0_4 = arith.constant 0 : index
    %3 = vector.load %arg3[%c0_3, %c0_4] : memref<1x128xf32, #tpu.memory_space<vmem>>, vector<1x128xf32>
    %4 = vector.broadcast %3 : vector<1x128xf32> to vector<1024x128xf32>
    %5 = arith.addf %2, %4 : vector<1024x128xf32>
    %cst_5 = arith.constant 0.000000e+00 : f32
    %6 = vector.broadcast %cst_5 : f32 to vector<1024x128xf32>
    %7 = arith.maximumf %5, %6 : vector<1024x128xf32>
    %8 = arith.truncf %7 : vector<1024x128xf32> to vector<1024x128xbf16>
    %c0_6 = arith.constant 0 : index
    %c0_7 = arith.constant 0 : index
    %9 = vector.load %arg4[%c0_6, %c0_7] : memref<128x128xbf16, #tpu.memory_space<vmem>>, vector<128x128xbf16>
    %cst_8 = arith.constant dense<0.000000e+00> : vector<1024x128xf32>
    %10 = tpu.matmul %8, %9, %cst_8 {dimension_numbers = #tpu.dot_dimension_numbers<[1], [0], [0], [1], [0, 0, 1, 1], [], []>} : vector<1024x128xbf16>, vector<128x128xbf16>, vector<1024x128xf32> -> vector<1024x128xf32>
    %c0_9 = arith.constant 0 : index
    %c0_10 = arith.constant 0 : index
    %11 = vector.load %arg5[%c0_9, %c0_10] : memref<1x128xf32, #tpu.memory_space<vmem>>, vector<1x128xf32>
    %12 = vector.broadcast %11 : vector<1x128xf32> to vector<1024x128xf32>
    %13 = arith.addf %10, %12 : vector<1024x128xf32>
    %cst_11 = arith.constant 0.000000e+00 : f32
    %14 = vector.broadcast %cst_11 : f32 to vector<1024x128xf32>
    %15 = arith.maximumf %13, %14 : vector<1024x128xf32>
    %16 = arith.truncf %15 : vector<1024x128xf32> to vector<1024x128xbf16>
    %c0_12 = arith.constant 0 : index
    %c0_13 = arith.constant 0 : index
    %17 = vector.load %arg6[%c0_12, %c0_13] : memref<128x128xbf16, #tpu.memory_space<vmem>>, vector<128x128xbf16>
    %cst_14 = arith.constant dense<0.000000e+00> : vector<1024x128xf32>
    %18 = tpu.matmul %16, %17, %cst_14 {dimension_numbers = #tpu.dot_dimension_numbers<[1], [0], [0], [1], [0, 0, 1, 1], [], []>} : vector<1024x128xbf16>, vector<128x128xbf16>, vector<1024x128xf32> -> vector<1024x128xf32>
    %c0_15 = arith.constant 0 : index
    %c0_16 = arith.constant 0 : index
    %19 = vector.load %arg7[%c0_15, %c0_16] : memref<1x128xf32, #tpu.memory_space<vmem>>, vector<1x128xf32>
    %20 = vector.broadcast %19 : vector<1x128xf32> to vector<1024x128xf32>
    %21 = arith.addf %18, %20 : vector<1024x128xf32>
    %cst_17 = arith.constant 0.000000e+00 : f32
    %22 = vector.broadcast %cst_17 : f32 to vector<1024x128xf32>
    %23 = arith.maximumf %21, %22 : vector<1024x128xf32>
    %24 = arith.truncf %23 : vector<1024x128xf32> to vector<1024x128xbf16>
    %c0_18 = arith.constant 0 : index
    %c0_19 = arith.constant 0 : index
    %25 = vector.load %arg8[%c0_18, %c0_19] : memref<1024x128xbf16, #tpu.memory_space<vmem>>, vector<1024x128xbf16>
    tpu.vector_store %arg8[%c0_18, %c0_19], %24 {strides = array<i32>} : memref<1024x128xbf16, #tpu.memory_space<vmem>>, vector<1024x128xbf16>,
    return
  }
  func.func @transform_0(%arg0: i32) -> (i32, i32) {
    %c0_i32 = arith.constant 0 : i32
    %c0_i32_0 = arith.constant 0 : i32
    return %arg0, %c0_i32 : i32, i32
  }
  func.func @transform_1(%arg0: i32) -> (i32, i32) {
    %c0_i32 = arith.constant 0 : i32
    %c0_i32_0 = arith.constant 0 : i32
    %c0_i32_1 = arith.constant 0 : i32
    return %c0_i32, %c0_i32_0 : i32, i32
  }
  func.func @transform_2(%arg0: i32) -> (i32, i32) {
    %c0_i32 = arith.constant 0 : i32
    %c0_i32_0 = arith.constant 0 : i32
    %c0_i32_1 = arith.constant 0 : i32
    return %c0_i32, %c0_i32_0 : i32, i32
  }
  func.func @transform_3(%arg0: i32) -> (i32, i32) {
    %c0_i32 = arith.constant 0 : i32
    %c0_i32_0 = arith.constant 0 : i32
    %c0_i32_1 = arith.constant 0 : i32
    return %c0_i32, %c0_i32_0 : i32, i32
  }
  func.func @transform_4(%arg0: i32) -> (i32, i32) {
    %c0_i32 = arith.constant 0 : i32
    %c0_i32_0 = arith.constant 0 : i32
    %c0_i32_1 = arith.constant 0 : i32
    return %c0_i32, %c0_i32_0 : i32, i32
  }
  func.func @transform_5(%arg0: i32) -> (i32, i32) {
    %c0_i32 = arith.constant 0 : i32
    %c0_i32_0 = arith.constant 0 : i32
    %c0_i32_1 = arith.constant 0 : i32
    return %c0_i32, %c0_i32_0 : i32, i32
  }
  func.func @transform_6(%arg0: i32) -> (i32, i32) {
    %c0_i32 = arith.constant 0 : i32
    %c0_i32_0 = arith.constant 0 : i32
    %c0_i32_1 = arith.constant 0 : i32
    return %c0_i32, %c0_i32_0 : i32, i32
  }
  func.func @transform_7(%arg0: i32) -> (i32, i32) {
    %c0_i32 = arith.constant 0 : i32
    %c0_i32_0 = arith.constant 0 : i32
    return %arg0, %c0_i32 : i32, i32
  }
}

module attributes {stable_mosaic.version = 11 : i64} {
  func.func @_block_kernel(%arg0: i32, %arg1: memref<512x512xbf16, #tpu.memory_space<vmem>>, %arg2: memref<512x128xbf16, #tpu.memory_space<vmem>>, %arg3: memref<1x128xf32, #tpu.memory_space<vmem>>, %arg4: memref<128x128xbf16, #tpu.memory_space<vmem>>, %arg5: memref<1x128xf32, #tpu.memory_space<vmem>>, %arg6: memref<128x128xbf16, #tpu.memory_space<vmem>>, %arg7: memref<1x128xf32, #tpu.memory_space<vmem>>, %arg8: memref<512x128xbf16, #tpu.memory_space<vmem>>) attributes {dimension_semantics = [#tpu.dimension_semantics<parallel>], iteration_bounds = array<i64: 1>, scalar_prefetch = 0 : i64, scratch_operands = 0 : i64, tpu.core_type = #tpu.core_type<tc>, window_params = [{transform_indices = @transform_0, window_bounds = array<i64: 512, 512>}, {pipeline_mode = #tpu.pipeline_mode<synchronous>, transform_indices = @transform_1, window_bounds = array<i64: 512, 128>}, {pipeline_mode = #tpu.pipeline_mode<synchronous>, transform_indices = @transform_2, window_bounds = array<i64: 1, 128>}, {pipeline_mode = #tpu.pipeline_mode<synchronous>, transform_indices = @transform_3, window_bounds = array<i64: 128, 128>}, {pipeline_mode = #tpu.pipeline_mode<synchronous>, transform_indices = @transform_4, window_bounds = array<i64: 1, 128>}, {pipeline_mode = #tpu.pipeline_mode<synchronous>, transform_indices = @transform_5, window_bounds = array<i64: 128, 128>}, {pipeline_mode = #tpu.pipeline_mode<synchronous>, transform_indices = @transform_6, window_bounds = array<i64: 1, 128>}, {transform_indices = @transform_7, window_bounds = array<i64: 512, 128>}]} {
    %c0 = arith.constant 0 : index
    %c0_0 = arith.constant 0 : index
    %0 = vector.load %arg1[%c0, %c0_0] : memref<512x512xbf16, #tpu.memory_space<vmem>>, vector<512x512xbf16>
    %c0_1 = arith.constant 0 : index
    %c0_2 = arith.constant 0 : index
    %1 = vector.load %arg2[%c0_1, %c0_2] : memref<512x128xbf16, #tpu.memory_space<vmem>>, vector<512x128xbf16>
    %cst = arith.constant dense<0.000000e+00> : vector<512x128xf32>
    %2 = tpu.matmul %0, %1, %cst {dimension_numbers = #tpu.dot_dimension_numbers<[1], [0], [0], [1], [0, 0, 1, 1], [], []>} : vector<512x512xbf16>, vector<512x128xbf16>, vector<512x128xf32> -> vector<512x128xf32>
    %c0_3 = arith.constant 0 : index
    %c0_4 = arith.constant 0 : index
    %3 = vector.load %arg3[%c0_3, %c0_4] : memref<1x128xf32, #tpu.memory_space<vmem>>, vector<1x128xf32>
    %4 = vector.broadcast %3 : vector<1x128xf32> to vector<512x128xf32>
    %5 = arith.addf %2, %4 : vector<512x128xf32>
    %cst_5 = arith.constant 0.000000e+00 : f32
    %6 = vector.broadcast %cst_5 : f32 to vector<512x128xf32>
    %7 = arith.maximumf %5, %6 : vector<512x128xf32>
    %8 = arith.truncf %7 : vector<512x128xf32> to vector<512x128xbf16>
    %c0_6 = arith.constant 0 : index
    %c0_7 = arith.constant 0 : index
    %9 = vector.load %arg4[%c0_6, %c0_7] : memref<128x128xbf16, #tpu.memory_space<vmem>>, vector<128x128xbf16>
    %cst_8 = arith.constant dense<0.000000e+00> : vector<512x128xf32>
    %10 = tpu.matmul %8, %9, %cst_8 {dimension_numbers = #tpu.dot_dimension_numbers<[1], [0], [0], [1], [0, 0, 1, 1], [], []>} : vector<512x128xbf16>, vector<128x128xbf16>, vector<512x128xf32> -> vector<512x128xf32>
    %c0_9 = arith.constant 0 : index
    %c0_10 = arith.constant 0 : index
    %11 = vector.load %arg5[%c0_9, %c0_10] : memref<1x128xf32, #tpu.memory_space<vmem>>, vector<1x128xf32>
    %12 = vector.broadcast %11 : vector<1x128xf32> to vector<512x128xf32>
    %13 = arith.addf %10, %12 : vector<512x128xf32>
    %cst_11 = arith.constant 0.000000e+00 : f32
    %14 = vector.broadcast %cst_11 : f32 to vector<512x128xf32>
    %15 = arith.maximumf %13, %14 : vector<512x128xf32>
    %16 = arith.truncf %15 : vector<512x128xf32> to vector<512x128xbf16>
    %c0_12 = arith.constant 0 : index
    %c0_13 = arith.constant 0 : index
    %17 = vector.load %arg6[%c0_12, %c0_13] : memref<128x128xbf16, #tpu.memory_space<vmem>>, vector<128x128xbf16>
    %cst_14 = arith.constant dense<0.000000e+00> : vector<512x128xf32>
    %18 = tpu.matmul %16, %17, %cst_14 {dimension_numbers = #tpu.dot_dimension_numbers<[1], [0], [0], [1], [0, 0, 1, 1], [], []>} : vector<512x128xbf16>, vector<128x128xbf16>, vector<512x128xf32> -> vector<512x128xf32>
    %c0_15 = arith.constant 0 : index
    %c0_16 = arith.constant 0 : index
    %19 = vector.load %arg7[%c0_15, %c0_16] : memref<1x128xf32, #tpu.memory_space<vmem>>, vector<1x128xf32>
    %20 = vector.broadcast %19 : vector<1x128xf32> to vector<512x128xf32>
    %21 = arith.addf %18, %20 : vector<512x128xf32>
    %cst_17 = arith.constant 0.000000e+00 : f32
    %22 = vector.broadcast %cst_17 : f32 to vector<512x128xf32>
    %23 = arith.maximumf %21, %22 : vector<512x128xf32>
    %24 = arith.truncf %23 : vector<512x128xf32> to vector<512x128xbf16>
    %c0_18 = arith.constant 0 : index
    %c0_19 = arith.constant 0 : index
    %25 = vector.load %arg8[%c0_18, %c0_19] : memref<512x128xbf16, #tpu.memory_space<vmem>>, vector<512x128xbf16>
    tpu.vector_store %arg8[%c0_18, %c0_19], %24 {strides = array<i32>} : memref<512x128xbf16, #tpu.memory_space<vmem>>, vector<512x128xbf16>,
    return
  }
  func.func @transform_0(%arg0: i32) -> (i32, i32) {
    %c0_i32 = arith.constant 0 : i32
    %c0_i32_0 = arith.constant 0 : i32
    return %arg0, %c0_i32 : i32, i32
  }
  func.func @transform_1(%arg0: i32) -> (i32, i32) {
    %c0_i32 = arith.constant 0 : i32
    %c0_i32_0 = arith.constant 0 : i32
    %c0_i32_1 = arith.constant 0 : i32
    return %c0_i32, %c0_i32_0 : i32, i32
  }
  func.func @transform_2(%arg0: i32) -> (i32, i32) {
    %c0_i32 = arith.constant 0 : i32
    %c0_i32_0 = arith.constant 0 : i32
    %c0_i32_1 = arith.constant 0 : i32
    return %c0_i32, %c0_i32_0 : i32, i32
  }
  func.func @transform_3(%arg0: i32) -> (i32, i32) {
    %c0_i32 = arith.constant 0 : i32
    %c0_i32_0 = arith.constant 0 : i32
    %c0_i32_1 = arith.constant 0 : i32
    return %c0_i32, %c0_i32_0 : i32, i32
  }
  func.func @transform_4(%arg0: i32) -> (i32, i32) {
    %c0_i32 = arith.constant 0 : i32
    %c0_i32_0 = arith.constant 0 : i32
    %c0_i32_1 = arith.constant 0 : i32
    return %c0_i32, %c0_i32_0 : i32, i32
  }
  func.func @transform_5(%arg0: i32) -> (i32, i32) {
    %c0_i32 = arith.constant 0 : i32
    %c0_i32_0 = arith.constant 0 : i32
    %c0_i32_1 = arith.constant 0 : i32
    return %c0_i32, %c0_i32_0 : i32, i32
  }
  func.func @transform_6(%arg0: i32) -> (i32, i32) {
    %c0_i32 = arith.constant 0 : i32
    %c0_i32_0 = arith.constant 0 : i32
    %c0_i32_1 = arith.constant 0 : i32
    return %c0_i32, %c0_i32_0 : i32, i32
  }
  func.func @transform_7(%arg0: i32) -> (i32, i32) {
    %c0_i32 = arith.constant 0 : i32
    %c0_i32_0 = arith.constant 0 : i32
    return %arg0, %c0_i32 : i32, i32
  }
}

module attributes {stable_mosaic.version = 11 : i64} {
  func.func @_final_block_kernel(%arg0: i32, %arg1: memref<128x384xbf16, #tpu.memory_space<vmem>>, %arg2: memref<384x128xbf16, #tpu.memory_space<vmem>>, %arg3: memref<1x128xf32, #tpu.memory_space<vmem>>, %arg4: memref<128x128xbf16, #tpu.memory_space<vmem>>, %arg5: memref<1x128xf32, #tpu.memory_space<vmem>>, %arg6: memref<128x128xbf16, #tpu.memory_space<vmem>>, %arg7: memref<1x128xf32, #tpu.memory_space<vmem>>, %arg8: memref<2x128xf32, #tpu.memory_space<vmem>>) attributes {dimension_semantics = [#tpu.dimension_semantics<arbitrary>], iteration_bounds = array<i64: 1>, scalar_prefetch = 0 : i64, scratch_operands = 0 : i64, tpu.core_type = #tpu.core_type<tc>, window_params = [{pipeline_mode = #tpu.pipeline_mode<synchronous>, transform_indices = @transform_0, window_bounds = array<i64: 128, 384>}, {pipeline_mode = #tpu.pipeline_mode<synchronous>, transform_indices = @transform_1, window_bounds = array<i64: 384, 128>}, {pipeline_mode = #tpu.pipeline_mode<synchronous>, transform_indices = @transform_2, window_bounds = array<i64: 1, 128>}, {pipeline_mode = #tpu.pipeline_mode<synchronous>, transform_indices = @transform_3, window_bounds = array<i64: 128, 128>}, {pipeline_mode = #tpu.pipeline_mode<synchronous>, transform_indices = @transform_4, window_bounds = array<i64: 1, 128>}, {pipeline_mode = #tpu.pipeline_mode<synchronous>, transform_indices = @transform_5, window_bounds = array<i64: 128, 128>}, {pipeline_mode = #tpu.pipeline_mode<synchronous>, transform_indices = @transform_6, window_bounds = array<i64: 1, 128>}, {pipeline_mode = #tpu.pipeline_mode<synchronous>, transform_indices = @transform_7, window_bounds = array<i64: 2, 128>}]} {
    %c0 = arith.constant 0 : index
    %c0_0 = arith.constant 0 : index
    %0 = vector.load %arg1[%c0, %c0_0] : memref<128x384xbf16, #tpu.memory_space<vmem>>, vector<128x384xbf16>
    %c0_1 = arith.constant 0 : index
    %c0_2 = arith.constant 0 : index
    %1 = vector.load %arg2[%c0_1, %c0_2] : memref<384x128xbf16, #tpu.memory_space<vmem>>, vector<384x128xbf16>
    %cst = arith.constant dense<0.000000e+00> : vector<128x128xf32>
    %2 = tpu.matmul %0, %1, %cst {dimension_numbers = #tpu.dot_dimension_numbers<[1], [0], [0], [1], [0, 0, 1, 1], [], []>} : vector<128x384xbf16>, vector<384x128xbf16>, vector<128x128xf32> -> vector<128x128xf32>
    %c0_3 = arith.constant 0 : index
    %c0_4 = arith.constant 0 : index
    %3 = vector.load %arg3[%c0_3, %c0_4] : memref<1x128xf32, #tpu.memory_space<vmem>>, vector<1x128xf32>
    %4 = vector.broadcast %3 : vector<1x128xf32> to vector<128x128xf32>
    %5 = arith.addf %2, %4 : vector<128x128xf32>
    %cst_5 = arith.constant 0.000000e+00 : f32
    %6 = vector.broadcast %cst_5 : f32 to vector<128x128xf32>
    %7 = arith.maximumf %5, %6 : vector<128x128xf32>
    %8 = arith.truncf %7 : vector<128x128xf32> to vector<128x128xbf16>
    %c0_6 = arith.constant 0 : index
    %c0_7 = arith.constant 0 : index
    %9 = vector.load %arg4[%c0_6, %c0_7] : memref<128x128xbf16, #tpu.memory_space<vmem>>, vector<128x128xbf16>
    %cst_8 = arith.constant dense<0.000000e+00> : vector<128x128xf32>
    %10 = tpu.matmul %8, %9, %cst_8 {dimension_numbers = #tpu.dot_dimension_numbers<[1], [0], [0], [1], [0, 0, 1, 1], [], []>} : vector<128x128xbf16>, vector<128x128xbf16>, vector<128x128xf32> -> vector<128x128xf32>
    %c0_9 = arith.constant 0 : index
    %c0_10 = arith.constant 0 : index
    %11 = vector.load %arg5[%c0_9, %c0_10] : memref<1x128xf32, #tpu.memory_space<vmem>>, vector<1x128xf32>
    %12 = vector.broadcast %11 : vector<1x128xf32> to vector<128x128xf32>
    %13 = arith.addf %10, %12 : vector<128x128xf32>
    %cst_11 = arith.constant 0.000000e+00 : f32
    %14 = vector.broadcast %cst_11 : f32 to vector<128x128xf32>
    %15 = arith.maximumf %13, %14 : vector<128x128xf32>
    %16 = arith.truncf %15 : vector<128x128xf32> to vector<128x128xbf16>
    %c0_12 = arith.constant 0 : index
    %c0_13 = arith.constant 0 : index
    %17 = vector.load %arg6[%c0_12, %c0_13] : memref<128x128xbf16, #tpu.memory_space<vmem>>, vector<128x128xbf16>
    %cst_14 = arith.constant dense<0.000000e+00> : vector<128x128xf32>
    %18 = tpu.matmul %16, %17, %cst_14 {dimension_numbers = #tpu.dot_dimension_numbers<[1], [0], [0], [1], [0, 0, 1, 1], [], []>} : vector<128x128xbf16>, vector<128x128xbf16>, vector<128x128xf32> -> vector<128x128xf32>
    %c0_15 = arith.constant 0 : index
    %c0_16 = arith.constant 0 : index
    %19 = vector.load %arg7[%c0_15, %c0_16] : memref<1x128xf32, #tpu.memory_space<vmem>>, vector<1x128xf32>
    %20 = vector.broadcast %19 : vector<1x128xf32> to vector<128x128xf32>
    %21 = arith.addf %18, %20 : vector<128x128xf32>
    %cst_17 = arith.constant 0.000000e+00 : f32
    %22 = vector.broadcast %cst_17 : f32 to vector<128x128xf32>
    %23 = arith.maximumf %21, %22 : vector<128x128xf32>
    %24 = vector.extract_strided_slice %23 {offsets = [0, 0], sizes = [64, 128], strides = [1, 1]} : vector<128x128xf32> to vector<64x128xf32>
    %cst_18 = arith.constant dense<0.000000e+00> : vector<128xf32>
    %25 = vector.multi_reduction <add>, %24, %cst_18 [0] : vector<64x128xf32> to vector<128xf32>
    %26 = vector.shape_cast %25 : vector<128xf32> to vector<1x128xf32>
    %cst_19 = arith.constant 6.400000e+01 : f32
    %27 = vector.broadcast %cst_19 : f32 to vector<1x128xf32>
    %28 = arith.divf %26, %27 : vector<1x128xf32>
    %c0_20 = arith.constant 0 : index
    %c0_21 = arith.constant 0 : index
    %29 = vector.load %arg8[%c0_20, %c0_21] : memref<2x128xf32, #tpu.memory_space<vmem>>, vector<1x128xf32>
    tpu.vector_store %arg8[%c0_20, %c0_21], %28 {strides = array<i32>} : memref<2x128xf32, #tpu.memory_space<vmem>>, vector<1x128xf32>,
    %30 = vector.extract_strided_slice %23 {offsets = [64, 0], sizes = [64, 128], strides = [1, 1]} : vector<128x128xf32> to vector<64x128xf32>
    %cst_22 = arith.constant dense<0.000000e+00> : vector<128xf32>
    %31 = vector.multi_reduction <add>, %30, %cst_22 [0] : vector<64x128xf32> to vector<128xf32>
    %32 = vector.shape_cast %31 : vector<128xf32> to vector<1x128xf32>
    %cst_23 = arith.constant 6.400000e+01 : f32
    %33 = vector.broadcast %cst_23 : f32 to vector<1x128xf32>
    %34 = arith.divf %32, %33 : vector<1x128xf32>
    %c1 = arith.constant 1 : index
    %c0_24 = arith.constant 0 : index
    %35 = vector.load %arg8[%c1, %c0_24] : memref<2x128xf32, #tpu.memory_space<vmem>>, vector<1x128xf32>
    tpu.vector_store %arg8[%c1, %c0_24], %34 {strides = array<i32>} : memref<2x128xf32, #tpu.memory_space<vmem>>, vector<1x128xf32>,
    return
  }
  func.func @transform_0(%arg0: i32) -> (i32, i32) {
    %c0_i32 = arith.constant 0 : i32
    %c0_i32_0 = arith.constant 0 : i32
    %c0_i32_1 = arith.constant 0 : i32
    return %c0_i32, %c0_i32_0 : i32, i32
  }
  func.func @transform_1(%arg0: i32) -> (i32, i32) {
    %c0_i32 = arith.constant 0 : i32
    %c0_i32_0 = arith.constant 0 : i32
    %c0_i32_1 = arith.constant 0 : i32
    return %c0_i32, %c0_i32_0 : i32, i32
  }
  func.func @transform_2(%arg0: i32) -> (i32, i32) {
    %c0_i32 = arith.constant 0 : i32
    %c0_i32_0 = arith.constant 0 : i32
    %c0_i32_1 = arith.constant 0 : i32
    return %c0_i32, %c0_i32_0 : i32, i32
  }
  func.func @transform_3(%arg0: i32) -> (i32, i32) {
    %c0_i32 = arith.constant 0 : i32
    %c0_i32_0 = arith.constant 0 : i32
    %c0_i32_1 = arith.constant 0 : i32
    return %c0_i32, %c0_i32_0 : i32, i32
  }
  func.func @transform_4(%arg0: i32) -> (i32, i32) {
    %c0_i32 = arith.constant 0 : i32
    %c0_i32_0 = arith.constant 0 : i32
    %c0_i32_1 = arith.constant 0 : i32
    return %c0_i32, %c0_i32_0 : i32, i32
  }
  func.func @transform_5(%arg0: i32) -> (i32, i32) {
    %c0_i32 = arith.constant 0 : i32
    %c0_i32_0 = arith.constant 0 : i32
    %c0_i32_1 = arith.constant 0 : i32
    return %c0_i32, %c0_i32_0 : i32, i32
  }
  func.func @transform_6(%arg0: i32) -> (i32, i32) {
    %c0_i32 = arith.constant 0 : i32
    %c0_i32_0 = arith.constant 0 : i32
    %c0_i32_1 = arith.constant 0 : i32
    return %c0_i32, %c0_i32_0 : i32, i32
  }
  func.func @transform_7(%arg0: i32) -> (i32, i32) {
    %c0_i32 = arith.constant 0 : i32
    %c0_i32_0 = arith.constant 0 : i32
    %c0_i32_1 = arith.constant 0 : i32
    return %c0_i32, %c0_i32_0 : i32, i32
  }
}

</mosaic_0001>

<llo_original>
// kernel: net_forward.3
$region0: #{net_forward.3}
  #allocation0 [shape = 'u32[]', space=smem, size = 0x4, offset = 0x4, fixed_abs, tag = 'smem constant byte address 0x4 - core index']
  #allocation1 [shape = 'u32[144,128]{1,0:T(1,128)}', space=vmem, size = 0x12000, scoped, tag = 'internal scratch']
  %s0 = inlined_call_operand.vmem [shape: bf16[2048,128], index: 0, kind: input, shape index: {}]
  %s1 = inlined_call_operand.vmem [shape: bf16[128,128], index: 1, kind: input, shape index: {}]
  %s2 = inlined_call_operand.vmem [shape: f32[1,128], index: 2, kind: input, shape index: {}]
  %s3 = inlined_call_operand.vmem [shape: bf16[128,128], index: 3, kind: input, shape index: {}]
  %s4 = inlined_call_operand.vmem [shape: f32[1,128], index: 4, kind: input, shape index: {}]
  %s5 = inlined_call_operand.vmem [shape: bf16[128,128], index: 5, kind: input, shape index: {}]
  %s6 = inlined_call_operand.vmem [shape: f32[1,128], index: 6, kind: input, shape index: {}]
  %s7 = inlined_call_operand.vmem [shape: bf16[2048,128], index: 7, kind: output, shape index: {}]
  %s8 = sld [smem:[#allocation0]]
  $region61: #{net_forward.3} parent=0
    _
  %s10 = ssub.s32 1, %s8
  %s11 = scalar_select 0, %s10, %s8
  loop: start=0, step=1, limit=4
  $region2: #{net_forward.3} parent=0 // loop_pre_header
    _
  $region3: #{net_forward.3} parent=0 // loop_header
    %s13 = sphi 0, %s17
    %p14 = scmp.ge.s32.totalorder %s13, 4
    %s23 = sphi 0, %s25
    %s26 = sphi 0, %s23
    %s27 = sphi 0, %s26
    %s43 = sphi 0, %s27
    %s47 = sphi 0, %s47
    %s49 = sphi 0, %s47
    %s50 = sphi 0, %s49
    %s64 = sphi 0, %s50
    %s68 = sphi 0, %s68
    %s70 = sphi 0, %s68
    %s71 = sphi 0, %s70
    %s85 = sphi 0, %s71
    %s89 = sphi 0, %s89
    %s91 = sphi 0, %s89
    %s92 = sphi 0, %s91
    %s106 = sphi 0, %s92
    %s110 = sphi 0, %s110
    %s112 = sphi 0, %s110
    %s113 = sphi 0, %s112
    %s127 = sphi 0, %s113
    %s131 = sphi 0, %s131
    %s133 = sphi 0, %s131
    %s134 = sphi 0, %s133
    %s148 = sphi 0, %s134
    %s152 = sphi 0, %s152
    %s154 = sphi 0, %s152
    %s155 = sphi 0, %s154
    %s169 = sphi 0, %s155
    %s175 = sphi 0, %s177
    %s178 = sphi 0, %s175
    %s179 = sphi 0, %s178
    %s195 = sphi 0, %s179
  $region4: #{net_forward.3} parent=0 // loop_header_branch
    %16 = sbr.rel (%p14) target = $region8
  $region5: #{net_forward.3} parent=0 // loop_body
    %s18 = ssub.s32 %s13, 1
    %s19 = ssub.s32 %s13, 2
    %s20 = sadd.s32 %s13, 1
    %s21 = ssub.s32 %s13, %s20
    %p22 = scmp.eq.s32.totalorder %s21, 0
    %s24 = sadd.s32 %s23, 1
    %s25 = scalar_select %p22, %s23, %s24
    %p28 = pneg %p22
    %p29 = scmp.eq.s32.totalorder %s13, 1
    %p30 = por %p28, %p29
    %p31 = scmp.ne.s32.totalorder %s23, %s26
    %p32 = scmp.eq.s32.totalorder %s13, 0
    %p33 = por %p31, %p32
    %p34 = scmp.ne.s32.totalorder %s23, %s26
    %p35 = scmp.eq.s32.totalorder %s18, 1
    %p36 = por %p34, %p35
    %p37 = scmp.ne.s32.totalorder %s26, %s27
    %p38 = scmp.eq.s32.totalorder %s18, 0
    %p39 = por %p37, %p38
    %p40 = scmp.ne.s32.totalorder %s26, %s27
    %p41 = scmp.eq.s32.totalorder %s19, 1
    %p42 = por %p40, %p41
    %p44 = scmp.ne.s32.totalorder %s27, %s43
    %p45 = scmp.eq.s32.totalorder %s19, 0
    %p46 = por %p44, %p45
    %s48 = sadd.s32 %s47, 1
    %p51 = scmp.eq.s32.totalorder %s13, 1
    %p52 = scmp.ne.s32.totalorder %s47, %s49
    %p53 = scmp.eq.s32.totalorder %s13, 0
    %p54 = por %p52, %p53
    %p55 = scmp.ne.s32.totalorder %s47, %s49
    %p56 = scmp.eq.s32.totalorder %s18, 1
    %p57 = por %p55, %p56
    %p58 = scmp.ne.s32.totalorder %s49, %s50
    %p59 = scmp.eq.s32.totalorder %s18, 0
    %p60 = por %p58, %p59
    %p61 = scmp.ne.s32.totalorder %s49, %s50
    %p62 = scmp.eq.s32.totalorder %s19, 1
    %p63 = por %p61, %p62
    %p65 = scmp.ne.s32.totalorder %s50, %s64
    %p66 = scmp.eq.s32.totalorder %s19, 0
    %p67 = por %p65, %p66
    %s69 = sadd.s32 %s68, 1
    %p72 = scmp.eq.s32.totalorder %s13, 1
    %p73 = scmp.ne.s32.totalorder %s68, %s70
    %p74 = scmp.eq.s32.totalorder %s13, 0
    %p75 = por %p73, %p74
    %p76 = scmp.ne.s32.totalorder %s68, %s70
    %p77 = scmp.eq.s32.totalorder %s18, 1
    %p78 = por %p76, %p77
    %p79 = scmp.ne.s32.totalorder %s70, %s71
    %p80 = scmp.eq.s32.totalorder %s18, 0
    %p81 = por %p79, %p80
    %p82 = scmp.ne.s32.totalorder %s70, %s71
    %p83 = scmp.eq.s32.totalorder %s19, 1
    %p84 = por %p82, %p83
    %p86 = scmp.ne.s32.totalorder %s71, %s85
    %p87 = scmp.eq.s32.totalorder %s19, 0
    %p88 = por %p86, %p87
    %s90 = sadd.s32 %s89, 1
    %p93 = scmp.eq.s32.totalorder %s13, 1
    %p94 = scmp.ne.s32.totalorder %s89, %s91
    %p95 = scmp.eq.s32.totalorder %s13, 0
    %p96 = por %p94, %p95
    %p97 = scmp.ne.s32.totalorder %s89, %s91
    %p98 = scmp.eq.s32.totalorder %s18, 1
    %p99 = por %p97, %p98
    %p100 = scmp.ne.s32.totalorder %s91, %s92
    %p101 = scmp.eq.s32.totalorder %s18, 0
    %p102 = por %p100, %p101
    %p103 = scmp.ne.s32.totalorder %s91, %s92
    %p104 = scmp.eq.s32.totalorder %s19, 1
    %p105 = por %p103, %p104
    %p107 = scmp.ne.s32.totalorder %s92, %s106
    %p108 = scmp.eq.s32.totalorder %s19, 0
    %p109 = por %p107, %p108
    %s111 = sadd.s32 %s110, 1
    %p114 = scmp.eq.s32.totalorder %s13, 1
    %p115 = scmp.ne.s32.totalorder %s110, %s112
    %p116 = scmp.eq.s32.totalorder %s13, 0
    %p117 = por %p115, %p116
    %p118 = scmp.ne.s32.totalorder %s110, %s112
    %p119 = scmp.eq.s32.totalorder %s18, 1
    %p120 = por %p118, %p119
    %p121 = scmp.ne.s32.totalorder %s112, %s113
    %p122 = scmp.eq.s32.totalorder %s18, 0
    %p123 = por %p121, %p122
    %p124 = scmp.ne.s32.totalorder %s112, %s113
    %p125 = scmp.eq.s32.totalorder %s19, 1
    %p126 = por %p124, %p125
    %p128 = scmp.ne.s32.totalorder %s113, %s127
    %p129 = scmp.eq.s32.totalorder %s19, 0
    %p130 = por %p128, %p129
    %s132 = sadd.s32 %s131, 1
    %p135 = scmp.eq.s32.totalorder %s13, 1
    %p136 = scmp.ne.s32.totalorder %s131, %s133
    %p137 = scmp.eq.s32.totalorder %s13, 0
    %p138 = por %p136, %p137
    %p139 = scmp.ne.s32.totalorder %s131, %s133
    %p140 = scmp.eq.s32.totalorder %s18, 1
    %p141 = por %p139, %p140
    %p142 = scmp.ne.s32.totalorder %s133, %s134
    %p143 = scmp.eq.s32.totalorder %s18, 0
    %p144 = por %p142, %p143
    %p145 = scmp.ne.s32.totalorder %s133, %s134
    %p146 = scmp.eq.s32.totalorder %s19, 1
    %p147 = por %p145, %p146
    %p149 = scmp.ne.s32.totalorder %s134, %s148
    %p150 = scmp.eq.s32.totalorder %s19, 0
    %p151 = por %p149, %p150
    %s153 = sadd.s32 %s152, 1
    %p156 = scmp.eq.s32.totalorder %s13, 1
    %p157 = scmp.ne.s32.totalorder %s152, %s154
    %p158 = scmp.eq.s32.totalorder %s13, 0
    %p159 = por %p157, %p158
    %p160 = scmp.ne.s32.totalorder %s152, %s154
    %p161 = scmp.eq.s32.totalorder %s18, 1
    %p162 = por %p160, %p161
    %p163 = scmp.ne.s32.totalorder %s154, %s155
    %p164 = scmp.eq.s32.totalorder %s18, 0
    %p165 = por %p163, %p164
    %p166 = scmp.ne.s32.totalorder %s154, %s155
    %p167 = scmp.eq.s32.totalorder %s19, 1
    %p168 = por %p166, %p167
    %p170 = scmp.ne.s32.totalorder %s155, %s169
    %p171 = scmp.eq.s32.totalorder %s19, 0
    %p172 = por %p170, %p171
    %s173 = ssub.s32 %s13, %s20
    %p174 = scmp.eq.s32.totalorder %s173, 0
    %s176 = sadd.s32 %s175, 1
    %s177 = scalar_select %p174, %s175, %s176
    %p180 = pneg %p174
    %p181 = scmp.eq.s32.totalorder %s13, 1
    %p182 = por %p180, %p181
    %p183 = scmp.ne.s32.totalorder %s175, %s178
    %p184 = scmp.eq.s32.totalorder %s13, 0
    %p185 = por %p183, %p184
    %p186 = scmp.ne.s32.totalorder %s175, %s178
    %p187 = scmp.eq.s32.totalorder %s18, 1
    %p188 = por %p186, %p187
    %p189 = scmp.ne.s32.totalorder %s178, %s179
    %p190 = scmp.eq.s32.totalorder %s18, 0
    %p191 = por %p189, %p190
    %p192 = scmp.ne.s32.totalorder %s178, %s179
    %p193 = scmp.eq.s32.totalorder %s19, 1
    %p194 = por %p192, %p193
    %p196 = scmp.ne.s32.totalorder %s179, %s195
    %p197 = scmp.eq.s32.totalorder %s19, 0
    %p198 = por %p196, %p197
    %p199 = scmp.le.s32.totalorder 1, %s13
    %p200 = scmp.lt.s32.totalorder %s13, 3
    %p201 = pnand %p199, %p200
    %p202 = pneg %p201
    // Predicated region
    $region9: #{net_forward.3} parent=5 // pred_check
      _
    $region10: #{net_forward.3} parent=5 // pred_check_branch
      %204 = sbr.rel (%p201) target = $region12
    $region11: #{net_forward.3} parent=5 // pred_region
      %s205 = ssub.s32 %s13, 1
      // Predicated region
      $region13: #{net_forward.3} parent=11 // pred_check
        %p206 = pneg %p60
      $region14: #{net_forward.3} parent=11 // pred_check_branch
        %208 = sbr.rel (%p206) target = $region16
      $region15: #{net_forward.3} parent=11 // pred_region
        _
      $region16: #{net_forward.3} parent=11 // pred_fallthru
        _
      // Predicated region
      $region17: #{net_forward.3} parent=11 // pred_check
        %p209 = pneg %p81
      $region18: #{net_forward.3} parent=11 // pred_check_branch
        %211 = sbr.rel (%p209) target = $region20
      $region19: #{net_forward.3} parent=11 // pred_region
        _
      $region20: #{net_forward.3} parent=11 // pred_fallthru
        _
      // Predicated region
      $region21: #{net_forward.3} parent=11 // pred_check
        %p212 = pneg %p102
      $region22: #{net_forward.3} parent=11 // pred_check_branch
        %214 = sbr.rel (%p212) target = $region24
      $region23: #{net_forward.3} parent=11 // pred_region
        _
      $region24: #{net_forward.3} parent=11 // pred_fallthru
        _
      // Predicated region
      $region25: #{net_forward.3} parent=11 // pred_check
        %p215 = pneg %p123
      $region26: #{net_forward.3} parent=11 // pred_check_branch
        %217 = sbr.rel (%p215) target = $region28
      $region27: #{net_forward.3} parent=11 // pred_region
        _
      $region28: #{net_forward.3} parent=11 // pred_fallthru
        _
      // Predicated region
      $region29: #{net_forward.3} parent=11 // pred_check
        %p218 = pneg %p144
      $region30: #{net_forward.3} parent=11 // pred_check_branch
        %220 = sbr.rel (%p218) target = $region32
      $region31: #{net_forward.3} parent=11 // pred_region
        _
      $region32: #{net_forward.3} parent=11 // pred_fallthru
        _
      // Predicated region
      $region33: #{net_forward.3} parent=11 // pred_check
        %p221 = pneg %p165
      $region34: #{net_forward.3} parent=11 // pred_check_branch
        %223 = sbr.rel (%p221) target = $region36
      $region35: #{net_forward.3} parent=11 // pred_region
        _
      $region36: #{net_forward.3} parent=11 // pred_fallthru
        _
    $region12: #{net_forward.3} parent=5 // pred_fallthru
      _
    %p224 = scmp.lt.s32.totalorder %s13, 2
    // Predicated region
    $region37: #{net_forward.3} parent=5 // pred_check
      %p225 = pneg %p224
    $region38: #{net_forward.3} parent=5 // pred_check_branch
      %227 = sbr.rel (%p225) target = $region40
    $region39: #{net_forward.3} parent=5 // pred_region
      // Predicated region
      $region41: #{net_forward.3} parent=39 // pred_check
        %p228 = pneg %p33
      $region42: #{net_forward.3} parent=39 // pred_check_branch
        %230 = sbr.rel (%p228) target = $region44
      $region43: #{net_forward.3} parent=39 // pred_region
        %s231 = smul.u32 128, %s13
        %p232 = scmp.lt.s32.totalorder %s231, 255
        %s233 = scalar_select %p232, %s231, 255
        %s234 = smul.addr %s233, 4
        %s235 = scalar_lea.vmem %s0, %s234
        %s236 = smul.u32 128, %s13
      $region44: #{net_forward.3} parent=39 // pred_fallthru
        _
    $region40: #{net_forward.3} parent=5 // pred_fallthru
      _
    %p237 = scmp.le.s32.totalorder 1, %s13
    %p238 = scmp.lt.s32.totalorder %s13, 3
    %p239 = pnand %p237, %p238
    %p240 = pneg %p239
    // Predicated region
    $region45: #{net_forward.3} parent=5 // pred_check
      _
    $region46: #{net_forward.3} parent=5 // pred_check_branch
      %242 = sbr.rel (%p239) target = $region48
    $region47: #{net_forward.3} parent=5 // pred_region
      %s243 = ssub.s32 %s13, 1
      %s244 = smul.u32 128, %s18
      %p245 = scmp.lt.s32.totalorder %s244, 255
      %s246 = scalar_select %p245, %s244, 255
      %s247 = smul.addr %s246, 4
      %s248 = scalar_lea.vmem %s0, %s247
      %p249 = pneg %p39
      %p250 = pneg %p36
      %p251 = pneg %p60
      %p252 = pneg %p57
      %p253 = pneg %p81
      %p254 = pneg %p78
      %p255 = pneg %p102
      %p256 = pneg %p99
      %p257 = pneg %p123
      %p258 = pneg %p120
      %p259 = pneg %p144
      %p260 = pneg %p141
      %p261 = pneg %p165
      %p262 = pneg %p162
      %p263 = pneg %p191
      %p264 = pneg %p188
      %s265 = smul.u32 128, %s18
      %p266 = scmp.lt.s32.totalorder %s265, 255
      %s267 = scalar_select %p266, %s265, 255
      %s268 = smul.addr %s267, 4
      %s269 = scalar_lea.vmem %s7, %s268
      %s270 = smul.u32 128, %s18
      %p271 = scmp.lt.s32.totalorder %s270, 255
      %s272 = scalar_select %p271, %s270, 255
      %s273 = smul.addr %s272, 4
      %s274 = scalar_lea.vmem %s0, %s273
      %s275 = smul.u32 128, %s18
      %s276 = smul.u32 128, %s18
      %p277 = scmp.lt.s32.totalorder %s276, 255
      %s278 = scalar_select %p277, %s276, 255
      %s279 = smul.addr %s278, 4
      %s280 = scalar_lea.vmem %s7, %s279
      %s281 = smul.u32 128, %s18
      %v283 = vld [vmem:[%s274] sm:$0xf]
      %v284 = vld [vmem:[%s274 + $0x4] sm:$0xf]
      %v285 = vld [vmem:[%s274 + $0x8] sm:$0xf]
      %v286 = vld [vmem:[%s274 + $0xc] sm:$0xf]
      %v287 = vld [vmem:[%s274 + $0x10] sm:$0xf]
      %v288 = vld [vmem:[%s274 + $0x14] sm:$0xf]
      %v289 = vld [vmem:[%s274 + $0x18] sm:$0xf]
      %v290 = vld [vmem:[%s274 + $0x1c] sm:$0xf]
      %v291 = vld [vmem:[%s274 + $0x20] sm:$0xf]
      %v292 = vld [vmem:[%s274 + $0x24] sm:$0xf]
      %v293 = vld [vmem:[%s274 + $0x28] sm:$0xf]
      %v294 = vld [vmem:[%s274 + $0x2c] sm:$0xf]
      %v295 = vld [vmem:[%s274 + $0x30] sm:$0xf]
      %v296 = vld [vmem:[%s274 + $0x34] sm:$0xf]
      %v297 = vld [vmem:[%s274 + $0x38] sm:$0xf]
      %v298 = vld [vmem:[%s274 + $0x3c] sm:$0xf]
      %v299 = vld [vmem:[%s274 + $0x40] sm:$0xf]
      %v300 = vld [vmem:[%s274 + $0x44] sm:$0xf]
      %v301 = vld [vmem:[%s274 + $0x48] sm:$0xf]
      %v302 = vld [vmem:[%s274 + $0x4c] sm:$0xf]
      %v303 = vld [vmem:[%s274 + $0x50] sm:$0xf]
      %v304 = vld [vmem:[%s274 + $0x54] sm:$0xf]
      %v305 = vld [vmem:[%s274 + $0x58] sm:$0xf]
      %v306 = vld [vmem:[%s274 + $0x5c] sm:$0xf]
      %v307 = vld [vmem:[%s274 + $0x60] sm:$0xf]
      %v308 = vld [vmem:[%s274 + $0x64] sm:$0xf]
      %v309 = vld [vmem:[%s274 + $0x68] sm:$0xf]
      %v310 = vld [vmem:[%s274 + $0x6c] sm:$0xf]
      %v311 = vld [vmem:[%s274 + $0x70] sm:$0xf]
      %v312 = vld [vmem:[%s274 + $0x74] sm:$0xf]
      %v313 = vld [vmem:[%s274 + $0x78] sm:$0xf]
      %v314 = vld [vmem:[%s274 + $0x7c] sm:$0xf]
      %v315 = vld [vmem:[%s274 + $0x80] sm:$0xf]
      %v316 = vld [vmem:[%s274 + $0x84] sm:$0xf]
      %v317 = vld [vmem:[%s274 + $0x88] sm:$0xf]
      %v318 = vld [vmem:[%s274 + $0x8c] sm:$0xf]
      %v319 = vld [vmem:[%s274 + $0x90] sm:$0xf]
      %v320 = vld [vmem:[%s274 + $0x94] sm:$0xf]
      %v321 = vld [vmem:[%s274 + $0x98] sm:$0xf]
      %v322 = vld [vmem:[%s274 + $0x9c] sm:$0xf]
      %v323 = vld [vmem:[%s274 + $0xa0] sm:$0xf]
      %v324 = vld [vmem:[%s274 + $0xa4] sm:$0xf]
      %v325 = vld [vmem:[%s274 + $0xa8] sm:$0xf]
      %v326 = vld [vmem:[%s274 + $0xac] sm:$0xf]
      %v327 = vld [vmem:[%s274 + $0xb0] sm:$0xf]
      %v328 = vld [vmem:[%s274 + $0xb4] sm:$0xf]
      %v329 = vld [vmem:[%s274 + $0xb8] sm:$0xf]
      %v330 = vld [vmem:[%s274 + $0xbc] sm:$0xf]
      %v331 = vld [vmem:[%s274 + $0xc0] sm:$0xf]
      %v332 = vld [vmem:[%s274 + $0xc4] sm:$0xf]
      %v333 = vld [vmem:[%s274 + $0xc8] sm:$0xf]
      %v334 = vld [vmem:[%s274 + $0xcc] sm:$0xf]
      %v335 = vld [vmem:[%s274 + $0xd0] sm:$0xf]
      %v336 = vld [vmem:[%s274 + $0xd4] sm:$0xf]
      %v337 = vld [vmem:[%s274 + $0xd8] sm:$0xf]
      %v338 = vld [vmem:[%s274 + $0xdc] sm:$0xf]
      %v339 = vld [vmem:[%s274 + $0xe0] sm:$0xf]
      %v340 = vld [vmem:[%s274 + $0xe4] sm:$0xf]
      %v341 = vld [vmem:[%s274 + $0xe8] sm:$0xf]
      %v342 = vld [vmem:[%s274 + $0xec] sm:$0xf]
      %v343 = vld [vmem:[%s274 + $0xf0] sm:$0xf]
      %v344 = vld [vmem:[%s274 + $0xf4] sm:$0xf]
      %v345 = vld [vmem:[%s274 + $0xf8] sm:$0xf]
      %v346 = vld [vmem:[%s274 + $0xfc] sm:$0xf]
      %v347 = vld [vmem:[%s274 + $0x100] sm:$0xf]
      %v348 = vld [vmem:[%s274 + $0x104] sm:$0xf]
      %v349 = vld [vmem:[%s274 + $0x108] sm:$0xf]
      %v350 = vld [vmem:[%s274 + $0x10c] sm:$0xf]
      %v351 = vld [vmem:[%s274 + $0x110] sm:$0xf]
      %v352 = vld [vmem:[%s274 + $0x114] sm:$0xf]
      %v353 = vld [vmem:[%s274 + $0x118] sm:$0xf]
      %v354 = vld [vmem:[%s274 + $0x11c] sm:$0xf]
      %v355 = vld [vmem:[%s274 + $0x120] sm:$0xf]
      %v356 = vld [vmem:[%s274 + $0x124] sm:$0xf]
      %v357 = vld [vmem:[%s274 + $0x128] sm:$0xf]
      %v358 = vld [vmem:[%s274 + $0x12c] sm:$0xf]
      %v359 = vld [vmem:[%s274 + $0x130] sm:$0xf]
      %v360 = vld [vmem:[%s274 + $0x134] sm:$0xf]
      %v361 = vld [vmem:[%s274 + $0x138] sm:$0xf]
      %v362 = vld [vmem:[%s274 + $0x13c] sm:$0xf]
      %v363 = vld [vmem:[%s274 + $0x140] sm:$0xf]
      %v364 = vld [vmem:[%s274 + $0x144] sm:$0xf]
      %v365 = vld [vmem:[%s274 + $0x148] sm:$0xf]
      %v366 = vld [vmem:[%s274 + $0x14c] sm:$0xf]
      %v367 = vld [vmem:[%s274 + $0x150] sm:$0xf]
      %v368 = vld [vmem:[%s274 + $0x154] sm:$0xf]
      %v369 = vld [vmem:[%s274 + $0x158] sm:$0xf]
      %v370 = vld [vmem:[%s274 + $0x15c] sm:$0xf]
      %v371 = vld [vmem:[%s274 + $0x160] sm:$0xf]
      %v372 = vld [vmem:[%s274 + $0x164] sm:$0xf]
      %v373 = vld [vmem:[%s274 + $0x168] sm:$0xf]
      %v374 = vld [vmem:[%s274 + $0x16c] sm:$0xf]
      %v375 = vld [vmem:[%s274 + $0x170] sm:$0xf]
      %v376 = vld [vmem:[%s274 + $0x174] sm:$0xf]
      %v377 = vld [vmem:[%s274 + $0x178] sm:$0xf]
      %v378 = vld [vmem:[%s274 + $0x17c] sm:$0xf]
      %v379 = vld [vmem:[%s274 + $0x180] sm:$0xf]
      %v380 = vld [vmem:[%s274 + $0x184] sm:$0xf]
      %v381 = vld [vmem:[%s274 + $0x188] sm:$0xf]
      %v382 = vld [vmem:[%s274 + $0x18c] sm:$0xf]
      %v383 = vld [vmem:[%s274 + $0x190] sm:$0xf]
      %v384 = vld [vmem:[%s274 + $0x194] sm:$0xf]
      %v385 = vld [vmem:[%s274 + $0x198] sm:$0xf]
      %v386 = vld [vmem:[%s274 + $0x19c] sm:$0xf]
      %v387 = vld [vmem:[%s274 + $0x1a0] sm:$0xf]
      %v388 = vld [vmem:[%s274 + $0x1a4] sm:$0xf]
      %v389 = vld [vmem:[%s274 + $0x1a8] sm:$0xf]
      %v390 = vld [vmem:[%s274 + $0x1ac] sm:$0xf]
      %v391 = vld [vmem:[%s274 + $0x1b0] sm:$0xf]
      %v392 = vld [vmem:[%s274 + $0x1b4] sm:$0xf]
      %v393 = vld [vmem:[%s274 + $0x1b8] sm:$0xf]
      %v394 = vld [vmem:[%s274 + $0x1bc] sm:$0xf]
      %v395 = vld [vmem:[%s274 + $0x1c0] sm:$0xf]
      %v396 = vld [vmem:[%s274 + $0x1c4] sm:$0xf]
      %v397 = vld [vmem:[%s274 + $0x1c8] sm:$0xf]
      %v398 = vld [vmem:[%s274 + $0x1cc] sm:$0xf]
      %v399 = vld [vmem:[%s274 + $0x1d0] sm:$0xf]
      %v400 = vld [vmem:[%s274 + $0x1d4] sm:$0xf]
      %v401 = vld [vmem:[%s274 + $0x1d8] sm:$0xf]
      %v402 = vld [vmem:[%s274 + $0x1dc] sm:$0xf]
      %v403 = vld [vmem:[%s274 + $0x1e0] sm:$0xf]
      %v404 = vld [vmem:[%s274 + $0x1e4] sm:$0xf]
      %v405 = vld [vmem:[%s274 + $0x1e8] sm:$0xf]
      %v406 = vld [vmem:[%s274 + $0x1ec] sm:$0xf]
      %v407 = vld [vmem:[%s274 + $0x1f0] sm:$0xf]
      %v408 = vld [vmem:[%s274 + $0x1f4] sm:$0xf]
      %v409 = vld [vmem:[%s274 + $0x1f8] sm:$0xf]
      %v410 = vld [vmem:[%s274 + $0x1fc] sm:$0xf]
      %v411 = vld [vmem:[%s1] sm:$0xf]
      %v412 = vld [vmem:[%s1 + $0x4] sm:$0xf]
      %v413 = vld [vmem:[%s1 + $0x8] sm:$0xf]
      %v414 = vld [vmem:[%s1 + $0xc] sm:$0xf]
      %v415 = vld [vmem:[%s1 + $0x10] sm:$0xf]
      %v416 = vld [vmem:[%s1 + $0x14] sm:$0xf]
      %v417 = vld [vmem:[%s1 + $0x18] sm:$0xf]
      %v418 = vld [vmem:[%s1 + $0x1c] sm:$0xf]
      %v419 = vld [vmem:[%s1 + $0x20] sm:$0xf]
      %v420 = vld [vmem:[%s1 + $0x24] sm:$0xf]
      %v421 = vld [vmem:[%s1 + $0x28] sm:$0xf]
      %v422 = vld [vmem:[%s1 + $0x2c] sm:$0xf]
      %v423 = vld [vmem:[%s1 + $0x30] sm:$0xf]
      %v424 = vld [vmem:[%s1 + $0x34] sm:$0xf]
      %v425 = vld [vmem:[%s1 + $0x38] sm:$0xf]
      %v426 = vld [vmem:[%s1 + $0x3c] sm:$0xf]
      %v427 = vld [vmem:[%s2] sm:$0x1]
      %v429 = vlaneseq
      %v430 = vshrl.u32 %v429, 7
      %v431 = vsub.s32 0, %v430
      %v432 = vrot.slane %v427, %v431
      %v562 = vunpack.c.l.b16 %v283
      %v563 = vunpack.c.l.b16 %v284
      %v564 = vunpack.c.l.b16 %v285
      %v565 = vunpack.c.l.b16 %v286
      %v566 = vunpack.c.l.b16 %v287
      %v567 = vunpack.c.l.b16 %v288
      %v568 = vunpack.c.l.b16 %v289
      %v569 = vunpack.c.l.b16 %v290
      %v570 = vunpack.c.l.b16 %v291
      %v571 = vunpack.c.l.b16 %v292
      %v572 = vunpack.c.l.b16 %v293
      %v573 = vunpack.c.l.b16 %v294
      %v574 = vunpack.c.l.b16 %v295
      %v575 = vunpack.c.l.b16 %v296
      %v576 = vunpack.c.l.b16 %v297
      %v577 = vunpack.c.l.b16 %v298
      %v578 = vunpack.c.l.b16 %v299
      %v579 = vunpack.c.l.b16 %v300
      %v580 = vunpack.c.l.b16 %v301
      %v581 = vunpack.c.l.b16 %v302
      %v582 = vunpack.c.l.b16 %v303
      %v583 = vunpack.c.l.b16 %v304
      %v584 = vunpack.c.l.b16 %v305
      %v585 = vunpack.c.l.b16 %v306
      %v586 = vunpack.c.l.b16 %v307
      %v587 = vunpack.c.l.b16 %v308
      %v588 = vunpack.c.l.b16 %v309
      %v589 = vunpack.c.l.b16 %v310
      %v590 = vunpack.c.l.b16 %v311
      %v591 = vunpack.c.l.b16 %v312
      %v592 = vunpack.c.l.b16 %v313
      %v593 = vunpack.c.l.b16 %v314
      %v594 = vunpack.c.l.b16 %v315
      %v595 = vunpack.c.l.b16 %v316
      %v596 = vunpack.c.l.b16 %v317
      %v597 = vunpack.c.l.b16 %v318
      %v598 = vunpack.c.l.b16 %v319
      %v599 = vunpack.c.l.b16 %v320
      %v600 = vunpack.c.l.b16 %v321
      %v601 = vunpack.c.l.b16 %v322
      %v602 = vunpack.c.l.b16 %v323
      %v603 = vunpack.c.l.b16 %v324
      %v604 = vunpack.c.l.b16 %v325
      %v605 = vunpack.c.l.b16 %v326
      %v606 = vunpack.c.l.b16 %v327
      %v607 = vunpack.c.l.b16 %v328
      %v608 = vunpack.c.l.b16 %v329
      %v609 = vunpack.c.l.b16 %v330
      %v610 = vunpack.c.l.b16 %v331
      %v611 = vunpack.c.l.b16 %v332
      %v612 = vunpack.c.l.b16 %v333
      %v613 = vunpack.c.l.b16 %v334
      %v614 = vunpack.c.l.b16 %v335
      %v615 = vunpack.c.l.b16 %v336
      %v616 = vunpack.c.l.b16 %v337
      %v617 = vunpack.c.l.b16 %v338
      %v618 = vunpack.c.l.b16 %v339
      %v619 = vunpack.c.l.b16 %v340
      %v620 = vunpack.c.l.b16 %v341
      %v621 = vunpack.c.l.b16 %v342
      %v622 = vunpack.c.l.b16 %v343
      %v623 = vunpack.c.l.b16 %v344
      %v624 = vunpack.c.l.b16 %v345
      %v625 = vunpack.c.l.b16 %v346
      %v626 = vunpack.c.l.b16 %v347
      %v627 = vunpack.c.l.b16 %v348
      %v628 = vunpack.c.l.b16 %v349
      %v629 = vunpack.c.l.b16 %v350
      %v630 = vunpack.c.l.b16 %v351
      %v631 = vunpack.c.l.b16 %v352
      %v632 = vunpack.c.l.b16 %v353
      %v633 = vunpack.c.l.b16 %v354
      %v634 = vunpack.c.l.b16 %v355
      %v635 = vunpack.c.l.b16 %v356
      %v636 = vunpack.c.l.b16 %v357
      %v637 = vunpack.c.l.b16 %v358
      %v638 = vunpack.c.l.b16 %v359
      %v639 = vunpack.c.l.b16 %v360
      %v640 = vunpack.c.l.b16 %v361
      %v641 = vunpack.c.l.b16 %v362
      %v642 = vunpack.c.l.b16 %v363
      %v643 = vunpack.c.l.b16 %v364
      %v644 = vunpack.c.l.b16 %v365
      %v645 = vunpack.c.l.b16 %v366
      %v646 = vunpack.c.l.b16 %v367
      %v647 = vunpack.c.l.b16 %v368
      %v648 = vunpack.c.l.b16 %v369
      %v649 = vunpack.c.l.b16 %v370
      %v650 = vunpack.c.l.b16 %v371
      %v651 = vunpack.c.l.b16 %v372
      %v652 = vunpack.c.l.b16 %v373
      %v653 = vunpack.c.l.b16 %v374
      %v654 = vunpack.c.l.b16 %v375
      %v655 = vunpack.c.l.b16 %v376
      %v656 = vunpack.c.l.b16 %v377
      %v657 = vunpack.c.l.b16 %v378
      %v658 = vunpack.c.l.b16 %v379
      %v659 = vunpack.c.l.b16 %v380
      %v660 = vunpack.c.l.b16 %v381
      %v661 = vunpack.c.l.b16 %v382
      %v662 = vunpack.c.l.b16 %v383
      %v663 = vunpack.c.l.b16 %v384
      %v664 = vunpack.c.l.b16 %v385
      %v665 = vunpack.c.l.b16 %v386
      %v666 = vunpack.c.l.b16 %v387
      %v667 = vunpack.c.l.b16 %v388
      %v668 = vunpack.c.l.b16 %v389
      %v669 = vunpack.c.l.b16 %v390
      %v670 = vunpack.c.l.b16 %v391
      %v671 = vunpack.c.l.b16 %v392
      %v672 = vunpack.c.l.b16 %v393
      %v673 = vunpack.c.l.b16 %v394
      %v674 = vunpack.c.l.b16 %v395
      %v675 = vunpack.c.l.b16 %v396
      %v676 = vunpack.c.l.b16 %v397
      %v677 = vunpack.c.l.b16 %v398
      %v678 = vunpack.c.l.b16 %v399
      %v679 = vunpack.c.l.b16 %v400
      %v680 = vunpack.c.l.b16 %v401
      %v681 = vunpack.c.l.b16 %v402
      %v682 = vunpack.c.l.b16 %v403
      %v683 = vunpack.c.l.b16 %v404
      %v684 = vunpack.c.l.b16 %v405
      %v685 = vunpack.c.l.b16 %v406
      %v686 = vunpack.c.l.b16 %v407
      %v687 = vunpack.c.l.b16 %v408
      %v688 = vunpack.c.l.b16 %v409
      %v689 = vunpack.c.l.b16 %v410
      %v690 = vpack.c.b16 %v563, %v562
      %v691 = vpack.c.b16 %v565, %v564
      %v692 = vpack.c.b16 %v567, %v566
      %v693 = vpack.c.b16 %v569, %v568
      %v694 = vpack.c.b16 %v571, %v570
      %v695 = vpack.c.b16 %v573, %v572
      %v696 = vpack.c.b16 %v575, %v574
      %v697 = vpack.c.b16 %v577, %v576
      %v698 = vpack.c.b16 %v579, %v578
      %v699 = vpack.c.b16 %v581, %v580
      %v700 = vpack.c.b16 %v583, %v582
      %v701 = vpack.c.b16 %v585, %v584
      %v702 = vpack.c.b16 %v587, %v586
      %v703 = vpack.c.b16 %v589, %v588
      %v704 = vpack.c.b16 %v591, %v590
      %v705 = vpack.c.b16 %v593, %v592
      %v706 = vpack.c.b16 %v595, %v594
      %v707 = vpack.c.b16 %v597, %v596
      %v708 = vpack.c.b16 %v599, %v598
      %v709 = vpack.c.b16 %v601, %v600
      %v710 = vpack.c.b16 %v603, %v602
      %v711 = vpack.c.b16 %v605, %v604
      %v712 = vpack.c.b16 %v607, %v606
      %v713 = vpack.c.b16 %v609, %v608
      %v714 = vpack.c.b16 %v611, %v610
      %v715 = vpack.c.b16 %v613, %v612
      %v716 = vpack.c.b16 %v615, %v614
      %v717 = vpack.c.b16 %v617, %v616
      %v718 = vpack.c.b16 %v619, %v618
      %v719 = vpack.c.b16 %v621, %v620
      %v720 = vpack.c.b16 %v623, %v622
      %v721 = vpack.c.b16 %v625, %v624
      %v722 = vpack.c.b16 %v627, %v626
      %v723 = vpack.c.b16 %v629, %v628
      %v724 = vpack.c.b16 %v631, %v630
      %v725 = vpack.c.b16 %v633, %v632
      %v726 = vpack.c.b16 %v635, %v634
      %v727 = vpack.c.b16 %v637, %v636
      %v728 = vpack.c.b16 %v639, %v638
      %v729 = vpack.c.b16 %v641, %v640
      %v730 = vpack.c.b16 %v643, %v642
      %v731 = vpack.c.b16 %v645, %v644
      %v732 = vpack.c.b16 %v647, %v646
      %v733 = vpack.c.b16 %v649, %v648
      %v734 = vpack.c.b16 %v651, %v650
      %v735 = vpack.c.b16 %v653, %v652
      %v736 = vpack.c.b16 %v655, %v654
      %v737 = vpack.c.b16 %v657, %v656
      %v738 = vpack.c.b16 %v659, %v658
      %v739 = vpack.c.b16 %v661, %v660
      %v740 = vpack.c.b16 %v663, %v662
      %v741 = vpack.c.b16 %v665, %v664
      %v742 = vpack.c.b16 %v667, %v666
      %v743 = vpack.c.b16 %v669, %v668
      %v744 = vpack.c.b16 %v671, %v670
      %v745 = vpack.c.b16 %v673, %v672
      %v746 = vpack.c.b16 %v675, %v674
      %v747 = vpack.c.b16 %v677, %v676
      %v748 = vpack.c.b16 %v679, %v678
      %v749 = vpack.c.b16 %v681, %v680
      %v750 = vpack.c.b16 %v683, %v682
      %v751 = vpack.c.b16 %v685, %v684
      %v752 = vpack.c.b16 %v687, %v686
      %v753 = vpack.c.b16 %v689, %v688
      %v834 = vunpack.c.l.b16 %v411
      %v835 = vunpack.c.l.b16 %v412
      %v836 = vunpack.c.l.b16 %v413
      %v837 = vunpack.c.l.b16 %v414
      %v838 = vunpack.c.l.b16 %v415
      %v839 = vunpack.c.l.b16 %v416
      %v840 = vunpack.c.l.b16 %v417
      %v841 = vunpack.c.l.b16 %v418
      %v842 = vunpack.c.l.b16 %v419
      %v843 = vunpack.c.l.b16 %v420
      %v844 = vunpack.c.l.b16 %v421
      %v845 = vunpack.c.l.b16 %v422
      %v846 = vunpack.c.l.b16 %v423
      %v847 = vunpack.c.l.b16 %v424
      %v848 = vunpack.c.l.b16 %v425
      %v849 = vunpack.c.l.b16 %v426
      %v850 = vpack.c.b16 %v835, %v834
      %v851 = vpack.c.b16 %v837, %v836
      %v852 = vpack.c.b16 %v839, %v838
      %v853 = vpack.c.b16 %v841, %v840
      %v854 = vpack.c.b16 %v843, %v842
      %v855 = vpack.c.b16 %v845, %v844
      %v856 = vpack.c.b16 %v847, %v846
      %v857 = vpack.c.b16 %v849, %v848
      %866 = vmatprep.subr.bf16.mxu0 0
      %867 = vmatpush1.bf16.msra.mxu0 %v850
      %868 = vmatprep.subr.bf16.mxu0 0
      %869 = vmatpush1.bf16.msra.mxu0 %v851
      %870 = vmatprep.subr.bf16.mxu0 0
      %871 = vmatpush1.bf16.msra.mxu0 %v852
      %872 = vmatprep.subr.bf16.mxu0 0
      %873 = vmatpush1.bf16.msra.mxu0 %v853
      %874 = vmatprep.subr.bf16.mxu0 0
      %875 = vmatpush1.bf16.msra.mxu0 %v854
      %876 = vmatprep.subr.bf16.mxu0 0
      %877 = vmatpush1.bf16.msra.mxu0 %v855
      %878 = vmatprep.subr.bf16.mxu0 0
      %879 = vmatpush1.bf16.msra.mxu0 %v856
      %880 = vmatprep.subr.bf16.mxu0 0
      %881 = vmatpush1.bf16.msra.mxu0 %v857
      %882 = vmatprep.subr.bf16.mxu0 0
      %883 = vmatpush1.bf16.msra.mxu0 0
      %884 = vmatprep.subr.bf16.mxu0 0
      %885 = vmatpush1.bf16.msra.mxu0 0
      %886 = vmatprep.subr.bf16.mxu0 0
      %887 = vmatpush1.bf16.msra.mxu0 0
      %888 = vmatprep.subr.bf16.mxu0 0
      %889 = vmatpush1.bf16.msra.mxu0 0
      %890 = vmatprep.subr.bf16.mxu0 0
      %891 = vmatpush1.bf16.msra.mxu0 0
      %892 = vmatprep.subr.bf16.mxu0 0
      %893 = vmatpush1.bf16.msra.mxu0 0
      %894 = vmatprep.subr.bf16.mxu0 0
      %895 = vmatpush1.bf16.msra.mxu0 0
      %896 = vmatprep.subr.bf16.mxu0 0
      %897 = vmatpush1.bf16.msra.mxu0 0
      %898 = vmatprep.mubr.bf16.mxu0 0
      %899 = vmatmul.mubr.bf16.gmra.mrb[0].mxu0 %v690
      %v900 = vpop.f32.mrb[0].mxu0
      %v901 = vadd.f32 %v432, %v900
      %v902 = vpop.f32.mrb[0].mxu0
      %v903 = vpop.f32.mrb[0].mxu0
      %v904 = vadd.f32 %v432, %v903
      %v905 = vpop.f32.mrb[0].mxu0
      %906 = vmatprep.mubr.bf16.mxu0 0
      %907 = vmatmul.mubr.bf16.gmra.mrb[0].mxu0 %v691
      %v908 = vpop.f32.mrb[0].mxu0
      %v909 = vadd.f32 %v432, %v908
      %v910 = vpop.f32.mrb[0].mxu0
      %v911 = vpop.f32.mrb[0].mxu0
      %v912 = vadd.f32 %v432, %v911
      %v913 = vpop.f32.mrb[0].mxu0
      %914 = vmatprep.mubr.bf16.mxu0 0
      %915 = vmatmul.mubr.bf16.gmra.mrb[0].mxu0 %v692
      %v916 = vpop.f32.mrb[0].mxu0
      %v917 = vadd.f32 %v432, %v916
      %v918 = vpop.f32.mrb[0].mxu0
      %v919 = vpop.f32.mrb[0].mxu0
      %v920 = vadd.f32 %v432, %v919
      %v921 = vpop.f32.mrb[0].mxu0
      %922 = vmatprep.mubr.bf16.mxu0 0
      %923 = vmatmul.mubr.bf16.gmra.mrb[0].mxu0 %v693
      %v924 = vpop.f32.mrb[0].mxu0
      %v925 = vadd.f32 %v432, %v924
      %v926 = vpop.f32.mrb[0].mxu0
      %v927 = vpop.f32.mrb[0].mxu0
      %v928 = vadd.f32 %v432, %v927
      %v929 = vpop.f32.mrb[0].mxu0
      %930 = vmatprep.mubr.bf16.mxu0 0
      %931 = vmatmul.mubr.bf16.gmra.mrb[0].mxu0 %v694
      %v932 = vpop.f32.mrb[0].mxu0
      %v933 = vadd.f32 %v432, %v932
      %v934 = vpop.f32.mrb[0].mxu0
      %v935 = vpop.f32.mrb[0].mxu0
      %v936 = vadd.f32 %v432, %v935
      %v937 = vpop.f32.mrb[0].mxu0
      %938 = vmatprep.mubr.bf16.mxu0 0
      %939 = vmatmul.mubr.bf16.gmra.mrb[0].mxu0 %v695
      %v940 = vpop.f32.mrb[0].mxu0
      %v941 = vadd.f32 %v432, %v940
      %v942 = vpop.f32.mrb[0].mxu0
      %v943 = vpop.f32.mrb[0].mxu0
      %v944 = vadd.f32 %v432, %v943
      %v945 = vpop.f32.mrb[0].mxu0
      %946 = vmatprep.mubr.bf16.mxu0 0
      %947 = vmatmul.mubr.bf16.gmra.mrb[0].mxu0 %v696
      %v948 = vpop.f32.mrb[0].mxu0
      %v949 = vadd.f32 %v432, %v948
      %v950 = vpop.f32.mrb[0].mxu0
      %v951 = vpop.f32.mrb[0].mxu0
      %v952 = vadd.f32 %v432, %v951
      %v953 = vpop.f32.mrb[0].mxu0
      %954 = vmatprep.mubr.bf16.mxu0 0
      %955 = vmatmul.mubr.bf16.gmra.mrb[0].mxu0 %v697
      %v956 = vpop.f32.mrb[0].mxu0
      %v957 = vadd.f32 %v432, %v956
      %v958 = vpop.f32.mrb[0].mxu0
      %v959 = vpop.f32.mrb[0].mxu0
      %v960 = vadd.f32 %v432, %v959
      %v961 = vpop.f32.mrb[0].mxu0
      %962 = vmatprep.mubr.bf16.mxu0 0
      %963 = vmatmul.mubr.bf16.gmra.mrb[0].mxu0 %v698
      %v964 = vpop.f32.mrb[0].mxu0
      %v965 = vadd.f32 %v432, %v964
      %v966 = vpop.f32.mrb[0].mxu0
      %v967 = vpop.f32.mrb[0].mxu0
      %v968 = vadd.f32 %v432, %v967
      %v969 = vpop.f32.mrb[0].mxu0
      %970 = vmatprep.mubr.bf16.mxu0 0
      %971 = vmatmul.mubr.bf16.gmra.mrb[0].mxu0 %v699
      %v972 = vpop.f32.mrb[0].mxu0
      %v973 = vadd.f32 %v432, %v972
      %v974 = vpop.f32.mrb[0].mxu0
      %v975 = vpop.f32.mrb[0].mxu0
      %v976 = vadd.f32 %v432, %v975
      %v977 = vpop.f32.mrb[0].mxu0
      %978 = vmatprep.mubr.bf16.mxu0 0
      %979 = vmatmul.mubr.bf16.gmra.mrb[0].mxu0 %v700
      %v980 = vpop.f32.mrb[0].mxu0
      %v981 = vadd.f32 %v432, %v980
      %v982 = vpop.f32.mrb[0].mxu0
      %v983 = vpop.f32.mrb[0].mxu0
      %v984 = vadd.f32 %v432, %v983
      %v985 = vpop.f32.mrb[0].mxu0
      %986 = vmatprep.mubr.bf16.mxu0 0
      %987 = vmatmul.mubr.bf16.gmra.mrb[0].mxu0 %v701
      %v988 = vpop.f32.mrb[0].mxu0
      %v989 = vadd.f32 %v432, %v988
      %v990 = vpop.f32.mrb[0].mxu0
      %v991 = vpop.f32.mrb[0].mxu0
      %v992 = vadd.f32 %v432, %v991
      %v993 = vpop.f32.mrb[0].mxu0
      %994 = vmatprep.mubr.bf16.mxu0 0
      %995 = vmatmul.mubr.bf16.gmra.mrb[0].mxu0 %v702
      %v996 = vpop.f32.mrb[0].mxu0
      %v997 = vadd.f32 %v432, %v996
      %v998 = vpop.f32.mrb[0].mxu0
      %v999 = vpop.f32.mrb[0].mxu0
      %v1000 = vadd.f32 %v432, %v999
      %v1001 = vpop.f32.mrb[0].mxu0
      %1002 = vmatprep.mubr.bf16.mxu0 0
      %1003 = vmatmul.mubr.bf16.gmra.mrb[0].mxu0 %v703
      %v1004 = vpop.f32.mrb[0].mxu0
      %v1005 = vadd.f32 %v432, %v1004
      %v1006 = vpop.f32.mrb[0].mxu0
      %v1007 = vpop.f32.mrb[0].mxu0
      %v1008 = vadd.f32 %v432, %v1007
      %v1009 = vpop.f32.mrb[0].mxu0
      %1010 = vmatprep.mubr.bf16.mxu0 0
      %1011 = vmatmul.mubr.bf16.gmra.mrb[0].mxu0 %v704
      %v1012 = vpop.f32.mrb[0].mxu0
      %v1013 = vadd.f32 %v432, %v1012
      %v1014 = vpop.f32.mrb[0].mxu0
      %v1015 = vpop.f32.mrb[0].mxu0
      %v1016 = vadd.f32 %v432, %v1015
      %v1017 = vpop.f32.mrb[0].mxu0
      %1018 = vmatprep.mubr.bf16.mxu0 0
      %1019 = vmatmul.mubr.bf16.gmra.mrb[0].mxu0 %v705
      %v1020 = vpop.f32.mrb[0].mxu0
      %v1021 = vadd.f32 %v432, %v1020
      %v1022 = vpop.f32.mrb[0].mxu0
      %v1023 = vpop.f32.mrb[0].mxu0
      %v1024 = vadd.f32 %v432, %v1023
      %v1025 = vpop.f32.mrb[0].mxu0
      %1026 = vmatprep.mubr.bf16.mxu0 0
      %1027 = vmatmul.mubr.bf16.gmra.mrb[0].mxu0 %v706
      %v1028 = vpop.f32.mrb[0].mxu0
      %v1029 = vadd.f32 %v432, %v1028
      %v1030 = vpop.f32.mrb[0].mxu0
      %v1031 = vpop.f32.mrb[0].mxu0
      %v1032 = vadd.f32 %v432, %v1031
      %v1033 = vpop.f32.mrb[0].mxu0
      %1034 = vmatprep.mubr.bf16.mxu0 0
      %1035 = vmatmul.mubr.bf16.gmra.mrb[0].mxu0 %v707
      %v1036 = vpop.f32.mrb[0].mxu0
      %v1037 = vadd.f32 %v432, %v1036
      %v1038 = vpop.f32.mrb[0].mxu0
      %v1039 = vpop.f32.mrb[0].mxu0
      %v1040 = vadd.f32 %v432, %v1039
      %v1041 = vpop.f32.mrb[0].mxu0
      %1042 = vmatprep.mubr.bf16.mxu0 0
      %1043 = vmatmul.mubr.bf16.gmra.mrb[0].mxu0 %v708
      %v1044 = vpop.f32.mrb[0].mxu0
      %v1045 = vadd.f32 %v432, %v1044
      %v1046 = vpop.f32.mrb[0].mxu0
      %v1047 = vpop.f32.mrb[0].mxu0
      %v1048 = vadd.f32 %v432, %v1047
      %v1049 = vpop.f32.mrb[0].mxu0
      %1050 = vmatprep.mubr.bf16.mxu0 0
      %1051 = vmatmul.mubr.bf16.gmra.mrb[0].mxu0 %v709
      %v1052 = vpop.f32.mrb[0].mxu0
      %v1053 = vadd.f32 %v432, %v1052
      %v1054 = vpop.f32.mrb[0].mxu0
      %v1055 = vpop.f32.mrb[0].mxu0
      %v1056 = vadd.f32 %v432, %v1055
      %v1057 = vpop.f32.mrb[0].mxu0
      %1058 = vmatprep.mubr.bf16.mxu0 0
      %1059 = vmatmul.mubr.bf16.gmra.mrb[0].mxu0 %v710
      %v1060 = vpop.f32.mrb[0].mxu0
      %v1061 = vadd.f32 %v432, %v1060
      %v1062 = vpop.f32.mrb[0].mxu0
      %v1063 = vpop.f32.mrb[0].mxu0
      %v1064 = vadd.f32 %v432, %v1063
      %v1065 = vpop.f32.mrb[0].mxu0
      %1066 = vmatprep.mubr.bf16.mxu0 0
      %1067 = vmatmul.mubr.bf16.gmra.mrb[0].mxu0 %v711
      %v1068 = vpop.f32.mrb[0].mxu0
      %v1069 = vadd.f32 %v432, %v1068
      %v1070 = vpop.f32.mrb[0].mxu0
      %v1071 = vpop.f32.mrb[0].mxu0
      %v1072 = vadd.f32 %v432, %v1071
      %v1073 = vpop.f32.mrb[0].mxu0
      %1074 = vmatprep.mubr.bf16.mxu0 0
      %1075 = vmatmul.mubr.bf16.gmra.mrb[0].mxu0 %v712
      %v1076 = vpop.f32.mrb[0].mxu0
      %v1077 = vadd.f32 %v432, %v1076
      %v1078 = vpop.f32.mrb[0].mxu0
      %v1079 = vpop.f32.mrb[0].mxu0
      %v1080 = vadd.f32 %v432, %v1079
      %v1081 = vpop.f32.mrb[0].mxu0
      %1082 = vmatprep.mubr.bf16.mxu0 0
      %1083 = vmatmul.mubr.bf16.gmra.mrb[0].mxu0 %v713
      %v1084 = vpop.f32.mrb[0].mxu0
      %v1085 = vadd.f32 %v432, %v1084
      %v1086 = vpop.f32.mrb[0].mxu0
      %v1087 = vpop.f32.mrb[0].mxu0
      %v1088 = vadd.f32 %v432, %v1087
      %v1089 = vpop.f32.mrb[0].mxu0
      %1090 = vmatprep.mubr.bf16.mxu0 0
      %1091 = vmatmul.mubr.bf16.gmra.mrb[0].mxu0 %v714
      %v1092 = vpop.f32.mrb[0].mxu0
      %v1093 = vadd.f32 %v432, %v1092
      %v1094 = vpop.f32.mrb[0].mxu0
      %v1095 = vpop.f32.mrb[0].mxu0
      %v1096 = vadd.f32 %v432, %v1095
      %v1097 = vpop.f32.mrb[0].mxu0
      %1098 = vmatprep.mubr.bf16.mxu0 0
      %1099 = vmatmul.mubr.bf16.gmra.mrb[0].mxu0 %v715
      %v1100 = vpop.f32.mrb[0].mxu0
      %v1101 = vadd.f32 %v432, %v1100
      %v1102 = vpop.f32.mrb[0].mxu0
      %v1103 = vpop.f32.mrb[0].mxu0
      %v1104 = vadd.f32 %v432, %v1103
      %v1105 = vpop.f32.mrb[0].mxu0
      %1106 = vmatprep.mubr.bf16.mxu0 0
      %1107 = vmatmul.mubr.bf16.gmra.mrb[0].mxu0 %v716
      %v1108 = vpop.f32.mrb[0].mxu0
      %v1109 = vadd.f32 %v432, %v1108
      %v1110 = vpop.f32.mrb[0].mxu0
      %v1111 = vpop.f32.mrb[0].mxu0
      %v1112 = vadd.f32 %v432, %v1111
      %v1113 = vpop.f32.mrb[0].mxu0
      %1114 = vmatprep.mubr.bf16.mxu0 0
      %1115 = vmatmul.mubr.bf16.gmra.mrb[0].mxu0 %v717
      %v1116 = vpop.f32.mrb[0].mxu0
      %v1117 = vadd.f32 %v432, %v1116
      %v1118 = vpop.f32.mrb[0].mxu0
      %v1119 = vpop.f32.mrb[0].mxu0
      %v1120 = vadd.f32 %v432, %v1119
      %v1121 = vpop.f32.mrb[0].mxu0
      %1122 = vmatprep.mubr.bf16.mxu0 0
      %1123 = vmatmul.mubr.bf16.gmra.mrb[0].mxu0 %v718
      %v1124 = vpop.f32.mrb[0].mxu0
      %v1125 = vadd.f32 %v432, %v1124
      %v1126 = vpop.f32.mrb[0].mxu0
      %v1127 = vpop.f32.mrb[0].mxu0
      %v1128 = vadd.f32 %v432, %v1127
      %v1129 = vpop.f32.mrb[0].mxu0
      %1130 = vmatprep.mubr.bf16.mxu0 0
      %1131 = vmatmul.mubr.bf16.gmra.mrb[0].mxu0 %v719
      %v1132 = vpop.f32.mrb[0].mxu0
      %v1133 = vadd.f32 %v432, %v1132
      %v1134 = vpop.f32.mrb[0].mxu0
      %v1135 = vpop.f32.mrb[0].mxu0
      %v1136 = vadd.f32 %v432, %v1135
      %v1137 = vpop.f32.mrb[0].mxu0
      %1138 = vmatprep.mubr.bf16.mxu0 0
      %1139 = vmatmul.mubr.bf16.gmra.mrb[0].mxu0 %v720
      %v1140 = vpop.f32.mrb[0].mxu0
      %v1141 = vadd.f32 %v432, %v1140
      %v1142 = vpop.f32.mrb[0].mxu0
      %v1143 = vpop.f32.mrb[0].mxu0
      %v1144 = vadd.f32 %v432, %v1143
      %v1145 = vpop.f32.mrb[0].mxu0
      %1146 = vmatprep.mubr.bf16.mxu0 0
      %1147 = vmatmul.mubr.bf16.gmra.mrb[0].mxu0 %v721
      %v1148 = vpop.f32.mrb[0].mxu0
      %v1149 = vadd.f32 %v432, %v1148
      %v1150 = vpop.f32.mrb[0].mxu0
      %v1151 = vpop.f32.mrb[0].mxu0
      %v1152 = vadd.f32 %v432, %v1151
      %v1153 = vpop.f32.mrb[0].mxu0
      %1154 = vmatprep.mubr.bf16.mxu0 0
      %1155 = vmatmul.mubr.bf16.gmra.mrb[0].mxu0 %v722
      %v1156 = vpop.f32.mrb[0].mxu0
      %v1157 = vadd.f32 %v432, %v1156
      %v1158 = vpop.f32.mrb[0].mxu0
      %v1159 = vpop.f32.mrb[0].mxu0
      %v1160 = vadd.f32 %v432, %v1159
      %v1161 = vpop.f32.mrb[0].mxu0
      %1162 = vmatprep.mubr.bf16.mxu0 0
      %1163 = vmatmul.mubr.bf16.gmra.mrb[0].mxu0 %v723
      %v1164 = vpop.f32.mrb[0].mxu0
      %v1165 = vadd.f32 %v432, %v1164
      %v1166 = vpop.f32.mrb[0].mxu0
      %v1167 = vpop.f32.mrb[0].mxu0
      %v1168 = vadd.f32 %v432, %v1167
      %v1169 = vpop.f32.mrb[0].mxu0
      %1170 = vmatprep.mubr.bf16.mxu0 0
      %1171 = vmatmul.mubr.bf16.gmra.mrb[0].mxu0 %v724
      %v1172 = vpop.f32.mrb[0].mxu0
      %v1173 = vadd.f32 %v432, %v1172
      %v1174 = vpop.f32.mrb[0].mxu0
      %v1175 = vpop.f32.mrb[0].mxu0
      %v1176 = vadd.f32 %v432, %v1175
      %v1177 = vpop.f32.mrb[0].mxu0
      %1178 = vmatprep.mubr.bf16.mxu0 0
      %1179 = vmatmul.mubr.bf16.gmra.mrb[0].mxu0 %v725
      %v1180 = vpop.f32.mrb[0].mxu0
      %v1181 = vadd.f32 %v432, %v1180
      %v1182 = vpop.f32.mrb[0].mxu0
      %v1183 = vpop.f32.mrb[0].mxu0
      %v1184 = vadd.f32 %v432, %v1183
      %v1185 = vpop.f32.mrb[0].mxu0
      %1186 = vmatprep.mubr.bf16.mxu0 0
      %1187 = vmatmul.mubr.bf16.gmra.mrb[0].mxu0 %v726
      %v1188 = vpop.f32.mrb[0].mxu0
      %v1189 = vadd.f32 %v432, %v1188
      %v1190 = vpop.f32.mrb[0].mxu0
      %v1191 = vpop.f32.mrb[0].mxu0
      %v1192 = vadd.f32 %v432, %v1191
      %v1193 = vpop.f32.mrb[0].mxu0
      %1194 = vmatprep.mubr.bf16.mxu0 0
      %1195 = vmatmul.mubr.bf16.gmra.mrb[0].mxu0 %v727
      %v1196 = vpop.f32.mrb[0].mxu0
      %v1197 = vadd.f32 %v432, %v1196
      %v1198 = vpop.f32.mrb[0].mxu0
      %v1199 = vpop.f32.mrb[0].mxu0
      %v1200 = vadd.f32 %v432, %v1199
      %v1201 = vpop.f32.mrb[0].mxu0
      %1202 = vmatprep.mubr.bf16.mxu0 0
      %1203 = vmatmul.mubr.bf16.gmra.mrb[0].mxu0 %v728
      %v1204 = vpop.f32.mrb[0].mxu0
      %v1205 = vadd.f32 %v432, %v1204
      %v1206 = vpop.f32.mrb[0].mxu0
      %v1207 = vpop.f32.mrb[0].mxu0
      %v1208 = vadd.f32 %v432, %v1207
      %v1209 = vpop.f32.mrb[0].mxu0
      %1210 = vmatprep.mubr.bf16.mxu0 0
      %1211 = vmatmul.mubr.bf16.gmra.mrb[0].mxu0 %v729
      %v1212 = vpop.f32.mrb[0].mxu0
      %v1213 = vadd.f32 %v432, %v1212
      %v1214 = vpop.f32.mrb[0].mxu0
      %v1215 = vpop.f32.mrb[0].mxu0
      %v1216 = vadd.f32 %v432, %v1215
      %v1217 = vpop.f32.mrb[0].mxu0
      %1218 = vmatprep.mubr.bf16.mxu0 0
      %1219 = vmatmul.mubr.bf16.gmra.mrb[0].mxu0 %v730
      %v1220 = vpop.f32.mrb[0].mxu0
      %v1221 = vadd.f32 %v432, %v1220
      %v1222 = vpop.f32.mrb[0].mxu0
      %v1223 = vpop.f32.mrb[0].mxu0
      %v1224 = vadd.f32 %v432, %v1223
      %v1225 = vpop.f32.mrb[0].mxu0
      %1226 = vmatprep.mubr.bf16.mxu0 0
      %1227 = vmatmul.mubr.bf16.gmra.mrb[0].mxu0 %v731
      %v1228 = vpop.f32.mrb[0].mxu0
      %v1229 = vadd.f32 %v432, %v1228
      %v1230 = vpop.f32.mrb[0].mxu0
      %v1231 = vpop.f32.mrb[0].mxu0
      %v1232 = vadd.f32 %v432, %v1231
      %v1233 = vpop.f32.mrb[0].mxu0
      %1234 = vmatprep.mubr.bf16.mxu0 0
      %1235 = vmatmul.mubr.bf16.gmra.mrb[0].mxu0 %v732
      %v1236 = vpop.f32.mrb[0].mxu0
      %v1237 = vadd.f32 %v432, %v1236
      %v1238 = vpop.f32.mrb[0].mxu0
      %v1239 = vpop.f32.mrb[0].mxu0
      %v1240 = vadd.f32 %v432, %v1239
      %v1241 = vpop.f32.mrb[0].mxu0
      %1242 = vmatprep.mubr.bf16.mxu0 0
      %1243 = vmatmul.mubr.bf16.gmra.mrb[0].mxu0 %v733
      %v1244 = vpop.f32.mrb[0].mxu0
      %v1245 = vadd.f32 %v432, %v1244
      %v1246 = vpop.f32.mrb[0].mxu0
      %v1247 = vpop.f32.mrb[0].mxu0
      %v1248 = vadd.f32 %v432, %v1247
      %v1249 = vpop.f32.mrb[0].mxu0
      %1250 = vmatprep.mubr.bf16.mxu0 0
      %1251 = vmatmul.mubr.bf16.gmra.mrb[0].mxu0 %v734
      %v1252 = vpop.f32.mrb[0].mxu0
      %v1253 = vadd.f32 %v432, %v1252
      %v1254 = vpop.f32.mrb[0].mxu0
      %v1255 = vpop.f32.mrb[0].mxu0
      %v1256 = vadd.f32 %v432, %v1255
      %v1257 = vpop.f32.mrb[0].mxu0
      %1258 = vmatprep.mubr.bf16.mxu0 0
      %1259 = vmatmul.mubr.bf16.gmra.mrb[0].mxu0 %v735
      %v1260 = vpop.f32.mrb[0].mxu0
      %v1261 = vadd.f32 %v432, %v1260
      %v1262 = vpop.f32.mrb[0].mxu0
      %v1263 = vpop.f32.mrb[0].mxu0
      %v1264 = vadd.f32 %v432, %v1263
      %v1265 = vpop.f32.mrb[0].mxu0
      %1266 = vmatprep.mubr.bf16.mxu0 0
      %1267 = vmatmul.mubr.bf16.gmra.mrb[0].mxu0 %v736
      %v1268 = vpop.f32.mrb[0].mxu0
      %v1269 = vadd.f32 %v432, %v1268
      %v1270 = vpop.f32.mrb[0].mxu0
      %v1271 = vpop.f32.mrb[0].mxu0
      %v1272 = vadd.f32 %v432, %v1271
      %v1273 = vpop.f32.mrb[0].mxu0
      %1274 = vmatprep.mubr.bf16.mxu0 0
      %1275 = vmatmul.mubr.bf16.gmra.mrb[0].mxu0 %v737
      %v1276 = vpop.f32.mrb[0].mxu0
      %v1277 = vadd.f32 %v432, %v1276
      %v1278 = vpop.f32.mrb[0].mxu0
      %v1279 = vpop.f32.mrb[0].mxu0
      %v1280 = vadd.f32 %v432, %v1279
      %v1281 = vpop.f32.mrb[0].mxu0
      %1282 = vmatprep.mubr.bf16.mxu0 0
      %1283 = vmatmul.mubr.bf16.gmra.mrb[0].mxu0 %v738
      %v1284 = vpop.f32.mrb[0].mxu0
      %v1285 = vadd.f32 %v432, %v1284
      %v1286 = vpop.f32.mrb[0].mxu0
      %v1287 = vpop.f32.mrb[0].mxu0
      %v1288 = vadd.f32 %v432, %v1287
      %v1289 = vpop.f32.mrb[0].mxu0
      %1290 = vmatprep.mubr.bf16.mxu0 0
      %1291 = vmatmul.mubr.bf16.gmra.mrb[0].mxu0 %v739
      %v1292 = vpop.f32.mrb[0].mxu0
      %v1293 = vadd.f32 %v432, %v1292
      %v1294 = vpop.f32.mrb[0].mxu0
      %v1295 = vpop.f32.mrb[0].mxu0
      %v1296 = vadd.f32 %v432, %v1295
      %v1297 = vpop.f32.mrb[0].mxu0
      %1298 = vmatprep.mubr.bf16.mxu0 0
      %1299 = vmatmul.mubr.bf16.gmra.mrb[0].mxu0 %v740
      %v1300 = vpop.f32.mrb[0].mxu0
      %v1301 = vadd.f32 %v432, %v1300
      %v1302 = vpop.f32.mrb[0].mxu0
      %v1303 = vpop.f32.mrb[0].mxu0
      %v1304 = vadd.f32 %v432, %v1303
      %v1305 = vpop.f32.mrb[0].mxu0
      %1306 = vmatprep.mubr.bf16.mxu0 0
      %1307 = vmatmul.mubr.bf16.gmra.mrb[0].mxu0 %v741
      %v1308 = vpop.f32.mrb[0].mxu0
      %v1309 = vadd.f32 %v432, %v1308
      %v1310 = vpop.f32.mrb[0].mxu0
      %v1311 = vpop.f32.mrb[0].mxu0
      %v1312 = vadd.f32 %v432, %v1311
      %v1313 = vpop.f32.mrb[0].mxu0
      %1314 = vmatprep.mubr.bf16.mxu0 0
      %1315 = vmatmul.mubr.bf16.gmra.mrb[0].mxu0 %v742
      %v1316 = vpop.f32.mrb[0].mxu0
      %v1317 = vadd.f32 %v432, %v1316
      %v1318 = vpop.f32.mrb[0].mxu0
      %v1319 = vpop.f32.mrb[0].mxu0
      %v1320 = vadd.f32 %v432, %v1319
      %v1321 = vpop.f32.mrb[0].mxu0
      %1322 = vmatprep.mubr.bf16.mxu0 0
      %1323 = vmatmul.mubr.bf16.gmra.mrb[0].mxu0 %v743
      %v1324 = vpop.f32.mrb[0].mxu0
      %v1325 = vadd.f32 %v432, %v1324
      %v1326 = vpop.f32.mrb[0].mxu0
      %v1327 = vpop.f32.mrb[0].mxu0
      %v1328 = vadd.f32 %v432, %v1327
      %v1329 = vpop.f32.mrb[0].mxu0
      %1330 = vmatprep.mubr.bf16.mxu0 0
      %1331 = vmatmul.mubr.bf16.gmra.mrb[0].mxu0 %v744
      %v1332 = vpop.f32.mrb[0].mxu0
      %v1333 = vadd.f32 %v432, %v1332
      %v1334 = vpop.f32.mrb[0].mxu0
      %v1335 = vpop.f32.mrb[0].mxu0
      %v1336 = vadd.f32 %v432, %v1335
      %v1337 = vpop.f32.mrb[0].mxu0
      %1338 = vmatprep.mubr.bf16.mxu0 0
      %1339 = vmatmul.mubr.bf16.gmra.mrb[0].mxu0 %v745
      %v1340 = vpop.f32.mrb[0].mxu0
      %v1341 = vadd.f32 %v432, %v1340
      %v1342 = vpop.f32.mrb[0].mxu0
      %v1343 = vpop.f32.mrb[0].mxu0
      %v1344 = vadd.f32 %v432, %v1343
      %v1345 = vpop.f32.mrb[0].mxu0
      %1346 = vmatprep.mubr.bf16.mxu0 0
      %1347 = vmatmul.mubr.bf16.gmra.mrb[0].mxu0 %v746
      %v1348 = vpop.f32.mrb[0].mxu0
      %v1349 = vadd.f32 %v432, %v1348
      %v1350 = vpop.f32.mrb[0].mxu0
      %v1351 = vpop.f32.mrb[0].mxu0
      %v1352 = vadd.f32 %v432, %v1351
      %v1353 = vpop.f32.mrb[0].mxu0
      %1354 = vmatprep.mubr.bf16.mxu0 0
      %1355 = vmatmul.mubr.bf16.gmra.mrb[0].mxu0 %v747
      %v1356 = vpop.f32.mrb[0].mxu0
      %v1357 = vadd.f32 %v432, %v1356
      %v1358 = vpop.f32.mrb[0].mxu0
      %v1359 = vpop.f32.mrb[0].mxu0
      %v1360 = vadd.f32 %v432, %v1359
      %v1361 = vpop.f32.mrb[0].mxu0
      %1362 = vmatprep.mubr.bf16.mxu0 0
      %1363 = vmatmul.mubr.bf16.gmra.mrb[0].mxu0 %v748
      %v1364 = vpop.f32.mrb[0].mxu0
      %v1365 = vadd.f32 %v432, %v1364
      %v1366 = vpop.f32.mrb[0].mxu0
      %v1367 = vpop.f32.mrb[0].mxu0
      %v1368 = vadd.f32 %v432, %v1367
      %v1369 = vpop.f32.mrb[0].mxu0
      %1370 = vmatprep.mubr.bf16.mxu0 0
      %1371 = vmatmul.mubr.bf16.gmra.mrb[0].mxu0 %v749
      %v1372 = vpop.f32.mrb[0].mxu0
      %v1373 = vadd.f32 %v432, %v1372
      %v1374 = vpop.f32.mrb[0].mxu0
      %v1375 = vpop.f32.mrb[0].mxu0
      %v1376 = vadd.f32 %v432, %v1375
      %v1377 = vpop.f32.mrb[0].mxu0
      %1378 = vmatprep.mubr.bf16.mxu0 0
      %1379 = vmatmul.mubr.bf16.gmra.mrb[0].mxu0 %v750
      %v1380 = vpop.f32.mrb[0].mxu0
      %v1381 = vadd.f32 %v432, %v1380
      %v1382 = vpop.f32.mrb[0].mxu0
      %v1383 = vpop.f32.mrb[0].mxu0
      %v1384 = vadd.f32 %v432, %v1383
      %v1385 = vpop.f32.mrb[0].mxu0
      %1386 = vmatprep.mubr.bf16.mxu0 0
      %1387 = vmatmul.mubr.bf16.gmra.mrb[0].mxu0 %v751
      %v1388 = vpop.f32.mrb[0].mxu0
      %v1389 = vadd.f32 %v432, %v1388
      %v1390 = vpop.f32.mrb[0].mxu0
      %v1391 = vpop.f32.mrb[0].mxu0
      %v1392 = vadd.f32 %v432, %v1391
      %v1393 = vpop.f32.mrb[0].mxu0
      %1394 = vmatprep.mubr.bf16.mxu0 0
      %1395 = vmatmul.mubr.bf16.gmra.mrb[0].mxu0 %v752
      %v1396 = vpop.f32.mrb[0].mxu0
      %v1397 = vadd.f32 %v432, %v1396
      %v1398 = vpop.f32.mrb[0].mxu0
      %v1399 = vpop.f32.mrb[0].mxu0
      %v1400 = vadd.f32 %v432, %v1399
      %v1401 = vpop.f32.mrb[0].mxu0
      %1402 = vmatprep.mubr.bf16.mxu0 0
      %1403 = vmatmul.mubr.bf16.gmra.mrb[0].mxu0 %v753
      %v1404 = vpop.f32.mrb[0].mxu0
      %v1405 = vadd.f32 %v432, %v1404
      %v1406 = vpop.f32.mrb[0].mxu0
      %v1407 = vpop.f32.mrb[0].mxu0
      %v1408 = vadd.f32 %v432, %v1407
      %v1409 = vpop.f32.mrb[0].mxu0
      %1410 = vdwg.mxu0
      %v1411 = vmax.f32 %v901, 0.0
      %v1412 = vmax.f32 %v904, 0.0
      %v1413 = vmax.f32 %v909, 0.0
      %v1414 = vmax.f32 %v912, 0.0
      %v1415 = vmax.f32 %v917, 0.0
      %v1416 = vmax.f32 %v920, 0.0
      %v1417 = vmax.f32 %v925, 0.0
      %v1418 = vmax.f32 %v928, 0.0
      %v1419 = vmax.f32 %v933, 0.0
      %v1420 = vmax.f32 %v936, 0.0
      %v1421 = vmax.f32 %v941, 0.0
      %v1422 = vmax.f32 %v944, 0.0
      %v1423 = vmax.f32 %v949, 0.0
      %v1424 = vmax.f32 %v952, 0.0
      %v1425 = vmax.f32 %v957, 0.0
      %v1426 = vmax.f32 %v960, 0.0
      %v1427 = vmax.f32 %v965, 0.0
      %v1428 = vmax.f32 %v968, 0.0
      %v1429 = vmax.f32 %v973, 0.0
      %v1430 = vmax.f32 %v976, 0.0
      %v1431 = vmax.f32 %v981, 0.0
      %v1432 = vmax.f32 %v984, 0.0
      %v1433 = vmax.f32 %v989, 0.0
      %v1434 = vmax.f32 %v992, 0.0
      %v1435 = vmax.f32 %v997, 0.0
      %v1436 = vmax.f32 %v1000, 0.0
      %v1437 = vmax.f32 %v1005, 0.0
      %v1438 = vmax.f32 %v1008, 0.0
      %v1439 = vmax.f32 %v1013, 0.0
      %v1440 = vmax.f32 %v1016, 0.0
      %v1441 = vmax.f32 %v1021, 0.0
      %v1442 = vmax.f32 %v1024, 0.0
      %v1443 = vmax.f32 %v1029, 0.0
      %v1444 = vmax.f32 %v1032, 0.0
      %v1445 = vmax.f32 %v1037, 0.0
      %v1446 = vmax.f32 %v1040, 0.0
      %v1447 = vmax.f32 %v1045, 0.0
      %v1448 = vmax.f32 %v1048, 0.0
      %v1449 = vmax.f32 %v1053, 0.0
      %v1450 = vmax.f32 %v1056, 0.0
      %v1451 = vmax.f32 %v1061, 0.0
      %v1452 = vmax.f32 %v1064, 0.0
      %v1453 = vmax.f32 %v1069, 0.0
      %v1454 = vmax.f32 %v1072, 0.0
      %v1455 = vmax.f32 %v1077, 0.0
      %v1456 = vmax.f32 %v1080, 0.0
      %v1457 = vmax.f32 %v1085, 0.0
      %v1458 = vmax.f32 %v1088, 0.0
      %v1459 = vmax.f32 %v1093, 0.0
      %v1460 = vmax.f32 %v1096, 0.0
      %v1461 = vmax.f32 %v1101, 0.0
      %v1462 = vmax.f32 %v1104, 0.0
      %v1463 = vmax.f32 %v1109, 0.0
      %v1464 = vmax.f32 %v1112, 0.0
      %v1465 = vmax.f32 %v1117, 0.0
      %v1466 = vmax.f32 %v1120, 0.0
      %v1467 = vmax.f32 %v1125, 0.0
      %v1468 = vmax.f32 %v1128, 0.0
      %v1469 = vmax.f32 %v1133, 0.0
      %v1470 = vmax.f32 %v1136, 0.0
      %v1471 = vmax.f32 %v1141, 0.0
      %v1472 = vmax.f32 %v1144, 0.0
      %v1473 = vmax.f32 %v1149, 0.0
      %v1474 = vmax.f32 %v1152, 0.0
      %v1475 = vmax.f32 %v1157, 0.0
      %v1476 = vmax.f32 %v1160, 0.0
      %v1477 = vmax.f32 %v1165, 0.0
      %v1478 = vmax.f32 %v1168, 0.0
      %v1479 = vmax.f32 %v1173, 0.0
      %v1480 = vmax.f32 %v1176, 0.0
      %v1481 = vmax.f32 %v1181, 0.0
      %v1482 = vmax.f32 %v1184, 0.0
      %v1483 = vmax.f32 %v1189, 0.0
      %v1484 = vmax.f32 %v1192, 0.0
      %v1485 = vmax.f32 %v1197, 0.0
      %v1486 = vmax.f32 %v1200, 0.0
      %v1487 = vmax.f32 %v1205, 0.0
      %v1488 = vmax.f32 %v1208, 0.0
      %v1489 = vmax.f32 %v1213, 0.0
      %v1490 = vmax.f32 %v1216, 0.0
      %v1491 = vmax.f32 %v1221, 0.0
      %v1492 = vmax.f32 %v1224, 0.0
      %v1493 = vmax.f32 %v1229, 0.0
      %v1494 = vmax.f32 %v1232, 0.0
      %v1495 = vmax.f32 %v1237, 0.0
      %v1496 = vmax.f32 %v1240, 0.0
      %v1497 = vmax.f32 %v1245, 0.0
      %v1498 = vmax.f32 %v1248, 0.0
      %v1499 = vmax.f32 %v1253, 0.0
      %v1500 = vmax.f32 %v1256, 0.0
      %v1501 = vmax.f32 %v1261, 0.0
      %v1502 = vmax.f32 %v1264, 0.0
      %v1503 = vmax.f32 %v1269, 0.0
      %v1504 = vmax.f32 %v1272, 0.0
      %v1505 = vmax.f32 %v1277, 0.0
      %v1506 = vmax.f32 %v1280, 0.0
      %v1507 = vmax.f32 %v1285, 0.0
      %v1508 = vmax.f32 %v1288, 0.0
      %v1509 = vmax.f32 %v1293, 0.0
      %v1510 = vmax.f32 %v1296, 0.0
      %v1511 = vmax.f32 %v1301, 0.0
      %v1512 = vmax.f32 %v1304, 0.0
      %v1513 = vmax.f32 %v1309, 0.0
      %v1514 = vmax.f32 %v1312, 0.0
      %v1515 = vmax.f32 %v1317, 0.0
      %v1516 = vmax.f32 %v1320, 0.0
      %v1517 = vmax.f32 %v1325, 0.0
      %v1518 = vmax.f32 %v1328, 0.0
      %v1519 = vmax.f32 %v1333, 0.0
      %v1520 = vmax.f32 %v1336, 0.0
      %v1521 = vmax.f32 %v1341, 0.0
      %v1522 = vmax.f32 %v1344, 0.0
      %v1523 = vmax.f32 %v1349, 0.0
      %v1524 = vmax.f32 %v1352, 0.0
      %v1525 = vmax.f32 %v1357, 0.0
      %v1526 = vmax.f32 %v1360, 0.0
      %v1527 = vmax.f32 %v1365, 0.0
      %v1528 = vmax.f32 %v1368, 0.0
      %v1529 = vmax.f32 %v1373, 0.0
      %v1530 = vmax.f32 %v1376, 0.0
      %v1531 = vmax.f32 %v1381, 0.0
      %v1532 = vmax.f32 %v1384, 0.0
      %v1533 = vmax.f32 %v1389, 0.0
      %v1534 = vmax.f32 %v1392, 0.0
      %v1535 = vmax.f32 %v1397, 0.0
      %v1536 = vmax.f32 %v1400, 0.0
      %v1537 = vmax.f32 %v1405, 0.0
      %v1538 = vmax.f32 %v1408, 0.0
      %v1539 = vpack.c.bf16 %v1412, %v1411
      %v1540 = vpack.c.bf16 %v1414, %v1413
      %v1541 = vpack.c.bf16 %v1416, %v1415
      %v1542 = vpack.c.bf16 %v1418, %v1417
      %v1543 = vpack.c.bf16 %v1420, %v1419
      %v1544 = vpack.c.bf16 %v1422, %v1421
      %v1545 = vpack.c.bf16 %v1424, %v1423
      %v1546 = vpack.c.bf16 %v1426, %v1425
      %v1547 = vpack.c.bf16 %v1428, %v1427
      %v1548 = vpack.c.bf16 %v1430, %v1429
      %v1549 = vpack.c.bf16 %v1432, %v1431
      %v1550 = vpack.c.bf16 %v1434, %v1433
      %v1551 = vpack.c.bf16 %v1436, %v1435
      %v1552 = vpack.c.bf16 %v1438, %v1437
      %v1553 = vpack.c.bf16 %v1440, %v1439
      %v1554 = vpack.c.bf16 %v1442, %v1441
      %v1555 = vpack.c.bf16 %v1444, %v1443
      %v1556 = vpack.c.bf16 %v1446, %v1445
      %v1557 = vpack.c.bf16 %v1448, %v1447
      %v1558 = vpack.c.bf16 %v1450, %v1449
      %v1559 = vpack.c.bf16 %v1452, %v1451
      %v1560 = vpack.c.bf16 %v1454, %v1453
      %v1561 = vpack.c.bf16 %v1456, %v1455
      %v1562 = vpack.c.bf16 %v1458, %v1457
      %v1563 = vpack.c.bf16 %v1460, %v1459
      %v1564 = vpack.c.bf16 %v1462, %v1461
      %v1565 = vpack.c.bf16 %v1464, %v1463
      %v1566 = vpack.c.bf16 %v1466, %v1465
      %v1567 = vpack.c.bf16 %v1468, %v1467
      %v1568 = vpack.c.bf16 %v1470, %v1469
      %v1569 = vpack.c.bf16 %v1472, %v1471
      %v1570 = vpack.c.bf16 %v1474, %v1473
      %v1571 = vpack.c.bf16 %v1476, %v1475
      %v1572 = vpack.c.bf16 %v1478, %v1477
      %v1573 = vpack.c.bf16 %v1480, %v1479
      %v1574 = vpack.c.bf16 %v1482, %v1481
      %v1575 = vpack.c.bf16 %v1484, %v1483
      %v1576 = vpack.c.bf16 %v1486, %v1485
      %v1577 = vpack.c.bf16 %v1488, %v1487
      %v1578 = vpack.c.bf16 %v1490, %v1489
      %v1579 = vpack.c.bf16 %v1492, %v1491
      %v1580 = vpack.c.bf16 %v1494, %v1493
      %v1581 = vpack.c.bf16 %v1496, %v1495
      %v1582 = vpack.c.bf16 %v1498, %v1497
      %v1583 = vpack.c.bf16 %v1500, %v1499
      %v1584 = vpack.c.bf16 %v1502, %v1501
      %v1585 = vpack.c.bf16 %v1504, %v1503
      %v1586 = vpack.c.bf16 %v1506, %v1505
      %v1587 = vpack.c.bf16 %v1508, %v1507
      %v1588 = vpack.c.bf16 %v1510, %v1509
      %v1589 = vpack.c.bf16 %v1512, %v1511
      %v1590 = vpack.c.bf16 %v1514, %v1513
      %v1591 = vpack.c.bf16 %v1516, %v1515
      %v1592 = vpack.c.bf16 %v1518, %v1517
      %v1593 = vpack.c.bf16 %v1520, %v1519
      %v1594 = vpack.c.bf16 %v1522, %v1521
      %v1595 = vpack.c.bf16 %v1524, %v1523
      %v1596 = vpack.c.bf16 %v1526, %v1525
      %v1597 = vpack.c.bf16 %v1528, %v1527
      %v1598 = vpack.c.bf16 %v1530, %v1529
      %v1599 = vpack.c.bf16 %v1532, %v1531
      %v1600 = vpack.c.bf16 %v1534, %v1533
      %v1601 = vpack.c.bf16 %v1536, %v1535
      %v1602 = vpack.c.bf16 %v1538, %v1537
      %v1603 = vld [vmem:[%s3] sm:$0xf]
      %v1604 = vld [vmem:[%s3 + $0x4] sm:$0xf]
      %v1605 = vld [vmem:[%s3 + $0x8] sm:$0xf]
      %v1606 = vld [vmem:[%s3 + $0xc] sm:$0xf]
      %v1607 = vld [vmem:[%s3 + $0x10] sm:$0xf]
      %v1608 = vld [vmem:[%s3 + $0x14] sm:$0xf]
      %v1609 = vld [vmem:[%s3 + $0x18] sm:$0xf]
      %v1610 = vld [vmem:[%s3 + $0x1c] sm:$0xf]
      %v1611 = vld [vmem:[%s3 + $0x20] sm:$0xf]
      %v1612 = vld [vmem:[%s3 + $0x24] sm:$0xf]
      %v1613 = vld [vmem:[%s3 + $0x28] sm:$0xf]
      %v1614 = vld [vmem:[%s3 + $0x2c] sm:$0xf]
      %v1615 = vld [vmem:[%s3 + $0x30] sm:$0xf]
      %v1616 = vld [vmem:[%s3 + $0x34] sm:$0xf]
      %v1617 = vld [vmem:[%s3 + $0x38] sm:$0xf]
      %v1618 = vld [vmem:[%s3 + $0x3c] sm:$0xf]
      %v1619 = vld [vmem:[%s4] sm:$0x1]
      %v1621 = vlaneseq
      %v1622 = vshrl.u32 %v1621, 7
      %v1623 = vsub.s32 0, %v1622
      %v1624 = vrot.slane %v1619, %v1623
      %v1642 = vunpack.c.l.b16 %v1603
      %v1643 = vunpack.c.l.b16 %v1604
      %v1644 = vunpack.c.l.b16 %v1605
      %v1645 = vunpack.c.l.b16 %v1606
      %v1646 = vunpack.c.l.b16 %v1607
      %v1647 = vunpack.c.l.b16 %v1608
      %v1648 = vunpack.c.l.b16 %v1609
      %v1649 = vunpack.c.l.b16 %v1610
      %v1650 = vunpack.c.l.b16 %v1611
      %v1651 = vunpack.c.l.b16 %v1612
      %v1652 = vunpack.c.l.b16 %v1613
      %v1653 = vunpack.c.l.b16 %v1614
      %v1654 = vunpack.c.l.b16 %v1615
      %v1655 = vunpack.c.l.b16 %v1616
      %v1656 = vunpack.c.l.b16 %v1617
      %v1657 = vunpack.c.l.b16 %v1618
      %v1658 = vpack.c.b16 %v1643, %v1642
      %v1659 = vpack.c.b16 %v1645, %v1644
      %v1660 = vpack.c.b16 %v1647, %v1646
      %v1661 = vpack.c.b16 %v1649, %v1648
      %v1662 = vpack.c.b16 %v1651, %v1650
      %v1663 = vpack.c.b16 %v1653, %v1652
      %v1664 = vpack.c.b16 %v1655, %v1654
      %v1665 = vpack.c.b16 %v1657, %v1656
      %1674 = vmatprep.subr.bf16.mxu0 0
      %1675 = vmatpush1.bf16.msra.mxu0 %v1658
      %1676 = vmatprep.subr.bf16.mxu0 0
      %1677 = vmatpush1.bf16.msra.mxu0 %v1659
      %1678 = vmatprep.subr.bf16.mxu0 0
      %1679 = vmatpush1.bf16.msra.mxu0 %v1660
      %1680 = vmatprep.subr.bf16.mxu0 0
      %1681 = vmatpush1.bf16.msra.mxu0 %v1661
      %1682 = vmatprep.subr.bf16.mxu0 0
      %1683 = vmatpush1.bf16.msra.mxu0 %v1662
      %1684 = vmatprep.subr.bf16.mxu0 0
      %1685 = vmatpush1.bf16.msra.mxu0 %v1663
      %1686 = vmatprep.subr.bf16.mxu0 0
      %1687 = vmatpush1.bf16.msra.mxu0 %v1664
      %1688 = vmatprep.subr.bf16.mxu0 0
      %1689 = vmatpush1.bf16.msra.mxu0 %v1665
      %1690 = vmatprep.subr.bf16.mxu0 0
      %1691 = vmatpush1.bf16.msra.mxu0 0
      %1692 = vmatprep.subr.bf16.mxu0 0
      %1693 = vmatpush1.bf16.msra.mxu0 0
      %1694 = vmatprep.subr.bf16.mxu0 0
      %1695 = vmatpush1.bf16.msra.mxu0 0
      %1696 = vmatprep.subr.bf16.mxu0 0
      %1697 = vmatpush1.bf16.msra.mxu0 0
      %1698 = vmatprep.subr.bf16.mxu0 0
      %1699 = vmatpush1.bf16.msra.mxu0 0
      %1700 = vmatprep.subr.bf16.mxu0 0
      %1701 = vmatpush1.bf16.msra.mxu0 0
      %1702 = vmatprep.subr.bf16.mxu0 0
      %1703 = vmatpush1.bf16.msra.mxu0 0
      %1704 = vmatprep.subr.bf16.mxu0 0
      %1705 = vmatpush1.bf16.msra.mxu0 0
      %1706 = vmatprep.mubr.bf16.mxu0 0
      %1707 = vmatmul.mubr.bf16.gmra.mrb[0].mxu0 %v1539
      %v1708 = vpop.f32.mrb[0].mxu0
      %v1709 = vadd.f32 %v1624, %v1708
      %v1710 = vpop.f32.mrb[0].mxu0
      %v1711 = vpop.f32.mrb[0].mxu0
      %v1712 = vadd.f32 %v1624, %v1711
      %v1713 = vpop.f32.mrb[0].mxu0
      %1714 = vmatprep.mubr.bf16.mxu0 0
      %1715 = vmatmul.mubr.bf16.gmra.mrb[0].mxu0 %v1540
      %v1716 = vpop.f32.mrb[0].mxu0
      %v1717 = vadd.f32 %v1624, %v1716
      %v1718 = vpop.f32.mrb[0].mxu0
      %v1719 = vpop.f32.mrb[0].mxu0
      %v1720 = vadd.f32 %v1624, %v1719
      %v1721 = vpop.f32.mrb[0].mxu0
      %1722 = vmatprep.mubr.bf16.mxu0 0
      %1723 = vmatmul.mubr.bf16.gmra.mrb[0].mxu0 %v1541
      %v1724 = vpop.f32.mrb[0].mxu0
      %v1725 = vadd.f32 %v1624, %v1724
      %v1726 = vpop.f32.mrb[0].mxu0
      %v1727 = vpop.f32.mrb[0].mxu0
      %v1728 = vadd.f32 %v1624, %v1727
      %v1729 = vpop.f32.mrb[0].mxu0
      %1730 = vmatprep.mubr.bf16.mxu0 0
      %1731 = vmatmul.mubr.bf16.gmra.mrb[0].mxu0 %v1542
      %v1732 = vpop.f32.mrb[0].mxu0
      %v1733 = vadd.f32 %v1624, %v1732
      %v1734 = vpop.f32.mrb[0].mxu0
      %v1735 = vpop.f32.mrb[0].mxu0
      %v1736 = vadd.f32 %v1624, %v1735
      %v1737 = vpop.f32.mrb[0].mxu0
      %1738 = vmatprep.mubr.bf16.mxu0 0
      %1739 = vmatmul.mubr.bf16.gmra.mrb[0].mxu0 %v1543
      %v1740 = vpop.f32.mrb[0].mxu0
      %v1741 = vadd.f32 %v1624, %v1740
      %v1742 = vpop.f32.mrb[0].mxu0
      %v1743 = vpop.f32.mrb[0].mxu0
      %v1744 = vadd.f32 %v1624, %v1743
      %v1745 = vpop.f32.mrb[0].mxu0
      %1746 = vmatprep.mubr.bf16.mxu0 0
      %1747 = vmatmul.mubr.bf16.gmra.mrb[0].mxu0 %v1544
      %v1748 = vpop.f32.mrb[0].mxu0
      %v1749 = vadd.f32 %v1624, %v1748
      %v1750 = vpop.f32.mrb[0].mxu0
      %v1751 = vpop.f32.mrb[0].mxu0
      %v1752 = vadd.f32 %v1624, %v1751
      %v1753 = vpop.f32.mrb[0].mxu0
      %1754 = vmatprep.mubr.bf16.mxu0 0
      %1755 = vmatmul.mubr.bf16.gmra.mrb[0].mxu0 %v1545
      %v1756 = vpop.f32.mrb[0].mxu0
      %v1757 = vadd.f32 %v1624, %v1756
      %v1758 = vpop.f32.mrb[0].mxu0
      %v1759 = vpop.f32.mrb[0].mxu0
      %v1760 = vadd.f32 %v1624, %v1759
      %v1761 = vpop.f32.mrb[0].mxu0
      %1762 = vmatprep.mubr.bf16.mxu0 0
      %1763 = vmatmul.mubr.bf16.gmra.mrb[0].mxu0 %v1546
      %v1764 = vpop.f32.mrb[0].mxu0
      %v1765 = vadd.f32 %v1624, %v1764
      %v1766 = vpop.f32.mrb[0].mxu0
      %v1767 = vpop.f32.mrb[0].mxu0
      %v1768 = vadd.f32 %v1624, %v1767
      %v1769 = vpop.f32.mrb[0].mxu0
      %1770 = vmatprep.mubr.bf16.mxu0 0
      %1771 = vmatmul.mubr.bf16.gmra.mrb[0].mxu0 %v1547
      %v1772 = vpop.f32.mrb[0].mxu0
      %v1773 = vadd.f32 %v1624, %v1772
      %v1774 = vpop.f32.mrb[0].mxu0
      %v1775 = vpop.f32.mrb[0].mxu0
      %v1776 = vadd.f32 %v1624, %v1775
      %v1777 = vpop.f32.mrb[0].mxu0
      %1778 = vmatprep.mubr.bf16.mxu0 0
      %1779 = vmatmul.mubr.bf16.gmra.mrb[0].mxu0 %v1548
      %v1780 = vpop.f32.mrb[0].mxu0
      %v1781 = vadd.f32 %v1624, %v1780
      %v1782 = vpop.f32.mrb[0].mxu0
      %v1783 = vpop.f32.mrb[0].mxu0
      %v1784 = vadd.f32 %v1624, %v1783
      %v1785 = vpop.f32.mrb[0].mxu0
      %1786 = vmatprep.mubr.bf16.mxu0 0
      %1787 = vmatmul.mubr.bf16.gmra.mrb[0].mxu0 %v1549
      %v1788 = vpop.f32.mrb[0].mxu0
      %v1789 = vadd.f32 %v1624, %v1788
      %v1790 = vpop.f32.mrb[0].mxu0
      %v1791 = vpop.f32.mrb[0].mxu0
      %v1792 = vadd.f32 %v1624, %v1791
      %v1793 = vpop.f32.mrb[0].mxu0
      %1794 = vmatprep.mubr.bf16.mxu0 0
      %1795 = vmatmul.mubr.bf16.gmra.mrb[0].mxu0 %v1550
      %v1796 = vpop.f32.mrb[0].mxu0
      %v1797 = vadd.f32 %v1624, %v1796
      %v1798 = vpop.f32.mrb[0].mxu0
      %v1799 = vpop.f32.mrb[0].mxu0
      %v1800 = vadd.f32 %v1624, %v1799
      %v1801 = vpop.f32.mrb[0].mxu0
      %1802 = vmatprep.mubr.bf16.mxu0 0
      %1803 = vmatmul.mubr.bf16.gmra.mrb[0].mxu0 %v1551
      %v1804 = vpop.f32.mrb[0].mxu0
      %v1805 = vadd.f32 %v1624, %v1804
      %v1806 = vpop.f32.mrb[0].mxu0
      %v1807 = vpop.f32.mrb[0].mxu0
      %v1808 = vadd.f32 %v1624, %v1807
      %v1809 = vpop.f32.mrb[0].mxu0
      %1810 = vmatprep.mubr.bf16.mxu0 0
      %1811 = vmatmul.mubr.bf16.gmra.mrb[0].mxu0 %v1552
      %v1812 = vpop.f32.mrb[0].mxu0
      %v1813 = vadd.f32 %v1624, %v1812
      %v1814 = vpop.f32.mrb[0].mxu0
      %v1815 = vpop.f32.mrb[0].mxu0
      %v1816 = vadd.f32 %v1624, %v1815
      %v1817 = vpop.f32.mrb[0].mxu0
      %1818 = vmatprep.mubr.bf16.mxu0 0
      %1819 = vmatmul.mubr.bf16.gmra.mrb[0].mxu0 %v1553
      %v1820 = vpop.f32.mrb[0].mxu0
      %v1821 = vadd.f32 %v1624, %v1820
      %v1822 = vpop.f32.mrb[0].mxu0
      %v1823 = vpop.f32.mrb[0].mxu0
      %v1824 = vadd.f32 %v1624, %v1823
      %v1825 = vpop.f32.mrb[0].mxu0
      %1826 = vmatprep.mubr.bf16.mxu0 0
      %1827 = vmatmul.mubr.bf16.gmra.mrb[0].mxu0 %v1554
      %v1828 = vpop.f32.mrb[0].mxu0
      %v1829 = vadd.f32 %v1624, %v1828
      %v1830 = vpop.f32.mrb[0].mxu0
      %v1831 = vpop.f32.mrb[0].mxu0
      %v1832 = vadd.f32 %v1624, %v1831
      %v1833 = vpop.f32.mrb[0].mxu0
      %1834 = vmatprep.mubr.bf16.mxu0 0
      %1835 = vmatmul.mubr.bf16.gmra.mrb[0].mxu0 %v1555
      %v1836 = vpop.f32.mrb[0].mxu0
      %v1837 = vadd.f32 %v1624, %v1836
      %v1838 = vpop.f32.mrb[0].mxu0
      %v1839 = vpop.f32.mrb[0].mxu0
      %v1840 = vadd.f32 %v1624, %v1839
      %v1841 = vpop.f32.mrb[0].mxu0
      %1842 = vmatprep.mubr.bf16.mxu0 0
      %1843 = vmatmul.mubr.bf16.gmra.mrb[0].mxu0 %v1556
      %v1844 = vpop.f32.mrb[0].mxu0
      %v1845 = vadd.f32 %v1624, %v1844
      %v1846 = vpop.f32.mrb[0].mxu0
      %v1847 = vpop.f32.mrb[0].mxu0
      %v1848 = vadd.f32 %v1624, %v1847
      %v1849 = vpop.f32.mrb[0].mxu0
      %1850 = vmatprep.mubr.bf16.mxu0 0
      %1851 = vmatmul.mubr.bf16.gmra.mrb[0].mxu0 %v1557
      %v1852 = vpop.f32.mrb[0].mxu0
      %v1853 = vadd.f32 %v1624, %v1852
      %v1854 = vpop.f32.mrb[0].mxu0
      %v1855 = vpop.f32.mrb[0].mxu0
      %v1856 = vadd.f32 %v1624, %v1855
      %v1857 = vpop.f32.mrb[0].mxu0
      %1858 = vmatprep.mubr.bf16.mxu0 0
      %1859 = vmatmul.mubr.bf16.gmra.mrb[0].mxu0 %v1558
      %v1860 = vpop.f32.mrb[0].mxu0
      %v1861 = vadd.f32 %v1624, %v1860
      %v1862 = vpop.f32.mrb[0].mxu0
      %v1863 = vpop.f32.mrb[0].mxu0
      %v1864 = vadd.f32 %v1624, %v1863
      %v1865 = vpop.f32.mrb[0].mxu0
      %1866 = vmatprep.mubr.bf16.mxu0 0
      %1867 = vmatmul.mubr.bf16.gmra.mrb[0].mxu0 %v1559
      %v1868 = vpop.f32.mrb[0].mxu0
      %v1869 = vadd.f32 %v1624, %v1868
      %v1870 = vpop.f32.mrb[0].mxu0
      %v1871 = vpop.f32.mrb[0].mxu0
      %v1872 = vadd.f32 %v1624, %v1871
      %v1873 = vpop.f32.mrb[0].mxu0
      %1874 = vmatprep.mubr.bf16.mxu0 0
      %1875 = vmatmul.mubr.bf16.gmra.mrb[0].mxu0 %v1560
      %v1876 = vpop.f32.mrb[0].mxu0
      %v1877 = vadd.f32 %v1624, %v1876
      %v1878 = vpop.f32.mrb[0].mxu0
      %v1879 = vpop.f32.mrb[0].mxu0
      %v1880 = vadd.f32 %v1624, %v1879
      %v1881 = vpop.f32.mrb[0].mxu0
      %1882 = vmatprep.mubr.bf16.mxu0 0
      %1883 = vmatmul.mubr.bf16.gmra.mrb[0].mxu0 %v1561
      %v1884 = vpop.f32.mrb[0].mxu0
      %v1885 = vadd.f32 %v1624, %v1884
      %v1886 = vpop.f32.mrb[0].mxu0
      %v1887 = vpop.f32.mrb[0].mxu0
      %v1888 = vadd.f32 %v1624, %v1887
      %v1889 = vpop.f32.mrb[0].mxu0
      %1890 = vmatprep.mubr.bf16.mxu0 0
      %1891 = vmatmul.mubr.bf16.gmra.mrb[0].mxu0 %v1562
      %v1892 = vpop.f32.mrb[0].mxu0
      %v1893 = vadd.f32 %v1624, %v1892
      %v1894 = vpop.f32.mrb[0].mxu0
      %v1895 = vpop.f32.mrb[0].mxu0
      %v1896 = vadd.f32 %v1624, %v1895
      %v1897 = vpop.f32.mrb[0].mxu0
      %1898 = vmatprep.mubr.bf16.mxu0 0
      %1899 = vmatmul.mubr.bf16.gmra.mrb[0].mxu0 %v1563
      %v1900 = vpop.f32.mrb[0].mxu0
      %v1901 = vadd.f32 %v1624, %v1900
      %v1902 = vpop.f32.mrb[0].mxu0
      %v1903 = vpop.f32.mrb[0].mxu0
      %v1904 = vadd.f32 %v1624, %v1903
      %v1905 = vpop.f32.mrb[0].mxu0
      %1906 = vmatprep.mubr.bf16.mxu0 0
      %1907 = vmatmul.mubr.bf16.gmra.mrb[0].mxu0 %v1564
      %v1908 = vpop.f32.mrb[0].mxu0
      %v1909 = vadd.f32 %v1624, %v1908
      %v1910 = vpop.f32.mrb[0].mxu0
      %v1911 = vpop.f32.mrb[0].mxu0
      %v1912 = vadd.f32 %v1624, %v1911
      %v1913 = vpop.f32.mrb[0].mxu0
      %1914 = vmatprep.mubr.bf16.mxu0 0
      %1915 = vmatmul.mubr.bf16.gmra.mrb[0].mxu0 %v1565
      %v1916 = vpop.f32.mrb[0].mxu0
      %v1917 = vadd.f32 %v1624, %v1916
      %v1918 = vpop.f32.mrb[0].mxu0
      %v1919 = vpop.f32.mrb[0].mxu0
      %v1920 = vadd.f32 %v1624, %v1919
      %v1921 = vpop.f32.mrb[0].mxu0
      %1922 = vmatprep.mubr.bf16.mxu0 0
      %1923 = vmatmul.mubr.bf16.gmra.mrb[0].mxu0 %v1566
      %v1924 = vpop.f32.mrb[0].mxu0
      %v1925 = vadd.f32 %v1624, %v1924
      %v1926 = vpop.f32.mrb[0].mxu0
      %v1927 = vpop.f32.mrb[0].mxu0
      %v1928 = vadd.f32 %v1624, %v1927
      %v1929 = vpop.f32.mrb[0].mxu0
      %1930 = vmatprep.mubr.bf16.mxu0 0
      %1931 = vmatmul.mubr.bf16.gmra.mrb[0].mxu0 %v1567
      %v1932 = vpop.f32.mrb[0].mxu0
      %v1933 = vadd.f32 %v1624, %v1932
      %v1934 = vpop.f32.mrb[0].mxu0
      %v1935 = vpop.f32.mrb[0].mxu0
      %v1936 = vadd.f32 %v1624, %v1935
      %v1937 = vpop.f32.mrb[0].mxu0
      %1938 = vmatprep.mubr.bf16.mxu0 0
      %1939 = vmatmul.mubr.bf16.gmra.mrb[0].mxu0 %v1568
      %v1940 = vpop.f32.mrb[0].mxu0
      %v1941 = vadd.f32 %v1624, %v1940
      %v1942 = vpop.f32.mrb[0].mxu0
      %v1943 = vpop.f32.mrb[0].mxu0
      %v1944 = vadd.f32 %v1624, %v1943
      %v1945 = vpop.f32.mrb[0].mxu0
      %1946 = vmatprep.mubr.bf16.mxu0 0
      %1947 = vmatmul.mubr.bf16.gmra.mrb[0].mxu0 %v1569
      %v1948 = vpop.f32.mrb[0].mxu0
      %v1949 = vadd.f32 %v1624, %v1948
      %v1950 = vpop.f32.mrb[0].mxu0
      %v1951 = vpop.f32.mrb[0].mxu0
      %v1952 = vadd.f32 %v1624, %v1951
      %v1953 = vpop.f32.mrb[0].mxu0
      %1954 = vmatprep.mubr.bf16.mxu0 0
      %1955 = vmatmul.mubr.bf16.gmra.mrb[0].mxu0 %v1570
      %v1956 = vpop.f32.mrb[0].mxu0
      %v1957 = vadd.f32 %v1624, %v1956
      %v1958 = vpop.f32.mrb[0].mxu0
      %v1959 = vpop.f32.mrb[0].mxu0
      %v1960 = vadd.f32 %v1624, %v1959
      %v1961 = vpop.f32.mrb[0].mxu0
      %1962 = vmatprep.mubr.bf16.mxu0 0
      %1963 = vmatmul.mubr.bf16.gmra.mrb[0].mxu0 %v1571
      %v1964 = vpop.f32.mrb[0].mxu0
      %v1965 = vadd.f32 %v1624, %v1964
      %v1966 = vpop.f32.mrb[0].mxu0
      %v1967 = vpop.f32.mrb[0].mxu0
      %v1968 = vadd.f32 %v1624, %v1967
      %v1969 = vpop.f32.mrb[0].mxu0
      %1970 = vmatprep.mubr.bf16.mxu0 0
      %1971 = vmatmul.mubr.bf16.gmra.mrb[0].mxu0 %v1572
      %v1972 = vpop.f32.mrb[0].mxu0
      %v1973 = vadd.f32 %v1624, %v1972
      %v1974 = vpop.f32.mrb[0].mxu0
      %v1975 = vpop.f32.mrb[0].mxu0
      %v1976 = vadd.f32 %v1624, %v1975
      %v1977 = vpop.f32.mrb[0].mxu0
      %1978 = vmatprep.mubr.bf16.mxu0 0
      %1979 = vmatmul.mubr.bf16.gmra.mrb[0].mxu0 %v1573
      %v1980 = vpop.f32.mrb[0].mxu0
      %v1981 = vadd.f32 %v1624, %v1980
      %v1982 = vpop.f32.mrb[0].mxu0
      %v1983 = vpop.f32.mrb[0].mxu0
      %v1984 = vadd.f32 %v1624, %v1983
      %v1985 = vpop.f32.mrb[0].mxu0
      %1986 = vmatprep.mubr.bf16.mxu0 0
      %1987 = vmatmul.mubr.bf16.gmra.mrb[0].mxu0 %v1574
      %v1988 = vpop.f32.mrb[0].mxu0
      %v1989 = vadd.f32 %v1624, %v1988
      %v1990 = vpop.f32.mrb[0].mxu0
      %v1991 = vpop.f32.mrb[0].mxu0
      %v1992 = vadd.f32 %v1624, %v1991
      %v1993 = vpop.f32.mrb[0].mxu0
      %1994 = vmatprep.mubr.bf16.mxu0 0
      %1995 = vmatmul.mubr.bf16.gmra.mrb[0].mxu0 %v1575
      %v1996 = vpop.f32.mrb[0].mxu0
      %v1997 = vadd.f32 %v1624, %v1996
      %v1998 = vpop.f32.mrb[0].mxu0
      %v1999 = vpop.f32.mrb[0].mxu0
      %v2000 = vadd.f32 %v1624, %v1999
      %v2001 = vpop.f32.mrb[0].mxu0
      %2002 = vmatprep.mubr.bf16.mxu0 0
      %2003 = vmatmul.mubr.bf16.gmra.mrb[0].mxu0 %v1576
      %v2004 = vpop.f32.mrb[0].mxu0
      %v2005 = vadd.f32 %v1624, %v2004
      %v2006 = vpop.f32.mrb[0].mxu0
      %v2007 = vpop.f32.mrb[0].mxu0
      %v2008 = vadd.f32 %v1624, %v2007
      %v2009 = vpop.f32.mrb[0].mxu0
      %2010 = vmatprep.mubr.bf16.mxu0 0
      %2011 = vmatmul.mubr.bf16.gmra.mrb[0].mxu0 %v1577
      %v2012 = vpop.f32.mrb[0].mxu0
      %v2013 = vadd.f32 %v1624, %v2012
      %v2014 = vpop.f32.mrb[0].mxu0
      %v2015 = vpop.f32.mrb[0].mxu0
      %v2016 = vadd.f32 %v1624, %v2015
      %v2017 = vpop.f32.mrb[0].mxu0
      %2018 = vmatprep.mubr.bf16.mxu0 0
      %2019 = vmatmul.mubr.bf16.gmra.mrb[0].mxu0 %v1578
      %v2020 = vpop.f32.mrb[0].mxu0
      %v2021 = vadd.f32 %v1624, %v2020
      %v2022 = vpop.f32.mrb[0].mxu0
      %v2023 = vpop.f32.mrb[0].mxu0
      %v2024 = vadd.f32 %v1624, %v2023
      %v2025 = vpop.f32.mrb[0].mxu0
      %2026 = vmatprep.mubr.bf16.mxu0 0
      %2027 = vmatmul.mubr.bf16.gmra.mrb[0].mxu0 %v1579
      %v2028 = vpop.f32.mrb[0].mxu0
      %v2029 = vadd.f32 %v1624, %v2028
      %v2030 = vpop.f32.mrb[0].mxu0
      %v2031 = vpop.f32.mrb[0].mxu0
      %v2032 = vadd.f32 %v1624, %v2031
      %v2033 = vpop.f32.mrb[0].mxu0
      %2034 = vmatprep.mubr.bf16.mxu0 0
      %2035 = vmatmul.mubr.bf16.gmra.mrb[0].mxu0 %v1580
      %v2036 = vpop.f32.mrb[0].mxu0
      %v2037 = vadd.f32 %v1624, %v2036
      %v2038 = vpop.f32.mrb[0].mxu0
      %v2039 = vpop.f32.mrb[0].mxu0
      %v2040 = vadd.f32 %v1624, %v2039
      %v2041 = vpop.f32.mrb[0].mxu0
      %2042 = vmatprep.mubr.bf16.mxu0 0
      %2043 = vmatmul.mubr.bf16.gmra.mrb[0].mxu0 %v1581
      %v2044 = vpop.f32.mrb[0].mxu0
      %v2045 = vadd.f32 %v1624, %v2044
      %v2046 = vpop.f32.mrb[0].mxu0
      %v2047 = vpop.f32.mrb[0].mxu0
      %v2048 = vadd.f32 %v1624, %v2047
      %v2049 = vpop.f32.mrb[0].mxu0
      %2050 = vmatprep.mubr.bf16.mxu0 0
      %2051 = vmatmul.mubr.bf16.gmra.mrb[0].mxu0 %v1582
      %v2052 = vpop.f32.mrb[0].mxu0
      %v2053 = vadd.f32 %v1624, %v2052
      %v2054 = vpop.f32.mrb[0].mxu0
      %v2055 = vpop.f32.mrb[0].mxu0
      %v2056 = vadd.f32 %v1624, %v2055
      %v2057 = vpop.f32.mrb[0].mxu0
      %2058 = vmatprep.mubr.bf16.mxu0 0
      %2059 = vmatmul.mubr.bf16.gmra.mrb[0].mxu0 %v1583
      %v2060 = vpop.f32.mrb[0].mxu0
      %v2061 = vadd.f32 %v1624, %v2060
      %v2062 = vpop.f32.mrb[0].mxu0
      %v2063 = vpop.f32.mrb[0].mxu0
      %v2064 = vadd.f32 %v1624, %v2063
      %v2065 = vpop.f32.mrb[0].mxu0
      %2066 = vmatprep.mubr.bf16.mxu0 0
      %2067 = vmatmul.mubr.bf16.gmra.mrb[0].mxu0 %v1584
      %v2068 = vpop.f32.mrb[0].mxu0
      %v2069 = vadd.f32 %v1624, %v2068
      %v2070 = vpop.f32.mrb[0].mxu0
      %v2071 = vpop.f32.mrb[0].mxu0
      %v2072 = vadd.f32 %v1624, %v2071
      %v2073 = vpop.f32.mrb[0].mxu0
      %2074 = vmatprep.mubr.bf16.mxu0 0
      %2075 = vmatmul.mubr.bf16.gmra.mrb[0].mxu0 %v1585
      %v2076 = vpop.f32.mrb[0].mxu0
      %v2077 = vadd.f32 %v1624, %v2076
      %v2078 = vpop.f32.mrb[0].mxu0
      %v2079 = vpop.f32.mrb[0].mxu0
      %v2080 = vadd.f32 %v1624, %v2079
      %v2081 = vpop.f32.mrb[0].mxu0
      %2082 = vmatprep.mubr.bf16.mxu0 0
      %2083 = vmatmul.mubr.bf16.gmra.mrb[0].mxu0 %v1586
      %v2084 = vpop.f32.mrb[0].mxu0
      %v2085 = vadd.f32 %v1624, %v2084
      %v2086 = vpop.f32.mrb[0].mxu0
      %v2087 = vpop.f32.mrb[0].mxu0
      %v2088 = vadd.f32 %v1624, %v2087
      %v2089 = vpop.f32.mrb[0].mxu0
      %2090 = vmatprep.mubr.bf16.mxu0 0
      %2091 = vmatmul.mubr.bf16.gmra.mrb[0].mxu0 %v1587
      %v2092 = vpop.f32.mrb[0].mxu0
      %v2093 = vadd.f32 %v1624, %v2092
      %v2094 = vpop.f32.mrb[0].mxu0
      %v2095 = vpop.f32.mrb[0].mxu0
      %v2096 = vadd.f32 %v1624, %v2095
      %v2097 = vpop.f32.mrb[0].mxu0
      %2098 = vmatprep.mubr.bf16.mxu0 0
      %2099 = vmatmul.mubr.bf16.gmra.mrb[0].mxu0 %v1588
      %v2100 = vpop.f32.mrb[0].mxu0
      %v2101 = vadd.f32 %v1624, %v2100
      %v2102 = vpop.f32.mrb[0].mxu0
      %v2103 = vpop.f32.mrb[0].mxu0
      %v2104 = vadd.f32 %v1624, %v2103
      %v2105 = vpop.f32.mrb[0].mxu0
      %2106 = vmatprep.mubr.bf16.mxu0 0
      %2107 = vmatmul.mubr.bf16.gmra.mrb[0].mxu0 %v1589
      %v2108 = vpop.f32.mrb[0].mxu0
      %v2109 = vadd.f32 %v1624, %v2108
      %v2110 = vpop.f32.mrb[0].mxu0
      %v2111 = vpop.f32.mrb[0].mxu0
      %v2112 = vadd.f32 %v1624, %v2111
      %v2113 = vpop.f32.mrb[0].mxu0
      %2114 = vmatprep.mubr.bf16.mxu0 0
      %2115 = vmatmul.mubr.bf16.gmra.mrb[0].mxu0 %v1590
      %v2116 = vpop.f32.mrb[0].mxu0
      %v2117 = vadd.f32 %v1624, %v2116
      %v2118 = vpop.f32.mrb[0].mxu0
      %v2119 = vpop.f32.mrb[0].mxu0
      %v2120 = vadd.f32 %v1624, %v2119
      %v2121 = vpop.f32.mrb[0].mxu0
      %2122 = vmatprep.mubr.bf16.mxu0 0
      %2123 = vmatmul.mubr.bf16.gmra.mrb[0].mxu0 %v1591
      %v2124 = vpop.f32.mrb[0].mxu0
      %v2125 = vadd.f32 %v1624, %v2124
      %v2126 = vpop.f32.mrb[0].mxu0
      %v2127 = vpop.f32.mrb[0].mxu0
      %v2128 = vadd.f32 %v1624, %v2127
      %v2129 = vpop.f32.mrb[0].mxu0
      %2130 = vmatprep.mubr.bf16.mxu0 0
      %2131 = vmatmul.mubr.bf16.gmra.mrb[0].mxu0 %v1592
      %v2132 = vpop.f32.mrb[0].mxu0
      %v2133 = vadd.f32 %v1624, %v2132
      %v2134 = vpop.f32.mrb[0].mxu0
      %v2135 = vpop.f32.mrb[0].mxu0
      %v2136 = vadd.f32 %v1624, %v2135
      %v2137 = vpop.f32.mrb[0].mxu0
      %2138 = vmatprep.mubr.bf16.mxu0 0
      %2139 = vmatmul.mubr.bf16.gmra.mrb[0].mxu0 %v1593
      %v2140 = vpop.f32.mrb[0].mxu0
      %v2141 = vadd.f32 %v1624, %v2140
      %v2142 = vpop.f32.mrb[0].mxu0
      %v2143 = vpop.f32.mrb[0].mxu0
      %v2144 = vadd.f32 %v1624, %v2143
      %v2145 = vpop.f32.mrb[0].mxu0
      %2146 = vmatprep.mubr.bf16.mxu0 0
      %2147 = vmatmul.mubr.bf16.gmra.mrb[0].mxu0 %v1594
      %v2148 = vpop.f32.mrb[0].mxu0
      %v2149 = vadd.f32 %v1624, %v2148
      %v2150 = vpop.f32.mrb[0].mxu0
      %v2151 = vpop.f32.mrb[0].mxu0
      %v2152 = vadd.f32 %v1624, %v2151
      %v2153 = vpop.f32.mrb[0].mxu0
      %2154 = vmatprep.mubr.bf16.mxu0 0
      %2155 = vmatmul.mubr.bf16.gmra.mrb[0].mxu0 %v1595
      %v2156 = vpop.f32.mrb[0].mxu0
      %v2157 = vadd.f32 %v1624, %v2156
      %v2158 = vpop.f32.mrb[0].mxu0
      %v2159 = vpop.f32.mrb[0].mxu0
      %v2160 = vadd.f32 %v1624, %v2159
      %v2161 = vpop.f32.mrb[0].mxu0
      %2162 = vmatprep.mubr.bf16.mxu0 0
      %2163 = vmatmul.mubr.bf16.gmra.mrb[0].mxu0 %v1596
      %v2164 = vpop.f32.mrb[0].mxu0
      %v2165 = vadd.f32 %v1624, %v2164
      %v2166 = vpop.f32.mrb[0].mxu0
      %v2167 = vpop.f32.mrb[0].mxu0
      %v2168 = vadd.f32 %v1624, %v2167
      %v2169 = vpop.f32.mrb[0].mxu0
      %2170 = vmatprep.mubr.bf16.mxu0 0
      %2171 = vmatmul.mubr.bf16.gmra.mrb[0].mxu0 %v1597
      %v2172 = vpop.f32.mrb[0].mxu0
      %v2173 = vadd.f32 %v1624, %v2172
      %v2174 = vpop.f32.mrb[0].mxu0
      %v2175 = vpop.f32.mrb[0].mxu0
      %v2176 = vadd.f32 %v1624, %v2175
      %v2177 = vpop.f32.mrb[0].mxu0
      %2178 = vmatprep.mubr.bf16.mxu0 0
      %2179 = vmatmul.mubr.bf16.gmra.mrb[0].mxu0 %v1598
      %v2180 = vpop.f32.mrb[0].mxu0
      %v2181 = vadd.f32 %v1624, %v2180
      %v2182 = vpop.f32.mrb[0].mxu0
      %v2183 = vpop.f32.mrb[0].mxu0
      %v2184 = vadd.f32 %v1624, %v2183
      %v2185 = vpop.f32.mrb[0].mxu0
      %2186 = vmatprep.mubr.bf16.mxu0 0
      %2187 = vmatmul.mubr.bf16.gmra.mrb[0].mxu0 %v1599
      %v2188 = vpop.f32.mrb[0].mxu0
      %v2189 = vadd.f32 %v1624, %v2188
      %v2190 = vpop.f32.mrb[0].mxu0
      %v2191 = vpop.f32.mrb[0].mxu0
      %v2192 = vadd.f32 %v1624, %v2191
      %v2193 = vpop.f32.mrb[0].mxu0
      %2194 = vmatprep.mubr.bf16.mxu0 0
      %2195 = vmatmul.mubr.bf16.gmra.mrb[0].mxu0 %v1600
      %v2196 = vpop.f32.mrb[0].mxu0
      %v2197 = vadd.f32 %v1624, %v2196
      %v2198 = vpop.f32.mrb[0].mxu0
      %v2199 = vpop.f32.mrb[0].mxu0
      %v2200 = vadd.f32 %v1624, %v2199
      %v2201 = vpop.f32.mrb[0].mxu0
      %2202 = vmatprep.mubr.bf16.mxu0 0
      %2203 = vmatmul.mubr.bf16.gmra.mrb[0].mxu0 %v1601
      %v2204 = vpop.f32.mrb[0].mxu0
      %v2205 = vadd.f32 %v1624, %v2204
      %v2206 = vpop.f32.mrb[0].mxu0
      %v2207 = vpop.f32.mrb[0].mxu0
      %v2208 = vadd.f32 %v1624, %v2207
      %v2209 = vpop.f32.mrb[0].mxu0
      %2210 = vmatprep.mubr.bf16.mxu0 0
      %2211 = vmatmul.mubr.bf16.gmra.mrb[0].mxu0 %v1602
      %v2212 = vpop.f32.mrb[0].mxu0
      %v2213 = vadd.f32 %v1624, %v2212
      %v2214 = vpop.f32.mrb[0].mxu0
      %v2215 = vpop.f32.mrb[0].mxu0
      %v2216 = vadd.f32 %v1624, %v2215
      %v2217 = vpop.f32.mrb[0].mxu0
      %2218 = vdwg.mxu0
      %v2219 = vmax.f32 %v1709, 0.0
      %v2220 = vmax.f32 %v1712, 0.0
      %v2221 = vmax.f32 %v1717, 0.0
      %v2222 = vmax.f32 %v1720, 0.0
      %v2223 = vmax.f32 %v1725, 0.0
      %v2224 = vmax.f32 %v1728, 0.0
      %v2225 = vmax.f32 %v1733, 0.0
      %v2226 = vmax.f32 %v1736, 0.0
      %v2227 = vmax.f32 %v1741, 0.0
      %v2228 = vmax.f32 %v1744, 0.0
      %v2229 = vmax.f32 %v1749, 0.0
      %v2230 = vmax.f32 %v1752, 0.0
      %v2231 = vmax.f32 %v1757, 0.0
      %v2232 = vmax.f32 %v1760, 0.0
      %v2233 = vmax.f32 %v1765, 0.0
      %v2234 = vmax.f32 %v1768, 0.0
      %v2235 = vmax.f32 %v1773, 0.0
      %v2236 = vmax.f32 %v1776, 0.0
      %v2237 = vmax.f32 %v1781, 0.0
      %v2238 = vmax.f32 %v1784, 0.0
      %v2239 = vmax.f32 %v1789, 0.0
      %v2240 = vmax.f32 %v1792, 0.0
      %v2241 = vmax.f32 %v1797, 0.0
      %v2242 = vmax.f32 %v1800, 0.0
      %v2243 = vmax.f32 %v1805, 0.0
      %v2244 = vmax.f32 %v1808, 0.0
      %v2245 = vmax.f32 %v1813, 0.0
      %v2246 = vmax.f32 %v1816, 0.0
      %v2247 = vmax.f32 %v1821, 0.0
      %v2248 = vmax.f32 %v1824, 0.0
      %v2249 = vmax.f32 %v1829, 0.0
      %v2250 = vmax.f32 %v1832, 0.0
      %v2251 = vmax.f32 %v1837, 0.0
      %v2252 = vmax.f32 %v1840, 0.0
      %v2253 = vmax.f32 %v1845, 0.0
      %v2254 = vmax.f32 %v1848, 0.0
      %v2255 = vmax.f32 %v1853, 0.0
      %v2256 = vmax.f32 %v1856, 0.0
      %v2257 = vmax.f32 %v1861, 0.0
      %v2258 = vmax.f32 %v1864, 0.0
      %v2259 = vmax.f32 %v1869, 0.0
      %v2260 = vmax.f32 %v1872, 0.0
      %v2261 = vmax.f32 %v1877, 0.0
      %v2262 = vmax.f32 %v1880, 0.0
      %v2263 = vmax.f32 %v1885, 0.0
      %v2264 = vmax.f32 %v1888, 0.0
      %v2265 = vmax.f32 %v1893, 0.0
      %v2266 = vmax.f32 %v1896, 0.0
      %v2267 = vmax.f32 %v1901, 0.0
      %v2268 = vmax.f32 %v1904, 0.0
      %v2269 = vmax.f32 %v1909, 0.0
      %v2270 = vmax.f32 %v1912, 0.0
      %v2271 = vmax.f32 %v1917, 0.0
      %v2272 = vmax.f32 %v1920, 0.0
      %v2273 = vmax.f32 %v1925, 0.0
      %v2274 = vmax.f32 %v1928, 0.0
      %v2275 = vmax.f32 %v1933, 0.0
      %v2276 = vmax.f32 %v1936, 0.0
      %v2277 = vmax.f32 %v1941, 0.0
      %v2278 = vmax.f32 %v1944, 0.0
      %v2279 = vmax.f32 %v1949, 0.0
      %v2280 = vmax.f32 %v1952, 0.0
      %v2281 = vmax.f32 %v1957, 0.0
      %v2282 = vmax.f32 %v1960, 0.0
      %v2283 = vmax.f32 %v1965, 0.0
      %v2284 = vmax.f32 %v1968, 0.0
      %v2285 = vmax.f32 %v1973, 0.0
      %v2286 = vmax.f32 %v1976, 0.0
      %v2287 = vmax.f32 %v1981, 0.0
      %v2288 = vmax.f32 %v1984, 0.0
      %v2289 = vmax.f32 %v1989, 0.0
      %v2290 = vmax.f32 %v1992, 0.0
      %v2291 = vmax.f32 %v1997, 0.0
      %v2292 = vmax.f32 %v2000, 0.0
      %v2293 = vmax.f32 %v2005, 0.0
      %v2294 = vmax.f32 %v2008, 0.0
      %v2295 = vmax.f32 %v2013, 0.0
      %v2296 = vmax.f32 %v2016, 0.0
      %v2297 = vmax.f32 %v2021, 0.0
      %v2298 = vmax.f32 %v2024, 0.0
      %v2299 = vmax.f32 %v2029, 0.0
      %v2300 = vmax.f32 %v2032, 0.0
      %v2301 = vmax.f32 %v2037, 0.0
      %v2302 = vmax.f32 %v2040, 0.0
      %v2303 = vmax.f32 %v2045, 0.0
      %v2304 = vmax.f32 %v2048, 0.0
      %v2305 = vmax.f32 %v2053, 0.0
      %v2306 = vmax.f32 %v2056, 0.0
      %v2307 = vmax.f32 %v2061, 0.0
      %v2308 = vmax.f32 %v2064, 0.0
      %v2309 = vmax.f32 %v2069, 0.0
      %v2310 = vmax.f32 %v2072, 0.0
      %v2311 = vmax.f32 %v2077, 0.0
      %v2312 = vmax.f32 %v2080, 0.0
      %v2313 = vmax.f32 %v2085, 0.0
      %v2314 = vmax.f32 %v2088, 0.0
      %v2315 = vmax.f32 %v2093, 0.0
      %v2316 = vmax.f32 %v2096, 0.0
      %v2317 = vmax.f32 %v2101, 0.0
      %v2318 = vmax.f32 %v2104, 0.0
      %v2319 = vmax.f32 %v2109, 0.0
      %v2320 = vmax.f32 %v2112, 0.0
      %v2321 = vmax.f32 %v2117, 0.0
      %v2322 = vmax.f32 %v2120, 0.0
      %v2323 = vmax.f32 %v2125, 0.0
      %v2324 = vmax.f32 %v2128, 0.0
      %v2325 = vmax.f32 %v2133, 0.0
      %v2326 = vmax.f32 %v2136, 0.0
      %v2327 = vmax.f32 %v2141, 0.0
      %v2328 = vmax.f32 %v2144, 0.0
      %v2329 = vmax.f32 %v2149, 0.0
      %v2330 = vmax.f32 %v2152, 0.0
      %v2331 = vmax.f32 %v2157, 0.0
      %v2332 = vmax.f32 %v2160, 0.0
      %v2333 = vmax.f32 %v2165, 0.0
      %v2334 = vmax.f32 %v2168, 0.0
      %v2335 = vmax.f32 %v2173, 0.0
      %v2336 = vmax.f32 %v2176, 0.0
      %v2337 = vmax.f32 %v2181, 0.0
      %v2338 = vmax.f32 %v2184, 0.0
      %v2339 = vmax.f32 %v2189, 0.0
      %v2340 = vmax.f32 %v2192, 0.0
      %v2341 = vmax.f32 %v2197, 0.0
      %v2342 = vmax.f32 %v2200, 0.0
      %v2343 = vmax.f32 %v2205, 0.0
      %v2344 = vmax.f32 %v2208, 0.0
      %v2345 = vmax.f32 %v2213, 0.0
      %v2346 = vmax.f32 %v2216, 0.0
      %v2347 = vpack.c.bf16 %v2220, %v2219
      %v2348 = vpack.c.bf16 %v2222, %v2221
      %v2349 = vpack.c.bf16 %v2224, %v2223
      %v2350 = vpack.c.bf16 %v2226, %v2225
      %v2351 = vpack.c.bf16 %v2228, %v2227
      %v2352 = vpack.c.bf16 %v2230, %v2229
      %v2353 = vpack.c.bf16 %v2232, %v2231
      %v2354 = vpack.c.bf16 %v2234, %v2233
      %v2355 = vpack.c.bf16 %v2236, %v2235
      %v2356 = vpack.c.bf16 %v2238, %v2237
      %v2357 = vpack.c.bf16 %v2240, %v2239
      %v2358 = vpack.c.bf16 %v2242, %v2241
      %v2359 = vpack.c.bf16 %v2244, %v2243
      %v2360 = vpack.c.bf16 %v2246, %v2245
      %v2361 = vpack.c.bf16 %v2248, %v2247
      %v2362 = vpack.c.bf16 %v2250, %v2249
      %v2363 = vpack.c.bf16 %v2252, %v2251
      %v2364 = vpack.c.bf16 %v2254, %v2253
      %v2365 = vpack.c.bf16 %v2256, %v2255
      %v2366 = vpack.c.bf16 %v2258, %v2257
      %v2367 = vpack.c.bf16 %v2260, %v2259
      %v2368 = vpack.c.bf16 %v2262, %v2261
      %v2369 = vpack.c.bf16 %v2264, %v2263
      %v2370 = vpack.c.bf16 %v2266, %v2265
      %v2371 = vpack.c.bf16 %v2268, %v2267
      %v2372 = vpack.c.bf16 %v2270, %v2269
      %v2373 = vpack.c.bf16 %v2272, %v2271
      %v2374 = vpack.c.bf16 %v2274, %v2273
      %v2375 = vpack.c.bf16 %v2276, %v2275
      %v2376 = vpack.c.bf16 %v2278, %v2277
      %v2377 = vpack.c.bf16 %v2280, %v2279
      %v2378 = vpack.c.bf16 %v2282, %v2281
      %v2379 = vpack.c.bf16 %v2284, %v2283
      %v2380 = vpack.c.bf16 %v2286, %v2285
      %v2381 = vpack.c.bf16 %v2288, %v2287
      %v2382 = vpack.c.bf16 %v2290, %v2289
      %v2383 = vpack.c.bf16 %v2292, %v2291
      %v2384 = vpack.c.bf16 %v2294, %v2293
      %v2385 = vpack.c.bf16 %v2296, %v2295
      %v2386 = vpack.c.bf16 %v2298, %v2297
      %v2387 = vpack.c.bf16 %v2300, %v2299
      %v2388 = vpack.c.bf16 %v2302, %v2301
      %v2389 = vpack.c.bf16 %v2304, %v2303
      %v2390 = vpack.c.bf16 %v2306, %v2305
      %v2391 = vpack.c.bf16 %v2308, %v2307
      %v2392 = vpack.c.bf16 %v2310, %v2309
      %v2393 = vpack.c.bf16 %v2312, %v2311
      %v2394 = vpack.c.bf16 %v2314, %v2313
      %v2395 = vpack.c.bf16 %v2316, %v2315
      %v2396 = vpack.c.bf16 %v2318, %v2317
      %v2397 = vpack.c.bf16 %v2320, %v2319
      %v2398 = vpack.c.bf16 %v2322, %v2321
      %v2399 = vpack.c.bf16 %v2324, %v2323
      %v2400 = vpack.c.bf16 %v2326, %v2325
      %v2401 = vpack.c.bf16 %v2328, %v2327
      %v2402 = vpack.c.bf16 %v2330, %v2329
      %v2403 = vpack.c.bf16 %v2332, %v2331
      %v2404 = vpack.c.bf16 %v2334, %v2333
      %v2405 = vpack.c.bf16 %v2336, %v2335
      %v2406 = vpack.c.bf16 %v2338, %v2337
      %v2407 = vpack.c.bf16 %v2340, %v2339
      %v2408 = vpack.c.bf16 %v2342, %v2341
      %v2409 = vpack.c.bf16 %v2344, %v2343
      %v2410 = vpack.c.bf16 %v2346, %v2345
      %v2411 = vld [vmem:[%s5] sm:$0xf]
      %v2412 = vld [vmem:[%s5 + $0x4] sm:$0xf]
      %v2413 = vld [vmem:[%s5 + $0x8] sm:$0xf]
      %v2414 = vld [vmem:[%s5 + $0xc] sm:$0xf]
      %v2415 = vld [vmem:[%s5 + $0x10] sm:$0xf]
      %v2416 = vld [vmem:[%s5 + $0x14] sm:$0xf]
      %v2417 = vld [vmem:[%s5 + $0x18] sm:$0xf]
      %v2418 = vld [vmem:[%s5 + $0x1c] sm:$0xf]
      %v2419 = vld [vmem:[%s5 + $0x20] sm:$0xf]
      %v2420 = vld [vmem:[%s5 + $0x24] sm:$0xf]
      %v2421 = vld [vmem:[%s5 + $0x28] sm:$0xf]
      %v2422 = vld [vmem:[%s5 + $0x2c] sm:$0xf]
      %v2423 = vld [vmem:[%s5 + $0x30] sm:$0xf]
      %v2424 = vld [vmem:[%s5 + $0x34] sm:$0xf]
      %v2425 = vld [vmem:[%s5 + $0x38] sm:$0xf]
      %v2426 = vld [vmem:[%s5 + $0x3c] sm:$0xf]
      %v2427 = vld [vmem:[%s6] sm:$0x1]
      %v2429 = vlaneseq
      %v2430 = vshrl.u32 %v2429, 7
      %v2431 = vsub.s32 0, %v2430
      %v2432 = vrot.slane %v2427, %v2431
      %v2450 = vunpack.c.l.b16 %v2411
      %v2451 = vunpack.c.l.b16 %v2412
      %v2452 = vunpack.c.l.b16 %v2413
      %v2453 = vunpack.c.l.b16 %v2414
      %v2454 = vunpack.c.l.b16 %v2415
      %v2455 = vunpack.c.l.b16 %v2416
      %v2456 = vunpack.c.l.b16 %v2417
      %v2457 = vunpack.c.l.b16 %v2418
      %v2458 = vunpack.c.l.b16 %v2419
      %v2459 = vunpack.c.l.b16 %v2420
      %v2460 = vunpack.c.l.b16 %v2421
      %v2461 = vunpack.c.l.b16 %v2422
      %v2462 = vunpack.c.l.b16 %v2423
      %v2463 = vunpack.c.l.b16 %v2424
      %v2464 = vunpack.c.l.b16 %v2425
      %v2465 = vunpack.c.l.b16 %v2426
      %v2466 = vpack.c.b16 %v2451, %v2450
      %v2467 = vpack.c.b16 %v2453, %v2452
      %v2468 = vpack.c.b16 %v2455, %v2454
      %v2469 = vpack.c.b16 %v2457, %v2456
      %v2470 = vpack.c.b16 %v2459, %v2458
      %v2471 = vpack.c.b16 %v2461, %v2460
      %v2472 = vpack.c.b16 %v2463, %v2462
      %v2473 = vpack.c.b16 %v2465, %v2464
      %2482 = vmatprep.subr.bf16.mxu0 0
      %2483 = vmatpush1.bf16.msra.mxu0 %v2466
      %2484 = vmatprep.subr.bf16.mxu0 0
      %2485 = vmatpush1.bf16.msra.mxu0 %v2467
      %2486 = vmatprep.subr.bf16.mxu0 0
      %2487 = vmatpush1.bf16.msra.mxu0 %v2468
      %2488 = vmatprep.subr.bf16.mxu0 0
      %2489 = vmatpush1.bf16.msra.mxu0 %v2469
      %2490 = vmatprep.subr.bf16.mxu0 0
      %2491 = vmatpush1.bf16.msra.mxu0 %v2470
      %2492 = vmatprep.subr.bf16.mxu0 0
      %2493 = vmatpush1.bf16.msra.mxu0 %v2471
      %2494 = vmatprep.subr.bf16.mxu0 0
      %2495 = vmatpush1.bf16.msra.mxu0 %v2472
      %2496 = vmatprep.subr.bf16.mxu0 0
      %2497 = vmatpush1.bf16.msra.mxu0 %v2473
      %2498 = vmatprep.subr.bf16.mxu0 0
      %2499 = vmatpush1.bf16.msra.mxu0 0
      %2500 = vmatprep.subr.bf16.mxu0 0
      %2501 = vmatpush1.bf16.msra.mxu0 0
      %2502 = vmatprep.subr.bf16.mxu0 0
      %2503 = vmatpush1.bf16.msra.mxu0 0
      %2504 = vmatprep.subr.bf16.mxu0 0
      %2505 = vmatpush1.bf16.msra.mxu0 0
      %2506 = vmatprep.subr.bf16.mxu0 0
      %2507 = vmatpush1.bf16.msra.mxu0 0
      %2508 = vmatprep.subr.bf16.mxu0 0
      %2509 = vmatpush1.bf16.msra.mxu0 0
      %2510 = vmatprep.subr.bf16.mxu0 0
      %2511 = vmatpush1.bf16.msra.mxu0 0
      %2512 = vmatprep.subr.bf16.mxu0 0
      %2513 = vmatpush1.bf16.msra.mxu0 0
      %2514 = vmatprep.mubr.bf16.mxu0 0
      %2515 = vmatmul.mubr.bf16.gmra.mrb[0].mxu0 %v2347
      %v2516 = vpop.f32.mrb[0].mxu0
      %v2517 = vadd.f32 %v2432, %v2516
      %v2518 = vpop.f32.mrb[0].mxu0
      %v2519 = vpop.f32.mrb[0].mxu0
      %v2520 = vadd.f32 %v2432, %v2519
      %v2521 = vpop.f32.mrb[0].mxu0
      %2522 = vmatprep.mubr.bf16.mxu0 0
      %2523 = vmatmul.mubr.bf16.gmra.mrb[0].mxu0 %v2348
      %v2524 = vpop.f32.mrb[0].mxu0
      %v2525 = vadd.f32 %v2432, %v2524
      %v2526 = vpop.f32.mrb[0].mxu0
      %v2527 = vpop.f32.mrb[0].mxu0
      %v2528 = vadd.f32 %v2432, %v2527
      %v2529 = vpop.f32.mrb[0].mxu0
      %2530 = vmatprep.mubr.bf16.mxu0 0
      %2531 = vmatmul.mubr.bf16.gmra.mrb[0].mxu0 %v2349
      %v2532 = vpop.f32.mrb[0].mxu0
      %v2533 = vadd.f32 %v2432, %v2532
      %v2534 = vpop.f32.mrb[0].mxu0
      %v2535 = vpop.f32.mrb[0].mxu0
      %v2536 = vadd.f32 %v2432, %v2535
      %v2537 = vpop.f32.mrb[0].mxu0
      %2538 = vmatprep.mubr.bf16.mxu0 0
      %2539 = vmatmul.mubr.bf16.gmra.mrb[0].mxu0 %v2350
      %v2540 = vpop.f32.mrb[0].mxu0
      %v2541 = vadd.f32 %v2432, %v2540
      %v2542 = vpop.f32.mrb[0].mxu0
      %v2543 = vpop.f32.mrb[0].mxu0
      %v2544 = vadd.f32 %v2432, %v2543
      %v2545 = vpop.f32.mrb[0].mxu0
      %2546 = vmatprep.mubr.bf16.mxu0 0
      %2547 = vmatmul.mubr.bf16.gmra.mrb[0].mxu0 %v2351
      %v2548 = vpop.f32.mrb[0].mxu0
      %v2549 = vadd.f32 %v2432, %v2548
      %v2550 = vpop.f32.mrb[0].mxu0
      %v2551 = vpop.f32.mrb[0].mxu0
      %v2552 = vadd.f32 %v2432, %v2551
      %v2553 = vpop.f32.mrb[0].mxu0
      %2554 = vmatprep.mubr.bf16.mxu0 0
      %2555 = vmatmul.mubr.bf16.gmra.mrb[0].mxu0 %v2352
      %v2556 = vpop.f32.mrb[0].mxu0
      %v2557 = vadd.f32 %v2432, %v2556
      %v2558 = vpop.f32.mrb[0].mxu0
      %v2559 = vpop.f32.mrb[0].mxu0
      %v2560 = vadd.f32 %v2432, %v2559
      %v2561 = vpop.f32.mrb[0].mxu0
      %2562 = vmatprep.mubr.bf16.mxu0 0
      %2563 = vmatmul.mubr.bf16.gmra.mrb[0].mxu0 %v2353
      %v2564 = vpop.f32.mrb[0].mxu0
      %v2565 = vadd.f32 %v2432, %v2564
      %v2566 = vpop.f32.mrb[0].mxu0
      %v2567 = vpop.f32.mrb[0].mxu0
      %v2568 = vadd.f32 %v2432, %v2567
      %v2569 = vpop.f32.mrb[0].mxu0
      %2570 = vmatprep.mubr.bf16.mxu0 0
      %2571 = vmatmul.mubr.bf16.gmra.mrb[0].mxu0 %v2354
      %v2572 = vpop.f32.mrb[0].mxu0
      %v2573 = vadd.f32 %v2432, %v2572
      %v2574 = vpop.f32.mrb[0].mxu0
      %v2575 = vpop.f32.mrb[0].mxu0
      %v2576 = vadd.f32 %v2432, %v2575
      %v2577 = vpop.f32.mrb[0].mxu0
      %2578 = vmatprep.mubr.bf16.mxu0 0
      %2579 = vmatmul.mubr.bf16.gmra.mrb[0].mxu0 %v2355
      %v2580 = vpop.f32.mrb[0].mxu0
      %v2581 = vadd.f32 %v2432, %v2580
      %v2582 = vpop.f32.mrb[0].mxu0
      %v2583 = vpop.f32.mrb[0].mxu0
      %v2584 = vadd.f32 %v2432, %v2583
      %v2585 = vpop.f32.mrb[0].mxu0
      %2586 = vmatprep.mubr.bf16.mxu0 0
      %2587 = vmatmul.mubr.bf16.gmra.mrb[0].mxu0 %v2356
      %v2588 = vpop.f32.mrb[0].mxu0
      %v2589 = vadd.f32 %v2432, %v2588
      %v2590 = vpop.f32.mrb[0].mxu0
      %v2591 = vpop.f32.mrb[0].mxu0
      %v2592 = vadd.f32 %v2432, %v2591
      %v2593 = vpop.f32.mrb[0].mxu0
      %2594 = vmatprep.mubr.bf16.mxu0 0
      %2595 = vmatmul.mubr.bf16.gmra.mrb[0].mxu0 %v2357
      %v2596 = vpop.f32.mrb[0].mxu0
      %v2597 = vadd.f32 %v2432, %v2596
      %v2598 = vpop.f32.mrb[0].mxu0
      %v2599 = vpop.f32.mrb[0].mxu0
      %v2600 = vadd.f32 %v2432, %v2599
      %v2601 = vpop.f32.mrb[0].mxu0
      %2602 = vmatprep.mubr.bf16.mxu0 0
      %2603 = vmatmul.mubr.bf16.gmra.mrb[0].mxu0 %v2358
      %v2604 = vpop.f32.mrb[0].mxu0
      %v2605 = vadd.f32 %v2432, %v2604
      %v2606 = vpop.f32.mrb[0].mxu0
      %v2607 = vpop.f32.mrb[0].mxu0
      %v2608 = vadd.f32 %v2432, %v2607
      %v2609 = vpop.f32.mrb[0].mxu0
      %2610 = vmatprep.mubr.bf16.mxu0 0
      %2611 = vmatmul.mubr.bf16.gmra.mrb[0].mxu0 %v2359
      %v2612 = vpop.f32.mrb[0].mxu0
      %v2613 = vadd.f32 %v2432, %v2612
      %v2614 = vpop.f32.mrb[0].mxu0
      %v2615 = vpop.f32.mrb[0].mxu0
      %v2616 = vadd.f32 %v2432, %v2615
      %v2617 = vpop.f32.mrb[0].mxu0
      %2618 = vmatprep.mubr.bf16.mxu0 0
      %2619 = vmatmul.mubr.bf16.gmra.mrb[0].mxu0 %v2360
      %v2620 = vpop.f32.mrb[0].mxu0
      %v2621 = vadd.f32 %v2432, %v2620
      %v2622 = vpop.f32.mrb[0].mxu0
      %v2623 = vpop.f32.mrb[0].mxu0
      %v2624 = vadd.f32 %v2432, %v2623
      %v2625 = vpop.f32.mrb[0].mxu0
      %2626 = vmatprep.mubr.bf16.mxu0 0
      %2627 = vmatmul.mubr.bf16.gmra.mrb[0].mxu0 %v2361
      %v2628 = vpop.f32.mrb[0].mxu0
      %v2629 = vadd.f32 %v2432, %v2628
      %v2630 = vpop.f32.mrb[0].mxu0
      %v2631 = vpop.f32.mrb[0].mxu0
      %v2632 = vadd.f32 %v2432, %v2631
      %v2633 = vpop.f32.mrb[0].mxu0
      %2634 = vmatprep.mubr.bf16.mxu0 0
      %2635 = vmatmul.mubr.bf16.gmra.mrb[0].mxu0 %v2362
      %v2636 = vpop.f32.mrb[0].mxu0
      %v2637 = vadd.f32 %v2432, %v2636
      %v2638 = vpop.f32.mrb[0].mxu0
      %v2639 = vpop.f32.mrb[0].mxu0
      %v2640 = vadd.f32 %v2432, %v2639
      %v2641 = vpop.f32.mrb[0].mxu0
      %2642 = vmatprep.mubr.bf16.mxu0 0
      %2643 = vmatmul.mubr.bf16.gmra.mrb[0].mxu0 %v2363
      %v2644 = vpop.f32.mrb[0].mxu0
      %v2645 = vadd.f32 %v2432, %v2644
      %v2646 = vpop.f32.mrb[0].mxu0
      %v2647 = vpop.f32.mrb[0].mxu0
      %v2648 = vadd.f32 %v2432, %v2647
      %v2649 = vpop.f32.mrb[0].mxu0
      %2650 = vmatprep.mubr.bf16.mxu0 0
      %2651 = vmatmul.mubr.bf16.gmra.mrb[0].mxu0 %v2364
      %v2652 = vpop.f32.mrb[0].mxu0
      %v2653 = vadd.f32 %v2432, %v2652
      %v2654 = vpop.f32.mrb[0].mxu0
      %v2655 = vpop.f32.mrb[0].mxu0
      %v2656 = vadd.f32 %v2432, %v2655
      %v2657 = vpop.f32.mrb[0].mxu0
      %2658 = vmatprep.mubr.bf16.mxu0 0
      %2659 = vmatmul.mubr.bf16.gmra.mrb[0].mxu0 %v2365
      %v2660 = vpop.f32.mrb[0].mxu0
      %v2661 = vadd.f32 %v2432, %v2660
      %v2662 = vpop.f32.mrb[0].mxu0
      %v2663 = vpop.f32.mrb[0].mxu0
      %v2664 = vadd.f32 %v2432, %v2663
      %v2665 = vpop.f32.mrb[0].mxu0
      %2666 = vmatprep.mubr.bf16.mxu0 0
      %2667 = vmatmul.mubr.bf16.gmra.mrb[0].mxu0 %v2366
      %v2668 = vpop.f32.mrb[0].mxu0
      %v2669 = vadd.f32 %v2432, %v2668
      %v2670 = vpop.f32.mrb[0].mxu0
      %v2671 = vpop.f32.mrb[0].mxu0
      %v2672 = vadd.f32 %v2432, %v2671
      %v2673 = vpop.f32.mrb[0].mxu0
      %2674 = vmatprep.mubr.bf16.mxu0 0
      %2675 = vmatmul.mubr.bf16.gmra.mrb[0].mxu0 %v2367
      %v2676 = vpop.f32.mrb[0].mxu0
      %v2677 = vadd.f32 %v2432, %v2676
      %v2678 = vpop.f32.mrb[0].mxu0
      %v2679 = vpop.f32.mrb[0].mxu0
      %v2680 = vadd.f32 %v2432, %v2679
      %v2681 = vpop.f32.mrb[0].mxu0
      %2682 = vmatprep.mubr.bf16.mxu0 0
      %2683 = vmatmul.mubr.bf16.gmra.mrb[0].mxu0 %v2368
      %v2684 = vpop.f32.mrb[0].mxu0
      %v2685 = vadd.f32 %v2432, %v2684
      %v2686 = vpop.f32.mrb[0].mxu0
      %v2687 = vpop.f32.mrb[0].mxu0
      %v2688 = vadd.f32 %v2432, %v2687
      %v2689 = vpop.f32.mrb[0].mxu0
      %2690 = vmatprep.mubr.bf16.mxu0 0
      %2691 = vmatmul.mubr.bf16.gmra.mrb[0].mxu0 %v2369
      %v2692 = vpop.f32.mrb[0].mxu0
      %v2693 = vadd.f32 %v2432, %v2692
      %v2694 = vpop.f32.mrb[0].mxu0
      %v2695 = vpop.f32.mrb[0].mxu0
      %v2696 = vadd.f32 %v2432, %v2695
      %v2697 = vpop.f32.mrb[0].mxu0
      %2698 = vmatprep.mubr.bf16.mxu0 0
      %2699 = vmatmul.mubr.bf16.gmra.mrb[0].mxu0 %v2370
      %v2700 = vpop.f32.mrb[0].mxu0
      %v2701 = vadd.f32 %v2432, %v2700
      %v2702 = vpop.f32.mrb[0].mxu0
      %v2703 = vpop.f32.mrb[0].mxu0
      %v2704 = vadd.f32 %v2432, %v2703
      %v2705 = vpop.f32.mrb[0].mxu0
      %2706 = vmatprep.mubr.bf16.mxu0 0
      %2707 = vmatmul.mubr.bf16.gmra.mrb[0].mxu0 %v2371
      %v2708 = vpop.f32.mrb[0].mxu0
      %v2709 = vadd.f32 %v2432, %v2708
      %v2710 = vpop.f32.mrb[0].mxu0
      %v2711 = vpop.f32.mrb[0].mxu0
      %v2712 = vadd.f32 %v2432, %v2711
      %v2713 = vpop.f32.mrb[0].mxu0
      %2714 = vmatprep.mubr.bf16.mxu0 0
      %2715 = vmatmul.mubr.bf16.gmra.mrb[0].mxu0 %v2372
      %v2716 = vpop.f32.mrb[0].mxu0
      %v2717 = vadd.f32 %v2432, %v2716
      %v2718 = vpop.f32.mrb[0].mxu0
      %v2719 = vpop.f32.mrb[0].mxu0
      %v2720 = vadd.f32 %v2432, %v2719
      %v2721 = vpop.f32.mrb[0].mxu0
      %2722 = vmatprep.mubr.bf16.mxu0 0
      %2723 = vmatmul.mubr.bf16.gmra.mrb[0].mxu0 %v2373
      %v2724 = vpop.f32.mrb[0].mxu0
      %v2725 = vadd.f32 %v2432, %v2724
      %v2726 = vpop.f32.mrb[0].mxu0
      %v2727 = vpop.f32.mrb[0].mxu0
      %v2728 = vadd.f32 %v2432, %v2727
      %v2729 = vpop.f32.mrb[0].mxu0
      %2730 = vmatprep.mubr.bf16.mxu0 0
      %2731 = vmatmul.mubr.bf16.gmra.mrb[0].mxu0 %v2374
      %v2732 = vpop.f32.mrb[0].mxu0
      %v2733 = vadd.f32 %v2432, %v2732
      %v2734 = vpop.f32.mrb[0].mxu0
      %v2735 = vpop.f32.mrb[0].mxu0
      %v2736 = vadd.f32 %v2432, %v2735
      %v2737 = vpop.f32.mrb[0].mxu0
      %2738 = vmatprep.mubr.bf16.mxu0 0
      %2739 = vmatmul.mubr.bf16.gmra.mrb[0].mxu0 %v2375
      %v2740 = vpop.f32.mrb[0].mxu0
      %v2741 = vadd.f32 %v2432, %v2740
      %v2742 = vpop.f32.mrb[0].mxu0
      %v2743 = vpop.f32.mrb[0].mxu0
      %v2744 = vadd.f32 %v2432, %v2743
      %v2745 = vpop.f32.mrb[0].mxu0
      %2746 = vmatprep.mubr.bf16.mxu0 0
      %2747 = vmatmul.mubr.bf16.gmra.mrb[0].mxu0 %v2376
      %v2748 = vpop.f32.mrb[0].mxu0
      %v2749 = vadd.f32 %v2432, %v2748
      %v2750 = vpop.f32.mrb[0].mxu0
      %v2751 = vpop.f32.mrb[0].mxu0
      %v2752 = vadd.f32 %v2432, %v2751
      %v2753 = vpop.f32.mrb[0].mxu0
      %2754 = vmatprep.mubr.bf16.mxu0 0
      %2755 = vmatmul.mubr.bf16.gmra.mrb[0].mxu0 %v2377
      %v2756 = vpop.f32.mrb[0].mxu0
      %v2757 = vadd.f32 %v2432, %v2756
      %v2758 = vpop.f32.mrb[0].mxu0
      %v2759 = vpop.f32.mrb[0].mxu0
      %v2760 = vadd.f32 %v2432, %v2759
      %v2761 = vpop.f32.mrb[0].mxu0
      %2762 = vmatprep.mubr.bf16.mxu0 0
      %2763 = vmatmul.mubr.bf16.gmra.mrb[0].mxu0 %v2378
      %v2764 = vpop.f32.mrb[0].mxu0
      %v2765 = vadd.f32 %v2432, %v2764
      %v2766 = vpop.f32.mrb[0].mxu0
      %v2767 = vpop.f32.mrb[0].mxu0
      %v2768 = vadd.f32 %v2432, %v2767
      %v2769 = vpop.f32.mrb[0].mxu0
      %2770 = vmatprep.mubr.bf16.mxu0 0
      %2771 = vmatmul.mubr.bf16.gmra.mrb[0].mxu0 %v2379
      %v2772 = vpop.f32.mrb[0].mxu0
      %v2773 = vadd.f32 %v2432, %v2772
      %v2774 = vpop.f32.mrb[0].mxu0
      %v2775 = vpop.f32.mrb[0].mxu0
      %v2776 = vadd.f32 %v2432, %v2775
      %v2777 = vpop.f32.mrb[0].mxu0
      %2778 = vmatprep.mubr.bf16.mxu0 0
      %2779 = vmatmul.mubr.bf16.gmra.mrb[0].mxu0 %v2380
      %v2780 = vpop.f32.mrb[0].mxu0
      %v2781 = vadd.f32 %v2432, %v2780
      %v2782 = vpop.f32.mrb[0].mxu0
      %v2783 = vpop.f32.mrb[0].mxu0
      %v2784 = vadd.f32 %v2432, %v2783
      %v2785 = vpop.f32.mrb[0].mxu0
      %2786 = vmatprep.mubr.bf16.mxu0 0
      %2787 = vmatmul.mubr.bf16.gmra.mrb[0].mxu0 %v2381
      %v2788 = vpop.f32.mrb[0].mxu0
      %v2789 = vadd.f32 %v2432, %v2788
      %v2790 = vpop.f32.mrb[0].mxu0
      %v2791 = vpop.f32.mrb[0].mxu0
      %v2792 = vadd.f32 %v2432, %v2791
      %v2793 = vpop.f32.mrb[0].mxu0
      %2794 = vmatprep.mubr.bf16.mxu0 0
      %2795 = vmatmul.mubr.bf16.gmra.mrb[0].mxu0 %v2382
      %v2796 = vpop.f32.mrb[0].mxu0
      %v2797 = vadd.f32 %v2432, %v2796
      %v2798 = vpop.f32.mrb[0].mxu0
      %v2799 = vpop.f32.mrb[0].mxu0
      %v2800 = vadd.f32 %v2432, %v2799
      %v2801 = vpop.f32.mrb[0].mxu0
      %2802 = vmatprep.mubr.bf16.mxu0 0
      %2803 = vmatmul.mubr.bf16.gmra.mrb[0].mxu0 %v2383
      %v2804 = vpop.f32.mrb[0].mxu0
      %v2805 = vadd.f32 %v2432, %v2804
      %v2806 = vpop.f32.mrb[0].mxu0
      %v2807 = vpop.f32.mrb[0].mxu0
      %v2808 = vadd.f32 %v2432, %v2807
      %v2809 = vpop.f32.mrb[0].mxu0
      %2810 = vmatprep.mubr.bf16.mxu0 0
      %2811 = vmatmul.mubr.bf16.gmra.mrb[0].mxu0 %v2384
      %v2812 = vpop.f32.mrb[0].mxu0
      %v2813 = vadd.f32 %v2432, %v2812
      %v2814 = vpop.f32.mrb[0].mxu0
      %v2815 = vpop.f32.mrb[0].mxu0
      %v2816 = vadd.f32 %v2432, %v2815
      %v2817 = vpop.f32.mrb[0].mxu0
      %2818 = vmatprep.mubr.bf16.mxu0 0
      %2819 = vmatmul.mubr.bf16.gmra.mrb[0].mxu0 %v2385
      %v2820 = vpop.f32.mrb[0].mxu0
      %v2821 = vadd.f32 %v2432, %v2820
      %v2822 = vpop.f32.mrb[0].mxu0
      %v2823 = vpop.f32.mrb[0].mxu0
      %v2824 = vadd.f32 %v2432, %v2823
      %v2825 = vpop.f32.mrb[0].mxu0
      %2826 = vmatprep.mubr.bf16.mxu0 0
      %2827 = vmatmul.mubr.bf16.gmra.mrb[0].mxu0 %v2386
      %v2828 = vpop.f32.mrb[0].mxu0
      %v2829 = vadd.f32 %v2432, %v2828
      %v2830 = vpop.f32.mrb[0].mxu0
      %v2831 = vpop.f32.mrb[0].mxu0
      %v2832 = vadd.f32 %v2432, %v2831
      %v2833 = vpop.f32.mrb[0].mxu0
      %2834 = vmatprep.mubr.bf16.mxu0 0
      %2835 = vmatmul.mubr.bf16.gmra.mrb[0].mxu0 %v2387
      %v2836 = vpop.f32.mrb[0].mxu0
      %v2837 = vadd.f32 %v2432, %v2836
      %v2838 = vpop.f32.mrb[0].mxu0
      %v2839 = vpop.f32.mrb[0].mxu0
      %v2840 = vadd.f32 %v2432, %v2839
      %v2841 = vpop.f32.mrb[0].mxu0
      %2842 = vmatprep.mubr.bf16.mxu0 0
      %2843 = vmatmul.mubr.bf16.gmra.mrb[0].mxu0 %v2388
      %v2844 = vpop.f32.mrb[0].mxu0
      %v2845 = vadd.f32 %v2432, %v2844
      %v2846 = vpop.f32.mrb[0].mxu0
      %v2847 = vpop.f32.mrb[0].mxu0
      %v2848 = vadd.f32 %v2432, %v2847
      %v2849 = vpop.f32.mrb[0].mxu0
      %2850 = vmatprep.mubr.bf16.mxu0 0
      %2851 = vmatmul.mubr.bf16.gmra.mrb[0].mxu0 %v2389
      %v2852 = vpop.f32.mrb[0].mxu0
      %v2853 = vadd.f32 %v2432, %v2852
      %v2854 = vpop.f32.mrb[0].mxu0
      %v2855 = vpop.f32.mrb[0].mxu0
      %v2856 = vadd.f32 %v2432, %v2855
      %v2857 = vpop.f32.mrb[0].mxu0
      %2858 = vmatprep.mubr.bf16.mxu0 0
      %2859 = vmatmul.mubr.bf16.gmra.mrb[0].mxu0 %v2390
      %v2860 = vpop.f32.mrb[0].mxu0
      %v2861 = vadd.f32 %v2432, %v2860
      %v2862 = vpop.f32.mrb[0].mxu0
      %v2863 = vpop.f32.mrb[0].mxu0
      %v2864 = vadd.f32 %v2432, %v2863
      %v2865 = vpop.f32.mrb[0].mxu0
      %2866 = vmatprep.mubr.bf16.mxu0 0
      %2867 = vmatmul.mubr.bf16.gmra.mrb[0].mxu0 %v2391
      %v2868 = vpop.f32.mrb[0].mxu0
      %v2869 = vadd.f32 %v2432, %v2868
      %v2870 = vpop.f32.mrb[0].mxu0
      %v2871 = vpop.f32.mrb[0].mxu0
      %v2872 = vadd.f32 %v2432, %v2871
      %v2873 = vpop.f32.mrb[0].mxu0
      %2874 = vmatprep.mubr.bf16.mxu0 0
      %2875 = vmatmul.mubr.bf16.gmra.mrb[0].mxu0 %v2392
      %v2876 = vpop.f32.mrb[0].mxu0
      %v2877 = vadd.f32 %v2432, %v2876
      %v2878 = vpop.f32.mrb[0].mxu0
      %v2879 = vpop.f32.mrb[0].mxu0
      %v2880 = vadd.f32 %v2432, %v2879
      %v2881 = vpop.f32.mrb[0].mxu0
      %2882 = vmatprep.mubr.bf16.mxu0 0
      %2883 = vmatmul.mubr.bf16.gmra.mrb[0].mxu0 %v2393
      %v2884 = vpop.f32.mrb[0].mxu0
      %v2885 = vadd.f32 %v2432, %v2884
      %v2886 = vpop.f32.mrb[0].mxu0
      %v2887 = vpop.f32.mrb[0].mxu0
      %v2888 = vadd.f32 %v2432, %v2887
      %v2889 = vpop.f32.mrb[0].mxu0
      %2890 = vmatprep.mubr.bf16.mxu0 0
      %2891 = vmatmul.mubr.bf16.gmra.mrb[0].mxu0 %v2394
      %v2892 = vpop.f32.mrb[0].mxu0
      %v2893 = vadd.f32 %v2432, %v2892
      %v2894 = vpop.f32.mrb[0].mxu0
      %v2895 = vpop.f32.mrb[0].mxu0
      %v2896 = vadd.f32 %v2432, %v2895
      %v2897 = vpop.f32.mrb[0].mxu0
      %2898 = vmatprep.mubr.bf16.mxu0 0
      %2899 = vmatmul.mubr.bf16.gmra.mrb[0].mxu0 %v2395
      %v2900 = vpop.f32.mrb[0].mxu0
      %v2901 = vadd.f32 %v2432, %v2900
      %v2902 = vpop.f32.mrb[0].mxu0
      %v2903 = vpop.f32.mrb[0].mxu0
      %v2904 = vadd.f32 %v2432, %v2903
      %v2905 = vpop.f32.mrb[0].mxu0
      %2906 = vmatprep.mubr.bf16.mxu0 0
      %2907 = vmatmul.mubr.bf16.gmra.mrb[0].mxu0 %v2396
      %v2908 = vpop.f32.mrb[0].mxu0
      %v2909 = vadd.f32 %v2432, %v2908
      %v2910 = vpop.f32.mrb[0].mxu0
      %v2911 = vpop.f32.mrb[0].mxu0
      %v2912 = vadd.f32 %v2432, %v2911
      %v2913 = vpop.f32.mrb[0].mxu0
      %2914 = vmatprep.mubr.bf16.mxu0 0
      %2915 = vmatmul.mubr.bf16.gmra.mrb[0].mxu0 %v2397
      %v2916 = vpop.f32.mrb[0].mxu0
      %v2917 = vadd.f32 %v2432, %v2916
      %v2918 = vpop.f32.mrb[0].mxu0
      %v2919 = vpop.f32.mrb[0].mxu0
      %v2920 = vadd.f32 %v2432, %v2919
      %v2921 = vpop.f32.mrb[0].mxu0
      %2922 = vmatprep.mubr.bf16.mxu0 0
      %2923 = vmatmul.mubr.bf16.gmra.mrb[0].mxu0 %v2398
      %v2924 = vpop.f32.mrb[0].mxu0
      %v2925 = vadd.f32 %v2432, %v2924
      %v2926 = vpop.f32.mrb[0].mxu0
      %v2927 = vpop.f32.mrb[0].mxu0
      %v2928 = vadd.f32 %v2432, %v2927
      %v2929 = vpop.f32.mrb[0].mxu0
      %2930 = vmatprep.mubr.bf16.mxu0 0
      %2931 = vmatmul.mubr.bf16.gmra.mrb[0].mxu0 %v2399
      %v2932 = vpop.f32.mrb[0].mxu0
      %v2933 = vadd.f32 %v2432, %v2932
      %v2934 = vpop.f32.mrb[0].mxu0
      %v2935 = vpop.f32.mrb[0].mxu0
      %v2936 = vadd.f32 %v2432, %v2935
      %v2937 = vpop.f32.mrb[0].mxu0
      %2938 = vmatprep.mubr.bf16.mxu0 0
      %2939 = vmatmul.mubr.bf16.gmra.mrb[0].mxu0 %v2400
      %v2940 = vpop.f32.mrb[0].mxu0
      %v2941 = vadd.f32 %v2432, %v2940
      %v2942 = vpop.f32.mrb[0].mxu0
      %v2943 = vpop.f32.mrb[0].mxu0
      %v2944 = vadd.f32 %v2432, %v2943
      %v2945 = vpop.f32.mrb[0].mxu0
      %2946 = vmatprep.mubr.bf16.mxu0 0
      %2947 = vmatmul.mubr.bf16.gmra.mrb[0].mxu0 %v2401
      %v2948 = vpop.f32.mrb[0].mxu0
      %v2949 = vadd.f32 %v2432, %v2948
      %v2950 = vpop.f32.mrb[0].mxu0
      %v2951 = vpop.f32.mrb[0].mxu0
      %v2952 = vadd.f32 %v2432, %v2951
      %v2953 = vpop.f32.mrb[0].mxu0
      %2954 = vmatprep.mubr.bf16.mxu0 0
      %2955 = vmatmul.mubr.bf16.gmra.mrb[0].mxu0 %v2402
      %v2956 = vpop.f32.mrb[0].mxu0
      %v2957 = vadd.f32 %v2432, %v2956
      %v2958 = vpop.f32.mrb[0].mxu0
      %v2959 = vpop.f32.mrb[0].mxu0
      %v2960 = vadd.f32 %v2432, %v2959
      %v2961 = vpop.f32.mrb[0].mxu0
      %2962 = vmatprep.mubr.bf16.mxu0 0
      %2963 = vmatmul.mubr.bf16.gmra.mrb[0].mxu0 %v2403
      %v2964 = vpop.f32.mrb[0].mxu0
      %v2965 = vadd.f32 %v2432, %v2964
      %v2966 = vpop.f32.mrb[0].mxu0
      %v2967 = vpop.f32.mrb[0].mxu0
      %v2968 = vadd.f32 %v2432, %v2967
      %v2969 = vpop.f32.mrb[0].mxu0
      %2970 = vmatprep.mubr.bf16.mxu0 0
      %2971 = vmatmul.mubr.bf16.gmra.mrb[0].mxu0 %v2404
      %v2972 = vpop.f32.mrb[0].mxu0
      %v2973 = vadd.f32 %v2432, %v2972
      %v2974 = vpop.f32.mrb[0].mxu0
      %v2975 = vpop.f32.mrb[0].mxu0
      %v2976 = vadd.f32 %v2432, %v2975
      %v2977 = vpop.f32.mrb[0].mxu0
      %2978 = vmatprep.mubr.bf16.mxu0 0
      %2979 = vmatmul.mubr.bf16.gmra.mrb[0].mxu0 %v2405
      %v2980 = vpop.f32.mrb[0].mxu0
      %v2981 = vadd.f32 %v2432, %v2980
      %v2982 = vpop.f32.mrb[0].mxu0
      %v2983 = vpop.f32.mrb[0].mxu0
      %v2984 = vadd.f32 %v2432, %v2983
      %v2985 = vpop.f32.mrb[0].mxu0
      %2986 = vmatprep.mubr.bf16.mxu0 0
      %2987 = vmatmul.mubr.bf16.gmra.mrb[0].mxu0 %v2406
      %v2988 = vpop.f32.mrb[0].mxu0
      %v2989 = vadd.f32 %v2432, %v2988
      %v2990 = vpop.f32.mrb[0].mxu0
      %v2991 = vpop.f32.mrb[0].mxu0
      %v2992 = vadd.f32 %v2432, %v2991
      %v2993 = vpop.f32.mrb[0].mxu0
      %2994 = vmatprep.mubr.bf16.mxu0 0
      %2995 = vmatmul.mubr.bf16.gmra.mrb[0].mxu0 %v2407
      %v2996 = vpop.f32.mrb[0].mxu0
      %v2997 = vadd.f32 %v2432, %v2996
      %v2998 = vpop.f32.mrb[0].mxu0
      %v2999 = vpop.f32.mrb[0].mxu0
      %v3000 = vadd.f32 %v2432, %v2999
      %v3001 = vpop.f32.mrb[0].mxu0
      %3002 = vmatprep.mubr.bf16.mxu0 0
      %3003 = vmatmul.mubr.bf16.gmra.mrb[0].mxu0 %v2408
      %v3004 = vpop.f32.mrb[0].mxu0
      %v3005 = vadd.f32 %v2432, %v3004
      %v3006 = vpop.f32.mrb[0].mxu0
      %v3007 = vpop.f32.mrb[0].mxu0
      %v3008 = vadd.f32 %v2432, %v3007
      %v3009 = vpop.f32.mrb[0].mxu0
      %3010 = vmatprep.mubr.bf16.mxu0 0
      %3011 = vmatmul.mubr.bf16.gmra.mrb[0].mxu0 %v2409
      %v3012 = vpop.f32.mrb[0].mxu0
      %v3013 = vadd.f32 %v2432, %v3012
      %v3014 = vpop.f32.mrb[0].mxu0
      %v3015 = vpop.f32.mrb[0].mxu0
      %v3016 = vadd.f32 %v2432, %v3015
      %v3017 = vpop.f32.mrb[0].mxu0
      %3018 = vmatprep.mubr.bf16.mxu0 0
      %3019 = vmatmul.mubr.bf16.gmra.mrb[0].mxu0 %v2410
      %v3020 = vpop.f32.mrb[0].mxu0
      %v3021 = vadd.f32 %v2432, %v3020
      %v3022 = vpop.f32.mrb[0].mxu0
      %v3023 = vpop.f32.mrb[0].mxu0
      %v3024 = vadd.f32 %v2432, %v3023
      %v3025 = vpop.f32.mrb[0].mxu0
      %3026 = vdwg.mxu0
      %v3027 = vmax.f32 %v2517, 0.0
      %v3028 = vmax.f32 %v2520, 0.0
      %v3029 = vmax.f32 %v2525, 0.0
      %v3030 = vmax.f32 %v2528, 0.0
      %v3031 = vmax.f32 %v2533, 0.0
      %v3032 = vmax.f32 %v2536, 0.0
      %v3033 = vmax.f32 %v2541, 0.0
      %v3034 = vmax.f32 %v2544, 0.0
      %v3035 = vmax.f32 %v2549, 0.0
      %v3036 = vmax.f32 %v2552, 0.0
      %v3037 = vmax.f32 %v2557, 0.0
      %v3038 = vmax.f32 %v2560, 0.0
      %v3039 = vmax.f32 %v2565, 0.0
      %v3040 = vmax.f32 %v2568, 0.0
      %v3041 = vmax.f32 %v2573, 0.0
      %v3042 = vmax.f32 %v2576, 0.0
      %v3043 = vmax.f32 %v2581, 0.0
      %v3044 = vmax.f32 %v2584, 0.0
      %v3045 = vmax.f32 %v2589, 0.0
      %v3046 = vmax.f32 %v2592, 0.0
      %v3047 = vmax.f32 %v2597, 0.0
      %v3048 = vmax.f32 %v2600, 0.0
      %v3049 = vmax.f32 %v2605, 0.0
      %v3050 = vmax.f32 %v2608, 0.0
      %v3051 = vmax.f32 %v2613, 0.0
      %v3052 = vmax.f32 %v2616, 0.0
      %v3053 = vmax.f32 %v2621, 0.0
      %v3054 = vmax.f32 %v2624, 0.0
      %v3055 = vmax.f32 %v2629, 0.0
      %v3056 = vmax.f32 %v2632, 0.0
      %v3057 = vmax.f32 %v2637, 0.0
      %v3058 = vmax.f32 %v2640, 0.0
      %v3059 = vmax.f32 %v2645, 0.0
      %v3060 = vmax.f32 %v2648, 0.0
      %v3061 = vmax.f32 %v2653, 0.0
      %v3062 = vmax.f32 %v2656, 0.0
      %v3063 = vmax.f32 %v2661, 0.0
      %v3064 = vmax.f32 %v2664, 0.0
      %v3065 = vmax.f32 %v2669, 0.0
      %v3066 = vmax.f32 %v2672, 0.0
      %v3067 = vmax.f32 %v2677, 0.0
      %v3068 = vmax.f32 %v2680, 0.0
      %v3069 = vmax.f32 %v2685, 0.0
      %v3070 = vmax.f32 %v2688, 0.0
      %v3071 = vmax.f32 %v2693, 0.0
      %v3072 = vmax.f32 %v2696, 0.0
      %v3073 = vmax.f32 %v2701, 0.0
      %v3074 = vmax.f32 %v2704, 0.0
      %v3075 = vmax.f32 %v2709, 0.0
      %v3076 = vmax.f32 %v2712, 0.0
      %v3077 = vmax.f32 %v2717, 0.0
      %v3078 = vmax.f32 %v2720, 0.0
      %v3079 = vmax.f32 %v2725, 0.0
      %v3080 = vmax.f32 %v2728, 0.0
      %v3081 = vmax.f32 %v2733, 0.0
      %v3082 = vmax.f32 %v2736, 0.0
      %v3083 = vmax.f32 %v2741, 0.0
      %v3084 = vmax.f32 %v2744, 0.0
      %v3085 = vmax.f32 %v2749, 0.0
      %v3086 = vmax.f32 %v2752, 0.0
      %v3087 = vmax.f32 %v2757, 0.0
      %v3088 = vmax.f32 %v2760, 0.0
      %v3089 = vmax.f32 %v2765, 0.0
      %v3090 = vmax.f32 %v2768, 0.0
      %v3091 = vmax.f32 %v2773, 0.0
      %v3092 = vmax.f32 %v2776, 0.0
      %v3093 = vmax.f32 %v2781, 0.0
      %v3094 = vmax.f32 %v2784, 0.0
      %v3095 = vmax.f32 %v2789, 0.0
      %v3096 = vmax.f32 %v2792, 0.0
      %v3097 = vmax.f32 %v2797, 0.0
      %v3098 = vmax.f32 %v2800, 0.0
      %v3099 = vmax.f32 %v2805, 0.0
      %v3100 = vmax.f32 %v2808, 0.0
      %v3101 = vmax.f32 %v2813, 0.0
      %v3102 = vmax.f32 %v2816, 0.0
      %v3103 = vmax.f32 %v2821, 0.0
      %v3104 = vmax.f32 %v2824, 0.0
      %v3105 = vmax.f32 %v2829, 0.0
      %v3106 = vmax.f32 %v2832, 0.0
      %v3107 = vmax.f32 %v2837, 0.0
      %v3108 = vmax.f32 %v2840, 0.0
      %v3109 = vmax.f32 %v2845, 0.0
      %v3110 = vmax.f32 %v2848, 0.0
      %v3111 = vmax.f32 %v2853, 0.0
      %v3112 = vmax.f32 %v2856, 0.0
      %v3113 = vmax.f32 %v2861, 0.0
      %v3114 = vmax.f32 %v2864, 0.0
      %v3115 = vmax.f32 %v2869, 0.0
      %v3116 = vmax.f32 %v2872, 0.0
      %v3117 = vmax.f32 %v2877, 0.0
      %v3118 = vmax.f32 %v2880, 0.0
      %v3119 = vmax.f32 %v2885, 0.0
      %v3120 = vmax.f32 %v2888, 0.0
      %v3121 = vmax.f32 %v2893, 0.0
      %v3122 = vmax.f32 %v2896, 0.0
      %v3123 = vmax.f32 %v2901, 0.0
      %v3124 = vmax.f32 %v2904, 0.0
      %v3125 = vmax.f32 %v2909, 0.0
      %v3126 = vmax.f32 %v2912, 0.0
      %v3127 = vmax.f32 %v2917, 0.0
      %v3128 = vmax.f32 %v2920, 0.0
      %v3129 = vmax.f32 %v2925, 0.0
      %v3130 = vmax.f32 %v2928, 0.0
      %v3131 = vmax.f32 %v2933, 0.0
      %v3132 = vmax.f32 %v2936, 0.0
      %v3133 = vmax.f32 %v2941, 0.0
      %v3134 = vmax.f32 %v2944, 0.0
      %v3135 = vmax.f32 %v2949, 0.0
      %v3136 = vmax.f32 %v2952, 0.0
      %v3137 = vmax.f32 %v2957, 0.0
      %v3138 = vmax.f32 %v2960, 0.0
      %v3139 = vmax.f32 %v2965, 0.0
      %v3140 = vmax.f32 %v2968, 0.0
      %v3141 = vmax.f32 %v2973, 0.0
      %v3142 = vmax.f32 %v2976, 0.0
      %v3143 = vmax.f32 %v2981, 0.0
      %v3144 = vmax.f32 %v2984, 0.0
      %v3145 = vmax.f32 %v2989, 0.0
      %v3146 = vmax.f32 %v2992, 0.0
      %v3147 = vmax.f32 %v2997, 0.0
      %v3148 = vmax.f32 %v3000, 0.0
      %v3149 = vmax.f32 %v3005, 0.0
      %v3150 = vmax.f32 %v3008, 0.0
      %v3151 = vmax.f32 %v3013, 0.0
      %v3152 = vmax.f32 %v3016, 0.0
      %v3153 = vmax.f32 %v3021, 0.0
      %v3154 = vmax.f32 %v3024, 0.0
      %v3155 = vpack.c.bf16 %v3028, %v3027
      %v3156 = vpack.c.bf16 %v3030, %v3029
      %v3157 = vpack.c.bf16 %v3032, %v3031
      %v3158 = vpack.c.bf16 %v3034, %v3033
      %v3159 = vpack.c.bf16 %v3036, %v3035
      %v3160 = vpack.c.bf16 %v3038, %v3037
      %v3161 = vpack.c.bf16 %v3040, %v3039
      %v3162 = vpack.c.bf16 %v3042, %v3041
      %v3163 = vpack.c.bf16 %v3044, %v3043
      %v3164 = vpack.c.bf16 %v3046, %v3045
      %v3165 = vpack.c.bf16 %v3048, %v3047
      %v3166 = vpack.c.bf16 %v3050, %v3049
      %v3167 = vpack.c.bf16 %v3052, %v3051
      %v3168 = vpack.c.bf16 %v3054, %v3053
      %v3169 = vpack.c.bf16 %v3056, %v3055
      %v3170 = vpack.c.bf16 %v3058, %v3057
      %v3171 = vpack.c.bf16 %v3060, %v3059
      %v3172 = vpack.c.bf16 %v3062, %v3061
      %v3173 = vpack.c.bf16 %v3064, %v3063
      %v3174 = vpack.c.bf16 %v3066, %v3065
      %v3175 = vpack.c.bf16 %v3068, %v3067
      %v3176 = vpack.c.bf16 %v3070, %v3069
      %v3177 = vpack.c.bf16 %v3072, %v3071
      %v3178 = vpack.c.bf16 %v3074, %v3073
      %v3179 = vpack.c.bf16 %v3076, %v3075
      %v3180 = vpack.c.bf16 %v3078, %v3077
      %v3181 = vpack.c.bf16 %v3080, %v3079
      %v3182 = vpack.c.bf16 %v3082, %v3081
      %v3183 = vpack.c.bf16 %v3084, %v3083
      %v3184 = vpack.c.bf16 %v3086, %v3085
      %v3185 = vpack.c.bf16 %v3088, %v3087
      %v3186 = vpack.c.bf16 %v3090, %v3089
      %v3187 = vpack.c.bf16 %v3092, %v3091
      %v3188 = vpack.c.bf16 %v3094, %v3093
      %v3189 = vpack.c.bf16 %v3096, %v3095
      %v3190 = vpack.c.bf16 %v3098, %v3097
      %v3191 = vpack.c.bf16 %v3100, %v3099
      %v3192 = vpack.c.bf16 %v3102, %v3101
      %v3193 = vpack.c.bf16 %v3104, %v3103
      %v3194 = vpack.c.bf16 %v3106, %v3105
      %v3195 = vpack.c.bf16 %v3108, %v3107
      %v3196 = vpack.c.bf16 %v3110, %v3109
      %v3197 = vpack.c.bf16 %v3112, %v3111
      %v3198 = vpack.c.bf16 %v3114, %v3113
      %v3199 = vpack.c.bf16 %v3116, %v3115
      %v3200 = vpack.c.bf16 %v3118, %v3117
      %v3201 = vpack.c.bf16 %v3120, %v3119
      %v3202 = vpack.c.bf16 %v3122, %v3121
      %v3203 = vpack.c.bf16 %v3124, %v3123
      %v3204 = vpack.c.bf16 %v3126, %v3125
      %v3205 = vpack.c.bf16 %v3128, %v3127
      %v3206 = vpack.c.bf16 %v3130, %v3129
      %v3207 = vpack.c.bf16 %v3132, %v3131
      %v3208 = vpack.c.bf16 %v3134, %v3133
      %v3209 = vpack.c.bf16 %v3136, %v3135
      %v3210 = vpack.c.bf16 %v3138, %v3137
      %v3211 = vpack.c.bf16 %v3140, %v3139
      %v3212 = vpack.c.bf16 %v3142, %v3141
      %v3213 = vpack.c.bf16 %v3144, %v3143
      %v3214 = vpack.c.bf16 %v3146, %v3145
      %v3215 = vpack.c.bf16 %v3148, %v3147
      %v3216 = vpack.c.bf16 %v3150, %v3149
      %v3217 = vpack.c.bf16 %v3152, %v3151
      %v3218 = vpack.c.bf16 %v3154, %v3153
      %v3283 = vunpack.c.l.b16 %v3155
      %v3284 = vunpack.c.h.b16 %v3155
      %v3285 = vunpack.c.l.b16 %v3156
      %v3286 = vunpack.c.h.b16 %v3156
      %v3287 = vunpack.c.l.b16 %v3157
      %v3288 = vunpack.c.h.b16 %v3157
      %v3289 = vunpack.c.l.b16 %v3158
      %v3290 = vunpack.c.h.b16 %v3158
      %v3291 = vunpack.c.l.b16 %v3159
      %v3292 = vunpack.c.h.b16 %v3159
      %v3293 = vunpack.c.l.b16 %v3160
      %v3294 = vunpack.c.h.b16 %v3160
      %v3295 = vunpack.c.l.b16 %v3161
      %v3296 = vunpack.c.h.b16 %v3161
      %v3297 = vunpack.c.l.b16 %v3162
      %v3298 = vunpack.c.h.b16 %v3162
      %v3299 = vunpack.c.l.b16 %v3163
      %v3300 = vunpack.c.h.b16 %v3163
      %v3301 = vunpack.c.l.b16 %v3164
      %v3302 = vunpack.c.h.b16 %v3164
      %v3303 = vunpack.c.l.b16 %v3165
      %v3304 = vunpack.c.h.b16 %v3165
      %v3305 = vunpack.c.l.b16 %v3166
      %v3306 = vunpack.c.h.b16 %v3166
      %v3307 = vunpack.c.l.b16 %v3167
      %v3308 = vunpack.c.h.b16 %v3167
      %v3309 = vunpack.c.l.b16 %v3168
      %v3310 = vunpack.c.h.b16 %v3168
      %v3311 = vunpack.c.l.b16 %v3169
      %v3312 = vunpack.c.h.b16 %v3169
      %v3313 = vunpack.c.l.b16 %v3170
      %v3314 = vunpack.c.h.b16 %v3170
      %v3315 = vunpack.c.l.b16 %v3171
      %v3316 = vunpack.c.h.b16 %v3171
      %v3317 = vunpack.c.l.b16 %v3172
      %v3318 = vunpack.c.h.b16 %v3172
      %v3319 = vunpack.c.l.b16 %v3173
      %v3320 = vunpack.c.h.b16 %v3173
      %v3321 = vunpack.c.l.b16 %v3174
      %v3322 = vunpack.c.h.b16 %v3174
      %v3323 = vunpack.c.l.b16 %v3175
      %v3324 = vunpack.c.h.b16 %v3175
      %v3325 = vunpack.c.l.b16 %v3176
      %v3326 = vunpack.c.h.b16 %v3176
      %v3327 = vunpack.c.l.b16 %v3177
      %v3328 = vunpack.c.h.b16 %v3177
      %v3329 = vunpack.c.l.b16 %v3178
      %v3330 = vunpack.c.h.b16 %v3178
      %v3331 = vunpack.c.l.b16 %v3179
      %v3332 = vunpack.c.h.b16 %v3179
      %v3333 = vunpack.c.l.b16 %v3180
      %v3334 = vunpack.c.h.b16 %v3180
      %v3335 = vunpack.c.l.b16 %v3181
      %v3336 = vunpack.c.h.b16 %v3181
      %v3337 = vunpack.c.l.b16 %v3182
      %v3338 = vunpack.c.h.b16 %v3182
      %v3339 = vunpack.c.l.b16 %v3183
      %v3340 = vunpack.c.h.b16 %v3183
      %v3341 = vunpack.c.l.b16 %v3184
      %v3342 = vunpack.c.h.b16 %v3184
      %v3343 = vunpack.c.l.b16 %v3185
      %v3344 = vunpack.c.h.b16 %v3185
      %v3345 = vunpack.c.l.b16 %v3186
      %v3346 = vunpack.c.h.b16 %v3186
      %v3347 = vunpack.c.l.b16 %v3187
      %v3348 = vunpack.c.h.b16 %v3187
      %v3349 = vunpack.c.l.b16 %v3188
      %v3350 = vunpack.c.h.b16 %v3188
      %v3351 = vunpack.c.l.b16 %v3189
      %v3352 = vunpack.c.h.b16 %v3189
      %v3353 = vunpack.c.l.b16 %v3190
      %v3354 = vunpack.c.h.b16 %v3190
      %v3355 = vunpack.c.l.b16 %v3191
      %v3356 = vunpack.c.h.b16 %v3191
      %v3357 = vunpack.c.l.b16 %v3192
      %v3358 = vunpack.c.h.b16 %v3192
      %v3359 = vunpack.c.l.b16 %v3193
      %v3360 = vunpack.c.h.b16 %v3193
      %v3361 = vunpack.c.l.b16 %v3194
      %v3362 = vunpack.c.h.b16 %v3194
      %v3363 = vunpack.c.l.b16 %v3195
      %v3364 = vunpack.c.h.b16 %v3195
      %v3365 = vunpack.c.l.b16 %v3196
      %v3366 = vunpack.c.h.b16 %v3196
      %v3367 = vunpack.c.l.b16 %v3197
      %v3368 = vunpack.c.h.b16 %v3197
      %v3369 = vunpack.c.l.b16 %v3198
      %v3370 = vunpack.c.h.b16 %v3198
      %v3371 = vunpack.c.l.b16 %v3199
      %v3372 = vunpack.c.h.b16 %v3199
      %v3373 = vunpack.c.l.b16 %v3200
      %v3374 = vunpack.c.h.b16 %v3200
      %v3375 = vunpack.c.l.b16 %v3201
      %v3376 = vunpack.c.h.b16 %v3201
      %v3377 = vunpack.c.l.b16 %v3202
      %v3378 = vunpack.c.h.b16 %v3202
      %v3379 = vunpack.c.l.b16 %v3203
      %v3380 = vunpack.c.h.b16 %v3203
      %v3381 = vunpack.c.l.b16 %v3204
      %v3382 = vunpack.c.h.b16 %v3204
      %v3383 = vunpack.c.l.b16 %v3205
      %v3384 = vunpack.c.h.b16 %v3205
      %v3385 = vunpack.c.l.b16 %v3206
      %v3386 = vunpack.c.h.b16 %v3206
      %v3387 = vunpack.c.l.b16 %v3207
      %v3388 = vunpack.c.h.b16 %v3207
      %v3389 = vunpack.c.l.b16 %v3208
      %v3390 = vunpack.c.h.b16 %v3208
      %v3391 = vunpack.c.l.b16 %v3209
      %v3392 = vunpack.c.h.b16 %v3209
      %v3393 = vunpack.c.l.b16 %v3210
      %v3394 = vunpack.c.h.b16 %v3210
      %v3395 = vunpack.c.l.b16 %v3211
      %v3396 = vunpack.c.h.b16 %v3211
      %v3397 = vunpack.c.l.b16 %v3212
      %v3398 = vunpack.c.h.b16 %v3212
      %v3399 = vunpack.c.l.b16 %v3213
      %v3400 = vunpack.c.h.b16 %v3213
      %v3401 = vunpack.c.l.b16 %v3214
      %v3402 = vunpack.c.h.b16 %v3214
      %v3403 = vunpack.c.l.b16 %v3215
      %v3404 = vunpack.c.h.b16 %v3215
      %v3405 = vunpack.c.l.b16 %v3216
      %v3406 = vunpack.c.h.b16 %v3216
      %v3407 = vunpack.c.l.b16 %v3217
      %v3408 = vunpack.c.h.b16 %v3217
      %v3409 = vunpack.c.l.b16 %v3218
      %v3410 = vunpack.c.h.b16 %v3218
      %v3411 = vpack.c.b16 %v3283, %v3283
      %v3412 = vpack.c.b16 %v3284, %v3284
      %v3413 = vpack.c.b16 %v3285, %v3285
      %v3414 = vpack.c.b16 %v3286, %v3286
      %v3415 = vpack.c.b16 %v3287, %v3287
      %v3416 = vpack.c.b16 %v3288, %v3288
      %v3417 = vpack.c.b16 %v3289, %v3289
      %v3418 = vpack.c.b16 %v3290, %v3290
      %v3419 = vpack.c.b16 %v3291, %v3291
      %v3420 = vpack.c.b16 %v3292, %v3292
      %v3421 = vpack.c.b16 %v3293, %v3293
      %v3422 = vpack.c.b16 %v3294, %v3294
      %v3423 = vpack.c.b16 %v3295, %v3295
      %v3424 = vpack.c.b16 %v3296, %v3296
      %v3425 = vpack.c.b16 %v3297, %v3297
      %v3426 = vpack.c.b16 %v3298, %v3298
      %v3427 = vpack.c.b16 %v3299, %v3299
      %v3428 = vpack.c.b16 %v3300, %v3300
      %v3429 = vpack.c.b16 %v3301, %v3301
      %v3430 = vpack.c.b16 %v3302, %v3302
      %v3431 = vpack.c.b16 %v3303, %v3303
      %v3432 = vpack.c.b16 %v3304, %v3304
      %v3433 = vpack.c.b16 %v3305, %v3305
      %v3434 = vpack.c.b16 %v3306, %v3306
      %v3435 = vpack.c.b16 %v3307, %v3307
      %v3436 = vpack.c.b16 %v3308, %v3308
      %v3437 = vpack.c.b16 %v3309, %v3309
      %v3438 = vpack.c.b16 %v3310, %v3310
      %v3439 = vpack.c.b16 %v3311, %v3311
      %v3440 = vpack.c.b16 %v3312, %v3312
      %v3441 = vpack.c.b16 %v3313, %v3313
      %v3442 = vpack.c.b16 %v3314, %v3314
      %v3443 = vpack.c.b16 %v3315, %v3315
      %v3444 = vpack.c.b16 %v3316, %v3316
      %v3445 = vpack.c.b16 %v3317, %v3317
      %v3446 = vpack.c.b16 %v3318, %v3318
      %v3447 = vpack.c.b16 %v3319, %v3319
      %v3448 = vpack.c.b16 %v3320, %v3320
      %v3449 = vpack.c.b16 %v3321, %v3321
      %v3450 = vpack.c.b16 %v3322, %v3322
      %v3451 = vpack.c.b16 %v3323, %v3323
      %v3452 = vpack.c.b16 %v3324, %v3324
      %v3453 = vpack.c.b16 %v3325, %v3325
      %v3454 = vpack.c.b16 %v3326, %v3326
      %v3455 = vpack.c.b16 %v3327, %v3327
      %v3456 = vpack.c.b16 %v3328, %v3328
      %v3457 = vpack.c.b16 %v3329, %v3329
      %v3458 = vpack.c.b16 %v3330, %v3330
      %v3459 = vpack.c.b16 %v3331, %v3331
      %v3460 = vpack.c.b16 %v3332, %v3332
      %v3461 = vpack.c.b16 %v3333, %v3333
      %v3462 = vpack.c.b16 %v3334, %v3334
      %v3463 = vpack.c.b16 %v3335, %v3335
      %v3464 = vpack.c.b16 %v3336, %v3336
      %v3465 = vpack.c.b16 %v3337, %v3337
      %v3466 = vpack.c.b16 %v3338, %v3338
      %v3467 = vpack.c.b16 %v3339, %v3339
      %v3468 = vpack.c.b16 %v3340, %v3340
      %v3469 = vpack.c.b16 %v3341, %v3341
      %v3470 = vpack.c.b16 %v3342, %v3342
      %v3471 = vpack.c.b16 %v3343, %v3343
      %v3472 = vpack.c.b16 %v3344, %v3344
      %v3473 = vpack.c.b16 %v3345, %v3345
      %v3474 = vpack.c.b16 %v3346, %v3346
      %v3475 = vpack.c.b16 %v3347, %v3347
      %v3476 = vpack.c.b16 %v3348, %v3348
      %v3477 = vpack.c.b16 %v3349, %v3349
      %v3478 = vpack.c.b16 %v3350, %v3350
      %v3479 = vpack.c.b16 %v3351, %v3351
      %v3480 = vpack.c.b16 %v3352, %v3352
      %v3481 = vpack.c.b16 %v3353, %v3353
      %v3482 = vpack.c.b16 %v3354, %v3354
      %v3483 = vpack.c.b16 %v3355, %v3355
      %v3484 = vpack.c.b16 %v3356, %v3356
      %v3485 = vpack.c.b16 %v3357, %v3357
      %v3486 = vpack.c.b16 %v3358, %v3358
      %v3487 = vpack.c.b16 %v3359, %v3359
      %v3488 = vpack.c.b16 %v3360, %v3360
      %v3489 = vpack.c.b16 %v3361, %v3361
      %v3490 = vpack.c.b16 %v3362, %v3362
      %v3491 = vpack.c.b16 %v3363, %v3363
      %v3492 = vpack.c.b16 %v3364, %v3364
      %v3493 = vpack.c.b16 %v3365, %v3365
      %v3494 = vpack.c.b16 %v3366, %v3366
      %v3495 = vpack.c.b16 %v3367, %v3367
      %v3496 = vpack.c.b16 %v3368, %v3368
      %v3497 = vpack.c.b16 %v3369, %v3369
      %v3498 = vpack.c.b16 %v3370, %v3370
      %v3499 = vpack.c.b16 %v3371, %v3371
      %v3500 = vpack.c.b16 %v3372, %v3372
      %v3501 = vpack.c.b16 %v3373, %v3373
      %v3502 = vpack.c.b16 %v3374, %v3374
      %v3503 = vpack.c.b16 %v3375, %v3375
      %v3504 = vpack.c.b16 %v3376, %v3376
      %v3505 = vpack.c.b16 %v3377, %v3377
      %v3506 = vpack.c.b16 %v3378, %v3378
      %v3507 = vpack.c.b16 %v3379, %v3379
      %v3508 = vpack.c.b16 %v3380, %v3380
      %v3509 = vpack.c.b16 %v3381, %v3381
      %v3510 = vpack.c.b16 %v3382, %v3382
      %v3511 = vpack.c.b16 %v3383, %v3383
      %v3512 = vpack.c.b16 %v3384, %v3384
      %v3513 = vpack.c.b16 %v3385, %v3385
      %v3514 = vpack.c.b16 %v3386, %v3386
      %v3515 = vpack.c.b16 %v3387, %v3387
      %v3516 = vpack.c.b16 %v3388, %v3388
      %v3517 = vpack.c.b16 %v3389, %v3389
      %v3518 = vpack.c.b16 %v3390, %v3390
      %v3519 = vpack.c.b16 %v3391, %v3391
      %v3520 = vpack.c.b16 %v3392, %v3392
      %v3521 = vpack.c.b16 %v3393, %v3393
      %v3522 = vpack.c.b16 %v3394, %v3394
      %v3523 = vpack.c.b16 %v3395, %v3395
      %v3524 = vpack.c.b16 %v3396, %v3396
      %v3525 = vpack.c.b16 %v3397, %v3397
      %v3526 = vpack.c.b16 %v3398, %v3398
      %v3527 = vpack.c.b16 %v3399, %v3399
      %v3528 = vpack.c.b16 %v3400, %v3400
      %v3529 = vpack.c.b16 %v3401, %v3401
      %v3530 = vpack.c.b16 %v3402, %v3402
      %v3531 = vpack.c.b16 %v3403, %v3403
      %v3532 = vpack.c.b16 %v3404, %v3404
      %v3533 = vpack.c.b16 %v3405, %v3405
      %v3534 = vpack.c.b16 %v3406, %v3406
      %v3535 = vpack.c.b16 %v3407, %v3407
      %v3536 = vpack.c.b16 %v3408, %v3408
      %v3537 = vpack.c.b16 %v3409, %v3409
      %v3538 = vpack.c.b16 %v3410, %v3410
      %3667 = vst [vmem:[%s280] sm:$0xf] %v3411
      %3668 = vst [vmem:[%s280 + $0x4] sm:$0xf] %v3412
      %3669 = vst [vmem:[%s280 + $0x8] sm:$0xf] %v3413
      %3670 = vst [vmem:[%s280 + $0xc] sm:$0xf] %v3414
      %3671 = vst [vmem:[%s280 + $0x10] sm:$0xf] %v3415
      %3672 = vst [vmem:[%s280 + $0x14] sm:$0xf] %v3416
      %3673 = vst [vmem:[%s280 + $0x18] sm:$0xf] %v3417
      %3674 = vst [vmem:[%s280 + $0x1c] sm:$0xf] %v3418
      %3675 = vst [vmem:[%s280 + $0x20] sm:$0xf] %v3419
      %3676 = vst [vmem:[%s280 + $0x24] sm:$0xf] %v3420
      %3677 = vst [vmem:[%s280 + $0x28] sm:$0xf] %v3421
      %3678 = vst [vmem:[%s280 + $0x2c] sm:$0xf] %v3422
      %3679 = vst [vmem:[%s280 + $0x30] sm:$0xf] %v3423
      %3680 = vst [vmem:[%s280 + $0x34] sm:$0xf] %v3424
      %3681 = vst [vmem:[%s280 + $0x38] sm:$0xf] %v3425
      %3682 = vst [vmem:[%s280 + $0x3c] sm:$0xf] %v3426
      %3683 = vst [vmem:[%s280 + $0x40] sm:$0xf] %v3427
      %3684 = vst [vmem:[%s280 + $0x44] sm:$0xf] %v3428
      %3685 = vst [vmem:[%s280 + $0x48] sm:$0xf] %v3429
      %3686 = vst [vmem:[%s280 + $0x4c] sm:$0xf] %v3430
      %3687 = vst [vmem:[%s280 + $0x50] sm:$0xf] %v3431
      %3688 = vst [vmem:[%s280 + $0x54] sm:$0xf] %v3432
      %3689 = vst [vmem:[%s280 + $0x58] sm:$0xf] %v3433
      %3690 = vst [vmem:[%s280 + $0x5c] sm:$0xf] %v3434
      %3691 = vst [vmem:[%s280 + $0x60] sm:$0xf] %v3435
      %3692 = vst [vmem:[%s280 + $0x64] sm:$0xf] %v3436
      %3693 = vst [vmem:[%s280 + $0x68] sm:$0xf] %v3437
      %3694 = vst [vmem:[%s280 + $0x6c] sm:$0xf] %v3438
      %3695 = vst [vmem:[%s280 + $0x70] sm:$0xf] %v3439
      %3696 = vst [vmem:[%s280 + $0x74] sm:$0xf] %v3440
      %3697 = vst [vmem:[%s280 + $0x78] sm:$0xf] %v3441
      %3698 = vst [vmem:[%s280 + $0x7c] sm:$0xf] %v3442
      %3699 = vst [vmem:[%s280 + $0x80] sm:$0xf] %v3443
      %3700 = vst [vmem:[%s280 + $0x84] sm:$0xf] %v3444
      %3701 = vst [vmem:[%s280 + $0x88] sm:$0xf] %v3445
      %3702 = vst [vmem:[%s280 + $0x8c] sm:$0xf] %v3446
      %3703 = vst [vmem:[%s280 + $0x90] sm:$0xf] %v3447
      %3704 = vst [vmem:[%s280 + $0x94] sm:$0xf] %v3448
      %3705 = vst [vmem:[%s280 + $0x98] sm:$0xf] %v3449
      %3706 = vst [vmem:[%s280 + $0x9c] sm:$0xf] %v3450
      %3707 = vst [vmem:[%s280 + $0xa0] sm:$0xf] %v3451
      %3708 = vst [vmem:[%s280 + $0xa4] sm:$0xf] %v3452
      %3709 = vst [vmem:[%s280 + $0xa8] sm:$0xf] %v3453
      %3710 = vst [vmem:[%s280 + $0xac] sm:$0xf] %v3454
      %3711 = vst [vmem:[%s280 + $0xb0] sm:$0xf] %v3455
      %3712 = vst [vmem:[%s280 + $0xb4] sm:$0xf] %v3456
      %3713 = vst [vmem:[%s280 + $0xb8] sm:$0xf] %v3457
      %3714 = vst [vmem:[%s280 + $0xbc] sm:$0xf] %v3458
      %3715 = vst [vmem:[%s280 + $0xc0] sm:$0xf] %v3459
      %3716 = vst [vmem:[%s280 + $0xc4] sm:$0xf] %v3460
      %3717 = vst [vmem:[%s280 + $0xc8] sm:$0xf] %v3461
      %3718 = vst [vmem:[%s280 + $0xcc] sm:$0xf] %v3462
      %3719 = vst [vmem:[%s280 + $0xd0] sm:$0xf] %v3463
      %3720 = vst [vmem:[%s280 + $0xd4] sm:$0xf] %v3464
      %3721 = vst [vmem:[%s280 + $0xd8] sm:$0xf] %v3465
      %3722 = vst [vmem:[%s280 + $0xdc] sm:$0xf] %v3466
      %3723 = vst [vmem:[%s280 + $0xe0] sm:$0xf] %v3467
      %3724 = vst [vmem:[%s280 + $0xe4] sm:$0xf] %v3468
      %3725 = vst [vmem:[%s280 + $0xe8] sm:$0xf] %v3469
      %3726 = vst [vmem:[%s280 + $0xec] sm:$0xf] %v3470
      %3727 = vst [vmem:[%s280 + $0xf0] sm:$0xf] %v3471
      %3728 = vst [vmem:[%s280 + $0xf4] sm:$0xf] %v3472
      %3729 = vst [vmem:[%s280 + $0xf8] sm:$0xf] %v3473
      %3730 = vst [vmem:[%s280 + $0xfc] sm:$0xf] %v3474
      %3731 = vst [vmem:[%s280 + $0x100] sm:$0xf] %v3475
      %3732 = vst [vmem:[%s280 + $0x104] sm:$0xf] %v3476
      %3733 = vst [vmem:[%s280 + $0x108] sm:$0xf] %v3477
      %3734 = vst [vmem:[%s280 + $0x10c] sm:$0xf] %v3478
      %3735 = vst [vmem:[%s280 + $0x110] sm:$0xf] %v3479
      %3736 = vst [vmem:[%s280 + $0x114] sm:$0xf] %v3480
      %3737 = vst [vmem:[%s280 + $0x118] sm:$0xf] %v3481
      %3738 = vst [vmem:[%s280 + $0x11c] sm:$0xf] %v3482
      %3739 = vst [vmem:[%s280 + $0x120] sm:$0xf] %v3483
      %3740 = vst [vmem:[%s280 + $0x124] sm:$0xf] %v3484
      %3741 = vst [vmem:[%s280 + $0x128] sm:$0xf] %v3485
      %3742 = vst [vmem:[%s280 + $0x12c] sm:$0xf] %v3486
      %3743 = vst [vmem:[%s280 + $0x130] sm:$0xf] %v3487
      %3744 = vst [vmem:[%s280 + $0x134] sm:$0xf] %v3488
      %3745 = vst [vmem:[%s280 + $0x138] sm:$0xf] %v3489
      %3746 = vst [vmem:[%s280 + $0x13c] sm:$0xf] %v3490
      %3747 = vst [vmem:[%s280 + $0x140] sm:$0xf] %v3491
      %3748 = vst [vmem:[%s280 + $0x144] sm:$0xf] %v3492
      %3749 = vst [vmem:[%s280 + $0x148] sm:$0xf] %v3493
      %3750 = vst [vmem:[%s280 + $0x14c] sm:$0xf] %v3494
      %3751 = vst [vmem:[%s280 + $0x150] sm:$0xf] %v3495
      %3752 = vst [vmem:[%s280 + $0x154] sm:$0xf] %v3496
      %3753 = vst [vmem:[%s280 + $0x158] sm:$0xf] %v3497
      %3754 = vst [vmem:[%s280 + $0x15c] sm:$0xf] %v3498
      %3755 = vst [vmem:[%s280 + $0x160] sm:$0xf] %v3499
      %3756 = vst [vmem:[%s280 + $0x164] sm:$0xf] %v3500
      %3757 = vst [vmem:[%s280 + $0x168] sm:$0xf] %v3501
      %3758 = vst [vmem:[%s280 + $0x16c] sm:$0xf] %v3502
      %3759 = vst [vmem:[%s280 + $0x170] sm:$0xf] %v3503
      %3760 = vst [vmem:[%s280 + $0x174] sm:$0xf] %v3504
      %3761 = vst [vmem:[%s280 + $0x178] sm:$0xf] %v3505
      %3762 = vst [vmem:[%s280 + $0x17c] sm:$0xf] %v3506
      %3763 = vst [vmem:[%s280 + $0x180] sm:$0xf] %v3507
      %3764 = vst [vmem:[%s280 + $0x184] sm:$0xf] %v3508
      %3765 = vst [vmem:[%s280 + $0x188] sm:$0xf] %v3509
      %3766 = vst [vmem:[%s280 + $0x18c] sm:$0xf] %v3510
      %3767 = vst [vmem:[%s280 + $0x190] sm:$0xf] %v3511
      %3768 = vst [vmem:[%s280 + $0x194] sm:$0xf] %v3512
      %3769 = vst [vmem:[%s280 + $0x198] sm:$0xf] %v3513
      %3770 = vst [vmem:[%s280 + $0x19c] sm:$0xf] %v3514
      %3771 = vst [vmem:[%s280 + $0x1a0] sm:$0xf] %v3515
      %3772 = vst [vmem:[%s280 + $0x1a4] sm:$0xf] %v3516
      %3773 = vst [vmem:[%s280 + $0x1a8] sm:$0xf] %v3517
      %3774 = vst [vmem:[%s280 + $0x1ac] sm:$0xf] %v3518
      %3775 = vst [vmem:[%s280 + $0x1b0] sm:$0xf] %v3519
      %3776 = vst [vmem:[%s280 + $0x1b4] sm:$0xf] %v3520
      %3777 = vst [vmem:[%s280 + $0x1b8] sm:$0xf] %v3521
      %3778 = vst [vmem:[%s280 + $0x1bc] sm:$0xf] %v3522
      %3779 = vst [vmem:[%s280 + $0x1c0] sm:$0xf] %v3523
      %3780 = vst [vmem:[%s280 + $0x1c4] sm:$0xf] %v3524
      %3781 = vst [vmem:[%s280 + $0x1c8] sm:$0xf] %v3525
      %3782 = vst [vmem:[%s280 + $0x1cc] sm:$0xf] %v3526
      %3783 = vst [vmem:[%s280 + $0x1d0] sm:$0xf] %v3527
      %3784 = vst [vmem:[%s280 + $0x1d4] sm:$0xf] %v3528
      %3785 = vst [vmem:[%s280 + $0x1d8] sm:$0xf] %v3529
      %3786 = vst [vmem:[%s280 + $0x1dc] sm:$0xf] %v3530
      %3787 = vst [vmem:[%s280 + $0x1e0] sm:$0xf] %v3531
      %3788 = vst [vmem:[%s280 + $0x1e4] sm:$0xf] %v3532
      %3789 = vst [vmem:[%s280 + $0x1e8] sm:$0xf] %v3533
      %3790 = vst [vmem:[%s280 + $0x1ec] sm:$0xf] %v3534
      %3791 = vst [vmem:[%s280 + $0x1f0] sm:$0xf] %v3535
      %3792 = vst [vmem:[%s280 + $0x1f4] sm:$0xf] %v3536
      %3793 = vst [vmem:[%s280 + $0x1f8] sm:$0xf] %v3537
      %3794 = vst [vmem:[%s280 + $0x1fc] sm:$0xf] %v3538
      %s3795 = smul.u32 128, %s18
      %p3796 = scmp.lt.s32.totalorder %s3795, 255
      %s3797 = scalar_select %p3796, %s3795, 255
      %s3798 = smul.addr %s3797, 4
      %s3799 = scalar_lea.vmem %s7, %s3798
      // Predicated region
      $region49: #{net_forward.3} parent=47 // pred_check
        %p3800 = pneg %p188
      $region50: #{net_forward.3} parent=47 // pred_check_branch
        %3802 = sbr.rel (%p3800) target = $region52
      $region51: #{net_forward.3} parent=47 // pred_region
        %s3803 = smul.u32 128, %s18
      $region52: #{net_forward.3} parent=47 // pred_fallthru
        _
    $region48: #{net_forward.3} parent=5 // pred_fallthru
      _
    %p3804 = scmp.le.s32.totalorder 2, %s13
    // Predicated region
    $region53: #{net_forward.3} parent=5 // pred_check
      %p3805 = pneg %p3804
    $region54: #{net_forward.3} parent=5 // pred_check_branch
      %3807 = sbr.rel (%p3805) target = $region56
    $region55: #{net_forward.3} parent=5 // pred_region
      %s3808 = ssub.s32 %s13, 2
      // Predicated region
      $region57: #{net_forward.3} parent=55 // pred_check
        %p3809 = pneg %p194
      $region58: #{net_forward.3} parent=55 // pred_check_branch
        %3811 = sbr.rel (%p3809) target = $region60
      $region59: #{net_forward.3} parent=55 // pred_region
        %s3812 = smul.u32 128, %s19
        %p3813 = scmp.lt.s32.totalorder %s3812, 255
        %s3814 = scalar_select %p3813, %s3812, 255
        %s3815 = smul.addr %s3814, 4
        %s3816 = scalar_lea.vmem %s7, %s3815
      $region60: #{net_forward.3} parent=55 // pred_fallthru
        _
    $region56: #{net_forward.3} parent=5 // pred_fallthru
      _
  $region6: #{net_forward.3} parent=0 // loop_footer
    %s17 = sadd.s32 1, %s13
  $region7: #{net_forward.3} parent=0 // loop_footer_branch
    %12 = sbr.rel target = $region3
  $region8: #{net_forward.3} parent=0 // loop_exit
    _

// kernel: net_forward.4
$region0: #{net_forward.4}
  #allocation0 [shape = 'u32[]', space=smem, size = 0x4, offset = 0x4, fixed_abs, tag = 'smem constant byte address 0x4 - core index']
  #allocation1 [shape = 'u32[144,128]{1,0:T(1,128)}', space=vmem, size = 0x12000, scoped, tag = 'internal scratch']
  %s0 = inlined_call_operand.vmem [shape: bf16[512,512], index: 0, kind: input, shape index: {}]
  %s1 = inlined_call_operand.vmem [shape: bf16[512,128], index: 1, kind: input, shape index: {}]
  %s2 = inlined_call_operand.vmem [shape: f32[1,128], index: 2, kind: input, shape index: {}]
  %s3 = inlined_call_operand.vmem [shape: bf16[128,128], index: 3, kind: input, shape index: {}]
  %s4 = inlined_call_operand.vmem [shape: f32[1,128], index: 4, kind: input, shape index: {}]
  %s5 = inlined_call_operand.vmem [shape: bf16[128,128], index: 5, kind: input, shape index: {}]
  %s6 = inlined_call_operand.vmem [shape: f32[1,128], index: 6, kind: input, shape index: {}]
  %s7 = inlined_call_operand.vmem [shape: bf16[512,128], index: 7, kind: output, shape index: {}]
  %s8 = sld [smem:[#allocation0]]
  $region38: #{net_forward.4} parent=0
    _
  %s10 = ssub.s32 1, %s8
  %s11 = scalar_select 0, %s10, %s8
  // Predicated region
  $region2: #{net_forward.4} parent=0 // pred_check
    _
  $region3: #{net_forward.4} parent=0 // pred_check_branch
    %13 = sbr.rel (0) target = $region5
  $region4: #{net_forward.4} parent=0 // pred_region
    _
  $region5: #{net_forward.4} parent=0 // pred_fallthru
    _
  // Predicated region
  $region6: #{net_forward.4} parent=0 // pred_check
    _
  $region7: #{net_forward.4} parent=0 // pred_check_branch
    %15 = sbr.rel (0) target = $region9
  $region8: #{net_forward.4} parent=0 // pred_region
    _
  $region9: #{net_forward.4} parent=0 // pred_fallthru
    _
  // Predicated region
  $region10: #{net_forward.4} parent=0 // pred_check
    _
  $region11: #{net_forward.4} parent=0 // pred_check_branch
    %17 = sbr.rel (0) target = $region13
  $region12: #{net_forward.4} parent=0 // pred_region
    _
  $region13: #{net_forward.4} parent=0 // pred_fallthru
    _
  // Predicated region
  $region14: #{net_forward.4} parent=0 // pred_check
    _
  $region15: #{net_forward.4} parent=0 // pred_check_branch
    %19 = sbr.rel (0) target = $region17
  $region16: #{net_forward.4} parent=0 // pred_region
    _
  $region17: #{net_forward.4} parent=0 // pred_fallthru
    _
  // Predicated region
  $region18: #{net_forward.4} parent=0 // pred_check
    _
  $region19: #{net_forward.4} parent=0 // pred_check_branch
    %21 = sbr.rel (0) target = $region21
  $region20: #{net_forward.4} parent=0 // pred_region
    _
  $region21: #{net_forward.4} parent=0 // pred_fallthru
    _
  // Predicated region
  $region22: #{net_forward.4} parent=0 // pred_check
    _
  $region23: #{net_forward.4} parent=0 // pred_check_branch
    %23 = sbr.rel (0) target = $region25
  $region24: #{net_forward.4} parent=0 // pred_region
    _
  $region25: #{net_forward.4} parent=0 // pred_fallthru
    _
  // Predicated region
  $region26: #{net_forward.4} parent=0 // pred_check
    _
  $region27: #{net_forward.4} parent=0 // pred_check_branch
    %25 = sbr.rel (0) target = $region29
  $region28: #{net_forward.4} parent=0 // pred_region
    _
  $region29: #{net_forward.4} parent=0 // pred_fallthru
    _
  %v27 = vld [vmem:[%s0] sm:$0xff]
  %v28 = vld [vmem:[%s0 + $0x8] sm:$0xff]
  %v29 = vld [vmem:[%s0 + $0x10] sm:$0xff]
  %v30 = vld [vmem:[%s0 + $0x18] sm:$0xff]
  %v31 = vld [vmem:[%s0 + $0x20] sm:$0xff]
  %v32 = vld [vmem:[%s0 + $0x28] sm:$0xff]
  %v33 = vld [vmem:[%s0 + $0x30] sm:$0xff]
  %v34 = vld [vmem:[%s0 + $0x38] sm:$0xff]
  %v35 = vld [vmem:[%s0 + $0x40] sm:$0xff]
  %v36 = vld [vmem:[%s0 + $0x48] sm:$0xff]
  %v37 = vld [vmem:[%s0 + $0x50] sm:$0xff]
  %v38 = vld [vmem:[%s0 + $0x58] sm:$0xff]
  %v39 = vld [vmem:[%s0 + $0x60] sm:$0xff]
  %v40 = vld [vmem:[%s0 + $0x68] sm:$0xff]
  %v41 = vld [vmem:[%s0 + $0x70] sm:$0xff]
  %v42 = vld [vmem:[%s0 + $0x78] sm:$0xff]
  %v43 = vld [vmem:[%s0 + $0x80] sm:$0xff]
  %v44 = vld [vmem:[%s0 + $0x88] sm:$0xff]
  %v45 = vld [vmem:[%s0 + $0x90] sm:$0xff]
  %v46 = vld [vmem:[%s0 + $0x98] sm:$0xff]
  %v47 = vld [vmem:[%s0 + $0xa0] sm:$0xff]
  %v48 = vld [vmem:[%s0 + $0xa8] sm:$0xff]
  %v49 = vld [vmem:[%s0 + $0xb0] sm:$0xff]
  %v50 = vld [vmem:[%s0 + $0xb8] sm:$0xff]
  %v51 = vld [vmem:[%s0 + $0xc0] sm:$0xff]
  %v52 = vld [vmem:[%s0 + $0xc8] sm:$0xff]
  %v53 = vld [vmem:[%s0 + $0xd0] sm:$0xff]
  %v54 = vld [vmem:[%s0 + $0xd8] sm:$0xff]
  %v55 = vld [vmem:[%s0 + $0xe0] sm:$0xff]
  %v56 = vld [vmem:[%s0 + $0xe8] sm:$0xff]
  %v57 = vld [vmem:[%s0 + $0xf0] sm:$0xff]
  %v58 = vld [vmem:[%s0 + $0xf8] sm:$0xff]
  %v59 = vld [vmem:[%s0 + $0x100] sm:$0xff]
  %v60 = vld [vmem:[%s0 + $0x108] sm:$0xff]
  %v61 = vld [vmem:[%s0 + $0x110] sm:$0xff]
  %v62 = vld [vmem:[%s0 + $0x118] sm:$0xff]
  %v63 = vld [vmem:[%s0 + $0x120] sm:$0xff]
  %v64 = vld [vmem:[%s0 + $0x128] sm:$0xff]
  %v65 = vld [vmem:[%s0 + $0x130] sm:$0xff]
  %v66 = vld [vmem:[%s0 + $0x138] sm:$0xff]
  %v67 = vld [vmem:[%s0 + $0x140] sm:$0xff]
  %v68 = vld [vmem:[%s0 + $0x148] sm:$0xff]
  %v69 = vld [vmem:[%s0 + $0x150] sm:$0xff]
  %v70 = vld [vmem:[%s0 + $0x158] sm:$0xff]
  %v71 = vld [vmem:[%s0 + $0x160] sm:$0xff]
  %v72 = vld [vmem:[%s0 + $0x168] sm:$0xff]
  %v73 = vld [vmem:[%s0 + $0x170] sm:$0xff]
  %v74 = vld [vmem:[%s0 + $0x178] sm:$0xff]
  %v75 = vld [vmem:[%s0 + $0x180] sm:$0xff]
  %v76 = vld [vmem:[%s0 + $0x188] sm:$0xff]
  %v77 = vld [vmem:[%s0 + $0x190] sm:$0xff]
  %v78 = vld [vmem:[%s0 + $0x198] sm:$0xff]
  %v79 = vld [vmem:[%s0 + $0x1a0] sm:$0xff]
  %v80 = vld [vmem:[%s0 + $0x1a8] sm:$0xff]
  %v81 = vld [vmem:[%s0 + $0x1b0] sm:$0xff]
  %v82 = vld [vmem:[%s0 + $0x1b8] sm:$0xff]
  %v83 = vld [vmem:[%s0 + $0x1c0] sm:$0xff]
  %v84 = vld [vmem:[%s0 + $0x1c8] sm:$0xff]
  %v85 = vld [vmem:[%s0 + $0x1d0] sm:$0xff]
  %v86 = vld [vmem:[%s0 + $0x1d8] sm:$0xff]
  %v87 = vld [vmem:[%s0 + $0x1e0] sm:$0xff]
  %v88 = vld [vmem:[%s0 + $0x1e8] sm:$0xff]
  %v89 = vld [vmem:[%s0 + $0x1f0] sm:$0xff]
  %v90 = vld [vmem:[%s0 + $0x1f8] sm:$0xff]
  %v91 = vld [vmem:[%s0 + $0x200] sm:$0xff]
  %v92 = vld [vmem:[%s0 + $0x208] sm:$0xff]
  %v93 = vld [vmem:[%s0 + $0x210] sm:$0xff]
  %v94 = vld [vmem:[%s0 + $0x218] sm:$0xff]
  %v95 = vld [vmem:[%s0 + $0x220] sm:$0xff]
  %v96 = vld [vmem:[%s0 + $0x228] sm:$0xff]
  %v97 = vld [vmem:[%s0 + $0x230] sm:$0xff]
  %v98 = vld [vmem:[%s0 + $0x238] sm:$0xff]
  %v99 = vld [vmem:[%s0 + $0x240] sm:$0xff]
  %v100 = vld [vmem:[%s0 + $0x248] sm:$0xff]
  %v101 = vld [vmem:[%s0 + $0x250] sm:$0xff]
  %v102 = vld [vmem:[%s0 + $0x258] sm:$0xff]
  %v103 = vld [vmem:[%s0 + $0x260] sm:$0xff]
  %v104 = vld [vmem:[%s0 + $0x268] sm:$0xff]
  %v105 = vld [vmem:[%s0 + $0x270] sm:$0xff]
  %v106 = vld [vmem:[%s0 + $0x278] sm:$0xff]
  %v107 = vld [vmem:[%s0 + $0x280] sm:$0xff]
  %v108 = vld [vmem:[%s0 + $0x288] sm:$0xff]
  %v109 = vld [vmem:[%s0 + $0x290] sm:$0xff]
  %v110 = vld [vmem:[%s0 + $0x298] sm:$0xff]
  %v111 = vld [vmem:[%s0 + $0x2a0] sm:$0xff]
  %v112 = vld [vmem:[%s0 + $0x2a8] sm:$0xff]
  %v113 = vld [vmem:[%s0 + $0x2b0] sm:$0xff]
  %v114 = vld [vmem:[%s0 + $0x2b8] sm:$0xff]
  %v115 = vld [vmem:[%s0 + $0x2c0] sm:$0xff]
  %v116 = vld [vmem:[%s0 + $0x2c8] sm:$0xff]
  %v117 = vld [vmem:[%s0 + $0x2d0] sm:$0xff]
  %v118 = vld [vmem:[%s0 + $0x2d8] sm:$0xff]
  %v119 = vld [vmem:[%s0 + $0x2e0] sm:$0xff]
  %v120 = vld [vmem:[%s0 + $0x2e8] sm:$0xff]
  %v121 = vld [vmem:[%s0 + $0x2f0] sm:$0xff]
  %v122 = vld [vmem:[%s0 + $0x2f8] sm:$0xff]
  %v123 = vld [vmem:[%s0 + $0x300] sm:$0xff]
  %v124 = vld [vmem:[%s0 + $0x308] sm:$0xff]
  %v125 = vld [vmem:[%s0 + $0x310] sm:$0xff]
  %v126 = vld [vmem:[%s0 + $0x318] sm:$0xff]
  %v127 = vld [vmem:[%s0 + $0x320] sm:$0xff]
  %v128 = vld [vmem:[%s0 + $0x328] sm:$0xff]
  %v129 = vld [vmem:[%s0 + $0x330] sm:$0xff]
  %v130 = vld [vmem:[%s0 + $0x338] sm:$0xff]
  %v131 = vld [vmem:[%s0 + $0x340] sm:$0xff]
  %v132 = vld [vmem:[%s0 + $0x348] sm:$0xff]
  %v133 = vld [vmem:[%s0 + $0x350] sm:$0xff]
  %v134 = vld [vmem:[%s0 + $0x358] sm:$0xff]
  %v135 = vld [vmem:[%s0 + $0x360] sm:$0xff]
  %v136 = vld [vmem:[%s0 + $0x368] sm:$0xff]
  %v137 = vld [vmem:[%s0 + $0x370] sm:$0xff]
  %v138 = vld [vmem:[%s0 + $0x378] sm:$0xff]
  %v139 = vld [vmem:[%s0 + $0x380] sm:$0xff]
  %v140 = vld [vmem:[%s0 + $0x388] sm:$0xff]
  %v141 = vld [vmem:[%s0 + $0x390] sm:$0xff]
  %v142 = vld [vmem:[%s0 + $0x398] sm:$0xff]
  %v143 = vld [vmem:[%s0 + $0x3a0] sm:$0xff]
  %v144 = vld [vmem:[%s0 + $0x3a8] sm:$0xff]
  %v145 = vld [vmem:[%s0 + $0x3b0] sm:$0xff]
  %v146 = vld [vmem:[%s0 + $0x3b8] sm:$0xff]
  %v147 = vld [vmem:[%s0 + $0x3c0] sm:$0xff]
  %v148 = vld [vmem:[%s0 + $0x3c8] sm:$0xff]
  %v149 = vld [vmem:[%s0 + $0x3d0] sm:$0xff]
  %v150 = vld [vmem:[%s0 + $0x3d8] sm:$0xff]
  %v151 = vld [vmem:[%s0 + $0x3e0] sm:$0xff]
  %v152 = vld [vmem:[%s0 + $0x3e8] sm:$0xff]
  %v153 = vld [vmem:[%s0 + $0x3f0] sm:$0xff]
  %v154 = vld [vmem:[%s0 + $0x3f8] sm:$0xff]
  %v155 = vld [vmem:[%s1] sm:$0xf]
  %v156 = vld [vmem:[%s1 + $0x4] sm:$0xf]
  %v157 = vld [vmem:[%s1 + $0x8] sm:$0xf]
  %v158 = vld [vmem:[%s1 + $0xc] sm:$0xf]
  %v159 = vld [vmem:[%s1 + $0x10] sm:$0xf]
  %v160 = vld [vmem:[%s1 + $0x14] sm:$0xf]
  %v161 = vld [vmem:[%s1 + $0x18] sm:$0xf]
  %v162 = vld [vmem:[%s1 + $0x1c] sm:$0xf]
  %v163 = vld [vmem:[%s1 + $0x20] sm:$0xf]
  %v164 = vld [vmem:[%s1 + $0x24] sm:$0xf]
  %v165 = vld [vmem:[%s1 + $0x28] sm:$0xf]
  %v166 = vld [vmem:[%s1 + $0x2c] sm:$0xf]
  %v167 = vld [vmem:[%s1 + $0x30] sm:$0xf]
  %v168 = vld [vmem:[%s1 + $0x34] sm:$0xf]
  %v169 = vld [vmem:[%s1 + $0x38] sm:$0xf]
  %v170 = vld [vmem:[%s1 + $0x3c] sm:$0xf]
  %v171 = vld [vmem:[%s1 + $0x40] sm:$0xf]
  %v172 = vld [vmem:[%s1 + $0x44] sm:$0xf]
  %v173 = vld [vmem:[%s1 + $0x48] sm:$0xf]
  %v174 = vld [vmem:[%s1 + $0x4c] sm:$0xf]
  %v175 = vld [vmem:[%s1 + $0x50] sm:$0xf]
  %v176 = vld [vmem:[%s1 + $0x54] sm:$0xf]
  %v177 = vld [vmem:[%s1 + $0x58] sm:$0xf]
  %v178 = vld [vmem:[%s1 + $0x5c] sm:$0xf]
  %v179 = vld [vmem:[%s1 + $0x60] sm:$0xf]
  %v180 = vld [vmem:[%s1 + $0x64] sm:$0xf]
  %v181 = vld [vmem:[%s1 + $0x68] sm:$0xf]
  %v182 = vld [vmem:[%s1 + $0x6c] sm:$0xf]
  %v183 = vld [vmem:[%s1 + $0x70] sm:$0xf]
  %v184 = vld [vmem:[%s1 + $0x74] sm:$0xf]
  %v185 = vld [vmem:[%s1 + $0x78] sm:$0xf]
  %v186 = vld [vmem:[%s1 + $0x7c] sm:$0xf]
  %v187 = vld [vmem:[%s1 + $0x80] sm:$0xf]
  %v188 = vld [vmem:[%s1 + $0x84] sm:$0xf]
  %v189 = vld [vmem:[%s1 + $0x88] sm:$0xf]
  %v190 = vld [vmem:[%s1 + $0x8c] sm:$0xf]
  %v191 = vld [vmem:[%s1 + $0x90] sm:$0xf]
  %v192 = vld [vmem:[%s1 + $0x94] sm:$0xf]
  %v193 = vld [vmem:[%s1 + $0x98] sm:$0xf]
  %v194 = vld [vmem:[%s1 + $0x9c] sm:$0xf]
  %v195 = vld [vmem:[%s1 + $0xa0] sm:$0xf]
  %v196 = vld [vmem:[%s1 + $0xa4] sm:$0xf]
  %v197 = vld [vmem:[%s1 + $0xa8] sm:$0xf]
  %v198 = vld [vmem:[%s1 + $0xac] sm:$0xf]
  %v199 = vld [vmem:[%s1 + $0xb0] sm:$0xf]
  %v200 = vld [vmem:[%s1 + $0xb4] sm:$0xf]
  %v201 = vld [vmem:[%s1 + $0xb8] sm:$0xf]
  %v202 = vld [vmem:[%s1 + $0xbc] sm:$0xf]
  %v203 = vld [vmem:[%s1 + $0xc0] sm:$0xf]
  %v204 = vld [vmem:[%s1 + $0xc4] sm:$0xf]
  %v205 = vld [vmem:[%s1 + $0xc8] sm:$0xf]
  %v206 = vld [vmem:[%s1 + $0xcc] sm:$0xf]
  %v207 = vld [vmem:[%s1 + $0xd0] sm:$0xf]
  %v208 = vld [vmem:[%s1 + $0xd4] sm:$0xf]
  %v209 = vld [vmem:[%s1 + $0xd8] sm:$0xf]
  %v210 = vld [vmem:[%s1 + $0xdc] sm:$0xf]
  %v211 = vld [vmem:[%s1 + $0xe0] sm:$0xf]
  %v212 = vld [vmem:[%s1 + $0xe4] sm:$0xf]
  %v213 = vld [vmem:[%s1 + $0xe8] sm:$0xf]
  %v214 = vld [vmem:[%s1 + $0xec] sm:$0xf]
  %v215 = vld [vmem:[%s1 + $0xf0] sm:$0xf]
  %v216 = vld [vmem:[%s1 + $0xf4] sm:$0xf]
  %v217 = vld [vmem:[%s1 + $0xf8] sm:$0xf]
  %v218 = vld [vmem:[%s1 + $0xfc] sm:$0xf]
  %v219 = vld [vmem:[%s2] sm:$0x1]
  %v221 = vlaneseq
  %v222 = vshrl.u32 %v221, 7
  %v223 = vsub.s32 0, %v222
  %v224 = vrot.slane %v219, %v223
  %v354 = vunpack.c.l.b16 %v27
  %v355 = vunpack.c.h.b16 %v27
  %v356 = vunpack.c.l.b16 %v28
  %v357 = vunpack.c.h.b16 %v28
  %v358 = vunpack.c.l.b16 %v29
  %v359 = vunpack.c.h.b16 %v29
  %v360 = vunpack.c.l.b16 %v30
  %v361 = vunpack.c.h.b16 %v30
  %v362 = vunpack.c.l.b16 %v31
  %v363 = vunpack.c.h.b16 %v31
  %v364 = vunpack.c.l.b16 %v32
  %v365 = vunpack.c.h.b16 %v32
  %v366 = vunpack.c.l.b16 %v33
  %v367 = vunpack.c.h.b16 %v33
  %v368 = vunpack.c.l.b16 %v34
  %v369 = vunpack.c.h.b16 %v34
  %v370 = vunpack.c.l.b16 %v35
  %v371 = vunpack.c.h.b16 %v35
  %v372 = vunpack.c.l.b16 %v36
  %v373 = vunpack.c.h.b16 %v36
  %v374 = vunpack.c.l.b16 %v37
  %v375 = vunpack.c.h.b16 %v37
  %v376 = vunpack.c.l.b16 %v38
  %v377 = vunpack.c.h.b16 %v38
  %v378 = vunpack.c.l.b16 %v39
  %v379 = vunpack.c.h.b16 %v39
  %v380 = vunpack.c.l.b16 %v40
  %v381 = vunpack.c.h.b16 %v40
  %v382 = vunpack.c.l.b16 %v41
  %v383 = vunpack.c.h.b16 %v41
  %v384 = vunpack.c.l.b16 %v42
  %v385 = vunpack.c.h.b16 %v42
  %v386 = vunpack.c.l.b16 %v43
  %v387 = vunpack.c.h.b16 %v43
  %v388 = vunpack.c.l.b16 %v44
  %v389 = vunpack.c.h.b16 %v44
  %v390 = vunpack.c.l.b16 %v45
  %v391 = vunpack.c.h.b16 %v45
  %v392 = vunpack.c.l.b16 %v46
  %v393 = vunpack.c.h.b16 %v46
  %v394 = vunpack.c.l.b16 %v47
  %v395 = vunpack.c.h.b16 %v47
  %v396 = vunpack.c.l.b16 %v48
  %v397 = vunpack.c.h.b16 %v48
  %v398 = vunpack.c.l.b16 %v49
  %v399 = vunpack.c.h.b16 %v49
  %v400 = vunpack.c.l.b16 %v50
  %v401 = vunpack.c.h.b16 %v50
  %v402 = vunpack.c.l.b16 %v51
  %v403 = vunpack.c.h.b16 %v51
  %v404 = vunpack.c.l.b16 %v52
  %v405 = vunpack.c.h.b16 %v52
  %v406 = vunpack.c.l.b16 %v53
  %v407 = vunpack.c.h.b16 %v53
  %v408 = vunpack.c.l.b16 %v54
  %v409 = vunpack.c.h.b16 %v54
  %v410 = vunpack.c.l.b16 %v55
  %v411 = vunpack.c.h.b16 %v55
  %v412 = vunpack.c.l.b16 %v56
  %v413 = vunpack.c.h.b16 %v56
  %v414 = vunpack.c.l.b16 %v57
  %v415 = vunpack.c.h.b16 %v57
  %v416 = vunpack.c.l.b16 %v58
  %v417 = vunpack.c.h.b16 %v58
  %v418 = vunpack.c.l.b16 %v59
  %v419 = vunpack.c.h.b16 %v59
  %v420 = vunpack.c.l.b16 %v60
  %v421 = vunpack.c.h.b16 %v60
  %v422 = vunpack.c.l.b16 %v61
  %v423 = vunpack.c.h.b16 %v61
  %v424 = vunpack.c.l.b16 %v62
  %v425 = vunpack.c.h.b16 %v62
  %v426 = vunpack.c.l.b16 %v63
  %v427 = vunpack.c.h.b16 %v63
  %v428 = vunpack.c.l.b16 %v64
  %v429 = vunpack.c.h.b16 %v64
  %v430 = vunpack.c.l.b16 %v65
  %v431 = vunpack.c.h.b16 %v65
  %v432 = vunpack.c.l.b16 %v66
  %v433 = vunpack.c.h.b16 %v66
  %v434 = vunpack.c.l.b16 %v67
  %v435 = vunpack.c.h.b16 %v67
  %v436 = vunpack.c.l.b16 %v68
  %v437 = vunpack.c.h.b16 %v68
  %v438 = vunpack.c.l.b16 %v69
  %v439 = vunpack.c.h.b16 %v69
  %v440 = vunpack.c.l.b16 %v70
  %v441 = vunpack.c.h.b16 %v70
  %v442 = vunpack.c.l.b16 %v71
  %v443 = vunpack.c.h.b16 %v71
  %v444 = vunpack.c.l.b16 %v72
  %v445 = vunpack.c.h.b16 %v72
  %v446 = vunpack.c.l.b16 %v73
  %v447 = vunpack.c.h.b16 %v73
  %v448 = vunpack.c.l.b16 %v74
  %v449 = vunpack.c.h.b16 %v74
  %v450 = vunpack.c.l.b16 %v75
  %v451 = vunpack.c.h.b16 %v75
  %v452 = vunpack.c.l.b16 %v76
  %v453 = vunpack.c.h.b16 %v76
  %v454 = vunpack.c.l.b16 %v77
  %v455 = vunpack.c.h.b16 %v77
  %v456 = vunpack.c.l.b16 %v78
  %v457 = vunpack.c.h.b16 %v78
  %v458 = vunpack.c.l.b16 %v79
  %v459 = vunpack.c.h.b16 %v79
  %v460 = vunpack.c.l.b16 %v80
  %v461 = vunpack.c.h.b16 %v80
  %v462 = vunpack.c.l.b16 %v81
  %v463 = vunpack.c.h.b16 %v81
  %v464 = vunpack.c.l.b16 %v82
  %v465 = vunpack.c.h.b16 %v82
  %v466 = vunpack.c.l.b16 %v83
  %v467 = vunpack.c.h.b16 %v83
  %v468 = vunpack.c.l.b16 %v84
  %v469 = vunpack.c.h.b16 %v84
  %v470 = vunpack.c.l.b16 %v85
  %v471 = vunpack.c.h.b16 %v85
  %v472 = vunpack.c.l.b16 %v86
  %v473 = vunpack.c.h.b16 %v86
  %v474 = vunpack.c.l.b16 %v87
  %v475 = vunpack.c.h.b16 %v87
  %v476 = vunpack.c.l.b16 %v88
  %v477 = vunpack.c.h.b16 %v88
  %v478 = vunpack.c.l.b16 %v89
  %v479 = vunpack.c.h.b16 %v89
  %v480 = vunpack.c.l.b16 %v90
  %v481 = vunpack.c.h.b16 %v90
  %v482 = vunpack.c.l.b16 %v91
  %v483 = vunpack.c.h.b16 %v91
  %v484 = vunpack.c.l.b16 %v92
  %v485 = vunpack.c.h.b16 %v92
  %v486 = vunpack.c.l.b16 %v93
  %v487 = vunpack.c.h.b16 %v93
  %v488 = vunpack.c.l.b16 %v94
  %v489 = vunpack.c.h.b16 %v94
  %v490 = vunpack.c.l.b16 %v95
  %v491 = vunpack.c.h.b16 %v95
  %v492 = vunpack.c.l.b16 %v96
  %v493 = vunpack.c.h.b16 %v96
  %v494 = vunpack.c.l.b16 %v97
  %v495 = vunpack.c.h.b16 %v97
  %v496 = vunpack.c.l.b16 %v98
  %v497 = vunpack.c.h.b16 %v98
  %v498 = vunpack.c.l.b16 %v99
  %v499 = vunpack.c.h.b16 %v99
  %v500 = vunpack.c.l.b16 %v100
  %v501 = vunpack.c.h.b16 %v100
  %v502 = vunpack.c.l.b16 %v101
  %v503 = vunpack.c.h.b16 %v101
  %v504 = vunpack.c.l.b16 %v102
  %v505 = vunpack.c.h.b16 %v102
  %v506 = vunpack.c.l.b16 %v103
  %v507 = vunpack.c.h.b16 %v103
  %v508 = vunpack.c.l.b16 %v104
  %v509 = vunpack.c.h.b16 %v104
  %v510 = vunpack.c.l.b16 %v105
  %v511 = vunpack.c.h.b16 %v105
  %v512 = vunpack.c.l.b16 %v106
  %v513 = vunpack.c.h.b16 %v106
  %v514 = vunpack.c.l.b16 %v107
  %v515 = vunpack.c.h.b16 %v107
  %v516 = vunpack.c.l.b16 %v108
  %v517 = vunpack.c.h.b16 %v108
  %v518 = vunpack.c.l.b16 %v109
  %v519 = vunpack.c.h.b16 %v109
  %v520 = vunpack.c.l.b16 %v110
  %v521 = vunpack.c.h.b16 %v110
  %v522 = vunpack.c.l.b16 %v111
  %v523 = vunpack.c.h.b16 %v111
  %v524 = vunpack.c.l.b16 %v112
  %v525 = vunpack.c.h.b16 %v112
  %v526 = vunpack.c.l.b16 %v113
  %v527 = vunpack.c.h.b16 %v113
  %v528 = vunpack.c.l.b16 %v114
  %v529 = vunpack.c.h.b16 %v114
  %v530 = vunpack.c.l.b16 %v115
  %v531 = vunpack.c.h.b16 %v115
  %v532 = vunpack.c.l.b16 %v116
  %v533 = vunpack.c.h.b16 %v116
  %v534 = vunpack.c.l.b16 %v117
  %v535 = vunpack.c.h.b16 %v117
  %v536 = vunpack.c.l.b16 %v118
  %v537 = vunpack.c.h.b16 %v118
  %v538 = vunpack.c.l.b16 %v119
  %v539 = vunpack.c.h.b16 %v119
  %v540 = vunpack.c.l.b16 %v120
  %v541 = vunpack.c.h.b16 %v120
  %v542 = vunpack.c.l.b16 %v121
  %v543 = vunpack.c.h.b16 %v121
  %v544 = vunpack.c.l.b16 %v122
  %v545 = vunpack.c.h.b16 %v122
  %v546 = vunpack.c.l.b16 %v123
  %v547 = vunpack.c.h.b16 %v123
  %v548 = vunpack.c.l.b16 %v124
  %v549 = vunpack.c.h.b16 %v124
  %v550 = vunpack.c.l.b16 %v125
  %v551 = vunpack.c.h.b16 %v125
  %v552 = vunpack.c.l.b16 %v126
  %v553 = vunpack.c.h.b16 %v126
  %v554 = vunpack.c.l.b16 %v127
  %v555 = vunpack.c.h.b16 %v127
  %v556 = vunpack.c.l.b16 %v128
  %v557 = vunpack.c.h.b16 %v128
  %v558 = vunpack.c.l.b16 %v129
  %v559 = vunpack.c.h.b16 %v129
  %v560 = vunpack.c.l.b16 %v130
  %v561 = vunpack.c.h.b16 %v130
  %v562 = vunpack.c.l.b16 %v131
  %v563 = vunpack.c.h.b16 %v131
  %v564 = vunpack.c.l.b16 %v132
  %v565 = vunpack.c.h.b16 %v132
  %v566 = vunpack.c.l.b16 %v133
  %v567 = vunpack.c.h.b16 %v133
  %v568 = vunpack.c.l.b16 %v134
  %v569 = vunpack.c.h.b16 %v134
  %v570 = vunpack.c.l.b16 %v135
  %v571 = vunpack.c.h.b16 %v135
  %v572 = vunpack.c.l.b16 %v136
  %v573 = vunpack.c.h.b16 %v136
  %v574 = vunpack.c.l.b16 %v137
  %v575 = vunpack.c.h.b16 %v137
  %v576 = vunpack.c.l.b16 %v138
  %v577 = vunpack.c.h.b16 %v138
  %v578 = vunpack.c.l.b16 %v139
  %v579 = vunpack.c.h.b16 %v139
  %v580 = vunpack.c.l.b16 %v140
  %v581 = vunpack.c.h.b16 %v140
  %v582 = vunpack.c.l.b16 %v141
  %v583 = vunpack.c.h.b16 %v141
  %v584 = vunpack.c.l.b16 %v142
  %v585 = vunpack.c.h.b16 %v142
  %v586 = vunpack.c.l.b16 %v143
  %v587 = vunpack.c.h.b16 %v143
  %v588 = vunpack.c.l.b16 %v144
  %v589 = vunpack.c.h.b16 %v144
  %v590 = vunpack.c.l.b16 %v145
  %v591 = vunpack.c.h.b16 %v145
  %v592 = vunpack.c.l.b16 %v146
  %v593 = vunpack.c.h.b16 %v146
  %v594 = vunpack.c.l.b16 %v147
  %v595 = vunpack.c.h.b16 %v147
  %v596 = vunpack.c.l.b16 %v148
  %v597 = vunpack.c.h.b16 %v148
  %v598 = vunpack.c.l.b16 %v149
  %v599 = vunpack.c.h.b16 %v149
  %v600 = vunpack.c.l.b16 %v150
  %v601 = vunpack.c.h.b16 %v150
  %v602 = vunpack.c.l.b16 %v151
  %v603 = vunpack.c.h.b16 %v151
  %v604 = vunpack.c.l.b16 %v152
  %v605 = vunpack.c.h.b16 %v152
  %v606 = vunpack.c.l.b16 %v153
  %v607 = vunpack.c.h.b16 %v153
  %v608 = vunpack.c.l.b16 %v154
  %v609 = vunpack.c.h.b16 %v154
  %v610 = vpack.c.b16 %v358, %v354
  %v611 = vpack.c.b16 %v359, %v355
  %v612 = vpack.c.b16 %v360, %v356
  %v613 = vpack.c.b16 %v361, %v357
  %v614 = vpack.c.b16 %v366, %v362
  %v615 = vpack.c.b16 %v367, %v363
  %v616 = vpack.c.b16 %v368, %v364
  %v617 = vpack.c.b16 %v369, %v365
  %v618 = vpack.c.b16 %v374, %v370
  %v619 = vpack.c.b16 %v375, %v371
  %v620 = vpack.c.b16 %v376, %v372
  %v621 = vpack.c.b16 %v377, %v373
  %v622 = vpack.c.b16 %v382, %v378
  %v623 = vpack.c.b16 %v383, %v379
  %v624 = vpack.c.b16 %v384, %v380
  %v625 = vpack.c.b16 %v385, %v381
  %v626 = vpack.c.b16 %v390, %v386
  %v627 = vpack.c.b16 %v391, %v387
  %v628 = vpack.c.b16 %v392, %v388
  %v629 = vpack.c.b16 %v393, %v389
  %v630 = vpack.c.b16 %v398, %v394
  %v631 = vpack.c.b16 %v399, %v395
  %v632 = vpack.c.b16 %v400, %v396
  %v633 = vpack.c.b16 %v401, %v397
  %v634 = vpack.c.b16 %v406, %v402
  %v635 = vpack.c.b16 %v407, %v403
  %v636 = vpack.c.b16 %v408, %v404
  %v637 = vpack.c.b16 %v409, %v405
  %v638 = vpack.c.b16 %v414, %v410
  %v639 = vpack.c.b16 %v415, %v411
  %v640 = vpack.c.b16 %v416, %v412
  %v641 = vpack.c.b16 %v417, %v413
  %v642 = vpack.c.b16 %v422, %v418
  %v643 = vpack.c.b16 %v423, %v419
  %v644 = vpack.c.b16 %v424, %v420
  %v645 = vpack.c.b16 %v425, %v421
  %v646 = vpack.c.b16 %v430, %v426
  %v647 = vpack.c.b16 %v431, %v427
  %v648 = vpack.c.b16 %v432, %v428
  %v649 = vpack.c.b16 %v433, %v429
  %v650 = vpack.c.b16 %v438, %v434
  %v651 = vpack.c.b16 %v439, %v435
  %v652 = vpack.c.b16 %v440, %v436
  %v653 = vpack.c.b16 %v441, %v437
  %v654 = vpack.c.b16 %v446, %v442
  %v655 = vpack.c.b16 %v447, %v443
  %v656 = vpack.c.b16 %v448, %v444
  %v657 = vpack.c.b16 %v449, %v445
  %v658 = vpack.c.b16 %v454, %v450
  %v659 = vpack.c.b16 %v455, %v451
  %v660 = vpack.c.b16 %v456, %v452
  %v661 = vpack.c.b16 %v457, %v453
  %v662 = vpack.c.b16 %v462, %v458
  %v663 = vpack.c.b16 %v463, %v459
  %v664 = vpack.c.b16 %v464, %v460
  %v665 = vpack.c.b16 %v465, %v461
  %v666 = vpack.c.b16 %v470, %v466
  %v667 = vpack.c.b16 %v471, %v467
  %v668 = vpack.c.b16 %v472, %v468
  %v669 = vpack.c.b16 %v473, %v469
  %v670 = vpack.c.b16 %v478, %v474
  %v671 = vpack.c.b16 %v479, %v475
  %v672 = vpack.c.b16 %v480, %v476
  %v673 = vpack.c.b16 %v481, %v477
  %v674 = vpack.c.b16 %v486, %v482
  %v675 = vpack.c.b16 %v487, %v483
  %v676 = vpack.c.b16 %v488, %v484
  %v677 = vpack.c.b16 %v489, %v485
  %v678 = vpack.c.b16 %v494, %v490
  %v679 = vpack.c.b16 %v495, %v491
  %v680 = vpack.c.b16 %v496, %v492
  %v681 = vpack.c.b16 %v497, %v493
  %v682 = vpack.c.b16 %v502, %v498
  %v683 = vpack.c.b16 %v503, %v499
  %v684 = vpack.c.b16 %v504, %v500
  %v685 = vpack.c.b16 %v505, %v501
  %v686 = vpack.c.b16 %v510, %v506
  %v687 = vpack.c.b16 %v511, %v507
  %v688 = vpack.c.b16 %v512, %v508
  %v689 = vpack.c.b16 %v513, %v509
  %v690 = vpack.c.b16 %v518, %v514
  %v691 = vpack.c.b16 %v519, %v515
  %v692 = vpack.c.b16 %v520, %v516
  %v693 = vpack.c.b16 %v521, %v517
  %v694 = vpack.c.b16 %v526, %v522
  %v695 = vpack.c.b16 %v527, %v523
  %v696 = vpack.c.b16 %v528, %v524
  %v697 = vpack.c.b16 %v529, %v525
  %v698 = vpack.c.b16 %v534, %v530
  %v699 = vpack.c.b16 %v535, %v531
  %v700 = vpack.c.b16 %v536, %v532
  %v701 = vpack.c.b16 %v537, %v533
  %v702 = vpack.c.b16 %v542, %v538
  %v703 = vpack.c.b16 %v543, %v539
  %v704 = vpack.c.b16 %v544, %v540
  %v705 = vpack.c.b16 %v545, %v541
  %v706 = vpack.c.b16 %v550, %v546
  %v707 = vpack.c.b16 %v551, %v547
  %v708 = vpack.c.b16 %v552, %v548
  %v709 = vpack.c.b16 %v553, %v549
  %v710 = vpack.c.b16 %v558, %v554
  %v711 = vpack.c.b16 %v559, %v555
  %v712 = vpack.c.b16 %v560, %v556
  %v713 = vpack.c.b16 %v561, %v557
  %v714 = vpack.c.b16 %v566, %v562
  %v715 = vpack.c.b16 %v567, %v563
  %v716 = vpack.c.b16 %v568, %v564
  %v717 = vpack.c.b16 %v569, %v565
  %v718 = vpack.c.b16 %v574, %v570
  %v719 = vpack.c.b16 %v575, %v571
  %v720 = vpack.c.b16 %v576, %v572
  %v721 = vpack.c.b16 %v577, %v573
  %v722 = vpack.c.b16 %v582, %v578
  %v723 = vpack.c.b16 %v583, %v579
  %v724 = vpack.c.b16 %v584, %v580
  %v725 = vpack.c.b16 %v585, %v581
  %v726 = vpack.c.b16 %v590, %v586
  %v727 = vpack.c.b16 %v591, %v587
  %v728 = vpack.c.b16 %v592, %v588
  %v729 = vpack.c.b16 %v593, %v589
  %v730 = vpack.c.b16 %v598, %v594
  %v731 = vpack.c.b16 %v599, %v595
  %v732 = vpack.c.b16 %v600, %v596
  %v733 = vpack.c.b16 %v601, %v597
  %v734 = vpack.c.b16 %v606, %v602
  %v735 = vpack.c.b16 %v607, %v603
  %v736 = vpack.c.b16 %v608, %v604
  %v737 = vpack.c.b16 %v609, %v605
  %v930 = vunpack.c.l.b16 %v155
  %v931 = vunpack.c.l.b16 %v156
  %v932 = vunpack.c.l.b16 %v157
  %v933 = vunpack.c.l.b16 %v158
  %v934 = vunpack.c.l.b16 %v159
  %v935 = vunpack.c.l.b16 %v160
  %v936 = vunpack.c.l.b16 %v161
  %v937 = vunpack.c.l.b16 %v162
  %v938 = vunpack.c.l.b16 %v163
  %v939 = vunpack.c.l.b16 %v164
  %v940 = vunpack.c.l.b16 %v165
  %v941 = vunpack.c.l.b16 %v166
  %v942 = vunpack.c.l.b16 %v167
  %v943 = vunpack.c.l.b16 %v168
  %v944 = vunpack.c.l.b16 %v169
  %v945 = vunpack.c.l.b16 %v170
  %v946 = vunpack.c.l.b16 %v171
  %v947 = vunpack.c.l.b16 %v172
  %v948 = vunpack.c.l.b16 %v173
  %v949 = vunpack.c.l.b16 %v174
  %v950 = vunpack.c.l.b16 %v175
  %v951 = vunpack.c.l.b16 %v176
  %v952 = vunpack.c.l.b16 %v177
  %v953 = vunpack.c.l.b16 %v178
  %v954 = vunpack.c.l.b16 %v179
  %v955 = vunpack.c.l.b16 %v180
  %v956 = vunpack.c.l.b16 %v181
  %v957 = vunpack.c.l.b16 %v182
  %v958 = vunpack.c.l.b16 %v183
  %v959 = vunpack.c.l.b16 %v184
  %v960 = vunpack.c.l.b16 %v185
  %v961 = vunpack.c.l.b16 %v186
  %v962 = vunpack.c.l.b16 %v187
  %v963 = vunpack.c.l.b16 %v188
  %v964 = vunpack.c.l.b16 %v189
  %v965 = vunpack.c.l.b16 %v190
  %v966 = vunpack.c.l.b16 %v191
  %v967 = vunpack.c.l.b16 %v192
  %v968 = vunpack.c.l.b16 %v193
  %v969 = vunpack.c.l.b16 %v194
  %v970 = vunpack.c.l.b16 %v195
  %v971 = vunpack.c.l.b16 %v196
  %v972 = vunpack.c.l.b16 %v197
  %v973 = vunpack.c.l.b16 %v198
  %v974 = vunpack.c.l.b16 %v199
  %v975 = vunpack.c.l.b16 %v200
  %v976 = vunpack.c.l.b16 %v201
  %v977 = vunpack.c.l.b16 %v202
  %v978 = vunpack.c.l.b16 %v203
  %v979 = vunpack.c.l.b16 %v204
  %v980 = vunpack.c.l.b16 %v205
  %v981 = vunpack.c.l.b16 %v206
  %v982 = vunpack.c.l.b16 %v207
  %v983 = vunpack.c.l.b16 %v208
  %v984 = vunpack.c.l.b16 %v209
  %v985 = vunpack.c.l.b16 %v210
  %v986 = vunpack.c.l.b16 %v211
  %v987 = vunpack.c.l.b16 %v212
  %v988 = vunpack.c.l.b16 %v213
  %v989 = vunpack.c.l.b16 %v214
  %v990 = vunpack.c.l.b16 %v215
  %v991 = vunpack.c.l.b16 %v216
  %v992 = vunpack.c.l.b16 %v217
  %v993 = vunpack.c.l.b16 %v218
  %v994 = vpack.c.b16 %v931, %v930
  %v995 = vpack.c.b16 %v933, %v932
  %v996 = vpack.c.b16 %v935, %v934
  %v997 = vpack.c.b16 %v937, %v936
  %v998 = vpack.c.b16 %v939, %v938
  %v999 = vpack.c.b16 %v941, %v940
  %v1000 = vpack.c.b16 %v943, %v942
  %v1001 = vpack.c.b16 %v945, %v944
  %v1002 = vpack.c.b16 %v947, %v946
  %v1003 = vpack.c.b16 %v949, %v948
  %v1004 = vpack.c.b16 %v951, %v950
  %v1005 = vpack.c.b16 %v953, %v952
  %v1006 = vpack.c.b16 %v955, %v954
  %v1007 = vpack.c.b16 %v957, %v956
  %v1008 = vpack.c.b16 %v959, %v958
  %v1009 = vpack.c.b16 %v961, %v960
  %v1010 = vpack.c.b16 %v963, %v962
  %v1011 = vpack.c.b16 %v965, %v964
  %v1012 = vpack.c.b16 %v967, %v966
  %v1013 = vpack.c.b16 %v969, %v968
  %v1014 = vpack.c.b16 %v971, %v970
  %v1015 = vpack.c.b16 %v973, %v972
  %v1016 = vpack.c.b16 %v975, %v974
  %v1017 = vpack.c.b16 %v977, %v976
  %v1018 = vpack.c.b16 %v979, %v978
  %v1019 = vpack.c.b16 %v981, %v980
  %v1020 = vpack.c.b16 %v983, %v982
  %v1021 = vpack.c.b16 %v985, %v984
  %v1022 = vpack.c.b16 %v987, %v986
  %v1023 = vpack.c.b16 %v989, %v988
  %v1024 = vpack.c.b16 %v991, %v990
  %v1025 = vpack.c.b16 %v993, %v992
  %1058 = vmatprep.subr.bf16.mxu0 0
  %1059 = vmatpush1.bf16.msra.mxu0 %v994
  %1060 = vmatprep.subr.bf16.mxu0 0
  %1061 = vmatpush1.bf16.msra.mxu0 %v995
  %1062 = vmatprep.subr.bf16.mxu0 0
  %1063 = vmatpush1.bf16.msra.mxu0 %v996
  %1064 = vmatprep.subr.bf16.mxu0 0
  %1065 = vmatpush1.bf16.msra.mxu0 %v997
  %1066 = vmatprep.subr.bf16.mxu0 0
  %1067 = vmatpush1.bf16.msra.mxu0 %v998
  %1068 = vmatprep.subr.bf16.mxu0 0
  %1069 = vmatpush1.bf16.msra.mxu0 %v999
  %1070 = vmatprep.subr.bf16.mxu0 0
  %1071 = vmatpush1.bf16.msra.mxu0 %v1000
  %1072 = vmatprep.subr.bf16.mxu0 0
  %1073 = vmatpush1.bf16.msra.mxu0 %v1001
  %1074 = vmatprep.subr.bf16.mxu0 0
  %1075 = vmatpush1.bf16.msra.mxu0 %v1002
  %1076 = vmatprep.subr.bf16.mxu0 0
  %1077 = vmatpush1.bf16.msra.mxu0 %v1003
  %1078 = vmatprep.subr.bf16.mxu0 0
  %1079 = vmatpush1.bf16.msra.mxu0 %v1004
  %1080 = vmatprep.subr.bf16.mxu0 0
  %1081 = vmatpush1.bf16.msra.mxu0 %v1005
  %1082 = vmatprep.subr.bf16.mxu0 0
  %1083 = vmatpush1.bf16.msra.mxu0 %v1006
  %1084 = vmatprep.subr.bf16.mxu0 0
  %1085 = vmatpush1.bf16.msra.mxu0 %v1007
  %1086 = vmatprep.subr.bf16.mxu0 0
  %1087 = vmatpush1.bf16.msra.mxu0 %v1008
  %1088 = vmatprep.subr.bf16.mxu0 0
  %1089 = vmatpush1.bf16.msra.mxu0 %v1009
  %1090 = vmatprep.mubr.bf16.mxu0 %v611
  %1091 = vmatmul.mubr.bf16.gmra.mrb[0].mxu0 %v610
  %v1092 = vpop.f32.mrb[0].mxu0
  %v1093 = vadd.f32 %v224, %v1092
  %v1094 = vpop.f32.mrb[0].mxu0
  %v1095 = vpop.f32.mrb[0].mxu0
  %v1096 = vadd.f32 %v224, %v1095
  %v1097 = vpop.f32.mrb[0].mxu0
  %1098 = vmatprep.mubr.bf16.mxu0 %v615
  %1099 = vmatmul.mubr.bf16.gmra.mrb[0].mxu0 %v614
  %v1100 = vpop.f32.mrb[0].mxu0
  %v1101 = vadd.f32 %v224, %v1100
  %v1102 = vpop.f32.mrb[0].mxu0
  %v1103 = vpop.f32.mrb[0].mxu0
  %v1104 = vadd.f32 %v224, %v1103
  %v1105 = vpop.f32.mrb[0].mxu0
  %1106 = vmatprep.mubr.bf16.mxu0 %v619
  %1107 = vmatmul.mubr.bf16.gmra.mrb[0].mxu0 %v618
  %v1108 = vpop.f32.mrb[0].mxu0
  %v1109 = vadd.f32 %v224, %v1108
  %v1110 = vpop.f32.mrb[0].mxu0
  %v1111 = vpop.f32.mrb[0].mxu0
  %v1112 = vadd.f32 %v224, %v1111
  %v1113 = vpop.f32.mrb[0].mxu0
  %1114 = vmatprep.mubr.bf16.mxu0 %v623
  %1115 = vmatmul.mubr.bf16.gmra.mrb[0].mxu0 %v622
  %v1116 = vpop.f32.mrb[0].mxu0
  %v1117 = vadd.f32 %v224, %v1116
  %v1118 = vpop.f32.mrb[0].mxu0
  %v1119 = vpop.f32.mrb[0].mxu0
  %v1120 = vadd.f32 %v224, %v1119
  %v1121 = vpop.f32.mrb[0].mxu0
  %1122 = vmatprep.mubr.bf16.mxu0 %v627
  %1123 = vmatmul.mubr.bf16.gmra.mrb[0].mxu0 %v626
  %v1124 = vpop.f32.mrb[0].mxu0
  %v1125 = vadd.f32 %v224, %v1124
  %v1126 = vpop.f32.mrb[0].mxu0
  %v1127 = vpop.f32.mrb[0].mxu0
  %v1128 = vadd.f32 %v224, %v1127
  %v1129 = vpop.f32.mrb[0].mxu0
  %1130 = vmatprep.mubr.bf16.mxu0 %v631
  %1131 = vmatmul.mubr.bf16.gmra.mrb[0].mxu0 %v630
  %v1132 = vpop.f32.mrb[0].mxu0
  %v1133 = vadd.f32 %v224, %v1132
  %v1134 = vpop.f32.mrb[0].mxu0
  %v1135 = vpop.f32.mrb[0].mxu0
  %v1136 = vadd.f32 %v224, %v1135
  %v1137 = vpop.f32.mrb[0].mxu0
  %1138 = vmatprep.mubr.bf16.mxu0 %v635
  %1139 = vmatmul.mubr.bf16.gmra.mrb[0].mxu0 %v634
  %v1140 = vpop.f32.mrb[0].mxu0
  %v1141 = vadd.f32 %v224, %v1140
  %v1142 = vpop.f32.mrb[0].mxu0
  %v1143 = vpop.f32.mrb[0].mxu0
  %v1144 = vadd.f32 %v224, %v1143
  %v1145 = vpop.f32.mrb[0].mxu0
  %1146 = vmatprep.mubr.bf16.mxu0 %v639
  %1147 = vmatmul.mubr.bf16.gmra.mrb[0].mxu0 %v638
  %v1148 = vpop.f32.mrb[0].mxu0
  %v1149 = vadd.f32 %v224, %v1148
  %v1150 = vpop.f32.mrb[0].mxu0
  %v1151 = vpop.f32.mrb[0].mxu0
  %v1152 = vadd.f32 %v224, %v1151
  %v1153 = vpop.f32.mrb[0].mxu0
  %1154 = vmatprep.mubr.bf16.mxu0 %v643
  %1155 = vmatmul.mubr.bf16.gmra.mrb[0].mxu0 %v642
  %v1156 = vpop.f32.mrb[0].mxu0
  %v1157 = vadd.f32 %v224, %v1156
  %v1158 = vpop.f32.mrb[0].mxu0
  %v1159 = vpop.f32.mrb[0].mxu0
  %v1160 = vadd.f32 %v224, %v1159
  %v1161 = vpop.f32.mrb[0].mxu0
  %1162 = vmatprep.mubr.bf16.mxu0 %v647
  %1163 = vmatmul.mubr.bf16.gmra.mrb[0].mxu0 %v646
  %v1164 = vpop.f32.mrb[0].mxu0
  %v1165 = vadd.f32 %v224, %v1164
  %v1166 = vpop.f32.mrb[0].mxu0
  %v1167 = vpop.f32.mrb[0].mxu0
  %v1168 = vadd.f32 %v224, %v1167
  %v1169 = vpop.f32.mrb[0].mxu0
  %1170 = vmatprep.mubr.bf16.mxu0 %v651
  %1171 = vmatmul.mubr.bf16.gmra.mrb[0].mxu0 %v650
  %v1172 = vpop.f32.mrb[0].mxu0
  %v1173 = vadd.f32 %v224, %v1172
  %v1174 = vpop.f32.mrb[0].mxu0
  %v1175 = vpop.f32.mrb[0].mxu0
  %v1176 = vadd.f32 %v224, %v1175
  %v1177 = vpop.f32.mrb[0].mxu0
  %1178 = vmatprep.mubr.bf16.mxu0 %v655
  %1179 = vmatmul.mubr.bf16.gmra.mrb[0].mxu0 %v654
  %v1180 = vpop.f32.mrb[0].mxu0
  %v1181 = vadd.f32 %v224, %v1180
  %v1182 = vpop.f32.mrb[0].mxu0
  %v1183 = vpop.f32.mrb[0].mxu0
  %v1184 = vadd.f32 %v224, %v1183
  %v1185 = vpop.f32.mrb[0].mxu0
  %1186 = vmatprep.mubr.bf16.mxu0 %v659
  %1187 = vmatmul.mubr.bf16.gmra.mrb[0].mxu0 %v658
  %v1188 = vpop.f32.mrb[0].mxu0
  %v1189 = vadd.f32 %v224, %v1188
  %v1190 = vpop.f32.mrb[0].mxu0
  %v1191 = vpop.f32.mrb[0].mxu0
  %v1192 = vadd.f32 %v224, %v1191
  %v1193 = vpop.f32.mrb[0].mxu0
  %1194 = vmatprep.mubr.bf16.mxu0 %v663
  %1195 = vmatmul.mubr.bf16.gmra.mrb[0].mxu0 %v662
  %v1196 = vpop.f32.mrb[0].mxu0
  %v1197 = vadd.f32 %v224, %v1196
  %v1198 = vpop.f32.mrb[0].mxu0
  %v1199 = vpop.f32.mrb[0].mxu0
  %v1200 = vadd.f32 %v224, %v1199
  %v1201 = vpop.f32.mrb[0].mxu0
  %1202 = vmatprep.mubr.bf16.mxu0 %v667
  %1203 = vmatmul.mubr.bf16.gmra.mrb[0].mxu0 %v666
  %v1204 = vpop.f32.mrb[0].mxu0
  %v1205 = vadd.f32 %v224, %v1204
  %v1206 = vpop.f32.mrb[0].mxu0
  %v1207 = vpop.f32.mrb[0].mxu0
  %v1208 = vadd.f32 %v224, %v1207
  %v1209 = vpop.f32.mrb[0].mxu0
  %1210 = vmatprep.mubr.bf16.mxu0 %v671
  %1211 = vmatmul.mubr.bf16.gmra.mrb[0].mxu0 %v670
  %v1212 = vpop.f32.mrb[0].mxu0
  %v1213 = vadd.f32 %v224, %v1212
  %v1214 = vpop.f32.mrb[0].mxu0
  %v1215 = vpop.f32.mrb[0].mxu0
  %v1216 = vadd.f32 %v224, %v1215
  %v1217 = vpop.f32.mrb[0].mxu0
  %1218 = vmatprep.mubr.bf16.mxu0 %v675
  %1219 = vmatmul.mubr.bf16.gmra.mrb[0].mxu0 %v674
  %v1220 = vpop.f32.mrb[0].mxu0
  %v1221 = vadd.f32 %v224, %v1220
  %v1222 = vpop.f32.mrb[0].mxu0
  %v1223 = vpop.f32.mrb[0].mxu0
  %v1224 = vadd.f32 %v224, %v1223
  %v1225 = vpop.f32.mrb[0].mxu0
  %1226 = vmatprep.mubr.bf16.mxu0 %v679
  %1227 = vmatmul.mubr.bf16.gmra.mrb[0].mxu0 %v678
  %v1228 = vpop.f32.mrb[0].mxu0
  %v1229 = vadd.f32 %v224, %v1228
  %v1230 = vpop.f32.mrb[0].mxu0
  %v1231 = vpop.f32.mrb[0].mxu0
  %v1232 = vadd.f32 %v224, %v1231
  %v1233 = vpop.f32.mrb[0].mxu0
  %1234 = vmatprep.mubr.bf16.mxu0 %v683
  %1235 = vmatmul.mubr.bf16.gmra.mrb[0].mxu0 %v682
  %v1236 = vpop.f32.mrb[0].mxu0
  %v1237 = vadd.f32 %v224, %v1236
  %v1238 = vpop.f32.mrb[0].mxu0
  %v1239 = vpop.f32.mrb[0].mxu0
  %v1240 = vadd.f32 %v224, %v1239
  %v1241 = vpop.f32.mrb[0].mxu0
  %1242 = vmatprep.mubr.bf16.mxu0 %v687
  %1243 = vmatmul.mubr.bf16.gmra.mrb[0].mxu0 %v686
  %v1244 = vpop.f32.mrb[0].mxu0
  %v1245 = vadd.f32 %v224, %v1244
  %v1246 = vpop.f32.mrb[0].mxu0
  %v1247 = vpop.f32.mrb[0].mxu0
  %v1248 = vadd.f32 %v224, %v1247
  %v1249 = vpop.f32.mrb[0].mxu0
  %1250 = vmatprep.mubr.bf16.mxu0 %v691
  %1251 = vmatmul.mubr.bf16.gmra.mrb[0].mxu0 %v690
  %v1252 = vpop.f32.mrb[0].mxu0
  %v1253 = vadd.f32 %v224, %v1252
  %v1254 = vpop.f32.mrb[0].mxu0
  %v1255 = vpop.f32.mrb[0].mxu0
  %v1256 = vadd.f32 %v224, %v1255
  %v1257 = vpop.f32.mrb[0].mxu0
  %1258 = vmatprep.mubr.bf16.mxu0 %v695
  %1259 = vmatmul.mubr.bf16.gmra.mrb[0].mxu0 %v694
  %v1260 = vpop.f32.mrb[0].mxu0
  %v1261 = vadd.f32 %v224, %v1260
  %v1262 = vpop.f32.mrb[0].mxu0
  %v1263 = vpop.f32.mrb[0].mxu0
  %v1264 = vadd.f32 %v224, %v1263
  %v1265 = vpop.f32.mrb[0].mxu0
  %1266 = vmatprep.mubr.bf16.mxu0 %v699
  %1267 = vmatmul.mubr.bf16.gmra.mrb[0].mxu0 %v698
  %v1268 = vpop.f32.mrb[0].mxu0
  %v1269 = vadd.f32 %v224, %v1268
  %v1270 = vpop.f32.mrb[0].mxu0
  %v1271 = vpop.f32.mrb[0].mxu0
  %v1272 = vadd.f32 %v224, %v1271
  %v1273 = vpop.f32.mrb[0].mxu0
  %1274 = vmatprep.mubr.bf16.mxu0 %v703
  %1275 = vmatmul.mubr.bf16.gmra.mrb[0].mxu0 %v702
  %v1276 = vpop.f32.mrb[0].mxu0
  %v1277 = vadd.f32 %v224, %v1276
  %v1278 = vpop.f32.mrb[0].mxu0
  %v1279 = vpop.f32.mrb[0].mxu0
  %v1280 = vadd.f32 %v224, %v1279
  %v1281 = vpop.f32.mrb[0].mxu0
  %1282 = vmatprep.mubr.bf16.mxu0 %v707
  %1283 = vmatmul.mubr.bf16.gmra.mrb[0].mxu0 %v706
  %v1284 = vpop.f32.mrb[0].mxu0
  %v1285 = vadd.f32 %v224, %v1284
  %v1286 = vpop.f32.mrb[0].mxu0
  %v1287 = vpop.f32.mrb[0].mxu0
  %v1288 = vadd.f32 %v224, %v1287
  %v1289 = vpop.f32.mrb[0].mxu0
  %1290 = vmatprep.mubr.bf16.mxu0 %v711
  %1291 = vmatmul.mubr.bf16.gmra.mrb[0].mxu0 %v710
  %v1292 = vpop.f32.mrb[0].mxu0
  %v1293 = vadd.f32 %v224, %v1292
  %v1294 = vpop.f32.mrb[0].mxu0
  %v1295 = vpop.f32.mrb[0].mxu0
  %v1296 = vadd.f32 %v224, %v1295
  %v1297 = vpop.f32.mrb[0].mxu0
  %1298 = vmatprep.mubr.bf16.mxu0 %v715
  %1299 = vmatmul.mubr.bf16.gmra.mrb[0].mxu0 %v714
  %v1300 = vpop.f32.mrb[0].mxu0
  %v1301 = vadd.f32 %v224, %v1300
  %v1302 = vpop.f32.mrb[0].mxu0
  %v1303 = vpop.f32.mrb[0].mxu0
  %v1304 = vadd.f32 %v224, %v1303
  %v1305 = vpop.f32.mrb[0].mxu0
  %1306 = vmatprep.mubr.bf16.mxu0 %v719
  %1307 = vmatmul.mubr.bf16.gmra.mrb[0].mxu0 %v718
  %v1308 = vpop.f32.mrb[0].mxu0
  %v1309 = vadd.f32 %v224, %v1308
  %v1310 = vpop.f32.mrb[0].mxu0
  %v1311 = vpop.f32.mrb[0].mxu0
  %v1312 = vadd.f32 %v224, %v1311
  %v1313 = vpop.f32.mrb[0].mxu0
  %1314 = vmatprep.mubr.bf16.mxu0 %v723
  %1315 = vmatmul.mubr.bf16.gmra.mrb[0].mxu0 %v722
  %v1316 = vpop.f32.mrb[0].mxu0
  %v1317 = vadd.f32 %v224, %v1316
  %v1318 = vpop.f32.mrb[0].mxu0
  %v1319 = vpop.f32.mrb[0].mxu0
  %v1320 = vadd.f32 %v224, %v1319
  %v1321 = vpop.f32.mrb[0].mxu0
  %1322 = vmatprep.mubr.bf16.mxu0 %v727
  %1323 = vmatmul.mubr.bf16.gmra.mrb[0].mxu0 %v726
  %v1324 = vpop.f32.mrb[0].mxu0
  %v1325 = vadd.f32 %v224, %v1324
  %v1326 = vpop.f32.mrb[0].mxu0
  %v1327 = vpop.f32.mrb[0].mxu0
  %v1328 = vadd.f32 %v224, %v1327
  %v1329 = vpop.f32.mrb[0].mxu0
  %1330 = vmatprep.mubr.bf16.mxu0 %v731
  %1331 = vmatmul.mubr.bf16.gmra.mrb[0].mxu0 %v730
  %v1332 = vpop.f32.mrb[0].mxu0
  %v1333 = vadd.f32 %v224, %v1332
  %v1334 = vpop.f32.mrb[0].mxu0
  %v1335 = vpop.f32.mrb[0].mxu0
  %v1336 = vadd.f32 %v224, %v1335
  %v1337 = vpop.f32.mrb[0].mxu0
  %1338 = vmatprep.mubr.bf16.mxu0 %v735
  %1339 = vmatmul.mubr.bf16.gmra.mrb[0].mxu0 %v734
  %v1340 = vpop.f32.mrb[0].mxu0
  %v1341 = vadd.f32 %v224, %v1340
  %v1342 = vpop.f32.mrb[0].mxu0
  %v1343 = vpop.f32.mrb[0].mxu0
  %v1344 = vadd.f32 %v224, %v1343
  %v1345 = vpop.f32.mrb[0].mxu0
  %1346 = vdwg.mxu0
  %1347 = vmatprep.subr.bf16.mxu0 0
  %1348 = vmatpush1.bf16.msra.mxu0 %v1010
  %1349 = vmatprep.subr.bf16.mxu0 0
  %1350 = vmatpush1.bf16.msra.mxu0 %v1011
  %1351 = vmatprep.subr.bf16.mxu0 0
  %1352 = vmatpush1.bf16.msra.mxu0 %v1012
  %1353 = vmatprep.subr.bf16.mxu0 0
  %1354 = vmatpush1.bf16.msra.mxu0 %v1013
  %1355 = vmatprep.subr.bf16.mxu0 0
  %1356 = vmatpush1.bf16.msra.mxu0 %v1014
  %1357 = vmatprep.subr.bf16.mxu0 0
  %1358 = vmatpush1.bf16.msra.mxu0 %v1015
  %1359 = vmatprep.subr.bf16.mxu0 0
  %1360 = vmatpush1.bf16.msra.mxu0 %v1016
  %1361 = vmatprep.subr.bf16.mxu0 0
  %1362 = vmatpush1.bf16.msra.mxu0 %v1017
  %1363 = vmatprep.subr.bf16.mxu0 0
  %1364 = vmatpush1.bf16.msra.mxu0 %v1018
  %1365 = vmatprep.subr.bf16.mxu0 0
  %1366 = vmatpush1.bf16.msra.mxu0 %v1019
  %1367 = vmatprep.subr.bf16.mxu0 0
  %1368 = vmatpush1.bf16.msra.mxu0 %v1020
  %1369 = vmatprep.subr.bf16.mxu0 0
  %1370 = vmatpush1.bf16.msra.mxu0 %v1021
  %1371 = vmatprep.subr.bf16.mxu0 0
  %1372 = vmatpush1.bf16.msra.mxu0 %v1022
  %1373 = vmatprep.subr.bf16.mxu0 0
  %1374 = vmatpush1.bf16.msra.mxu0 %v1023
  %1375 = vmatprep.subr.bf16.mxu0 0
  %1376 = vmatpush1.bf16.msra.mxu0 %v1024
  %1377 = vmatprep.subr.bf16.mxu0 0
  %1378 = vmatpush1.bf16.msra.mxu0 %v1025
  %1379 = vmatprep.mubr.bf16.mxu0 %v613
  %1380 = vmatmul.mubr.bf16.gmra.mrb[0].mxu0 %v612
  %v1381 = vpop.f32.mrb[0].mxu0
  %v1382 = vadd.f32 %v1093, %v1381
  %v1383 = vpop.f32.mrb[0].mxu0
  %v1384 = vpop.f32.mrb[0].mxu0
  %v1385 = vadd.f32 %v1096, %v1384
  %v1386 = vpop.f32.mrb[0].mxu0
  %1387 = vmatprep.mubr.bf16.mxu0 %v617
  %1388 = vmatmul.mubr.bf16.gmra.mrb[0].mxu0 %v616
  %v1389 = vpop.f32.mrb[0].mxu0
  %v1390 = vadd.f32 %v1101, %v1389
  %v1391 = vpop.f32.mrb[0].mxu0
  %v1392 = vpop.f32.mrb[0].mxu0
  %v1393 = vadd.f32 %v1104, %v1392
  %v1394 = vpop.f32.mrb[0].mxu0
  %1395 = vmatprep.mubr.bf16.mxu0 %v621
  %1396 = vmatmul.mubr.bf16.gmra.mrb[0].mxu0 %v620
  %v1397 = vpop.f32.mrb[0].mxu0
  %v1398 = vadd.f32 %v1109, %v1397
  %v1399 = vpop.f32.mrb[0].mxu0
  %v1400 = vpop.f32.mrb[0].mxu0
  %v1401 = vadd.f32 %v1112, %v1400
  %v1402 = vpop.f32.mrb[0].mxu0
  %1403 = vmatprep.mubr.bf16.mxu0 %v625
  %1404 = vmatmul.mubr.bf16.gmra.mrb[0].mxu0 %v624
  %v1405 = vpop.f32.mrb[0].mxu0
  %v1406 = vadd.f32 %v1117, %v1405
  %v1407 = vpop.f32.mrb[0].mxu0
  %v1408 = vpop.f32.mrb[0].mxu0
  %v1409 = vadd.f32 %v1120, %v1408
  %v1410 = vpop.f32.mrb[0].mxu0
  %1411 = vmatprep.mubr.bf16.mxu0 %v629
  %1412 = vmatmul.mubr.bf16.gmra.mrb[0].mxu0 %v628
  %v1413 = vpop.f32.mrb[0].mxu0
  %v1414 = vadd.f32 %v1125, %v1413
  %v1415 = vpop.f32.mrb[0].mxu0
  %v1416 = vpop.f32.mrb[0].mxu0
  %v1417 = vadd.f32 %v1128, %v1416
  %v1418 = vpop.f32.mrb[0].mxu0
  %1419 = vmatprep.mubr.bf16.mxu0 %v633
  %1420 = vmatmul.mubr.bf16.gmra.mrb[0].mxu0 %v632
  %v1421 = vpop.f32.mrb[0].mxu0
  %v1422 = vadd.f32 %v1133, %v1421
  %v1423 = vpop.f32.mrb[0].mxu0
  %v1424 = vpop.f32.mrb[0].mxu0
  %v1425 = vadd.f32 %v1136, %v1424
  %v1426 = vpop.f32.mrb[0].mxu0
  %1427 = vmatprep.mubr.bf16.mxu0 %v637
  %1428 = vmatmul.mubr.bf16.gmra.mrb[0].mxu0 %v636
  %v1429 = vpop.f32.mrb[0].mxu0
  %v1430 = vadd.f32 %v1141, %v1429
  %v1431 = vpop.f32.mrb[0].mxu0
  %v1432 = vpop.f32.mrb[0].mxu0
  %v1433 = vadd.f32 %v1144, %v1432
  %v1434 = vpop.f32.mrb[0].mxu0
  %1435 = vmatprep.mubr.bf16.mxu0 %v641
  %1436 = vmatmul.mubr.bf16.gmra.mrb[0].mxu0 %v640
  %v1437 = vpop.f32.mrb[0].mxu0
  %v1438 = vadd.f32 %v1149, %v1437
  %v1439 = vpop.f32.mrb[0].mxu0
  %v1440 = vpop.f32.mrb[0].mxu0
  %v1441 = vadd.f32 %v1152, %v1440
  %v1442 = vpop.f32.mrb[0].mxu0
  %1443 = vmatprep.mubr.bf16.mxu0 %v645
  %1444 = vmatmul.mubr.bf16.gmra.mrb[0].mxu0 %v644
  %v1445 = vpop.f32.mrb[0].mxu0
  %v1446 = vadd.f32 %v1157, %v1445
  %v1447 = vpop.f32.mrb[0].mxu0
  %v1448 = vpop.f32.mrb[0].mxu0
  %v1449 = vadd.f32 %v1160, %v1448
  %v1450 = vpop.f32.mrb[0].mxu0
  %1451 = vmatprep.mubr.bf16.mxu0 %v649
  %1452 = vmatmul.mubr.bf16.gmra.mrb[0].mxu0 %v648
  %v1453 = vpop.f32.mrb[0].mxu0
  %v1454 = vadd.f32 %v1165, %v1453
  %v1455 = vpop.f32.mrb[0].mxu0
  %v1456 = vpop.f32.mrb[0].mxu0
  %v1457 = vadd.f32 %v1168, %v1456
  %v1458 = vpop.f32.mrb[0].mxu0
  %1459 = vmatprep.mubr.bf16.mxu0 %v653
  %1460 = vmatmul.mubr.bf16.gmra.mrb[0].mxu0 %v652
  %v1461 = vpop.f32.mrb[0].mxu0
  %v1462 = vadd.f32 %v1173, %v1461
  %v1463 = vpop.f32.mrb[0].mxu0
  %v1464 = vpop.f32.mrb[0].mxu0
  %v1465 = vadd.f32 %v1176, %v1464
  %v1466 = vpop.f32.mrb[0].mxu0
  %1467 = vmatprep.mubr.bf16.mxu0 %v657
  %1468 = vmatmul.mubr.bf16.gmra.mrb[0].mxu0 %v656
  %v1469 = vpop.f32.mrb[0].mxu0
  %v1470 = vadd.f32 %v1181, %v1469
  %v1471 = vpop.f32.mrb[0].mxu0
  %v1472 = vpop.f32.mrb[0].mxu0
  %v1473 = vadd.f32 %v1184, %v1472
  %v1474 = vpop.f32.mrb[0].mxu0
  %1475 = vmatprep.mubr.bf16.mxu0 %v661
  %1476 = vmatmul.mubr.bf16.gmra.mrb[0].mxu0 %v660
  %v1477 = vpop.f32.mrb[0].mxu0
  %v1478 = vadd.f32 %v1189, %v1477
  %v1479 = vpop.f32.mrb[0].mxu0
  %v1480 = vpop.f32.mrb[0].mxu0
  %v1481 = vadd.f32 %v1192, %v1480
  %v1482 = vpop.f32.mrb[0].mxu0
  %1483 = vmatprep.mubr.bf16.mxu0 %v665
  %1484 = vmatmul.mubr.bf16.gmra.mrb[0].mxu0 %v664
  %v1485 = vpop.f32.mrb[0].mxu0
  %v1486 = vadd.f32 %v1197, %v1485
  %v1487 = vpop.f32.mrb[0].mxu0
  %v1488 = vpop.f32.mrb[0].mxu0
  %v1489 = vadd.f32 %v1200, %v1488
  %v1490 = vpop.f32.mrb[0].mxu0
  %1491 = vmatprep.mubr.bf16.mxu0 %v669
  %1492 = vmatmul.mubr.bf16.gmra.mrb[0].mxu0 %v668
  %v1493 = vpop.f32.mrb[0].mxu0
  %v1494 = vadd.f32 %v1205, %v1493
  %v1495 = vpop.f32.mrb[0].mxu0
  %v1496 = vpop.f32.mrb[0].mxu0
  %v1497 = vadd.f32 %v1208, %v1496
  %v1498 = vpop.f32.mrb[0].mxu0
  %1499 = vmatprep.mubr.bf16.mxu0 %v673
  %1500 = vmatmul.mubr.bf16.gmra.mrb[0].mxu0 %v672
  %v1501 = vpop.f32.mrb[0].mxu0
  %v1502 = vadd.f32 %v1213, %v1501
  %v1503 = vpop.f32.mrb[0].mxu0
  %v1504 = vpop.f32.mrb[0].mxu0
  %v1505 = vadd.f32 %v1216, %v1504
  %v1506 = vpop.f32.mrb[0].mxu0
  %1507 = vmatprep.mubr.bf16.mxu0 %v677
  %1508 = vmatmul.mubr.bf16.gmra.mrb[0].mxu0 %v676
  %v1509 = vpop.f32.mrb[0].mxu0
  %v1510 = vadd.f32 %v1221, %v1509
  %v1511 = vpop.f32.mrb[0].mxu0
  %v1512 = vpop.f32.mrb[0].mxu0
  %v1513 = vadd.f32 %v1224, %v1512
  %v1514 = vpop.f32.mrb[0].mxu0
  %1515 = vmatprep.mubr.bf16.mxu0 %v681
  %1516 = vmatmul.mubr.bf16.gmra.mrb[0].mxu0 %v680
  %v1517 = vpop.f32.mrb[0].mxu0
  %v1518 = vadd.f32 %v1229, %v1517
  %v1519 = vpop.f32.mrb[0].mxu0
  %v1520 = vpop.f32.mrb[0].mxu0
  %v1521 = vadd.f32 %v1232, %v1520
  %v1522 = vpop.f32.mrb[0].mxu0
  %1523 = vmatprep.mubr.bf16.mxu0 %v685
  %1524 = vmatmul.mubr.bf16.gmra.mrb[0].mxu0 %v684
  %v1525 = vpop.f32.mrb[0].mxu0
  %v1526 = vadd.f32 %v1237, %v1525
  %v1527 = vpop.f32.mrb[0].mxu0
  %v1528 = vpop.f32.mrb[0].mxu0
  %v1529 = vadd.f32 %v1240, %v1528
  %v1530 = vpop.f32.mrb[0].mxu0
  %1531 = vmatprep.mubr.bf16.mxu0 %v689
  %1532 = vmatmul.mubr.bf16.gmra.mrb[0].mxu0 %v688
  %v1533 = vpop.f32.mrb[0].mxu0
  %v1534 = vadd.f32 %v1245, %v1533
  %v1535 = vpop.f32.mrb[0].mxu0
  %v1536 = vpop.f32.mrb[0].mxu0
  %v1537 = vadd.f32 %v1248, %v1536
  %v1538 = vpop.f32.mrb[0].mxu0
  %1539 = vmatprep.mubr.bf16.mxu0 %v693
  %1540 = vmatmul.mubr.bf16.gmra.mrb[0].mxu0 %v692
  %v1541 = vpop.f32.mrb[0].mxu0
  %v1542 = vadd.f32 %v1253, %v1541
  %v1543 = vpop.f32.mrb[0].mxu0
  %v1544 = vpop.f32.mrb[0].mxu0
  %v1545 = vadd.f32 %v1256, %v1544
  %v1546 = vpop.f32.mrb[0].mxu0
  %1547 = vmatprep.mubr.bf16.mxu0 %v697
  %1548 = vmatmul.mubr.bf16.gmra.mrb[0].mxu0 %v696
  %v1549 = vpop.f32.mrb[0].mxu0
  %v1550 = vadd.f32 %v1261, %v1549
  %v1551 = vpop.f32.mrb[0].mxu0
  %v1552 = vpop.f32.mrb[0].mxu0
  %v1553 = vadd.f32 %v1264, %v1552
  %v1554 = vpop.f32.mrb[0].mxu0
  %1555 = vmatprep.mubr.bf16.mxu0 %v701
  %1556 = vmatmul.mubr.bf16.gmra.mrb[0].mxu0 %v700
  %v1557 = vpop.f32.mrb[0].mxu0
  %v1558 = vadd.f32 %v1269, %v1557
  %v1559 = vpop.f32.mrb[0].mxu0
  %v1560 = vpop.f32.mrb[0].mxu0
  %v1561 = vadd.f32 %v1272, %v1560
  %v1562 = vpop.f32.mrb[0].mxu0
  %1563 = vmatprep.mubr.bf16.mxu0 %v705
  %1564 = vmatmul.mubr.bf16.gmra.mrb[0].mxu0 %v704
  %v1565 = vpop.f32.mrb[0].mxu0
  %v1566 = vadd.f32 %v1277, %v1565
  %v1567 = vpop.f32.mrb[0].mxu0
  %v1568 = vpop.f32.mrb[0].mxu0
  %v1569 = vadd.f32 %v1280, %v1568
  %v1570 = vpop.f32.mrb[0].mxu0
  %1571 = vmatprep.mubr.bf16.mxu0 %v709
  %1572 = vmatmul.mubr.bf16.gmra.mrb[0].mxu0 %v708
  %v1573 = vpop.f32.mrb[0].mxu0
  %v1574 = vadd.f32 %v1285, %v1573
  %v1575 = vpop.f32.mrb[0].mxu0
  %v1576 = vpop.f32.mrb[0].mxu0
  %v1577 = vadd.f32 %v1288, %v1576
  %v1578 = vpop.f32.mrb[0].mxu0
  %1579 = vmatprep.mubr.bf16.mxu0 %v713
  %1580 = vmatmul.mubr.bf16.gmra.mrb[0].mxu0 %v712
  %v1581 = vpop.f32.mrb[0].mxu0
  %v1582 = vadd.f32 %v1293, %v1581
  %v1583 = vpop.f32.mrb[0].mxu0
  %v1584 = vpop.f32.mrb[0].mxu0
  %v1585 = vadd.f32 %v1296, %v1584
  %v1586 = vpop.f32.mrb[0].mxu0
  %1587 = vmatprep.mubr.bf16.mxu0 %v717
  %1588 = vmatmul.mubr.bf16.gmra.mrb[0].mxu0 %v716
  %v1589 = vpop.f32.mrb[0].mxu0
  %v1590 = vadd.f32 %v1301, %v1589
  %v1591 = vpop.f32.mrb[0].mxu0
  %v1592 = vpop.f32.mrb[0].mxu0
  %v1593 = vadd.f32 %v1304, %v1592
  %v1594 = vpop.f32.mrb[0].mxu0
  %1595 = vmatprep.mubr.bf16.mxu0 %v721
  %1596 = vmatmul.mubr.bf16.gmra.mrb[0].mxu0 %v720
  %v1597 = vpop.f32.mrb[0].mxu0
  %v1598 = vadd.f32 %v1309, %v1597
  %v1599 = vpop.f32.mrb[0].mxu0
  %v1600 = vpop.f32.mrb[0].mxu0
  %v1601 = vadd.f32 %v1312, %v1600
  %v1602 = vpop.f32.mrb[0].mxu0
  %1603 = vmatprep.mubr.bf16.mxu0 %v725
  %1604 = vmatmul.mubr.bf16.gmra.mrb[0].mxu0 %v724
  %v1605 = vpop.f32.mrb[0].mxu0
  %v1606 = vadd.f32 %v1317, %v1605
  %v1607 = vpop.f32.mrb[0].mxu0
  %v1608 = vpop.f32.mrb[0].mxu0
  %v1609 = vadd.f32 %v1320, %v1608
  %v1610 = vpop.f32.mrb[0].mxu0
  %1611 = vmatprep.mubr.bf16.mxu0 %v729
  %1612 = vmatmul.mubr.bf16.gmra.mrb[0].mxu0 %v728
  %v1613 = vpop.f32.mrb[0].mxu0
  %v1614 = vadd.f32 %v1325, %v1613
  %v1615 = vpop.f32.mrb[0].mxu0
  %v1616 = vpop.f32.mrb[0].mxu0
  %v1617 = vadd.f32 %v1328, %v1616
  %v1618 = vpop.f32.mrb[0].mxu0
  %1619 = vmatprep.mubr.bf16.mxu0 %v733
  %1620 = vmatmul.mubr.bf16.gmra.mrb[0].mxu0 %v732
  %v1621 = vpop.f32.mrb[0].mxu0
  %v1622 = vadd.f32 %v1333, %v1621
  %v1623 = vpop.f32.mrb[0].mxu0
  %v1624 = vpop.f32.mrb[0].mxu0
  %v1625 = vadd.f32 %v1336, %v1624
  %v1626 = vpop.f32.mrb[0].mxu0
  %1627 = vmatprep.mubr.bf16.mxu0 %v737
  %1628 = vmatmul.mubr.bf16.gmra.mrb[0].mxu0 %v736
  %v1629 = vpop.f32.mrb[0].mxu0
  %v1630 = vadd.f32 %v1341, %v1629
  %v1631 = vpop.f32.mrb[0].mxu0
  %v1632 = vpop.f32.mrb[0].mxu0
  %v1633 = vadd.f32 %v1344, %v1632
  %v1634 = vpop.f32.mrb[0].mxu0
  %1635 = vdwg.mxu0
  %v1636 = vmax.f32 %v1382, 0.0
  %v1637 = vmax.f32 %v1385, 0.0
  %v1638 = vmax.f32 %v1390, 0.0
  %v1639 = vmax.f32 %v1393, 0.0
  %v1640 = vmax.f32 %v1398, 0.0
  %v1641 = vmax.f32 %v1401, 0.0
  %v1642 = vmax.f32 %v1406, 0.0
  %v1643 = vmax.f32 %v1409, 0.0
  %v1644 = vmax.f32 %v1414, 0.0
  %v1645 = vmax.f32 %v1417, 0.0
  %v1646 = vmax.f32 %v1422, 0.0
  %v1647 = vmax.f32 %v1425, 0.0
  %v1648 = vmax.f32 %v1430, 0.0
  %v1649 = vmax.f32 %v1433, 0.0
  %v1650 = vmax.f32 %v1438, 0.0
  %v1651 = vmax.f32 %v1441, 0.0
  %v1652 = vmax.f32 %v1446, 0.0
  %v1653 = vmax.f32 %v1449, 0.0
  %v1654 = vmax.f32 %v1454, 0.0
  %v1655 = vmax.f32 %v1457, 0.0
  %v1656 = vmax.f32 %v1462, 0.0
  %v1657 = vmax.f32 %v1465, 0.0
  %v1658 = vmax.f32 %v1470, 0.0
  %v1659 = vmax.f32 %v1473, 0.0
  %v1660 = vmax.f32 %v1478, 0.0
  %v1661 = vmax.f32 %v1481, 0.0
  %v1662 = vmax.f32 %v1486, 0.0
  %v1663 = vmax.f32 %v1489, 0.0
  %v1664 = vmax.f32 %v1494, 0.0
  %v1665 = vmax.f32 %v1497, 0.0
  %v1666 = vmax.f32 %v1502, 0.0
  %v1667 = vmax.f32 %v1505, 0.0
  %v1668 = vmax.f32 %v1510, 0.0
  %v1669 = vmax.f32 %v1513, 0.0
  %v1670 = vmax.f32 %v1518, 0.0
  %v1671 = vmax.f32 %v1521, 0.0
  %v1672 = vmax.f32 %v1526, 0.0
  %v1673 = vmax.f32 %v1529, 0.0
  %v1674 = vmax.f32 %v1534, 0.0
  %v1675 = vmax.f32 %v1537, 0.0
  %v1676 = vmax.f32 %v1542, 0.0
  %v1677 = vmax.f32 %v1545, 0.0
  %v1678 = vmax.f32 %v1550, 0.0
  %v1679 = vmax.f32 %v1553, 0.0
  %v1680 = vmax.f32 %v1558, 0.0
  %v1681 = vmax.f32 %v1561, 0.0
  %v1682 = vmax.f32 %v1566, 0.0
  %v1683 = vmax.f32 %v1569, 0.0
  %v1684 = vmax.f32 %v1574, 0.0
  %v1685 = vmax.f32 %v1577, 0.0
  %v1686 = vmax.f32 %v1582, 0.0
  %v1687 = vmax.f32 %v1585, 0.0
  %v1688 = vmax.f32 %v1590, 0.0
  %v1689 = vmax.f32 %v1593, 0.0
  %v1690 = vmax.f32 %v1598, 0.0
  %v1691 = vmax.f32 %v1601, 0.0
  %v1692 = vmax.f32 %v1606, 0.0
  %v1693 = vmax.f32 %v1609, 0.0
  %v1694 = vmax.f32 %v1614, 0.0
  %v1695 = vmax.f32 %v1617, 0.0
  %v1696 = vmax.f32 %v1622, 0.0
  %v1697 = vmax.f32 %v1625, 0.0
  %v1698 = vmax.f32 %v1630, 0.0
  %v1699 = vmax.f32 %v1633, 0.0
  %v1700 = vpack.c.bf16 %v1637, %v1636
  %v1701 = vpack.c.bf16 %v1639, %v1638
  %v1702 = vpack.c.bf16 %v1641, %v1640
  %v1703 = vpack.c.bf16 %v1643, %v1642
  %v1704 = vpack.c.bf16 %v1645, %v1644
  %v1705 = vpack.c.bf16 %v1647, %v1646
  %v1706 = vpack.c.bf16 %v1649, %v1648
  %v1707 = vpack.c.bf16 %v1651, %v1650
  %v1708 = vpack.c.bf16 %v1653, %v1652
  %v1709 = vpack.c.bf16 %v1655, %v1654
  %v1710 = vpack.c.bf16 %v1657, %v1656
  %v1711 = vpack.c.bf16 %v1659, %v1658
  %v1712 = vpack.c.bf16 %v1661, %v1660
  %v1713 = vpack.c.bf16 %v1663, %v1662
  %v1714 = vpack.c.bf16 %v1665, %v1664
  %v1715 = vpack.c.bf16 %v1667, %v1666
  %v1716 = vpack.c.bf16 %v1669, %v1668
  %v1717 = vpack.c.bf16 %v1671, %v1670
  %v1718 = vpack.c.bf16 %v1673, %v1672
  %v1719 = vpack.c.bf16 %v1675, %v1674
  %v1720 = vpack.c.bf16 %v1677, %v1676
  %v1721 = vpack.c.bf16 %v1679, %v1678
  %v1722 = vpack.c.bf16 %v1681, %v1680
  %v1723 = vpack.c.bf16 %v1683, %v1682
  %v1724 = vpack.c.bf16 %v1685, %v1684
  %v1725 = vpack.c.bf16 %v1687, %v1686
  %v1726 = vpack.c.bf16 %v1689, %v1688
  %v1727 = vpack.c.bf16 %v1691, %v1690
  %v1728 = vpack.c.bf16 %v1693, %v1692
  %v1729 = vpack.c.bf16 %v1695, %v1694
  %v1730 = vpack.c.bf16 %v1697, %v1696
  %v1731 = vpack.c.bf16 %v1699, %v1698
  %v1732 = vld [vmem:[%s3] sm:$0xf]
  %v1733 = vld [vmem:[%s3 + $0x4] sm:$0xf]
  %v1734 = vld [vmem:[%s3 + $0x8] sm:$0xf]
  %v1735 = vld [vmem:[%s3 + $0xc] sm:$0xf]
  %v1736 = vld [vmem:[%s3 + $0x10] sm:$0xf]
  %v1737 = vld [vmem:[%s3 + $0x14] sm:$0xf]
  %v1738 = vld [vmem:[%s3 + $0x18] sm:$0xf]
  %v1739 = vld [vmem:[%s3 + $0x1c] sm:$0xf]
  %v1740 = vld [vmem:[%s3 + $0x20] sm:$0xf]
  %v1741 = vld [vmem:[%s3 + $0x24] sm:$0xf]
  %v1742 = vld [vmem:[%s3 + $0x28] sm:$0xf]
  %v1743 = vld [vmem:[%s3 + $0x2c] sm:$0xf]
  %v1744 = vld [vmem:[%s3 + $0x30] sm:$0xf]
  %v1745 = vld [vmem:[%s3 + $0x34] sm:$0xf]
  %v1746 = vld [vmem:[%s3 + $0x38] sm:$0xf]
  %v1747 = vld [vmem:[%s3 + $0x3c] sm:$0xf]
  %v1748 = vld [vmem:[%s4] sm:$0x1]
  %v1750 = vlaneseq
  %v1751 = vshrl.u32 %v1750, 7
  %v1752 = vsub.s32 0, %v1751
  %v1753 = vrot.slane %v1748, %v1752
  %v1771 = vunpack.c.l.b16 %v1732
  %v1772 = vunpack.c.l.b16 %v1733
  %v1773 = vunpack.c.l.b16 %v1734
  %v1774 = vunpack.c.l.b16 %v1735
  %v1775 = vunpack.c.l.b16 %v1736
  %v1776 = vunpack.c.l.b16 %v1737
  %v1777 = vunpack.c.l.b16 %v1738
  %v1778 = vunpack.c.l.b16 %v1739
  %v1779 = vunpack.c.l.b16 %v1740
  %v1780 = vunpack.c.l.b16 %v1741
  %v1781 = vunpack.c.l.b16 %v1742
  %v1782 = vunpack.c.l.b16 %v1743
  %v1783 = vunpack.c.l.b16 %v1744
  %v1784 = vunpack.c.l.b16 %v1745
  %v1785 = vunpack.c.l.b16 %v1746
  %v1786 = vunpack.c.l.b16 %v1747
  %v1787 = vpack.c.b16 %v1772, %v1771
  %v1788 = vpack.c.b16 %v1774, %v1773
  %v1789 = vpack.c.b16 %v1776, %v1775
  %v1790 = vpack.c.b16 %v1778, %v1777
  %v1791 = vpack.c.b16 %v1780, %v1779
  %v1792 = vpack.c.b16 %v1782, %v1781
  %v1793 = vpack.c.b16 %v1784, %v1783
  %v1794 = vpack.c.b16 %v1786, %v1785
  %1803 = vmatprep.subr.bf16.mxu0 0
  %1804 = vmatpush1.bf16.msra.mxu0 %v1787
  %1805 = vmatprep.subr.bf16.mxu0 0
  %1806 = vmatpush1.bf16.msra.mxu0 %v1788
  %1807 = vmatprep.subr.bf16.mxu0 0
  %1808 = vmatpush1.bf16.msra.mxu0 %v1789
  %1809 = vmatprep.subr.bf16.mxu0 0
  %1810 = vmatpush1.bf16.msra.mxu0 %v1790
  %1811 = vmatprep.subr.bf16.mxu0 0
  %1812 = vmatpush1.bf16.msra.mxu0 %v1791
  %1813 = vmatprep.subr.bf16.mxu0 0
  %1814 = vmatpush1.bf16.msra.mxu0 %v1792
  %1815 = vmatprep.subr.bf16.mxu0 0
  %1816 = vmatpush1.bf16.msra.mxu0 %v1793
  %1817 = vmatprep.subr.bf16.mxu0 0
  %1818 = vmatpush1.bf16.msra.mxu0 %v1794
  %1819 = vmatprep.subr.bf16.mxu0 0
  %1820 = vmatpush1.bf16.msra.mxu0 0
  %1821 = vmatprep.subr.bf16.mxu0 0
  %1822 = vmatpush1.bf16.msra.mxu0 0
  %1823 = vmatprep.subr.bf16.mxu0 0
  %1824 = vmatpush1.bf16.msra.mxu0 0
  %1825 = vmatprep.subr.bf16.mxu0 0
  %1826 = vmatpush1.bf16.msra.mxu0 0
  %1827 = vmatprep.subr.bf16.mxu0 0
  %1828 = vmatpush1.bf16.msra.mxu0 0
  %1829 = vmatprep.subr.bf16.mxu0 0
  %1830 = vmatpush1.bf16.msra.mxu0 0
  %1831 = vmatprep.subr.bf16.mxu0 0
  %1832 = vmatpush1.bf16.msra.mxu0 0
  %1833 = vmatprep.subr.bf16.mxu0 0
  %1834 = vmatpush1.bf16.msra.mxu0 0
  %1835 = vmatprep.mubr.bf16.mxu0 0
  %1836 = vmatmul.mubr.bf16.gmra.mrb[0].mxu0 %v1700
  %v1837 = vpop.f32.mrb[0].mxu0
  %v1838 = vadd.f32 %v1753, %v1837
  %v1839 = vpop.f32.mrb[0].mxu0
  %v1840 = vpop.f32.mrb[0].mxu0
  %v1841 = vadd.f32 %v1753, %v1840
  %v1842 = vpop.f32.mrb[0].mxu0
  %1843 = vmatprep.mubr.bf16.mxu0 0
  %1844 = vmatmul.mubr.bf16.gmra.mrb[0].mxu0 %v1701
  %v1845 = vpop.f32.mrb[0].mxu0
  %v1846 = vadd.f32 %v1753, %v1845
  %v1847 = vpop.f32.mrb[0].mxu0
  %v1848 = vpop.f32.mrb[0].mxu0
  %v1849 = vadd.f32 %v1753, %v1848
  %v1850 = vpop.f32.mrb[0].mxu0
  %1851 = vmatprep.mubr.bf16.mxu0 0
  %1852 = vmatmul.mubr.bf16.gmra.mrb[0].mxu0 %v1702
  %v1853 = vpop.f32.mrb[0].mxu0
  %v1854 = vadd.f32 %v1753, %v1853
  %v1855 = vpop.f32.mrb[0].mxu0
  %v1856 = vpop.f32.mrb[0].mxu0
  %v1857 = vadd.f32 %v1753, %v1856
  %v1858 = vpop.f32.mrb[0].mxu0
  %1859 = vmatprep.mubr.bf16.mxu0 0
  %1860 = vmatmul.mubr.bf16.gmra.mrb[0].mxu0 %v1703
  %v1861 = vpop.f32.mrb[0].mxu0
  %v1862 = vadd.f32 %v1753, %v1861
  %v1863 = vpop.f32.mrb[0].mxu0
  %v1864 = vpop.f32.mrb[0].mxu0
  %v1865 = vadd.f32 %v1753, %v1864
  %v1866 = vpop.f32.mrb[0].mxu0
  %1867 = vmatprep.mubr.bf16.mxu0 0
  %1868 = vmatmul.mubr.bf16.gmra.mrb[0].mxu0 %v1704
  %v1869 = vpop.f32.mrb[0].mxu0
  %v1870 = vadd.f32 %v1753, %v1869
  %v1871 = vpop.f32.mrb[0].mxu0
  %v1872 = vpop.f32.mrb[0].mxu0
  %v1873 = vadd.f32 %v1753, %v1872
  %v1874 = vpop.f32.mrb[0].mxu0
  %1875 = vmatprep.mubr.bf16.mxu0 0
  %1876 = vmatmul.mubr.bf16.gmra.mrb[0].mxu0 %v1705
  %v1877 = vpop.f32.mrb[0].mxu0
  %v1878 = vadd.f32 %v1753, %v1877
  %v1879 = vpop.f32.mrb[0].mxu0
  %v1880 = vpop.f32.mrb[0].mxu0
  %v1881 = vadd.f32 %v1753, %v1880
  %v1882 = vpop.f32.mrb[0].mxu0
  %1883 = vmatprep.mubr.bf16.mxu0 0
  %1884 = vmatmul.mubr.bf16.gmra.mrb[0].mxu0 %v1706
  %v1885 = vpop.f32.mrb[0].mxu0
  %v1886 = vadd.f32 %v1753, %v1885
  %v1887 = vpop.f32.mrb[0].mxu0
  %v1888 = vpop.f32.mrb[0].mxu0
  %v1889 = vadd.f32 %v1753, %v1888
  %v1890 = vpop.f32.mrb[0].mxu0
  %1891 = vmatprep.mubr.bf16.mxu0 0
  %1892 = vmatmul.mubr.bf16.gmra.mrb[0].mxu0 %v1707
  %v1893 = vpop.f32.mrb[0].mxu0
  %v1894 = vadd.f32 %v1753, %v1893
  %v1895 = vpop.f32.mrb[0].mxu0
  %v1896 = vpop.f32.mrb[0].mxu0
  %v1897 = vadd.f32 %v1753, %v1896
  %v1898 = vpop.f32.mrb[0].mxu0
  %1899 = vmatprep.mubr.bf16.mxu0 0
  %1900 = vmatmul.mubr.bf16.gmra.mrb[0].mxu0 %v1708
  %v1901 = vpop.f32.mrb[0].mxu0
  %v1902 = vadd.f32 %v1753, %v1901
  %v1903 = vpop.f32.mrb[0].mxu0
  %v1904 = vpop.f32.mrb[0].mxu0
  %v1905 = vadd.f32 %v1753, %v1904
  %v1906 = vpop.f32.mrb[0].mxu0
  %1907 = vmatprep.mubr.bf16.mxu0 0
  %1908 = vmatmul.mubr.bf16.gmra.mrb[0].mxu0 %v1709
  %v1909 = vpop.f32.mrb[0].mxu0
  %v1910 = vadd.f32 %v1753, %v1909
  %v1911 = vpop.f32.mrb[0].mxu0
  %v1912 = vpop.f32.mrb[0].mxu0
  %v1913 = vadd.f32 %v1753, %v1912
  %v1914 = vpop.f32.mrb[0].mxu0
  %1915 = vmatprep.mubr.bf16.mxu0 0
  %1916 = vmatmul.mubr.bf16.gmra.mrb[0].mxu0 %v1710
  %v1917 = vpop.f32.mrb[0].mxu0
  %v1918 = vadd.f32 %v1753, %v1917
  %v1919 = vpop.f32.mrb[0].mxu0
  %v1920 = vpop.f32.mrb[0].mxu0
  %v1921 = vadd.f32 %v1753, %v1920
  %v1922 = vpop.f32.mrb[0].mxu0
  %1923 = vmatprep.mubr.bf16.mxu0 0
  %1924 = vmatmul.mubr.bf16.gmra.mrb[0].mxu0 %v1711
  %v1925 = vpop.f32.mrb[0].mxu0
  %v1926 = vadd.f32 %v1753, %v1925
  %v1927 = vpop.f32.mrb[0].mxu0
  %v1928 = vpop.f32.mrb[0].mxu0
  %v1929 = vadd.f32 %v1753, %v1928
  %v1930 = vpop.f32.mrb[0].mxu0
  %1931 = vmatprep.mubr.bf16.mxu0 0
  %1932 = vmatmul.mubr.bf16.gmra.mrb[0].mxu0 %v1712
  %v1933 = vpop.f32.mrb[0].mxu0
  %v1934 = vadd.f32 %v1753, %v1933
  %v1935 = vpop.f32.mrb[0].mxu0
  %v1936 = vpop.f32.mrb[0].mxu0
  %v1937 = vadd.f32 %v1753, %v1936
  %v1938 = vpop.f32.mrb[0].mxu0
  %1939 = vmatprep.mubr.bf16.mxu0 0
  %1940 = vmatmul.mubr.bf16.gmra.mrb[0].mxu0 %v1713
  %v1941 = vpop.f32.mrb[0].mxu0
  %v1942 = vadd.f32 %v1753, %v1941
  %v1943 = vpop.f32.mrb[0].mxu0
  %v1944 = vpop.f32.mrb[0].mxu0
  %v1945 = vadd.f32 %v1753, %v1944
  %v1946 = vpop.f32.mrb[0].mxu0
  %1947 = vmatprep.mubr.bf16.mxu0 0
  %1948 = vmatmul.mubr.bf16.gmra.mrb[0].mxu0 %v1714
  %v1949 = vpop.f32.mrb[0].mxu0
  %v1950 = vadd.f32 %v1753, %v1949
  %v1951 = vpop.f32.mrb[0].mxu0
  %v1952 = vpop.f32.mrb[0].mxu0
  %v1953 = vadd.f32 %v1753, %v1952
  %v1954 = vpop.f32.mrb[0].mxu0
  %1955 = vmatprep.mubr.bf16.mxu0 0
  %1956 = vmatmul.mubr.bf16.gmra.mrb[0].mxu0 %v1715
  %v1957 = vpop.f32.mrb[0].mxu0
  %v1958 = vadd.f32 %v1753, %v1957
  %v1959 = vpop.f32.mrb[0].mxu0
  %v1960 = vpop.f32.mrb[0].mxu0
  %v1961 = vadd.f32 %v1753, %v1960
  %v1962 = vpop.f32.mrb[0].mxu0
  %1963 = vmatprep.mubr.bf16.mxu0 0
  %1964 = vmatmul.mubr.bf16.gmra.mrb[0].mxu0 %v1716
  %v1965 = vpop.f32.mrb[0].mxu0
  %v1966 = vadd.f32 %v1753, %v1965
  %v1967 = vpop.f32.mrb[0].mxu0
  %v1968 = vpop.f32.mrb[0].mxu0
  %v1969 = vadd.f32 %v1753, %v1968
  %v1970 = vpop.f32.mrb[0].mxu0
  %1971 = vmatprep.mubr.bf16.mxu0 0
  %1972 = vmatmul.mubr.bf16.gmra.mrb[0].mxu0 %v1717
  %v1973 = vpop.f32.mrb[0].mxu0
  %v1974 = vadd.f32 %v1753, %v1973
  %v1975 = vpop.f32.mrb[0].mxu0
  %v1976 = vpop.f32.mrb[0].mxu0
  %v1977 = vadd.f32 %v1753, %v1976
  %v1978 = vpop.f32.mrb[0].mxu0
  %1979 = vmatprep.mubr.bf16.mxu0 0
  %1980 = vmatmul.mubr.bf16.gmra.mrb[0].mxu0 %v1718
  %v1981 = vpop.f32.mrb[0].mxu0
  %v1982 = vadd.f32 %v1753, %v1981
  %v1983 = vpop.f32.mrb[0].mxu0
  %v1984 = vpop.f32.mrb[0].mxu0
  %v1985 = vadd.f32 %v1753, %v1984
  %v1986 = vpop.f32.mrb[0].mxu0
  %1987 = vmatprep.mubr.bf16.mxu0 0
  %1988 = vmatmul.mubr.bf16.gmra.mrb[0].mxu0 %v1719
  %v1989 = vpop.f32.mrb[0].mxu0
  %v1990 = vadd.f32 %v1753, %v1989
  %v1991 = vpop.f32.mrb[0].mxu0
  %v1992 = vpop.f32.mrb[0].mxu0
  %v1993 = vadd.f32 %v1753, %v1992
  %v1994 = vpop.f32.mrb[0].mxu0
  %1995 = vmatprep.mubr.bf16.mxu0 0
  %1996 = vmatmul.mubr.bf16.gmra.mrb[0].mxu0 %v1720
  %v1997 = vpop.f32.mrb[0].mxu0
  %v1998 = vadd.f32 %v1753, %v1997
  %v1999 = vpop.f32.mrb[0].mxu0
  %v2000 = vpop.f32.mrb[0].mxu0
  %v2001 = vadd.f32 %v1753, %v2000
  %v2002 = vpop.f32.mrb[0].mxu0
  %2003 = vmatprep.mubr.bf16.mxu0 0
  %2004 = vmatmul.mubr.bf16.gmra.mrb[0].mxu0 %v1721
  %v2005 = vpop.f32.mrb[0].mxu0
  %v2006 = vadd.f32 %v1753, %v2005
  %v2007 = vpop.f32.mrb[0].mxu0
  %v2008 = vpop.f32.mrb[0].mxu0
  %v2009 = vadd.f32 %v1753, %v2008
  %v2010 = vpop.f32.mrb[0].mxu0
  %2011 = vmatprep.mubr.bf16.mxu0 0
  %2012 = vmatmul.mubr.bf16.gmra.mrb[0].mxu0 %v1722
  %v2013 = vpop.f32.mrb[0].mxu0
  %v2014 = vadd.f32 %v1753, %v2013
  %v2015 = vpop.f32.mrb[0].mxu0
  %v2016 = vpop.f32.mrb[0].mxu0
  %v2017 = vadd.f32 %v1753, %v2016
  %v2018 = vpop.f32.mrb[0].mxu0
  %2019 = vmatprep.mubr.bf16.mxu0 0
  %2020 = vmatmul.mubr.bf16.gmra.mrb[0].mxu0 %v1723
  %v2021 = vpop.f32.mrb[0].mxu0
  %v2022 = vadd.f32 %v1753, %v2021
  %v2023 = vpop.f32.mrb[0].mxu0
  %v2024 = vpop.f32.mrb[0].mxu0
  %v2025 = vadd.f32 %v1753, %v2024
  %v2026 = vpop.f32.mrb[0].mxu0
  %2027 = vmatprep.mubr.bf16.mxu0 0
  %2028 = vmatmul.mubr.bf16.gmra.mrb[0].mxu0 %v1724
  %v2029 = vpop.f32.mrb[0].mxu0
  %v2030 = vadd.f32 %v1753, %v2029
  %v2031 = vpop.f32.mrb[0].mxu0
  %v2032 = vpop.f32.mrb[0].mxu0
  %v2033 = vadd.f32 %v1753, %v2032
  %v2034 = vpop.f32.mrb[0].mxu0
  %2035 = vmatprep.mubr.bf16.mxu0 0
  %2036 = vmatmul.mubr.bf16.gmra.mrb[0].mxu0 %v1725
  %v2037 = vpop.f32.mrb[0].mxu0
  %v2038 = vadd.f32 %v1753, %v2037
  %v2039 = vpop.f32.mrb[0].mxu0
  %v2040 = vpop.f32.mrb[0].mxu0
  %v2041 = vadd.f32 %v1753, %v2040
  %v2042 = vpop.f32.mrb[0].mxu0
  %2043 = vmatprep.mubr.bf16.mxu0 0
  %2044 = vmatmul.mubr.bf16.gmra.mrb[0].mxu0 %v1726
  %v2045 = vpop.f32.mrb[0].mxu0
  %v2046 = vadd.f32 %v1753, %v2045
  %v2047 = vpop.f32.mrb[0].mxu0
  %v2048 = vpop.f32.mrb[0].mxu0
  %v2049 = vadd.f32 %v1753, %v2048
  %v2050 = vpop.f32.mrb[0].mxu0
  %2051 = vmatprep.mubr.bf16.mxu0 0
  %2052 = vmatmul.mubr.bf16.gmra.mrb[0].mxu0 %v1727
  %v2053 = vpop.f32.mrb[0].mxu0
  %v2054 = vadd.f32 %v1753, %v2053
  %v2055 = vpop.f32.mrb[0].mxu0
  %v2056 = vpop.f32.mrb[0].mxu0
  %v2057 = vadd.f32 %v1753, %v2056
  %v2058 = vpop.f32.mrb[0].mxu0
  %2059 = vmatprep.mubr.bf16.mxu0 0
  %2060 = vmatmul.mubr.bf16.gmra.mrb[0].mxu0 %v1728
  %v2061 = vpop.f32.mrb[0].mxu0
  %v2062 = vadd.f32 %v1753, %v2061
  %v2063 = vpop.f32.mrb[0].mxu0
  %v2064 = vpop.f32.mrb[0].mxu0
  %v2065 = vadd.f32 %v1753, %v2064
  %v2066 = vpop.f32.mrb[0].mxu0
  %2067 = vmatprep.mubr.bf16.mxu0 0
  %2068 = vmatmul.mubr.bf16.gmra.mrb[0].mxu0 %v1729
  %v2069 = vpop.f32.mrb[0].mxu0
  %v2070 = vadd.f32 %v1753, %v2069
  %v2071 = vpop.f32.mrb[0].mxu0
  %v2072 = vpop.f32.mrb[0].mxu0
  %v2073 = vadd.f32 %v1753, %v2072
  %v2074 = vpop.f32.mrb[0].mxu0
  %2075 = vmatprep.mubr.bf16.mxu0 0
  %2076 = vmatmul.mubr.bf16.gmra.mrb[0].mxu0 %v1730
  %v2077 = vpop.f32.mrb[0].mxu0
  %v2078 = vadd.f32 %v1753, %v2077
  %v2079 = vpop.f32.mrb[0].mxu0
  %v2080 = vpop.f32.mrb[0].mxu0
  %v2081 = vadd.f32 %v1753, %v2080
  %v2082 = vpop.f32.mrb[0].mxu0
  %2083 = vmatprep.mubr.bf16.mxu0 0
  %2084 = vmatmul.mubr.bf16.gmra.mrb[0].mxu0 %v1731
  %v2085 = vpop.f32.mrb[0].mxu0
  %v2086 = vadd.f32 %v1753, %v2085
  %v2087 = vpop.f32.mrb[0].mxu0
  %v2088 = vpop.f32.mrb[0].mxu0
  %v2089 = vadd.f32 %v1753, %v2088
  %v2090 = vpop.f32.mrb[0].mxu0
  %2091 = vdwg.mxu0
  %v2092 = vmax.f32 %v1838, 0.0
  %v2093 = vmax.f32 %v1841, 0.0
  %v2094 = vmax.f32 %v1846, 0.0
  %v2095 = vmax.f32 %v1849, 0.0
  %v2096 = vmax.f32 %v1854, 0.0
  %v2097 = vmax.f32 %v1857, 0.0
  %v2098 = vmax.f32 %v1862, 0.0
  %v2099 = vmax.f32 %v1865, 0.0
  %v2100 = vmax.f32 %v1870, 0.0
  %v2101 = vmax.f32 %v1873, 0.0
  %v2102 = vmax.f32 %v1878, 0.0
  %v2103 = vmax.f32 %v1881, 0.0
  %v2104 = vmax.f32 %v1886, 0.0
  %v2105 = vmax.f32 %v1889, 0.0
  %v2106 = vmax.f32 %v1894, 0.0
  %v2107 = vmax.f32 %v1897, 0.0
  %v2108 = vmax.f32 %v1902, 0.0
  %v2109 = vmax.f32 %v1905, 0.0
  %v2110 = vmax.f32 %v1910, 0.0
  %v2111 = vmax.f32 %v1913, 0.0
  %v2112 = vmax.f32 %v1918, 0.0
  %v2113 = vmax.f32 %v1921, 0.0
  %v2114 = vmax.f32 %v1926, 0.0
  %v2115 = vmax.f32 %v1929, 0.0
  %v2116 = vmax.f32 %v1934, 0.0
  %v2117 = vmax.f32 %v1937, 0.0
  %v2118 = vmax.f32 %v1942, 0.0
  %v2119 = vmax.f32 %v1945, 0.0
  %v2120 = vmax.f32 %v1950, 0.0
  %v2121 = vmax.f32 %v1953, 0.0
  %v2122 = vmax.f32 %v1958, 0.0
  %v2123 = vmax.f32 %v1961, 0.0
  %v2124 = vmax.f32 %v1966, 0.0
  %v2125 = vmax.f32 %v1969, 0.0
  %v2126 = vmax.f32 %v1974, 0.0
  %v2127 = vmax.f32 %v1977, 0.0
  %v2128 = vmax.f32 %v1982, 0.0
  %v2129 = vmax.f32 %v1985, 0.0
  %v2130 = vmax.f32 %v1990, 0.0
  %v2131 = vmax.f32 %v1993, 0.0
  %v2132 = vmax.f32 %v1998, 0.0
  %v2133 = vmax.f32 %v2001, 0.0
  %v2134 = vmax.f32 %v2006, 0.0
  %v2135 = vmax.f32 %v2009, 0.0
  %v2136 = vmax.f32 %v2014, 0.0
  %v2137 = vmax.f32 %v2017, 0.0
  %v2138 = vmax.f32 %v2022, 0.0
  %v2139 = vmax.f32 %v2025, 0.0
  %v2140 = vmax.f32 %v2030, 0.0
  %v2141 = vmax.f32 %v2033, 0.0
  %v2142 = vmax.f32 %v2038, 0.0
  %v2143 = vmax.f32 %v2041, 0.0
  %v2144 = vmax.f32 %v2046, 0.0
  %v2145 = vmax.f32 %v2049, 0.0
  %v2146 = vmax.f32 %v2054, 0.0
  %v2147 = vmax.f32 %v2057, 0.0
  %v2148 = vmax.f32 %v2062, 0.0
  %v2149 = vmax.f32 %v2065, 0.0
  %v2150 = vmax.f32 %v2070, 0.0
  %v2151 = vmax.f32 %v2073, 0.0
  %v2152 = vmax.f32 %v2078, 0.0
  %v2153 = vmax.f32 %v2081, 0.0
  %v2154 = vmax.f32 %v2086, 0.0
  %v2155 = vmax.f32 %v2089, 0.0
  %v2156 = vpack.c.bf16 %v2093, %v2092
  %v2157 = vpack.c.bf16 %v2095, %v2094
  %v2158 = vpack.c.bf16 %v2097, %v2096
  %v2159 = vpack.c.bf16 %v2099, %v2098
  %v2160 = vpack.c.bf16 %v2101, %v2100
  %v2161 = vpack.c.bf16 %v2103, %v2102
  %v2162 = vpack.c.bf16 %v2105, %v2104
  %v2163 = vpack.c.bf16 %v2107, %v2106
  %v2164 = vpack.c.bf16 %v2109, %v2108
  %v2165 = vpack.c.bf16 %v2111, %v2110
  %v2166 = vpack.c.bf16 %v2113, %v2112
  %v2167 = vpack.c.bf16 %v2115, %v2114
  %v2168 = vpack.c.bf16 %v2117, %v2116
  %v2169 = vpack.c.bf16 %v2119, %v2118
  %v2170 = vpack.c.bf16 %v2121, %v2120
  %v2171 = vpack.c.bf16 %v2123, %v2122
  %v2172 = vpack.c.bf16 %v2125, %v2124
  %v2173 = vpack.c.bf16 %v2127, %v2126
  %v2174 = vpack.c.bf16 %v2129, %v2128
  %v2175 = vpack.c.bf16 %v2131, %v2130
  %v2176 = vpack.c.bf16 %v2133, %v2132
  %v2177 = vpack.c.bf16 %v2135, %v2134
  %v2178 = vpack.c.bf16 %v2137, %v2136
  %v2179 = vpack.c.bf16 %v2139, %v2138
  %v2180 = vpack.c.bf16 %v2141, %v2140
  %v2181 = vpack.c.bf16 %v2143, %v2142
  %v2182 = vpack.c.bf16 %v2145, %v2144
  %v2183 = vpack.c.bf16 %v2147, %v2146
  %v2184 = vpack.c.bf16 %v2149, %v2148
  %v2185 = vpack.c.bf16 %v2151, %v2150
  %v2186 = vpack.c.bf16 %v2153, %v2152
  %v2187 = vpack.c.bf16 %v2155, %v2154
  %v2188 = vld [vmem:[%s5] sm:$0xf]
  %v2189 = vld [vmem:[%s5 + $0x4] sm:$0xf]
  %v2190 = vld [vmem:[%s5 + $0x8] sm:$0xf]
  %v2191 = vld [vmem:[%s5 + $0xc] sm:$0xf]
  %v2192 = vld [vmem:[%s5 + $0x10] sm:$0xf]
  %v2193 = vld [vmem:[%s5 + $0x14] sm:$0xf]
  %v2194 = vld [vmem:[%s5 + $0x18] sm:$0xf]
  %v2195 = vld [vmem:[%s5 + $0x1c] sm:$0xf]
  %v2196 = vld [vmem:[%s5 + $0x20] sm:$0xf]
  %v2197 = vld [vmem:[%s5 + $0x24] sm:$0xf]
  %v2198 = vld [vmem:[%s5 + $0x28] sm:$0xf]
  %v2199 = vld [vmem:[%s5 + $0x2c] sm:$0xf]
  %v2200 = vld [vmem:[%s5 + $0x30] sm:$0xf]
  %v2201 = vld [vmem:[%s5 + $0x34] sm:$0xf]
  %v2202 = vld [vmem:[%s5 + $0x38] sm:$0xf]
  %v2203 = vld [vmem:[%s5 + $0x3c] sm:$0xf]
  %v2204 = vld [vmem:[%s6] sm:$0x1]
  %v2206 = vlaneseq
  %v2207 = vshrl.u32 %v2206, 7
  %v2208 = vsub.s32 0, %v2207
  %v2209 = vrot.slane %v2204, %v2208
  %v2227 = vunpack.c.l.b16 %v2188
  %v2228 = vunpack.c.l.b16 %v2189
  %v2229 = vunpack.c.l.b16 %v2190
  %v2230 = vunpack.c.l.b16 %v2191
  %v2231 = vunpack.c.l.b16 %v2192
  %v2232 = vunpack.c.l.b16 %v2193
  %v2233 = vunpack.c.l.b16 %v2194
  %v2234 = vunpack.c.l.b16 %v2195
  %v2235 = vunpack.c.l.b16 %v2196
  %v2236 = vunpack.c.l.b16 %v2197
  %v2237 = vunpack.c.l.b16 %v2198
  %v2238 = vunpack.c.l.b16 %v2199
  %v2239 = vunpack.c.l.b16 %v2200
  %v2240 = vunpack.c.l.b16 %v2201
  %v2241 = vunpack.c.l.b16 %v2202
  %v2242 = vunpack.c.l.b16 %v2203
  %v2243 = vpack.c.b16 %v2228, %v2227
  %v2244 = vpack.c.b16 %v2230, %v2229
  %v2245 = vpack.c.b16 %v2232, %v2231
  %v2246 = vpack.c.b16 %v2234, %v2233
  %v2247 = vpack.c.b16 %v2236, %v2235
  %v2248 = vpack.c.b16 %v2238, %v2237
  %v2249 = vpack.c.b16 %v2240, %v2239
  %v2250 = vpack.c.b16 %v2242, %v2241
  %2259 = vmatprep.subr.bf16.mxu0 0
  %2260 = vmatpush1.bf16.msra.mxu0 %v2243
  %2261 = vmatprep.subr.bf16.mxu0 0
  %2262 = vmatpush1.bf16.msra.mxu0 %v2244
  %2263 = vmatprep.subr.bf16.mxu0 0
  %2264 = vmatpush1.bf16.msra.mxu0 %v2245
  %2265 = vmatprep.subr.bf16.mxu0 0
  %2266 = vmatpush1.bf16.msra.mxu0 %v2246
  %2267 = vmatprep.subr.bf16.mxu0 0
  %2268 = vmatpush1.bf16.msra.mxu0 %v2247
  %2269 = vmatprep.subr.bf16.mxu0 0
  %2270 = vmatpush1.bf16.msra.mxu0 %v2248
  %2271 = vmatprep.subr.bf16.mxu0 0
  %2272 = vmatpush1.bf16.msra.mxu0 %v2249
  %2273 = vmatprep.subr.bf16.mxu0 0
  %2274 = vmatpush1.bf16.msra.mxu0 %v2250
  %2275 = vmatprep.subr.bf16.mxu0 0
  %2276 = vmatpush1.bf16.msra.mxu0 0
  %2277 = vmatprep.subr.bf16.mxu0 0
  %2278 = vmatpush1.bf16.msra.mxu0 0
  %2279 = vmatprep.subr.bf16.mxu0 0
  %2280 = vmatpush1.bf16.msra.mxu0 0
  %2281 = vmatprep.subr.bf16.mxu0 0
  %2282 = vmatpush1.bf16.msra.mxu0 0
  %2283 = vmatprep.subr.bf16.mxu0 0
  %2284 = vmatpush1.bf16.msra.mxu0 0
  %2285 = vmatprep.subr.bf16.mxu0 0
  %2286 = vmatpush1.bf16.msra.mxu0 0
  %2287 = vmatprep.subr.bf16.mxu0 0
  %2288 = vmatpush1.bf16.msra.mxu0 0
  %2289 = vmatprep.subr.bf16.mxu0 0
  %2290 = vmatpush1.bf16.msra.mxu0 0
  %2291 = vmatprep.mubr.bf16.mxu0 0
  %2292 = vmatmul.mubr.bf16.gmra.mrb[0].mxu0 %v2156
  %v2293 = vpop.f32.mrb[0].mxu0
  %v2294 = vadd.f32 %v2209, %v2293
  %v2295 = vpop.f32.mrb[0].mxu0
  %v2296 = vpop.f32.mrb[0].mxu0
  %v2297 = vadd.f32 %v2209, %v2296
  %v2298 = vpop.f32.mrb[0].mxu0
  %2299 = vmatprep.mubr.bf16.mxu0 0
  %2300 = vmatmul.mubr.bf16.gmra.mrb[0].mxu0 %v2157
  %v2301 = vpop.f32.mrb[0].mxu0
  %v2302 = vadd.f32 %v2209, %v2301
  %v2303 = vpop.f32.mrb[0].mxu0
  %v2304 = vpop.f32.mrb[0].mxu0
  %v2305 = vadd.f32 %v2209, %v2304
  %v2306 = vpop.f32.mrb[0].mxu0
  %2307 = vmatprep.mubr.bf16.mxu0 0
  %2308 = vmatmul.mubr.bf16.gmra.mrb[0].mxu0 %v2158
  %v2309 = vpop.f32.mrb[0].mxu0
  %v2310 = vadd.f32 %v2209, %v2309
  %v2311 = vpop.f32.mrb[0].mxu0
  %v2312 = vpop.f32.mrb[0].mxu0
  %v2313 = vadd.f32 %v2209, %v2312
  %v2314 = vpop.f32.mrb[0].mxu0
  %2315 = vmatprep.mubr.bf16.mxu0 0
  %2316 = vmatmul.mubr.bf16.gmra.mrb[0].mxu0 %v2159
  %v2317 = vpop.f32.mrb[0].mxu0
  %v2318 = vadd.f32 %v2209, %v2317
  %v2319 = vpop.f32.mrb[0].mxu0
  %v2320 = vpop.f32.mrb[0].mxu0
  %v2321 = vadd.f32 %v2209, %v2320
  %v2322 = vpop.f32.mrb[0].mxu0
  %2323 = vmatprep.mubr.bf16.mxu0 0
  %2324 = vmatmul.mubr.bf16.gmra.mrb[0].mxu0 %v2160
  %v2325 = vpop.f32.mrb[0].mxu0
  %v2326 = vadd.f32 %v2209, %v2325
  %v2327 = vpop.f32.mrb[0].mxu0
  %v2328 = vpop.f32.mrb[0].mxu0
  %v2329 = vadd.f32 %v2209, %v2328
  %v2330 = vpop.f32.mrb[0].mxu0
  %2331 = vmatprep.mubr.bf16.mxu0 0
  %2332 = vmatmul.mubr.bf16.gmra.mrb[0].mxu0 %v2161
  %v2333 = vpop.f32.mrb[0].mxu0
  %v2334 = vadd.f32 %v2209, %v2333
  %v2335 = vpop.f32.mrb[0].mxu0
  %v2336 = vpop.f32.mrb[0].mxu0
  %v2337 = vadd.f32 %v2209, %v2336
  %v2338 = vpop.f32.mrb[0].mxu0
  %2339 = vmatprep.mubr.bf16.mxu0 0
  %2340 = vmatmul.mubr.bf16.gmra.mrb[0].mxu0 %v2162
  %v2341 = vpop.f32.mrb[0].mxu0
  %v2342 = vadd.f32 %v2209, %v2341
  %v2343 = vpop.f32.mrb[0].mxu0
  %v2344 = vpop.f32.mrb[0].mxu0
  %v2345 = vadd.f32 %v2209, %v2344
  %v2346 = vpop.f32.mrb[0].mxu0
  %2347 = vmatprep.mubr.bf16.mxu0 0
  %2348 = vmatmul.mubr.bf16.gmra.mrb[0].mxu0 %v2163
  %v2349 = vpop.f32.mrb[0].mxu0
  %v2350 = vadd.f32 %v2209, %v2349
  %v2351 = vpop.f32.mrb[0].mxu0
  %v2352 = vpop.f32.mrb[0].mxu0
  %v2353 = vadd.f32 %v2209, %v2352
  %v2354 = vpop.f32.mrb[0].mxu0
  %2355 = vmatprep.mubr.bf16.mxu0 0
  %2356 = vmatmul.mubr.bf16.gmra.mrb[0].mxu0 %v2164
  %v2357 = vpop.f32.mrb[0].mxu0
  %v2358 = vadd.f32 %v2209, %v2357
  %v2359 = vpop.f32.mrb[0].mxu0
  %v2360 = vpop.f32.mrb[0].mxu0
  %v2361 = vadd.f32 %v2209, %v2360
  %v2362 = vpop.f32.mrb[0].mxu0
  %2363 = vmatprep.mubr.bf16.mxu0 0
  %2364 = vmatmul.mubr.bf16.gmra.mrb[0].mxu0 %v2165
  %v2365 = vpop.f32.mrb[0].mxu0
  %v2366 = vadd.f32 %v2209, %v2365
  %v2367 = vpop.f32.mrb[0].mxu0
  %v2368 = vpop.f32.mrb[0].mxu0
  %v2369 = vadd.f32 %v2209, %v2368
  %v2370 = vpop.f32.mrb[0].mxu0
  %2371 = vmatprep.mubr.bf16.mxu0 0
  %2372 = vmatmul.mubr.bf16.gmra.mrb[0].mxu0 %v2166
  %v2373 = vpop.f32.mrb[0].mxu0
  %v2374 = vadd.f32 %v2209, %v2373
  %v2375 = vpop.f32.mrb[0].mxu0
  %v2376 = vpop.f32.mrb[0].mxu0
  %v2377 = vadd.f32 %v2209, %v2376
  %v2378 = vpop.f32.mrb[0].mxu0
  %2379 = vmatprep.mubr.bf16.mxu0 0
  %2380 = vmatmul.mubr.bf16.gmra.mrb[0].mxu0 %v2167
  %v2381 = vpop.f32.mrb[0].mxu0
  %v2382 = vadd.f32 %v2209, %v2381
  %v2383 = vpop.f32.mrb[0].mxu0
  %v2384 = vpop.f32.mrb[0].mxu0
  %v2385 = vadd.f32 %v2209, %v2384
  %v2386 = vpop.f32.mrb[0].mxu0
  %2387 = vmatprep.mubr.bf16.mxu0 0
  %2388 = vmatmul.mubr.bf16.gmra.mrb[0].mxu0 %v2168
  %v2389 = vpop.f32.mrb[0].mxu0
  %v2390 = vadd.f32 %v2209, %v2389
  %v2391 = vpop.f32.mrb[0].mxu0
  %v2392 = vpop.f32.mrb[0].mxu0
  %v2393 = vadd.f32 %v2209, %v2392
  %v2394 = vpop.f32.mrb[0].mxu0
  %2395 = vmatprep.mubr.bf16.mxu0 0
  %2396 = vmatmul.mubr.bf16.gmra.mrb[0].mxu0 %v2169
  %v2397 = vpop.f32.mrb[0].mxu0
  %v2398 = vadd.f32 %v2209, %v2397
  %v2399 = vpop.f32.mrb[0].mxu0
  %v2400 = vpop.f32.mrb[0].mxu0
  %v2401 = vadd.f32 %v2209, %v2400
  %v2402 = vpop.f32.mrb[0].mxu0
  %2403 = vmatprep.mubr.bf16.mxu0 0
  %2404 = vmatmul.mubr.bf16.gmra.mrb[0].mxu0 %v2170
  %v2405 = vpop.f32.mrb[0].mxu0
  %v2406 = vadd.f32 %v2209, %v2405
  %v2407 = vpop.f32.mrb[0].mxu0
  %v2408 = vpop.f32.mrb[0].mxu0
  %v2409 = vadd.f32 %v2209, %v2408
  %v2410 = vpop.f32.mrb[0].mxu0
  %2411 = vmatprep.mubr.bf16.mxu0 0
  %2412 = vmatmul.mubr.bf16.gmra.mrb[0].mxu0 %v2171
  %v2413 = vpop.f32.mrb[0].mxu0
  %v2414 = vadd.f32 %v2209, %v2413
  %v2415 = vpop.f32.mrb[0].mxu0
  %v2416 = vpop.f32.mrb[0].mxu0
  %v2417 = vadd.f32 %v2209, %v2416
  %v2418 = vpop.f32.mrb[0].mxu0
  %2419 = vmatprep.mubr.bf16.mxu0 0
  %2420 = vmatmul.mubr.bf16.gmra.mrb[0].mxu0 %v2172
  %v2421 = vpop.f32.mrb[0].mxu0
  %v2422 = vadd.f32 %v2209, %v2421
  %v2423 = vpop.f32.mrb[0].mxu0
  %v2424 = vpop.f32.mrb[0].mxu0
  %v2425 = vadd.f32 %v2209, %v2424
  %v2426 = vpop.f32.mrb[0].mxu0
  %2427 = vmatprep.mubr.bf16.mxu0 0
  %2428 = vmatmul.mubr.bf16.gmra.mrb[0].mxu0 %v2173
  %v2429 = vpop.f32.mrb[0].mxu0
  %v2430 = vadd.f32 %v2209, %v2429
  %v2431 = vpop.f32.mrb[0].mxu0
  %v2432 = vpop.f32.mrb[0].mxu0
  %v2433 = vadd.f32 %v2209, %v2432
  %v2434 = vpop.f32.mrb[0].mxu0
  %2435 = vmatprep.mubr.bf16.mxu0 0
  %2436 = vmatmul.mubr.bf16.gmra.mrb[0].mxu0 %v2174
  %v2437 = vpop.f32.mrb[0].mxu0
  %v2438 = vadd.f32 %v2209, %v2437
  %v2439 = vpop.f32.mrb[0].mxu0
  %v2440 = vpop.f32.mrb[0].mxu0
  %v2441 = vadd.f32 %v2209, %v2440
  %v2442 = vpop.f32.mrb[0].mxu0
  %2443 = vmatprep.mubr.bf16.mxu0 0
  %2444 = vmatmul.mubr.bf16.gmra.mrb[0].mxu0 %v2175
  %v2445 = vpop.f32.mrb[0].mxu0
  %v2446 = vadd.f32 %v2209, %v2445
  %v2447 = vpop.f32.mrb[0].mxu0
  %v2448 = vpop.f32.mrb[0].mxu0
  %v2449 = vadd.f32 %v2209, %v2448
  %v2450 = vpop.f32.mrb[0].mxu0
  %2451 = vmatprep.mubr.bf16.mxu0 0
  %2452 = vmatmul.mubr.bf16.gmra.mrb[0].mxu0 %v2176
  %v2453 = vpop.f32.mrb[0].mxu0
  %v2454 = vadd.f32 %v2209, %v2453
  %v2455 = vpop.f32.mrb[0].mxu0
  %v2456 = vpop.f32.mrb[0].mxu0
  %v2457 = vadd.f32 %v2209, %v2456
  %v2458 = vpop.f32.mrb[0].mxu0
  %2459 = vmatprep.mubr.bf16.mxu0 0
  %2460 = vmatmul.mubr.bf16.gmra.mrb[0].mxu0 %v2177
  %v2461 = vpop.f32.mrb[0].mxu0
  %v2462 = vadd.f32 %v2209, %v2461
  %v2463 = vpop.f32.mrb[0].mxu0
  %v2464 = vpop.f32.mrb[0].mxu0
  %v2465 = vadd.f32 %v2209, %v2464
  %v2466 = vpop.f32.mrb[0].mxu0
  %2467 = vmatprep.mubr.bf16.mxu0 0
  %2468 = vmatmul.mubr.bf16.gmra.mrb[0].mxu0 %v2178
  %v2469 = vpop.f32.mrb[0].mxu0
  %v2470 = vadd.f32 %v2209, %v2469
  %v2471 = vpop.f32.mrb[0].mxu0
  %v2472 = vpop.f32.mrb[0].mxu0
  %v2473 = vadd.f32 %v2209, %v2472
  %v2474 = vpop.f32.mrb[0].mxu0
  %2475 = vmatprep.mubr.bf16.mxu0 0
  %2476 = vmatmul.mubr.bf16.gmra.mrb[0].mxu0 %v2179
  %v2477 = vpop.f32.mrb[0].mxu0
  %v2478 = vadd.f32 %v2209, %v2477
  %v2479 = vpop.f32.mrb[0].mxu0
  %v2480 = vpop.f32.mrb[0].mxu0
  %v2481 = vadd.f32 %v2209, %v2480
  %v2482 = vpop.f32.mrb[0].mxu0
  %2483 = vmatprep.mubr.bf16.mxu0 0
  %2484 = vmatmul.mubr.bf16.gmra.mrb[0].mxu0 %v2180
  %v2485 = vpop.f32.mrb[0].mxu0
  %v2486 = vadd.f32 %v2209, %v2485
  %v2487 = vpop.f32.mrb[0].mxu0
  %v2488 = vpop.f32.mrb[0].mxu0
  %v2489 = vadd.f32 %v2209, %v2488
  %v2490 = vpop.f32.mrb[0].mxu0
  %2491 = vmatprep.mubr.bf16.mxu0 0
  %2492 = vmatmul.mubr.bf16.gmra.mrb[0].mxu0 %v2181
  %v2493 = vpop.f32.mrb[0].mxu0
  %v2494 = vadd.f32 %v2209, %v2493
  %v2495 = vpop.f32.mrb[0].mxu0
  %v2496 = vpop.f32.mrb[0].mxu0
  %v2497 = vadd.f32 %v2209, %v2496
  %v2498 = vpop.f32.mrb[0].mxu0
  %2499 = vmatprep.mubr.bf16.mxu0 0
  %2500 = vmatmul.mubr.bf16.gmra.mrb[0].mxu0 %v2182
  %v2501 = vpop.f32.mrb[0].mxu0
  %v2502 = vadd.f32 %v2209, %v2501
  %v2503 = vpop.f32.mrb[0].mxu0
  %v2504 = vpop.f32.mrb[0].mxu0
  %v2505 = vadd.f32 %v2209, %v2504
  %v2506 = vpop.f32.mrb[0].mxu0
  %2507 = vmatprep.mubr.bf16.mxu0 0
  %2508 = vmatmul.mubr.bf16.gmra.mrb[0].mxu0 %v2183
  %v2509 = vpop.f32.mrb[0].mxu0
  %v2510 = vadd.f32 %v2209, %v2509
  %v2511 = vpop.f32.mrb[0].mxu0
  %v2512 = vpop.f32.mrb[0].mxu0
  %v2513 = vadd.f32 %v2209, %v2512
  %v2514 = vpop.f32.mrb[0].mxu0
  %2515 = vmatprep.mubr.bf16.mxu0 0
  %2516 = vmatmul.mubr.bf16.gmra.mrb[0].mxu0 %v2184
  %v2517 = vpop.f32.mrb[0].mxu0
  %v2518 = vadd.f32 %v2209, %v2517
  %v2519 = vpop.f32.mrb[0].mxu0
  %v2520 = vpop.f32.mrb[0].mxu0
  %v2521 = vadd.f32 %v2209, %v2520
  %v2522 = vpop.f32.mrb[0].mxu0
  %2523 = vmatprep.mubr.bf16.mxu0 0
  %2524 = vmatmul.mubr.bf16.gmra.mrb[0].mxu0 %v2185
  %v2525 = vpop.f32.mrb[0].mxu0
  %v2526 = vadd.f32 %v2209, %v2525
  %v2527 = vpop.f32.mrb[0].mxu0
  %v2528 = vpop.f32.mrb[0].mxu0
  %v2529 = vadd.f32 %v2209, %v2528
  %v2530 = vpop.f32.mrb[0].mxu0
  %2531 = vmatprep.mubr.bf16.mxu0 0
  %2532 = vmatmul.mubr.bf16.gmra.mrb[0].mxu0 %v2186
  %v2533 = vpop.f32.mrb[0].mxu0
  %v2534 = vadd.f32 %v2209, %v2533
  %v2535 = vpop.f32.mrb[0].mxu0
  %v2536 = vpop.f32.mrb[0].mxu0
  %v2537 = vadd.f32 %v2209, %v2536
  %v2538 = vpop.f32.mrb[0].mxu0
  %2539 = vmatprep.mubr.bf16.mxu0 0
  %2540 = vmatmul.mubr.bf16.gmra.mrb[0].mxu0 %v2187
  %v2541 = vpop.f32.mrb[0].mxu0
  %v2542 = vadd.f32 %v2209, %v2541
  %v2543 = vpop.f32.mrb[0].mxu0
  %v2544 = vpop.f32.mrb[0].mxu0
  %v2545 = vadd.f32 %v2209, %v2544
  %v2546 = vpop.f32.mrb[0].mxu0
  %2547 = vdwg.mxu0
  %v2548 = vmax.f32 %v2294, 0.0
  %v2549 = vmax.f32 %v2297, 0.0
  %v2550 = vmax.f32 %v2302, 0.0
  %v2551 = vmax.f32 %v2305, 0.0
  %v2552 = vmax.f32 %v2310, 0.0
  %v2553 = vmax.f32 %v2313, 0.0
  %v2554 = vmax.f32 %v2318, 0.0
  %v2555 = vmax.f32 %v2321, 0.0
  %v2556 = vmax.f32 %v2326, 0.0
  %v2557 = vmax.f32 %v2329, 0.0
  %v2558 = vmax.f32 %v2334, 0.0
  %v2559 = vmax.f32 %v2337, 0.0
  %v2560 = vmax.f32 %v2342, 0.0
  %v2561 = vmax.f32 %v2345, 0.0
  %v2562 = vmax.f32 %v2350, 0.0
  %v2563 = vmax.f32 %v2353, 0.0
  %v2564 = vmax.f32 %v2358, 0.0
  %v2565 = vmax.f32 %v2361, 0.0
  %v2566 = vmax.f32 %v2366, 0.0
  %v2567 = vmax.f32 %v2369, 0.0
  %v2568 = vmax.f32 %v2374, 0.0
  %v2569 = vmax.f32 %v2377, 0.0
  %v2570 = vmax.f32 %v2382, 0.0
  %v2571 = vmax.f32 %v2385, 0.0
  %v2572 = vmax.f32 %v2390, 0.0
  %v2573 = vmax.f32 %v2393, 0.0
  %v2574 = vmax.f32 %v2398, 0.0
  %v2575 = vmax.f32 %v2401, 0.0
  %v2576 = vmax.f32 %v2406, 0.0
  %v2577 = vmax.f32 %v2409, 0.0
  %v2578 = vmax.f32 %v2414, 0.0
  %v2579 = vmax.f32 %v2417, 0.0
  %v2580 = vmax.f32 %v2422, 0.0
  %v2581 = vmax.f32 %v2425, 0.0
  %v2582 = vmax.f32 %v2430, 0.0
  %v2583 = vmax.f32 %v2433, 0.0
  %v2584 = vmax.f32 %v2438, 0.0
  %v2585 = vmax.f32 %v2441, 0.0
  %v2586 = vmax.f32 %v2446, 0.0
  %v2587 = vmax.f32 %v2449, 0.0
  %v2588 = vmax.f32 %v2454, 0.0
  %v2589 = vmax.f32 %v2457, 0.0
  %v2590 = vmax.f32 %v2462, 0.0
  %v2591 = vmax.f32 %v2465, 0.0
  %v2592 = vmax.f32 %v2470, 0.0
  %v2593 = vmax.f32 %v2473, 0.0
  %v2594 = vmax.f32 %v2478, 0.0
  %v2595 = vmax.f32 %v2481, 0.0
  %v2596 = vmax.f32 %v2486, 0.0
  %v2597 = vmax.f32 %v2489, 0.0
  %v2598 = vmax.f32 %v2494, 0.0
  %v2599 = vmax.f32 %v2497, 0.0
  %v2600 = vmax.f32 %v2502, 0.0
  %v2601 = vmax.f32 %v2505, 0.0
  %v2602 = vmax.f32 %v2510, 0.0
  %v2603 = vmax.f32 %v2513, 0.0
  %v2604 = vmax.f32 %v2518, 0.0
  %v2605 = vmax.f32 %v2521, 0.0
  %v2606 = vmax.f32 %v2526, 0.0
  %v2607 = vmax.f32 %v2529, 0.0
  %v2608 = vmax.f32 %v2534, 0.0
  %v2609 = vmax.f32 %v2537, 0.0
  %v2610 = vmax.f32 %v2542, 0.0
  %v2611 = vmax.f32 %v2545, 0.0
  %v2612 = vpack.c.bf16 %v2549, %v2548
  %v2613 = vpack.c.bf16 %v2551, %v2550
  %v2614 = vpack.c.bf16 %v2553, %v2552
  %v2615 = vpack.c.bf16 %v2555, %v2554
  %v2616 = vpack.c.bf16 %v2557, %v2556
  %v2617 = vpack.c.bf16 %v2559, %v2558
  %v2618 = vpack.c.bf16 %v2561, %v2560
  %v2619 = vpack.c.bf16 %v2563, %v2562
  %v2620 = vpack.c.bf16 %v2565, %v2564
  %v2621 = vpack.c.bf16 %v2567, %v2566
  %v2622 = vpack.c.bf16 %v2569, %v2568
  %v2623 = vpack.c.bf16 %v2571, %v2570
  %v2624 = vpack.c.bf16 %v2573, %v2572
  %v2625 = vpack.c.bf16 %v2575, %v2574
  %v2626 = vpack.c.bf16 %v2577, %v2576
  %v2627 = vpack.c.bf16 %v2579, %v2578
  %v2628 = vpack.c.bf16 %v2581, %v2580
  %v2629 = vpack.c.bf16 %v2583, %v2582
  %v2630 = vpack.c.bf16 %v2585, %v2584
  %v2631 = vpack.c.bf16 %v2587, %v2586
  %v2632 = vpack.c.bf16 %v2589, %v2588
  %v2633 = vpack.c.bf16 %v2591, %v2590
  %v2634 = vpack.c.bf16 %v2593, %v2592
  %v2635 = vpack.c.bf16 %v2595, %v2594
  %v2636 = vpack.c.bf16 %v2597, %v2596
  %v2637 = vpack.c.bf16 %v2599, %v2598
  %v2638 = vpack.c.bf16 %v2601, %v2600
  %v2639 = vpack.c.bf16 %v2603, %v2602
  %v2640 = vpack.c.bf16 %v2605, %v2604
  %v2641 = vpack.c.bf16 %v2607, %v2606
  %v2642 = vpack.c.bf16 %v2609, %v2608
  %v2643 = vpack.c.bf16 %v2611, %v2610
  %v2676 = vunpack.c.l.b16 %v2612
  %v2677 = vunpack.c.h.b16 %v2612
  %v2678 = vunpack.c.l.b16 %v2613
  %v2679 = vunpack.c.h.b16 %v2613
  %v2680 = vunpack.c.l.b16 %v2614
  %v2681 = vunpack.c.h.b16 %v2614
  %v2682 = vunpack.c.l.b16 %v2615
  %v2683 = vunpack.c.h.b16 %v2615
  %v2684 = vunpack.c.l.b16 %v2616
  %v2685 = vunpack.c.h.b16 %v2616
  %v2686 = vunpack.c.l.b16 %v2617
  %v2687 = vunpack.c.h.b16 %v2617
  %v2688 = vunpack.c.l.b16 %v2618
  %v2689 = vunpack.c.h.b16 %v2618
  %v2690 = vunpack.c.l.b16 %v2619
  %v2691 = vunpack.c.h.b16 %v2619
  %v2692 = vunpack.c.l.b16 %v2620
  %v2693 = vunpack.c.h.b16 %v2620
  %v2694 = vunpack.c.l.b16 %v2621
  %v2695 = vunpack.c.h.b16 %v2621
  %v2696 = vunpack.c.l.b16 %v2622
  %v2697 = vunpack.c.h.b16 %v2622
  %v2698 = vunpack.c.l.b16 %v2623
  %v2699 = vunpack.c.h.b16 %v2623
  %v2700 = vunpack.c.l.b16 %v2624
  %v2701 = vunpack.c.h.b16 %v2624
  %v2702 = vunpack.c.l.b16 %v2625
  %v2703 = vunpack.c.h.b16 %v2625
  %v2704 = vunpack.c.l.b16 %v2626
  %v2705 = vunpack.c.h.b16 %v2626
  %v2706 = vunpack.c.l.b16 %v2627
  %v2707 = vunpack.c.h.b16 %v2627
  %v2708 = vunpack.c.l.b16 %v2628
  %v2709 = vunpack.c.h.b16 %v2628
  %v2710 = vunpack.c.l.b16 %v2629
  %v2711 = vunpack.c.h.b16 %v2629
  %v2712 = vunpack.c.l.b16 %v2630
  %v2713 = vunpack.c.h.b16 %v2630
  %v2714 = vunpack.c.l.b16 %v2631
  %v2715 = vunpack.c.h.b16 %v2631
  %v2716 = vunpack.c.l.b16 %v2632
  %v2717 = vunpack.c.h.b16 %v2632
  %v2718 = vunpack.c.l.b16 %v2633
  %v2719 = vunpack.c.h.b16 %v2633
  %v2720 = vunpack.c.l.b16 %v2634
  %v2721 = vunpack.c.h.b16 %v2634
  %v2722 = vunpack.c.l.b16 %v2635
  %v2723 = vunpack.c.h.b16 %v2635
  %v2724 = vunpack.c.l.b16 %v2636
  %v2725 = vunpack.c.h.b16 %v2636
  %v2726 = vunpack.c.l.b16 %v2637
  %v2727 = vunpack.c.h.b16 %v2637
  %v2728 = vunpack.c.l.b16 %v2638
  %v2729 = vunpack.c.h.b16 %v2638
  %v2730 = vunpack.c.l.b16 %v2639
  %v2731 = vunpack.c.h.b16 %v2639
  %v2732 = vunpack.c.l.b16 %v2640
  %v2733 = vunpack.c.h.b16 %v2640
  %v2734 = vunpack.c.l.b16 %v2641
  %v2735 = vunpack.c.h.b16 %v2641
  %v2736 = vunpack.c.l.b16 %v2642
  %v2737 = vunpack.c.h.b16 %v2642
  %v2738 = vunpack.c.l.b16 %v2643
  %v2739 = vunpack.c.h.b16 %v2643
  %v2740 = vpack.c.b16 %v2676, %v2676
  %v2741 = vpack.c.b16 %v2677, %v2677
  %v2742 = vpack.c.b16 %v2678, %v2678
  %v2743 = vpack.c.b16 %v2679, %v2679
  %v2744 = vpack.c.b16 %v2680, %v2680
  %v2745 = vpack.c.b16 %v2681, %v2681
  %v2746 = vpack.c.b16 %v2682, %v2682
  %v2747 = vpack.c.b16 %v2683, %v2683
  %v2748 = vpack.c.b16 %v2684, %v2684
  %v2749 = vpack.c.b16 %v2685, %v2685
  %v2750 = vpack.c.b16 %v2686, %v2686
  %v2751 = vpack.c.b16 %v2687, %v2687
  %v2752 = vpack.c.b16 %v2688, %v2688
  %v2753 = vpack.c.b16 %v2689, %v2689
  %v2754 = vpack.c.b16 %v2690, %v2690
  %v2755 = vpack.c.b16 %v2691, %v2691
  %v2756 = vpack.c.b16 %v2692, %v2692
  %v2757 = vpack.c.b16 %v2693, %v2693
  %v2758 = vpack.c.b16 %v2694, %v2694
  %v2759 = vpack.c.b16 %v2695, %v2695
  %v2760 = vpack.c.b16 %v2696, %v2696
  %v2761 = vpack.c.b16 %v2697, %v2697
  %v2762 = vpack.c.b16 %v2698, %v2698
  %v2763 = vpack.c.b16 %v2699, %v2699
  %v2764 = vpack.c.b16 %v2700, %v2700
  %v2765 = vpack.c.b16 %v2701, %v2701
  %v2766 = vpack.c.b16 %v2702, %v2702
  %v2767 = vpack.c.b16 %v2703, %v2703
  %v2768 = vpack.c.b16 %v2704, %v2704
  %v2769 = vpack.c.b16 %v2705, %v2705
  %v2770 = vpack.c.b16 %v2706, %v2706
  %v2771 = vpack.c.b16 %v2707, %v2707
  %v2772 = vpack.c.b16 %v2708, %v2708
  %v2773 = vpack.c.b16 %v2709, %v2709
  %v2774 = vpack.c.b16 %v2710, %v2710
  %v2775 = vpack.c.b16 %v2711, %v2711
  %v2776 = vpack.c.b16 %v2712, %v2712
  %v2777 = vpack.c.b16 %v2713, %v2713
  %v2778 = vpack.c.b16 %v2714, %v2714
  %v2779 = vpack.c.b16 %v2715, %v2715
  %v2780 = vpack.c.b16 %v2716, %v2716
  %v2781 = vpack.c.b16 %v2717, %v2717
  %v2782 = vpack.c.b16 %v2718, %v2718
  %v2783 = vpack.c.b16 %v2719, %v2719
  %v2784 = vpack.c.b16 %v2720, %v2720
  %v2785 = vpack.c.b16 %v2721, %v2721
  %v2786 = vpack.c.b16 %v2722, %v2722
  %v2787 = vpack.c.b16 %v2723, %v2723
  %v2788 = vpack.c.b16 %v2724, %v2724
  %v2789 = vpack.c.b16 %v2725, %v2725
  %v2790 = vpack.c.b16 %v2726, %v2726
  %v2791 = vpack.c.b16 %v2727, %v2727
  %v2792 = vpack.c.b16 %v2728, %v2728
  %v2793 = vpack.c.b16 %v2729, %v2729
  %v2794 = vpack.c.b16 %v2730, %v2730
  %v2795 = vpack.c.b16 %v2731, %v2731
  %v2796 = vpack.c.b16 %v2732, %v2732
  %v2797 = vpack.c.b16 %v2733, %v2733
  %v2798 = vpack.c.b16 %v2734, %v2734
  %v2799 = vpack.c.b16 %v2735, %v2735
  %v2800 = vpack.c.b16 %v2736, %v2736
  %v2801 = vpack.c.b16 %v2737, %v2737
  %v2802 = vpack.c.b16 %v2738, %v2738
  %v2803 = vpack.c.b16 %v2739, %v2739
  %2868 = vst [vmem:[%s7] sm:$0xf] %v2740
  %2869 = vst [vmem:[%s7 + $0x4] sm:$0xf] %v2741
  %2870 = vst [vmem:[%s7 + $0x8] sm:$0xf] %v2742
  %2871 = vst [vmem:[%s7 + $0xc] sm:$0xf] %v2743
  %2872 = vst [vmem:[%s7 + $0x10] sm:$0xf] %v2744
  %2873 = vst [vmem:[%s7 + $0x14] sm:$0xf] %v2745
  %2874 = vst [vmem:[%s7 + $0x18] sm:$0xf] %v2746
  %2875 = vst [vmem:[%s7 + $0x1c] sm:$0xf] %v2747
  %2876 = vst [vmem:[%s7 + $0x20] sm:$0xf] %v2748
  %2877 = vst [vmem:[%s7 + $0x24] sm:$0xf] %v2749
  %2878 = vst [vmem:[%s7 + $0x28] sm:$0xf] %v2750
  %2879 = vst [vmem:[%s7 + $0x2c] sm:$0xf] %v2751
  %2880 = vst [vmem:[%s7 + $0x30] sm:$0xf] %v2752
  %2881 = vst [vmem:[%s7 + $0x34] sm:$0xf] %v2753
  %2882 = vst [vmem:[%s7 + $0x38] sm:$0xf] %v2754
  %2883 = vst [vmem:[%s7 + $0x3c] sm:$0xf] %v2755
  %2884 = vst [vmem:[%s7 + $0x40] sm:$0xf] %v2756
  %2885 = vst [vmem:[%s7 + $0x44] sm:$0xf] %v2757
  %2886 = vst [vmem:[%s7 + $0x48] sm:$0xf] %v2758
  %2887 = vst [vmem:[%s7 + $0x4c] sm:$0xf] %v2759
  %2888 = vst [vmem:[%s7 + $0x50] sm:$0xf] %v2760
  %2889 = vst [vmem:[%s7 + $0x54] sm:$0xf] %v2761
  %2890 = vst [vmem:[%s7 + $0x58] sm:$0xf] %v2762
  %2891 = vst [vmem:[%s7 + $0x5c] sm:$0xf] %v2763
  %2892 = vst [vmem:[%s7 + $0x60] sm:$0xf] %v2764
  %2893 = vst [vmem:[%s7 + $0x64] sm:$0xf] %v2765
  %2894 = vst [vmem:[%s7 + $0x68] sm:$0xf] %v2766
  %2895 = vst [vmem:[%s7 + $0x6c] sm:$0xf] %v2767
  %2896 = vst [vmem:[%s7 + $0x70] sm:$0xf] %v2768
  %2897 = vst [vmem:[%s7 + $0x74] sm:$0xf] %v2769
  %2898 = vst [vmem:[%s7 + $0x78] sm:$0xf] %v2770
  %2899 = vst [vmem:[%s7 + $0x7c] sm:$0xf] %v2771
  %2900 = vst [vmem:[%s7 + $0x80] sm:$0xf] %v2772
  %2901 = vst [vmem:[%s7 + $0x84] sm:$0xf] %v2773
  %2902 = vst [vmem:[%s7 + $0x88] sm:$0xf] %v2774
  %2903 = vst [vmem:[%s7 + $0x8c] sm:$0xf] %v2775
  %2904 = vst [vmem:[%s7 + $0x90] sm:$0xf] %v2776
  %2905 = vst [vmem:[%s7 + $0x94] sm:$0xf] %v2777
  %2906 = vst [vmem:[%s7 + $0x98] sm:$0xf] %v2778
  %2907 = vst [vmem:[%s7 + $0x9c] sm:$0xf] %v2779
  %2908 = vst [vmem:[%s7 + $0xa0] sm:$0xf] %v2780
  %2909 = vst [vmem:[%s7 + $0xa4] sm:$0xf] %v2781
  %2910 = vst [vmem:[%s7 + $0xa8] sm:$0xf] %v2782
  %2911 = vst [vmem:[%s7 + $0xac] sm:$0xf] %v2783
  %2912 = vst [vmem:[%s7 + $0xb0] sm:$0xf] %v2784
  %2913 = vst [vmem:[%s7 + $0xb4] sm:$0xf] %v2785
  %2914 = vst [vmem:[%s7 + $0xb8] sm:$0xf] %v2786
  %2915 = vst [vmem:[%s7 + $0xbc] sm:$0xf] %v2787
  %2916 = vst [vmem:[%s7 + $0xc0] sm:$0xf] %v2788
  %2917 = vst [vmem:[%s7 + $0xc4] sm:$0xf] %v2789
  %2918 = vst [vmem:[%s7 + $0xc8] sm:$0xf] %v2790
  %2919 = vst [vmem:[%s7 + $0xcc] sm:$0xf] %v2791
  %2920 = vst [vmem:[%s7 + $0xd0] sm:$0xf] %v2792
  %2921 = vst [vmem:[%s7 + $0xd4] sm:$0xf] %v2793
  %2922 = vst [vmem:[%s7 + $0xd8] sm:$0xf] %v2794
  %2923 = vst [vmem:[%s7 + $0xdc] sm:$0xf] %v2795
  %2924 = vst [vmem:[%s7 + $0xe0] sm:$0xf] %v2796
  %2925 = vst [vmem:[%s7 + $0xe4] sm:$0xf] %v2797
  %2926 = vst [vmem:[%s7 + $0xe8] sm:$0xf] %v2798
  %2927 = vst [vmem:[%s7 + $0xec] sm:$0xf] %v2799
  %2928 = vst [vmem:[%s7 + $0xf0] sm:$0xf] %v2800
  %2929 = vst [vmem:[%s7 + $0xf4] sm:$0xf] %v2801
  %2930 = vst [vmem:[%s7 + $0xf8] sm:$0xf] %v2802
  %2931 = vst [vmem:[%s7 + $0xfc] sm:$0xf] %v2803
  // Predicated region
  $region30: #{net_forward.4} parent=0 // pred_check
    _
  $region31: #{net_forward.4} parent=0 // pred_check_branch
    %2933 = sbr.rel (0) target = $region33
  $region32: #{net_forward.4} parent=0 // pred_region
    _
  $region33: #{net_forward.4} parent=0 // pred_fallthru
    _
  // Predicated region
  $region34: #{net_forward.4} parent=0 // pred_check
    _
  $region35: #{net_forward.4} parent=0 // pred_check_branch
    %2935 = sbr.rel (0) target = $region37
  $region36: #{net_forward.4} parent=0 // pred_region
    _
  $region37: #{net_forward.4} parent=0 // pred_fallthru
    _

// kernel: net_forward.5
$region0: #{net_forward.5}
  #allocation0 [shape = 'u32[]', space=smem, size = 0x4, offset = 0x4, fixed_abs, tag = 'smem constant byte address 0x4 - core index']
  #allocation1 [shape = 'u32[144,128]{1,0:T(1,128)}', space=vmem, size = 0x12000, scoped, tag = 'internal scratch']
  %s0 = inlined_call_operand.vmem [shape: bf16[128,384], index: 0, kind: input, shape index: {}]
  %s1 = inlined_call_operand.vmem [shape: bf16[384,128], index: 1, kind: input, shape index: {}]
  %s2 = inlined_call_operand.vmem [shape: f32[1,128], index: 2, kind: input, shape index: {}]
  %s3 = inlined_call_operand.vmem [shape: bf16[128,128], index: 3, kind: input, shape index: {}]
  %s4 = inlined_call_operand.vmem [shape: f32[1,128], index: 4, kind: input, shape index: {}]
  %s5 = inlined_call_operand.vmem [shape: bf16[128,128], index: 5, kind: input, shape index: {}]
  %s6 = inlined_call_operand.vmem [shape: f32[1,128], index: 6, kind: input, shape index: {}]
  %s7 = inlined_call_operand.hbm [shape: f32[2,128], index: 7, kind: output, shape index: {}]
  %s8 = sld [smem:[#allocation0]]
  $region38: #{net_forward.5} parent=0
    _
  %s10 = ssub.s32 1, %s8
  %s11 = scalar_select 0, %s10, %s8
  $region1: #{net_forward.5} parent=0
    #allocation2 [shape = 'u8[1024]{0}', space=vmem, size = 0x400, scoped, tag = 'output window, operand 0, single buffered']
    #allocation3 [shape = 's32[1]{0}', space=sflag, size = 0x4, scoped, tag = 'scoped memory for net_forward.5']
    %12 = vsyncpa [#allocation3], 0
    // Predicated region
    $region2: #{net_forward.5} parent=1 // pred_check
      _
    $region3: #{net_forward.5} parent=1 // pred_check_branch
      %14 = sbr.rel (0) target = $region5
    $region4: #{net_forward.5} parent=1 // pred_region
      _
    $region5: #{net_forward.5} parent=1 // pred_fallthru
      _
    // Predicated region
    $region6: #{net_forward.5} parent=1 // pred_check
      _
    $region7: #{net_forward.5} parent=1 // pred_check_branch
      %16 = sbr.rel (0) target = $region9
    $region8: #{net_forward.5} parent=1 // pred_region
      _
    $region9: #{net_forward.5} parent=1 // pred_fallthru
      _
    // Predicated region
    $region10: #{net_forward.5} parent=1 // pred_check
      _
    $region11: #{net_forward.5} parent=1 // pred_check_branch
      %18 = sbr.rel (0) target = $region13
    $region12: #{net_forward.5} parent=1 // pred_region
      _
    $region13: #{net_forward.5} parent=1 // pred_fallthru
      _
    // Predicated region
    $region14: #{net_forward.5} parent=1 // pred_check
      _
    $region15: #{net_forward.5} parent=1 // pred_check_branch
      %20 = sbr.rel (0) target = $region17
    $region16: #{net_forward.5} parent=1 // pred_region
      _
    $region17: #{net_forward.5} parent=1 // pred_fallthru
      _
    // Predicated region
    $region18: #{net_forward.5} parent=1 // pred_check
      _
    $region19: #{net_forward.5} parent=1 // pred_check_branch
      %22 = sbr.rel (0) target = $region21
    $region20: #{net_forward.5} parent=1 // pred_region
      _
    $region21: #{net_forward.5} parent=1 // pred_fallthru
      _
    // Predicated region
    $region22: #{net_forward.5} parent=1 // pred_check
      _
    $region23: #{net_forward.5} parent=1 // pred_check_branch
      %24 = sbr.rel (0) target = $region25
    $region24: #{net_forward.5} parent=1 // pred_region
      _
    $region25: #{net_forward.5} parent=1 // pred_fallthru
      _
    // Predicated region
    $region26: #{net_forward.5} parent=1 // pred_check
      _
    $region27: #{net_forward.5} parent=1 // pred_check_branch
      %26 = sbr.rel (0) target = $region29
    $region28: #{net_forward.5} parent=1 // pred_region
      _
    $region29: #{net_forward.5} parent=1 // pred_fallthru
      _
    %v28 = vld [vmem:[%s0] sm:$0xff]
    %v29 = vld [vmem:[%s0 + $0x8] sm:$0xf]
    %v30 = vld [vmem:[%s0 + $0xc] sm:$0xff]
    %v31 = vld [vmem:[%s0 + $0x14] sm:$0xf]
    %v32 = vld [vmem:[%s0 + $0x18] sm:$0xff]
    %v33 = vld [vmem:[%s0 + $0x20] sm:$0xf]
    %v34 = vld [vmem:[%s0 + $0x24] sm:$0xff]
    %v35 = vld [vmem:[%s0 + $0x2c] sm:$0xf]
    %v36 = vld [vmem:[%s0 + $0x30] sm:$0xff]
    %v37 = vld [vmem:[%s0 + $0x38] sm:$0xf]
    %v38 = vld [vmem:[%s0 + $0x3c] sm:$0xff]
    %v39 = vld [vmem:[%s0 + $0x44] sm:$0xf]
    %v40 = vld [vmem:[%s0 + $0x48] sm:$0xff]
    %v41 = vld [vmem:[%s0 + $0x50] sm:$0xf]
    %v42 = vld [vmem:[%s0 + $0x54] sm:$0xff]
    %v43 = vld [vmem:[%s0 + $0x5c] sm:$0xf]
    %v44 = vld [vmem:[%s0 + $0x60] sm:$0xff]
    %v45 = vld [vmem:[%s0 + $0x68] sm:$0xf]
    %v46 = vld [vmem:[%s0 + $0x6c] sm:$0xff]
    %v47 = vld [vmem:[%s0 + $0x74] sm:$0xf]
    %v48 = vld [vmem:[%s0 + $0x78] sm:$0xff]
    %v49 = vld [vmem:[%s0 + $0x80] sm:$0xf]
    %v50 = vld [vmem:[%s0 + $0x84] sm:$0xff]
    %v51 = vld [vmem:[%s0 + $0x8c] sm:$0xf]
    %v52 = vld [vmem:[%s0 + $0x90] sm:$0xff]
    %v53 = vld [vmem:[%s0 + $0x98] sm:$0xf]
    %v54 = vld [vmem:[%s0 + $0x9c] sm:$0xff]
    %v55 = vld [vmem:[%s0 + $0xa4] sm:$0xf]
    %v56 = vld [vmem:[%s0 + $0xa8] sm:$0xff]
    %v57 = vld [vmem:[%s0 + $0xb0] sm:$0xf]
    %v58 = vld [vmem:[%s0 + $0xb4] sm:$0xff]
    %v59 = vld [vmem:[%s0 + $0xbc] sm:$0xf]
    %v60 = vld [vmem:[%s1] sm:$0xf]
    %v61 = vld [vmem:[%s1 + $0x4] sm:$0xf]
    %v62 = vld [vmem:[%s1 + $0x8] sm:$0xf]
    %v63 = vld [vmem:[%s1 + $0xc] sm:$0xf]
    %v64 = vld [vmem:[%s1 + $0x10] sm:$0xf]
    %v65 = vld [vmem:[%s1 + $0x14] sm:$0xf]
    %v66 = vld [vmem:[%s1 + $0x18] sm:$0xf]
    %v67 = vld [vmem:[%s1 + $0x1c] sm:$0xf]
    %v68 = vld [vmem:[%s1 + $0x20] sm:$0xf]
    %v69 = vld [vmem:[%s1 + $0x24] sm:$0xf]
    %v70 = vld [vmem:[%s1 + $0x28] sm:$0xf]
    %v71 = vld [vmem:[%s1 + $0x2c] sm:$0xf]
    %v72 = vld [vmem:[%s1 + $0x30] sm:$0xf]
    %v73 = vld [vmem:[%s1 + $0x34] sm:$0xf]
    %v74 = vld [vmem:[%s1 + $0x38] sm:$0xf]
    %v75 = vld [vmem:[%s1 + $0x3c] sm:$0xf]
    %v76 = vld [vmem:[%s1 + $0x40] sm:$0xf]
    %v77 = vld [vmem:[%s1 + $0x44] sm:$0xf]
    %v78 = vld [vmem:[%s1 + $0x48] sm:$0xf]
    %v79 = vld [vmem:[%s1 + $0x4c] sm:$0xf]
    %v80 = vld [vmem:[%s1 + $0x50] sm:$0xf]
    %v81 = vld [vmem:[%s1 + $0x54] sm:$0xf]
    %v82 = vld [vmem:[%s1 + $0x58] sm:$0xf]
    %v83 = vld [vmem:[%s1 + $0x5c] sm:$0xf]
    %v84 = vld [vmem:[%s1 + $0x60] sm:$0xf]
    %v85 = vld [vmem:[%s1 + $0x64] sm:$0xf]
    %v86 = vld [vmem:[%s1 + $0x68] sm:$0xf]
    %v87 = vld [vmem:[%s1 + $0x6c] sm:$0xf]
    %v88 = vld [vmem:[%s1 + $0x70] sm:$0xf]
    %v89 = vld [vmem:[%s1 + $0x74] sm:$0xf]
    %v90 = vld [vmem:[%s1 + $0x78] sm:$0xf]
    %v91 = vld [vmem:[%s1 + $0x7c] sm:$0xf]
    %v92 = vld [vmem:[%s1 + $0x80] sm:$0xf]
    %v93 = vld [vmem:[%s1 + $0x84] sm:$0xf]
    %v94 = vld [vmem:[%s1 + $0x88] sm:$0xf]
    %v95 = vld [vmem:[%s1 + $0x8c] sm:$0xf]
    %v96 = vld [vmem:[%s1 + $0x90] sm:$0xf]
    %v97 = vld [vmem:[%s1 + $0x94] sm:$0xf]
    %v98 = vld [vmem:[%s1 + $0x98] sm:$0xf]
    %v99 = vld [vmem:[%s1 + $0x9c] sm:$0xf]
    %v100 = vld [vmem:[%s1 + $0xa0] sm:$0xf]
    %v101 = vld [vmem:[%s1 + $0xa4] sm:$0xf]
    %v102 = vld [vmem:[%s1 + $0xa8] sm:$0xf]
    %v103 = vld [vmem:[%s1 + $0xac] sm:$0xf]
    %v104 = vld [vmem:[%s1 + $0xb0] sm:$0xf]
    %v105 = vld [vmem:[%s1 + $0xb4] sm:$0xf]
    %v106 = vld [vmem:[%s1 + $0xb8] sm:$0xf]
    %v107 = vld [vmem:[%s1 + $0xbc] sm:$0xf]
    %v108 = vld [vmem:[%s2] sm:$0x1]
    %v110 = vlaneseq
    %v111 = vshrl.u32 %v110, 7
    %v112 = vsub.s32 0, %v111
    %v113 = vrot.slane %v108, %v112
    %v147 = vunpack.c.l.b16 %v28
    %v148 = vunpack.c.h.b16 %v28
    %v149 = vunpack.c.l.b16 %v29
    %v150 = vunpack.c.l.b16 %v30
    %v151 = vunpack.c.h.b16 %v30
    %v152 = vunpack.c.l.b16 %v31
    %v153 = vunpack.c.l.b16 %v32
    %v154 = vunpack.c.h.b16 %v32
    %v155 = vunpack.c.l.b16 %v33
    %v156 = vunpack.c.l.b16 %v34
    %v157 = vunpack.c.h.b16 %v34
    %v158 = vunpack.c.l.b16 %v35
    %v159 = vunpack.c.l.b16 %v36
    %v160 = vunpack.c.h.b16 %v36
    %v161 = vunpack.c.l.b16 %v37
    %v162 = vunpack.c.l.b16 %v38
    %v163 = vunpack.c.h.b16 %v38
    %v164 = vunpack.c.l.b16 %v39
    %v165 = vunpack.c.l.b16 %v40
    %v166 = vunpack.c.h.b16 %v40
    %v167 = vunpack.c.l.b16 %v41
    %v168 = vunpack.c.l.b16 %v42
    %v169 = vunpack.c.h.b16 %v42
    %v170 = vunpack.c.l.b16 %v43
    %v171 = vunpack.c.l.b16 %v44
    %v172 = vunpack.c.h.b16 %v44
    %v173 = vunpack.c.l.b16 %v45
    %v174 = vunpack.c.l.b16 %v46
    %v175 = vunpack.c.h.b16 %v46
    %v176 = vunpack.c.l.b16 %v47
    %v177 = vunpack.c.l.b16 %v48
    %v178 = vunpack.c.h.b16 %v48
    %v179 = vunpack.c.l.b16 %v49
    %v180 = vunpack.c.l.b16 %v50
    %v181 = vunpack.c.h.b16 %v50
    %v182 = vunpack.c.l.b16 %v51
    %v183 = vunpack.c.l.b16 %v52
    %v184 = vunpack.c.h.b16 %v52
    %v185 = vunpack.c.l.b16 %v53
    %v186 = vunpack.c.l.b16 %v54
    %v187 = vunpack.c.h.b16 %v54
    %v188 = vunpack.c.l.b16 %v55
    %v189 = vunpack.c.l.b16 %v56
    %v190 = vunpack.c.h.b16 %v56
    %v191 = vunpack.c.l.b16 %v57
    %v192 = vunpack.c.l.b16 %v58
    %v193 = vunpack.c.h.b16 %v58
    %v194 = vunpack.c.l.b16 %v59
    %v195 = vpack.c.b16 %v150, %v147
    %v196 = vpack.c.b16 %v151, %v148
    %v197 = vpack.c.b16 %v152, %v149
    %v198 = vpack.c.b16 %v156, %v153
    %v199 = vpack.c.b16 %v157, %v154
    %v200 = vpack.c.b16 %v158, %v155
    %v201 = vpack.c.b16 %v162, %v159
    %v202 = vpack.c.b16 %v163, %v160
    %v203 = vpack.c.b16 %v164, %v161
    %v204 = vpack.c.b16 %v168, %v165
    %v205 = vpack.c.b16 %v169, %v166
    %v206 = vpack.c.b16 %v170, %v167
    %v207 = vpack.c.b16 %v174, %v171
    %v208 = vpack.c.b16 %v175, %v172
    %v209 = vpack.c.b16 %v176, %v173
    %v210 = vpack.c.b16 %v180, %v177
    %v211 = vpack.c.b16 %v181, %v178
    %v212 = vpack.c.b16 %v182, %v179
    %v213 = vpack.c.b16 %v186, %v183
    %v214 = vpack.c.b16 %v187, %v184
    %v215 = vpack.c.b16 %v188, %v185
    %v216 = vpack.c.b16 %v192, %v189
    %v217 = vpack.c.b16 %v193, %v190
    %v218 = vpack.c.b16 %v194, %v191
    %v291 = vunpack.c.l.b16 %v60
    %v292 = vunpack.c.l.b16 %v61
    %v293 = vunpack.c.l.b16 %v62
    %v294 = vunpack.c.l.b16 %v63
    %v295 = vunpack.c.l.b16 %v64
    %v296 = vunpack.c.l.b16 %v65
    %v297 = vunpack.c.l.b16 %v66
    %v298 = vunpack.c.l.b16 %v67
    %v299 = vunpack.c.l.b16 %v68
    %v300 = vunpack.c.l.b16 %v69
    %v301 = vunpack.c.l.b16 %v70
    %v302 = vunpack.c.l.b16 %v71
    %v303 = vunpack.c.l.b16 %v72
    %v304 = vunpack.c.l.b16 %v73
    %v305 = vunpack.c.l.b16 %v74
    %v306 = vunpack.c.l.b16 %v75
    %v307 = vunpack.c.l.b16 %v76
    %v308 = vunpack.c.l.b16 %v77
    %v309 = vunpack.c.l.b16 %v78
    %v310 = vunpack.c.l.b16 %v79
    %v311 = vunpack.c.l.b16 %v80
    %v312 = vunpack.c.l.b16 %v81
    %v313 = vunpack.c.l.b16 %v82
    %v314 = vunpack.c.l.b16 %v83
    %v315 = vunpack.c.l.b16 %v84
    %v316 = vunpack.c.l.b16 %v85
    %v317 = vunpack.c.l.b16 %v86
    %v318 = vunpack.c.l.b16 %v87
    %v319 = vunpack.c.l.b16 %v88
    %v320 = vunpack.c.l.b16 %v89
    %v321 = vunpack.c.l.b16 %v90
    %v322 = vunpack.c.l.b16 %v91
    %v323 = vunpack.c.l.b16 %v92
    %v324 = vunpack.c.l.b16 %v93
    %v325 = vunpack.c.l.b16 %v94
    %v326 = vunpack.c.l.b16 %v95
    %v327 = vunpack.c.l.b16 %v96
    %v328 = vunpack.c.l.b16 %v97
    %v329 = vunpack.c.l.b16 %v98
    %v330 = vunpack.c.l.b16 %v99
    %v331 = vunpack.c.l.b16 %v100
    %v332 = vunpack.c.l.b16 %v101
    %v333 = vunpack.c.l.b16 %v102
    %v334 = vunpack.c.l.b16 %v103
    %v335 = vunpack.c.l.b16 %v104
    %v336 = vunpack.c.l.b16 %v105
    %v337 = vunpack.c.l.b16 %v106
    %v338 = vunpack.c.l.b16 %v107
    %v339 = vpack.c.b16 %v292, %v291
    %v340 = vpack.c.b16 %v294, %v293
    %v341 = vpack.c.b16 %v296, %v295
    %v342 = vpack.c.b16 %v298, %v297
    %v343 = vpack.c.b16 %v300, %v299
    %v344 = vpack.c.b16 %v302, %v301
    %v345 = vpack.c.b16 %v304, %v303
    %v346 = vpack.c.b16 %v306, %v305
    %v347 = vpack.c.b16 %v308, %v307
    %v348 = vpack.c.b16 %v310, %v309
    %v349 = vpack.c.b16 %v312, %v311
    %v350 = vpack.c.b16 %v314, %v313
    %v351 = vpack.c.b16 %v316, %v315
    %v352 = vpack.c.b16 %v318, %v317
    %v353 = vpack.c.b16 %v320, %v319
    %v354 = vpack.c.b16 %v322, %v321
    %v355 = vpack.c.b16 %v324, %v323
    %v356 = vpack.c.b16 %v326, %v325
    %v357 = vpack.c.b16 %v328, %v327
    %v358 = vpack.c.b16 %v330, %v329
    %v359 = vpack.c.b16 %v332, %v331
    %v360 = vpack.c.b16 %v334, %v333
    %v361 = vpack.c.b16 %v336, %v335
    %v362 = vpack.c.b16 %v338, %v337
    %387 = vmatprep.subr.bf16.mxu0 0
    %388 = vmatpush1.bf16.msra.mxu0 %v339
    %389 = vmatprep.subr.bf16.mxu0 0
    %390 = vmatpush1.bf16.msra.mxu0 %v340
    %391 = vmatprep.subr.bf16.mxu0 0
    %392 = vmatpush1.bf16.msra.mxu0 %v341
    %393 = vmatprep.subr.bf16.mxu0 0
    %394 = vmatpush1.bf16.msra.mxu0 %v342
    %395 = vmatprep.subr.bf16.mxu0 0
    %396 = vmatpush1.bf16.msra.mxu0 %v343
    %397 = vmatprep.subr.bf16.mxu0 0
    %398 = vmatpush1.bf16.msra.mxu0 %v344
    %399 = vmatprep.subr.bf16.mxu0 0
    %400 = vmatpush1.bf16.msra.mxu0 %v345
    %401 = vmatprep.subr.bf16.mxu0 0
    %402 = vmatpush1.bf16.msra.mxu0 %v346
    %403 = vmatprep.subr.bf16.mxu0 0
    %404 = vmatpush1.bf16.msra.mxu0 %v347
    %405 = vmatprep.subr.bf16.mxu0 0
    %406 = vmatpush1.bf16.msra.mxu0 %v348
    %407 = vmatprep.subr.bf16.mxu0 0
    %408 = vmatpush1.bf16.msra.mxu0 %v349
    %409 = vmatprep.subr.bf16.mxu0 0
    %410 = vmatpush1.bf16.msra.mxu0 %v350
    %411 = vmatprep.subr.bf16.mxu0 0
    %412 = vmatpush1.bf16.msra.mxu0 %v351
    %413 = vmatprep.subr.bf16.mxu0 0
    %414 = vmatpush1.bf16.msra.mxu0 %v352
    %415 = vmatprep.subr.bf16.mxu0 0
    %416 = vmatpush1.bf16.msra.mxu0 %v353
    %417 = vmatprep.subr.bf16.mxu0 0
    %418 = vmatpush1.bf16.msra.mxu0 %v354
    %419 = vmatprep.mubr.bf16.mxu0 %v196
    %420 = vmatmul.mubr.bf16.gmra.mrb[0].mxu0 %v195
    %v421 = vpop.f32.mrb[0].mxu0
    %v422 = vadd.f32 %v113, %v421
    %v423 = vpop.f32.mrb[0].mxu0
    %v424 = vpop.f32.mrb[0].mxu0
    %v425 = vadd.f32 %v113, %v424
    %v426 = vpop.f32.mrb[0].mxu0
    %427 = vmatprep.mubr.bf16.mxu0 %v199
    %428 = vmatmul.mubr.bf16.gmra.mrb[0].mxu0 %v198
    %v429 = vpop.f32.mrb[0].mxu0
    %v430 = vadd.f32 %v113, %v429
    %v431 = vpop.f32.mrb[0].mxu0
    %v432 = vpop.f32.mrb[0].mxu0
    %v433 = vadd.f32 %v113, %v432
    %v434 = vpop.f32.mrb[0].mxu0
    %435 = vmatprep.mubr.bf16.mxu0 %v202
    %436 = vmatmul.mubr.bf16.gmra.mrb[0].mxu0 %v201
    %v437 = vpop.f32.mrb[0].mxu0
    %v438 = vadd.f32 %v113, %v437
    %v439 = vpop.f32.mrb[0].mxu0
    %v440 = vpop.f32.mrb[0].mxu0
    %v441 = vadd.f32 %v113, %v440
    %v442 = vpop.f32.mrb[0].mxu0
    %443 = vmatprep.mubr.bf16.mxu0 %v205
    %444 = vmatmul.mubr.bf16.gmra.mrb[0].mxu0 %v204
    %v445 = vpop.f32.mrb[0].mxu0
    %v446 = vadd.f32 %v113, %v445
    %v447 = vpop.f32.mrb[0].mxu0
    %v448 = vpop.f32.mrb[0].mxu0
    %v449 = vadd.f32 %v113, %v448
    %v450 = vpop.f32.mrb[0].mxu0
    %451 = vmatprep.mubr.bf16.mxu0 %v208
    %452 = vmatmul.mubr.bf16.gmra.mrb[0].mxu0 %v207
    %v453 = vpop.f32.mrb[0].mxu0
    %v454 = vadd.f32 %v113, %v453
    %v455 = vpop.f32.mrb[0].mxu0
    %v456 = vpop.f32.mrb[0].mxu0
    %v457 = vadd.f32 %v113, %v456
    %v458 = vpop.f32.mrb[0].mxu0
    %459 = vmatprep.mubr.bf16.mxu0 %v211
    %460 = vmatmul.mubr.bf16.gmra.mrb[0].mxu0 %v210
    %v461 = vpop.f32.mrb[0].mxu0
    %v462 = vadd.f32 %v113, %v461
    %v463 = vpop.f32.mrb[0].mxu0
    %v464 = vpop.f32.mrb[0].mxu0
    %v465 = vadd.f32 %v113, %v464
    %v466 = vpop.f32.mrb[0].mxu0
    %467 = vmatprep.mubr.bf16.mxu0 %v214
    %468 = vmatmul.mubr.bf16.gmra.mrb[0].mxu0 %v213
    %v469 = vpop.f32.mrb[0].mxu0
    %v470 = vadd.f32 %v113, %v469
    %v471 = vpop.f32.mrb[0].mxu0
    %v472 = vpop.f32.mrb[0].mxu0
    %v473 = vadd.f32 %v113, %v472
    %v474 = vpop.f32.mrb[0].mxu0
    %475 = vmatprep.mubr.bf16.mxu0 %v217
    %476 = vmatmul.mubr.bf16.gmra.mrb[0].mxu0 %v216
    %v477 = vpop.f32.mrb[0].mxu0
    %v478 = vadd.f32 %v113, %v477
    %v479 = vpop.f32.mrb[0].mxu0
    %v480 = vpop.f32.mrb[0].mxu0
    %v481 = vadd.f32 %v113, %v480
    %v482 = vpop.f32.mrb[0].mxu0
    %483 = vdwg.mxu0
    %484 = vmatprep.subr.bf16.mxu0 0
    %485 = vmatpush1.bf16.msra.mxu0 %v355
    %486 = vmatprep.subr.bf16.mxu0 0
    %487 = vmatpush1.bf16.msra.mxu0 %v356
    %488 = vmatprep.subr.bf16.mxu0 0
    %489 = vmatpush1.bf16.msra.mxu0 %v357
    %490 = vmatprep.subr.bf16.mxu0 0
    %491 = vmatpush1.bf16.msra.mxu0 %v358
    %492 = vmatprep.subr.bf16.mxu0 0
    %493 = vmatpush1.bf16.msra.mxu0 %v359
    %494 = vmatprep.subr.bf16.mxu0 0
    %495 = vmatpush1.bf16.msra.mxu0 %v360
    %496 = vmatprep.subr.bf16.mxu0 0
    %497 = vmatpush1.bf16.msra.mxu0 %v361
    %498 = vmatprep.subr.bf16.mxu0 0
    %499 = vmatpush1.bf16.msra.mxu0 %v362
    %500 = vmatprep.subr.bf16.mxu0 0
    %501 = vmatpush1.bf16.msra.mxu0 0
    %502 = vmatprep.subr.bf16.mxu0 0
    %503 = vmatpush1.bf16.msra.mxu0 0
    %504 = vmatprep.subr.bf16.mxu0 0
    %505 = vmatpush1.bf16.msra.mxu0 0
    %506 = vmatprep.subr.bf16.mxu0 0
    %507 = vmatpush1.bf16.msra.mxu0 0
    %508 = vmatprep.subr.bf16.mxu0 0
    %509 = vmatpush1.bf16.msra.mxu0 0
    %510 = vmatprep.subr.bf16.mxu0 0
    %511 = vmatpush1.bf16.msra.mxu0 0
    %512 = vmatprep.subr.bf16.mxu0 0
    %513 = vmatpush1.bf16.msra.mxu0 0
    %514 = vmatprep.subr.bf16.mxu0 0
    %515 = vmatpush1.bf16.msra.mxu0 0
    %516 = vmatprep.mubr.bf16.mxu0 0
    %517 = vmatmul.mubr.bf16.gmra.mrb[0].mxu0 %v197
    %v518 = vpop.f32.mrb[0].mxu0
    %v519 = vadd.f32 %v422, %v518
    %v520 = vpop.f32.mrb[0].mxu0
    %v521 = vpop.f32.mrb[0].mxu0
    %v522 = vadd.f32 %v425, %v521
    %v523 = vpop.f32.mrb[0].mxu0
    %524 = vmatprep.mubr.bf16.mxu0 0
    %525 = vmatmul.mubr.bf16.gmra.mrb[0].mxu0 %v200
    %v526 = vpop.f32.mrb[0].mxu0
    %v527 = vadd.f32 %v430, %v526
    %v528 = vpop.f32.mrb[0].mxu0
    %v529 = vpop.f32.mrb[0].mxu0
    %v530 = vadd.f32 %v433, %v529
    %v531 = vpop.f32.mrb[0].mxu0
    %532 = vmatprep.mubr.bf16.mxu0 0
    %533 = vmatmul.mubr.bf16.gmra.mrb[0].mxu0 %v203
    %v534 = vpop.f32.mrb[0].mxu0
    %v535 = vadd.f32 %v438, %v534
    %v536 = vpop.f32.mrb[0].mxu0
    %v537 = vpop.f32.mrb[0].mxu0
    %v538 = vadd.f32 %v441, %v537
    %v539 = vpop.f32.mrb[0].mxu0
    %540 = vmatprep.mubr.bf16.mxu0 0
    %541 = vmatmul.mubr.bf16.gmra.mrb[0].mxu0 %v206
    %v542 = vpop.f32.mrb[0].mxu0
    %v543 = vadd.f32 %v446, %v542
    %v544 = vpop.f32.mrb[0].mxu0
    %v545 = vpop.f32.mrb[0].mxu0
    %v546 = vadd.f32 %v449, %v545
    %v547 = vpop.f32.mrb[0].mxu0
    %548 = vmatprep.mubr.bf16.mxu0 0
    %549 = vmatmul.mubr.bf16.gmra.mrb[0].mxu0 %v209
    %v550 = vpop.f32.mrb[0].mxu0
    %v551 = vadd.f32 %v454, %v550
    %v552 = vpop.f32.mrb[0].mxu0
    %v553 = vpop.f32.mrb[0].mxu0
    %v554 = vadd.f32 %v457, %v553
    %v555 = vpop.f32.mrb[0].mxu0
    %556 = vmatprep.mubr.bf16.mxu0 0
    %557 = vmatmul.mubr.bf16.gmra.mrb[0].mxu0 %v212
    %v558 = vpop.f32.mrb[0].mxu0
    %v559 = vadd.f32 %v462, %v558
    %v560 = vpop.f32.mrb[0].mxu0
    %v561 = vpop.f32.mrb[0].mxu0
    %v562 = vadd.f32 %v465, %v561
    %v563 = vpop.f32.mrb[0].mxu0
    %564 = vmatprep.mubr.bf16.mxu0 0
    %565 = vmatmul.mubr.bf16.gmra.mrb[0].mxu0 %v215
    %v566 = vpop.f32.mrb[0].mxu0
    %v567 = vadd.f32 %v470, %v566
    %v568 = vpop.f32.mrb[0].mxu0
    %v569 = vpop.f32.mrb[0].mxu0
    %v570 = vadd.f32 %v473, %v569
    %v571 = vpop.f32.mrb[0].mxu0
    %572 = vmatprep.mubr.bf16.mxu0 0
    %573 = vmatmul.mubr.bf16.gmra.mrb[0].mxu0 %v218
    %v574 = vpop.f32.mrb[0].mxu0
    %v575 = vadd.f32 %v478, %v574
    %v576 = vpop.f32.mrb[0].mxu0
    %v577 = vpop.f32.mrb[0].mxu0
    %v578 = vadd.f32 %v481, %v577
    %v579 = vpop.f32.mrb[0].mxu0
    %580 = vdwg.mxu0
    %v581 = vmax.f32 %v519, 0.0
    %v582 = vmax.f32 %v522, 0.0
    %v583 = vmax.f32 %v527, 0.0
    %v584 = vmax.f32 %v530, 0.0
    %v585 = vmax.f32 %v535, 0.0
    %v586 = vmax.f32 %v538, 0.0
    %v587 = vmax.f32 %v543, 0.0
    %v588 = vmax.f32 %v546, 0.0
    %v589 = vmax.f32 %v551, 0.0
    %v590 = vmax.f32 %v554, 0.0
    %v591 = vmax.f32 %v559, 0.0
    %v592 = vmax.f32 %v562, 0.0
    %v593 = vmax.f32 %v567, 0.0
    %v594 = vmax.f32 %v570, 0.0
    %v595 = vmax.f32 %v575, 0.0
    %v596 = vmax.f32 %v578, 0.0
    %v597 = vpack.c.bf16 %v582, %v581
    %v598 = vpack.c.bf16 %v584, %v583
    %v599 = vpack.c.bf16 %v586, %v585
    %v600 = vpack.c.bf16 %v588, %v587
    %v601 = vpack.c.bf16 %v590, %v589
    %v602 = vpack.c.bf16 %v592, %v591
    %v603 = vpack.c.bf16 %v594, %v593
    %v604 = vpack.c.bf16 %v596, %v595
    %v605 = vld [vmem:[%s3] sm:$0xf]
    %v606 = vld [vmem:[%s3 + $0x4] sm:$0xf]
    %v607 = vld [vmem:[%s3 + $0x8] sm:$0xf]
    %v608 = vld [vmem:[%s3 + $0xc] sm:$0xf]
    %v609 = vld [vmem:[%s3 + $0x10] sm:$0xf]
    %v610 = vld [vmem:[%s3 + $0x14] sm:$0xf]
    %v611 = vld [vmem:[%s3 + $0x18] sm:$0xf]
    %v612 = vld [vmem:[%s3 + $0x1c] sm:$0xf]
    %v613 = vld [vmem:[%s3 + $0x20] sm:$0xf]
    %v614 = vld [vmem:[%s3 + $0x24] sm:$0xf]
    %v615 = vld [vmem:[%s3 + $0x28] sm:$0xf]
    %v616 = vld [vmem:[%s3 + $0x2c] sm:$0xf]
    %v617 = vld [vmem:[%s3 + $0x30] sm:$0xf]
    %v618 = vld [vmem:[%s3 + $0x34] sm:$0xf]
    %v619 = vld [vmem:[%s3 + $0x38] sm:$0xf]
    %v620 = vld [vmem:[%s3 + $0x3c] sm:$0xf]
    %v621 = vld [vmem:[%s4] sm:$0x1]
    %v623 = vlaneseq
    %v624 = vshrl.u32 %v623, 7
    %v625 = vsub.s32 0, %v624
    %v626 = vrot.slane %v621, %v625
    %v644 = vunpack.c.l.b16 %v605
    %v645 = vunpack.c.l.b16 %v606
    %v646 = vunpack.c.l.b16 %v607
    %v647 = vunpack.c.l.b16 %v608
    %v648 = vunpack.c.l.b16 %v609
    %v649 = vunpack.c.l.b16 %v610
    %v650 = vunpack.c.l.b16 %v611
    %v651 = vunpack.c.l.b16 %v612
    %v652 = vunpack.c.l.b16 %v613
    %v653 = vunpack.c.l.b16 %v614
    %v654 = vunpack.c.l.b16 %v615
    %v655 = vunpack.c.l.b16 %v616
    %v656 = vunpack.c.l.b16 %v617
    %v657 = vunpack.c.l.b16 %v618
    %v658 = vunpack.c.l.b16 %v619
    %v659 = vunpack.c.l.b16 %v620
    %v660 = vpack.c.b16 %v645, %v644
    %v661 = vpack.c.b16 %v647, %v646
    %v662 = vpack.c.b16 %v649, %v648
    %v663 = vpack.c.b16 %v651, %v650
    %v664 = vpack.c.b16 %v653, %v652
    %v665 = vpack.c.b16 %v655, %v654
    %v666 = vpack.c.b16 %v657, %v656
    %v667 = vpack.c.b16 %v659, %v658
    %676 = vmatprep.subr.bf16.mxu0 0
    %677 = vmatpush1.bf16.msra.mxu0 %v660
    %678 = vmatprep.subr.bf16.mxu0 0
    %679 = vmatpush1.bf16.msra.mxu0 %v661
    %680 = vmatprep.subr.bf16.mxu0 0
    %681 = vmatpush1.bf16.msra.mxu0 %v662
    %682 = vmatprep.subr.bf16.mxu0 0
    %683 = vmatpush1.bf16.msra.mxu0 %v663
    %684 = vmatprep.subr.bf16.mxu0 0
    %685 = vmatpush1.bf16.msra.mxu0 %v664
    %686 = vmatprep.subr.bf16.mxu0 0
    %687 = vmatpush1.bf16.msra.mxu0 %v665
    %688 = vmatprep.subr.bf16.mxu0 0
    %689 = vmatpush1.bf16.msra.mxu0 %v666
    %690 = vmatprep.subr.bf16.mxu0 0
    %691 = vmatpush1.bf16.msra.mxu0 %v667
    %692 = vmatprep.subr.bf16.mxu0 0
    %693 = vmatpush1.bf16.msra.mxu0 0
    %694 = vmatprep.subr.bf16.mxu0 0
    %695 = vmatpush1.bf16.msra.mxu0 0
    %696 = vmatprep.subr.bf16.mxu0 0
    %697 = vmatpush1.bf16.msra.mxu0 0
    %698 = vmatprep.subr.bf16.mxu0 0
    %699 = vmatpush1.bf16.msra.mxu0 0
    %700 = vmatprep.subr.bf16.mxu0 0
    %701 = vmatpush1.bf16.msra.mxu0 0
    %702 = vmatprep.subr.bf16.mxu0 0
    %703 = vmatpush1.bf16.msra.mxu0 0
    %704 = vmatprep.subr.bf16.mxu0 0
    %705 = vmatpush1.bf16.msra.mxu0 0
    %706 = vmatprep.subr.bf16.mxu0 0
    %707 = vmatpush1.bf16.msra.mxu0 0
    %708 = vmatprep.mubr.bf16.mxu0 0
    %709 = vmatmul.mubr.bf16.gmra.mrb[0].mxu0 %v597
    %v710 = vpop.f32.mrb[0].mxu0
    %v711 = vadd.f32 %v626, %v710
    %v712 = vpop.f32.mrb[0].mxu0
    %v713 = vpop.f32.mrb[0].mxu0
    %v714 = vadd.f32 %v626, %v713
    %v715 = vpop.f32.mrb[0].mxu0
    %716 = vmatprep.mubr.bf16.mxu0 0
    %717 = vmatmul.mubr.bf16.gmra.mrb[0].mxu0 %v598
    %v718 = vpop.f32.mrb[0].mxu0
    %v719 = vadd.f32 %v626, %v718
    %v720 = vpop.f32.mrb[0].mxu0
    %v721 = vpop.f32.mrb[0].mxu0
    %v722 = vadd.f32 %v626, %v721
    %v723 = vpop.f32.mrb[0].mxu0
    %724 = vmatprep.mubr.bf16.mxu0 0
    %725 = vmatmul.mubr.bf16.gmra.mrb[0].mxu0 %v599
    %v726 = vpop.f32.mrb[0].mxu0
    %v727 = vadd.f32 %v626, %v726
    %v728 = vpop.f32.mrb[0].mxu0
    %v729 = vpop.f32.mrb[0].mxu0
    %v730 = vadd.f32 %v626, %v729
    %v731 = vpop.f32.mrb[0].mxu0
    %732 = vmatprep.mubr.bf16.mxu0 0
    %733 = vmatmul.mubr.bf16.gmra.mrb[0].mxu0 %v600
    %v734 = vpop.f32.mrb[0].mxu0
    %v735 = vadd.f32 %v626, %v734
    %v736 = vpop.f32.mrb[0].mxu0
    %v737 = vpop.f32.mrb[0].mxu0
    %v738 = vadd.f32 %v626, %v737
    %v739 = vpop.f32.mrb[0].mxu0
    %740 = vmatprep.mubr.bf16.mxu0 0
    %741 = vmatmul.mubr.bf16.gmra.mrb[0].mxu0 %v601
    %v742 = vpop.f32.mrb[0].mxu0
    %v743 = vadd.f32 %v626, %v742
    %v744 = vpop.f32.mrb[0].mxu0
    %v745 = vpop.f32.mrb[0].mxu0
    %v746 = vadd.f32 %v626, %v745
    %v747 = vpop.f32.mrb[0].mxu0
    %748 = vmatprep.mubr.bf16.mxu0 0
    %749 = vmatmul.mubr.bf16.gmra.mrb[0].mxu0 %v602
    %v750 = vpop.f32.mrb[0].mxu0
    %v751 = vadd.f32 %v626, %v750
    %v752 = vpop.f32.mrb[0].mxu0
    %v753 = vpop.f32.mrb[0].mxu0
    %v754 = vadd.f32 %v626, %v753
    %v755 = vpop.f32.mrb[0].mxu0
    %756 = vmatprep.mubr.bf16.mxu0 0
    %757 = vmatmul.mubr.bf16.gmra.mrb[0].mxu0 %v603
    %v758 = vpop.f32.mrb[0].mxu0
    %v759 = vadd.f32 %v626, %v758
    %v760 = vpop.f32.mrb[0].mxu0
    %v761 = vpop.f32.mrb[0].mxu0
    %v762 = vadd.f32 %v626, %v761
    %v763 = vpop.f32.mrb[0].mxu0
    %764 = vmatprep.mubr.bf16.mxu0 0
    %765 = vmatmul.mubr.bf16.gmra.mrb[0].mxu0 %v604
    %v766 = vpop.f32.mrb[0].mxu0
    %v767 = vadd.f32 %v626, %v766
    %v768 = vpop.f32.mrb[0].mxu0
    %v769 = vpop.f32.mrb[0].mxu0
    %v770 = vadd.f32 %v626, %v769
    %v771 = vpop.f32.mrb[0].mxu0
    %772 = vdwg.mxu0
    %v773 = vmax.f32 %v711, 0.0
    %v774 = vmax.f32 %v714, 0.0
    %v775 = vmax.f32 %v719, 0.0
    %v776 = vmax.f32 %v722, 0.0
    %v777 = vmax.f32 %v727, 0.0
    %v778 = vmax.f32 %v730, 0.0
    %v779 = vmax.f32 %v735, 0.0
    %v780 = vmax.f32 %v738, 0.0
    %v781 = vmax.f32 %v743, 0.0
    %v782 = vmax.f32 %v746, 0.0
    %v783 = vmax.f32 %v751, 0.0
    %v784 = vmax.f32 %v754, 0.0
    %v785 = vmax.f32 %v759, 0.0
    %v786 = vmax.f32 %v762, 0.0
    %v787 = vmax.f32 %v767, 0.0
    %v788 = vmax.f32 %v770, 0.0
    %v789 = vpack.c.bf16 %v774, %v773
    %v790 = vpack.c.bf16 %v776, %v775
    %v791 = vpack.c.bf16 %v778, %v777
    %v792 = vpack.c.bf16 %v780, %v779
    %v793 = vpack.c.bf16 %v782, %v781
    %v794 = vpack.c.bf16 %v784, %v783
    %v795 = vpack.c.bf16 %v786, %v785
    %v796 = vpack.c.bf16 %v788, %v787
    %v797 = vld [vmem:[%s5] sm:$0xf]
    %v798 = vld [vmem:[%s5 + $0x4] sm:$0xf]
    %v799 = vld [vmem:[%s5 + $0x8] sm:$0xf]
    %v800 = vld [vmem:[%s5 + $0xc] sm:$0xf]
    %v801 = vld [vmem:[%s5 + $0x10] sm:$0xf]
    %v802 = vld [vmem:[%s5 + $0x14] sm:$0xf]
    %v803 = vld [vmem:[%s5 + $0x18] sm:$0xf]
    %v804 = vld [vmem:[%s5 + $0x1c] sm:$0xf]
    %v805 = vld [vmem:[%s5 + $0x20] sm:$0xf]
    %v806 = vld [vmem:[%s5 + $0x24] sm:$0xf]
    %v807 = vld [vmem:[%s5 + $0x28] sm:$0xf]
    %v808 = vld [vmem:[%s5 + $0x2c] sm:$0xf]
    %v809 = vld [vmem:[%s5 + $0x30] sm:$0xf]
    %v810 = vld [vmem:[%s5 + $0x34] sm:$0xf]
    %v811 = vld [vmem:[%s5 + $0x38] sm:$0xf]
    %v812 = vld [vmem:[%s5 + $0x3c] sm:$0xf]
    %v813 = vld [vmem:[%s6] sm:$0x1]
    %v815 = vlaneseq
    %v816 = vshrl.u32 %v815, 7
    %v817 = vsub.s32 0, %v816
    %v818 = vrot.slane %v813, %v817
    %v836 = vunpack.c.l.b16 %v797
    %v837 = vunpack.c.l.b16 %v798
    %v838 = vunpack.c.l.b16 %v799
    %v839 = vunpack.c.l.b16 %v800
    %v840 = vunpack.c.l.b16 %v801
    %v841 = vunpack.c.l.b16 %v802
    %v842 = vunpack.c.l.b16 %v803
    %v843 = vunpack.c.l.b16 %v804
    %v844 = vunpack.c.l.b16 %v805
    %v845 = vunpack.c.l.b16 %v806
    %v846 = vunpack.c.l.b16 %v807
    %v847 = vunpack.c.l.b16 %v808
    %v848 = vunpack.c.l.b16 %v809
    %v849 = vunpack.c.l.b16 %v810
    %v850 = vunpack.c.l.b16 %v811
    %v851 = vunpack.c.l.b16 %v812
    %v852 = vpack.c.b16 %v837, %v836
    %v853 = vpack.c.b16 %v839, %v838
    %v854 = vpack.c.b16 %v841, %v840
    %v855 = vpack.c.b16 %v843, %v842
    %v856 = vpack.c.b16 %v845, %v844
    %v857 = vpack.c.b16 %v847, %v846
    %v858 = vpack.c.b16 %v849, %v848
    %v859 = vpack.c.b16 %v851, %v850
    %868 = vmatprep.subr.bf16.mxu0 0
    %869 = vmatpush1.bf16.msra.mxu0 %v852
    %870 = vmatprep.subr.bf16.mxu0 0
    %871 = vmatpush1.bf16.msra.mxu0 %v853
    %872 = vmatprep.subr.bf16.mxu0 0
    %873 = vmatpush1.bf16.msra.mxu0 %v854
    %874 = vmatprep.subr.bf16.mxu0 0
    %875 = vmatpush1.bf16.msra.mxu0 %v855
    %876 = vmatprep.subr.bf16.mxu0 0
    %877 = vmatpush1.bf16.msra.mxu0 %v856
    %878 = vmatprep.subr.bf16.mxu0 0
    %879 = vmatpush1.bf16.msra.mxu0 %v857
    %880 = vmatprep.subr.bf16.mxu0 0
    %881 = vmatpush1.bf16.msra.mxu0 %v858
    %882 = vmatprep.subr.bf16.mxu0 0
    %883 = vmatpush1.bf16.msra.mxu0 %v859
    %884 = vmatprep.subr.bf16.mxu0 0
    %885 = vmatpush1.bf16.msra.mxu0 0
    %886 = vmatprep.subr.bf16.mxu0 0
    %887 = vmatpush1.bf16.msra.mxu0 0
    %888 = vmatprep.subr.bf16.mxu0 0
    %889 = vmatpush1.bf16.msra.mxu0 0
    %890 = vmatprep.subr.bf16.mxu0 0
    %891 = vmatpush1.bf16.msra.mxu0 0
    %892 = vmatprep.subr.bf16.mxu0 0
    %893 = vmatpush1.bf16.msra.mxu0 0
    %894 = vmatprep.subr.bf16.mxu0 0
    %895 = vmatpush1.bf16.msra.mxu0 0
    %896 = vmatprep.subr.bf16.mxu0 0
    %897 = vmatpush1.bf16.msra.mxu0 0
    %898 = vmatprep.subr.bf16.mxu0 0
    %899 = vmatpush1.bf16.msra.mxu0 0
    %900 = vmatprep.mubr.bf16.mxu0 0
    %901 = vmatmul.mubr.bf16.gmra.mrb[0].mxu0 %v789
    %v902 = vpop.f32.mrb[0].mxu0
    %v903 = vadd.f32 %v818, %v902
    %v904 = vpop.f32.mrb[0].mxu0
    %v905 = vpop.f32.mrb[0].mxu0
    %v906 = vadd.f32 %v818, %v905
    %v907 = vpop.f32.mrb[0].mxu0
    %908 = vmatprep.mubr.bf16.mxu0 0
    %909 = vmatmul.mubr.bf16.gmra.mrb[0].mxu0 %v790
    %v910 = vpop.f32.mrb[0].mxu0
    %v911 = vadd.f32 %v818, %v910
    %v912 = vpop.f32.mrb[0].mxu0
    %v913 = vpop.f32.mrb[0].mxu0
    %v914 = vadd.f32 %v818, %v913
    %v915 = vpop.f32.mrb[0].mxu0
    %916 = vmatprep.mubr.bf16.mxu0 0
    %917 = vmatmul.mubr.bf16.gmra.mrb[0].mxu0 %v791
    %v918 = vpop.f32.mrb[0].mxu0
    %v919 = vadd.f32 %v818, %v918
    %v920 = vpop.f32.mrb[0].mxu0
    %v921 = vpop.f32.mrb[0].mxu0
    %v922 = vadd.f32 %v818, %v921
    %v923 = vpop.f32.mrb[0].mxu0
    %924 = vmatprep.mubr.bf16.mxu0 0
    %925 = vmatmul.mubr.bf16.gmra.mrb[0].mxu0 %v792
    %v926 = vpop.f32.mrb[0].mxu0
    %v927 = vadd.f32 %v818, %v926
    %v928 = vpop.f32.mrb[0].mxu0
    %v929 = vpop.f32.mrb[0].mxu0
    %v930 = vadd.f32 %v818, %v929
    %v931 = vpop.f32.mrb[0].mxu0
    %932 = vmatprep.mubr.bf16.mxu0 0
    %933 = vmatmul.mubr.bf16.gmra.mrb[0].mxu0 %v793
    %v934 = vpop.f32.mrb[0].mxu0
    %v935 = vadd.f32 %v818, %v934
    %v936 = vpop.f32.mrb[0].mxu0
    %v937 = vpop.f32.mrb[0].mxu0
    %v938 = vadd.f32 %v818, %v937
    %v939 = vpop.f32.mrb[0].mxu0
    %940 = vmatprep.mubr.bf16.mxu0 0
    %941 = vmatmul.mubr.bf16.gmra.mrb[0].mxu0 %v794
    %v942 = vpop.f32.mrb[0].mxu0
    %v943 = vadd.f32 %v818, %v942
    %v944 = vpop.f32.mrb[0].mxu0
    %v945 = vpop.f32.mrb[0].mxu0
    %v946 = vadd.f32 %v818, %v945
    %v947 = vpop.f32.mrb[0].mxu0
    %948 = vmatprep.mubr.bf16.mxu0 0
    %949 = vmatmul.mubr.bf16.gmra.mrb[0].mxu0 %v795
    %v950 = vpop.f32.mrb[0].mxu0
    %v951 = vadd.f32 %v818, %v950
    %v952 = vpop.f32.mrb[0].mxu0
    %v953 = vpop.f32.mrb[0].mxu0
    %v954 = vadd.f32 %v818, %v953
    %v955 = vpop.f32.mrb[0].mxu0
    %956 = vmatprep.mubr.bf16.mxu0 0
    %957 = vmatmul.mubr.bf16.gmra.mrb[0].mxu0 %v796
    %v958 = vpop.f32.mrb[0].mxu0
    %v959 = vadd.f32 %v818, %v958
    %v960 = vpop.f32.mrb[0].mxu0
    %v961 = vpop.f32.mrb[0].mxu0
    %v962 = vadd.f32 %v818, %v961
    %v963 = vpop.f32.mrb[0].mxu0
    %964 = vdwg.mxu0
    %v965 = vmax.f32 %v903, 0.0
    %v966 = vmax.f32 %v906, 0.0
    %v967 = vmax.f32 %v911, 0.0
    %v968 = vmax.f32 %v914, 0.0
    %v969 = vmax.f32 %v919, 0.0
    %v970 = vmax.f32 %v922, 0.0
    %v971 = vmax.f32 %v927, 0.0
    %v972 = vmax.f32 %v930, 0.0
    %v973 = vmax.f32 %v935, 0.0
    %v974 = vmax.f32 %v938, 0.0
    %v975 = vmax.f32 %v943, 0.0
    %v976 = vmax.f32 %v946, 0.0
    %v977 = vmax.f32 %v951, 0.0
    %v978 = vmax.f32 %v954, 0.0
    %v979 = vmax.f32 %v959, 0.0
    %v980 = vmax.f32 %v962, 0.0
    %v981 = vadd.f32 %v965, %v966
    %v982 = vadd.f32 %v981, %v967
    %v983 = vadd.f32 %v982, %v968
    %v984 = vadd.f32 %v983, %v969
    %v985 = vadd.f32 %v984, %v970
    %v986 = vadd.f32 %v985, %v971
    %v987 = vadd.f32 %v986, %v972
    %v988 = vrot.slane %v987, 4
    %v989 = vadd.f32 %v987, %v988
    %v990 = vrot.slane %v989, 2
    %v991 = vadd.f32 %v989, %v990
    %v992 = vrot.slane %v991, 1
    %v993 = vadd.f32 %v991, %v992
    %v994 = vrcp.pop 64.0
    %v995 = vmul.f32 %v993, %v994
    %996 = vst [vmem:[#allocation2] sm:$0x1] %v995
    %v997 = vadd.f32 %v973, %v974
    %v998 = vadd.f32 %v997, %v975
    %v999 = vadd.f32 %v998, %v976
    %v1000 = vadd.f32 %v999, %v977
    %v1001 = vadd.f32 %v1000, %v978
    %v1002 = vadd.f32 %v1001, %v979
    %v1003 = vadd.f32 %v1002, %v980
    %v1004 = vrot.slane %v1003, 4
    %v1005 = vadd.f32 %v1003, %v1004
    %v1006 = vrot.slane %v1005, 2
    %v1007 = vadd.f32 %v1005, %v1006
    %v1008 = vrot.slane %v1007, 1
    %v1009 = vadd.f32 %v1007, %v1008
    %v1010 = vmul.f32 %v1009, %v994
    %1011 = vst [vmem:[#allocation2 + $0x1] sm:$0x1] %v1010
    // Predicated region
    $region30: #{net_forward.5} parent=1 // pred_check
      _
    $region31: #{net_forward.5} parent=1 // pred_check_branch
      %1013 = sbr.rel (0) target = $region33
    $region32: #{net_forward.5} parent=1 // pred_region
      %s1015 = ssub.s32 32, 32
      %1016 = vsyncadd [#allocation3], %s1015
      %s1018 = sshll.u32 [#allocation2], 4
      %s1019 = int_to_ptr.vmem [resolvable:$true] %s1018
      %1021 = dma.vmem_to_hbm [thread:$0]  %s1019, 32, %s7, [#allocation3]
    $region33: #{net_forward.5} parent=1 // pred_fallthru
      _
    // Predicated region
    $region34: #{net_forward.5} parent=1 // pred_check
      _
    $region35: #{net_forward.5} parent=1 // pred_check_branch
      %1023 = sbr.rel (0) target = $region37
    $region36: #{net_forward.5} parent=1 // pred_region
      %1024 = dma.done [#allocation3], 32
    $region37: #{net_forward.5} parent=1 // pred_fallthru
      _
    %1025 = vsyncpa [#allocation3], 1

</llo_original>
